<compile_context>
chip_gen: v7x
topology: tpu7x:2x2x1
jax: 0.10.0
libtpu: 0.0.40
codegen_flags: <defaults>
</compile_context>

<pallas_src>
import functools

import jax
import jax.numpy as jnp
from jax import lax
from jax.experimental import pallas as pl
from jax.experimental.pallas import tpu as pltpu

THETA_PAD = 128                       # theta rows padded to a full 128-lane vector
_VMEM_LIMIT = 32 * 1024 * 1024        # raises v5e's ~16 MiB scoped default; == v6e/v7x default


# ---------------------------------------------------------------------------
# Host-side builders for static selection / shift matrices (shape-only, built
# once per call, VMEM-resident across grid steps via constant index_maps).
# ---------------------------------------------------------------------------

def _pool_selectors(h, w, post=None):
    """Concatenated 2x2/stride-2 max-pool window selectors: (h*w, 4*cols)."""
    ho, wo = h // 2, w // 2
    pin = h * w
    oy, ox = jnp.meshgrid(jnp.arange(ho), jnp.arange(wo), indexing="ij")
    oy = oy.reshape(-1)
    ox = ox.reshape(-1)                                    # (pout,)
    s = jnp.arange(pin)[:, None]                           # (pin, 1)
    mats = []
    for ky in (0, 1):
        for kx in (0, 1):
            src = (2 * oy + ky) * w + (2 * ox + kx)        # (pout,)
            m = (s == src[None, :]).astype(jnp.float32)    # (pin, pout)
            if post is not None:                           # fuse a right-matrix (Expand)
                m = m @ post
            mats.append(m)
    return jnp.concatenate(mats, axis=1)


def _conv_taps(h, w):
    """25 shift matrices for a 5x5 / pad=2 conv on an (h, w) grid: (25, p, p)."""
    p = h * w
    oy, ox = jnp.meshgrid(jnp.arange(h), jnp.arange(w), indexing="ij")
    oy = oy.reshape(-1)
    ox = ox.reshape(-1)
    s = jnp.arange(p)[:, None]
    taps = []
    for ky in range(5):
        for kx in range(5):
            sy = oy + (ky - 2)
            sx = ox + (kx - 2)
            valid = (sy >= 0) & (sy < h) & (sx >= 0) & (sx < w)
            src = jnp.where(valid, sy * w + sx, -1)
            taps.append((s == src[None, :]).astype(jnp.float32))
    return jnp.stack(taps, axis=0)


def _blockdiag_conv_w(conv_w, B):
    """(cout, cin, 5, 5) -> (25, B*cout, B*cin) block-diagonal per-tap weights."""
    cout, cin = conv_w.shape[0], conv_w.shape[1]
    wt = conv_w.transpose(2, 3, 0, 1).reshape(25, cout, cin)
    eye = jnp.eye(B, dtype=jnp.float32)
    wbd = jnp.einsum("bd,toi->tbodi", eye, wt.astype(jnp.float32))
    return wbd.reshape(25, B * cout, B * cin)


def _vec_helpers(B, L1, P3):
    """Matrices for the channel-major flatten of the (B*L1, P3) pooled features."""
    F = L1 * P3
    # Expand (P3, F): column c*P3+q is one-hot on row q (for every c)
    q = jnp.arange(P3)[:, None]
    col_q = jnp.tile(jnp.arange(P3), L1)[None, :]
    expand = (q == col_q).astype(jnp.float32)
    # RowMask (B*L1, F): row b*L1+c keeps only the columns belonging to channel c
    row_c = jnp.tile(jnp.arange(L1), B)[:, None]
    col_c = jnp.repeat(jnp.arange(L1), P3)[None, :]
    rowmask = (row_c == col_c).astype(jnp.float32)
    # OnesB (B, B*L1): sums the L1 rows of image b
    rb = jnp.arange(B)[:, None]
    cb = jnp.repeat(jnp.arange(B), L1)[None, :]
    onesb = (rb == cb).astype(jnp.float32)
    return expand, rowmask, onesb


def _expanders(H, W):
    """E_y (P, H), E_x (P, W): replicate per-row / per-column weights to flat pixels."""
    P = H * W
    r = jnp.arange(P)[:, None]
    ey = ((r // W) == jnp.arange(H)[None, :]).astype(jnp.float32)
    ex = ((r % W) == jnp.arange(W)[None, :]).astype(jnp.float32)
    return ey, ex


def _pick_batch_block(N, C, cap=32):
    """Largest divisor B of N (<= cap) such that the (B*C, P0) input block and the
    (B, 128) theta block both satisfy the TPU (8,128) block constraints."""
    best = N  # whole batch in one step always satisfies "block == full array"
    for b in range(1, min(N, cap) + 1):
        if N % b:
            continue
        ok_in = ((b * C) % 8 == 0) or (b == N)
        ok_out = (b % 8 == 0) or (b == N)
        if ok_in and ok_out:
            best = b
    return best


def _pick_tp(P, cap=256):
    """Output-pixel tile: largest 128-multiple divisor of P <= cap, else P."""
    if P <= cap:
        return P
    tp = (cap // 128) * 128
    while tp >= 128:
        if P % tp == 0:
            return tp
        tp -= 128
    return P  # no lane-aligned divisor: fall back to one untiled row (still correct)


# ---------------------------------------------------------------------------
# Kernel 1: fused localization network -> theta (lane-dense, padded to 128)
# ---------------------------------------------------------------------------

def _pool_max(m, pout):
    """m = activations @ concatenated-pool-selector: max over the 4 lane groups."""
    return jnp.maximum(jnp.maximum(m[:, 0:pout], m[:, pout:2 * pout]),
                       jnp.maximum(m[:, 2 * pout:3 * pout], m[:, 3 * pout:4 * pout]))


def _conv5x5_relu(v, taps_ref, wbd_ref, b_ref):
    """5x5 conv (pad=2) + ReLU: 25 precomputed shift matrices + block-diag weights."""
    acc = None
    for t in range(25):
        sh = jnp.dot(v, taps_ref[t], preferred_element_type=jnp.float32)      # (B*cin, p)
        part = jnp.dot(wbd_ref[t], sh, preferred_element_type=jnp.float32)    # (B*cout, p)
        acc = part if acc is None else acc + part
    return jnp.maximum(acc + b_ref[...], 0.0)


def _loc_kernel(x_ref, p1_ref, t1_ref, w1_ref, b1_ref,
                p2_ref, t2_ref, w2_ref, b2_ref,
                p3e_ref, rm_ref, ob_ref,
                fc1_ref, fc1b_ref, fc2_ref, fc2b_ref,
                o_ref, *, P1, P2, F):
    v = x_ref[...].astype(jnp.float32)                                         # (B*C, P0)
    a0 = _pool_max(jnp.dot(v, p1_ref[...], preferred_element_type=jnp.float32), P1)
    a1 = _conv5x5_relu(a0, t1_ref, w1_ref, b1_ref)                             # (B*L0, P1)
    a2 = _pool_max(jnp.dot(a1, p2_ref[...], preferred_element_type=jnp.float32), P2)
    a3 = _conv5x5_relu(a2, t2_ref, w2_ref, b2_ref)                             # (B*L1, P2)
    # last pool fused with the channel-major Expand: (B*L1, F), F = L1*P3
    a4e = _pool_max(jnp.dot(a3, p3e_ref[...], preferred_element_type=jnp.float32), F)
    # single contraction replacing the old per-channel one-hot loop:
    # flat[b, c*P3+q] = pooled[b, c, q]
    flat = jnp.dot(ob_ref[...], rm_ref[...] * a4e,
                   preferred_element_type=jnp.float32)                         # (B, F)
    hp = jnp.maximum(jnp.dot(flat, fc1_ref[...],
                             preferred_element_type=jnp.float32) + fc1b_ref[...], 0.0)
    th = jnp.dot(hp, fc2_ref[...], preferred_element_type=jnp.float32) + fc2b_ref[...]
    o_ref[...] = th.astype(o_ref.dtype)                                        # (B, 128)


def localization_theta(x, p, *, batch_block=None):
    """Fused localization net.  Returns theta padded to (N, 128); cols 0..5 valid."""
    N, C, H, W = x.shape
    assert H % 8 == 0 and W % 8 == 0, "localization net needs H, W divisible by 8"
    L0 = p["conv1_w"].shape[0]
    L1 = p["conv2_w"].shape[0]
    L2 = p["fc1_w"].shape[0]
    h1, w1 = H // 2, W // 2
    h2, w2 = h1 // 2, w1 // 2
    h3, w3 = h2 // 2, w2 // 2
    P0, P1, P2, P3 = H * W, h1 * w1, h2 * w2, h3 * w3
    F = L1 * P3

    B = batch_block if batch_block is not None else _pick_batch_block(N, C)
    assert N % B == 0
    G = N // B

    # static, shape-only matrices (VMEM resident across grid steps)
    expand, rowmask, onesb = _vec_helpers(B, L1, P3)
    p1 = _pool_selectors(H, W)                              # (P0, 4*P1)
    p2 = _pool_selectors(h1, w1)                            # (P1, 4*P2)
    p3e = _pool_selectors(h2, w2, post=expand)              # (P2, 4*F)
    t1 = _conv_taps(h1, w1)                                 # (25, P1, P1)
    t2 = _conv_taps(h2, w2)                                 # (25, P2, P2)

    # parameters reshaped for the kernel
    w1bd = _blockdiag_conv_w(p["conv1_w"], B)               # (25, B*L0, B*C)
    b1c = jnp.tile(p["conv1_b"].astype(jnp.float32), B).reshape(B * L0, 1)
    w2bd = _blockdiag_conv_w(p["conv2_w"], B)               # (25, B*L1, B*L0)
    b2c = jnp.tile(p["conv2_b"].astype(jnp.float32), B).reshape(B * L1, 1)
    fc1w = p["fc1_w"].astype(jnp.float32).T                 # (F, L2)
    fc1b = p["fc1_b"].astype(jnp.float32).reshape(1, L2)
    fc2w = jnp.zeros((L2, THETA_PAD), jnp.float32).at[:, :6].set(
        p["fc2_w"].astype(jnp.float32).T)                   # lane-dense theta output
    fc2b = jnp.zeros((1, THETA_PAD), jnp.float32).at[0, :6].set(
        p["fc2_b"].astype(jnp.float32))

    x2 = x.reshape(N * C, P0)                               # free reshape, no transpose

    kern = functools.partial(_loc_kernel, P1=P1, P2=P2, F=F)
    return pl.pallas_call(
        kern,
        grid=(G,),
        in_specs=[
            pl.BlockSpec((B * C, P0), lambda n: (n, 0)),
            pl.BlockSpec(p1.shape, lambda n: (0, 0)),
            pl.BlockSpec(t1.shape, lambda n: (0, 0, 0)),
            pl.BlockSpec(w1bd.shape, lambda n: (0, 0, 0)),
            pl.BlockSpec(b1c.shape, lambda n: (0, 0)),
            pl.BlockSpec(p2.shape, lambda n: (0, 0)),
            pl.BlockSpec(t2.shape, lambda n: (0, 0, 0)),
            pl.BlockSpec(w2bd.shape, lambda n: (0, 0, 0)),
            pl.BlockSpec(b2c.shape, lambda n: (0, 0)),
            pl.BlockSpec(p3e.shape, lambda n: (0, 0)),
            pl.BlockSpec(rowmask.shape, lambda n: (0, 0)),
            pl.BlockSpec(onesb.shape, lambda n: (0, 0)),
            pl.BlockSpec(fc1w.shape, lambda n: (0, 0)),
            pl.BlockSpec(fc1b.shape, lambda n: (0, 0)),
            pl.BlockSpec(fc2w.shape, lambda n: (0, 0)),
            pl.BlockSpec(fc2b.shape, lambda n: (0, 0)),
        ],
        out_specs=pl.BlockSpec((B, THETA_PAD), lambda n: (n, 0)),
        out_shape=jax.ShapeDtypeStruct((N, THETA_PAD), jnp.float32),
        compiler_params=pltpu.CompilerParams(
            dimension_semantics=("parallel",),
            vmem_limit_bytes=_VMEM_LIMIT),
    )(x2, p1, t1, w1bd, b1c, p2, t2, w2bd, b2c,
      p3e, rowmask, onesb, fc1w, fc1b, fc2w, fc2b)


# ---------------------------------------------------------------------------
# Kernel 2: affine_grid + bilinear grid_sample (align_corners=True, zeros pad)
#           with separable (y / x) interpolation matrices and SMEM theta.
# ---------------------------------------------------------------------------

def _sample_kernel(theta_ref, xs_ref, ys_ref, img_ref, ey_ref, ex_ref, o_ref, *, H, W):
    n = pl.program_id(0)
    t0 = theta_ref[n, 0]
    t1 = theta_ref[n, 1]
    t2 = theta_ref[n, 2]
    t3 = theta_ref[n, 3]
    t4 = theta_ref[n, 4]
    t5 = theta_ref[n, 5]

    xs = xs_ref[...]                       # (1, TP) base normalized x of this tile
    ys = ys_ref[...]                       # (1, TP)
    gx = t0 * xs + t1 * ys + t2
    gy = t3 * xs + t4 * ys + t5
    ix = (gx + 1.0) * (0.5 * (W - 1))
    iy = (gy + 1.0) * (0.5 * (H - 1))
    x0 = jnp.floor(ix)
    y0 = jnp.floor(iy)
    wx1 = ix - x0
    wx0 = 1.0 - wx1
    wy1 = iy - y0
    wy0 = 1.0 - wy1

    tp = xs.shape[-1]
    ry = lax.broadcasted_iota(jnp.int32, (H, tp), 0).astype(jnp.float32)
    rx = lax.broadcasted_iota(jnp.int32, (W, tp), 0).astype(jnp.float32)
    # Separable bilinear weights; OOB corners (y0<0, y1>H-1, x0<0, x1>W-1) simply
    # never match a row, reproducing grid_sample's zero padding exactly.
    sy = jnp.where(ry == y0, wy0, 0.0) + jnp.where(ry == (y0 + 1.0), wy1, 0.0)   # (H, TP)
    sx = jnp.where(rx == x0, wx0, 0.0) + jnp.where(rx == (x0 + 1.0), wx1, 0.0)   # (W, TP)

    # Expand to source-pixel rows on the MXU, combine with one VPU multiply.
    s_t = (jnp.dot(ey_ref[...], sy, preferred_element_type=jnp.float32)
           * jnp.dot(ex_ref[...], sx, preferred_element_type=jnp.float32))        # (P, TP)
    out = jnp.dot(img_ref[0].astype(jnp.float32), s_t,
                  preferred_element_type=jnp.float32)                             # (C, TP)
    o_ref[0] = out.astype(o_ref.dtype)


def spatial_transform(x, theta_pad):
    """F.affine_grid + F.grid_sample (bilinear, align_corners=True, zeros padding)."""
    N, C, H, W = x.shape
    P = H * W
    TP = _pick_tp(P)                       # keeps the (P, TP) slab small on v5e/v7x VMEM

    xl = jnp.linspace(-1.0, 1.0, W, dtype=jnp.float32)
    yl = jnp.linspace(-1.0, 1.0, H, dtype=jnp.float32)
    xs = jnp.tile(xl, H).reshape(1, P)
    ys = jnp.repeat(yl, W).reshape(1, P)
    ey, ex = _expanders(H, W)
    img = x.reshape(N, C, P)               # natural NCHW flatten, no transpose

    kern = functools.partial(_sample_kernel, H=H, W=W)
    out = pl.pallas_call(
        kern,
        grid=(N, P // TP),
        in_specs=[
            pl.BlockSpec(memory_space=pltpu.MemorySpace.SMEM),   # theta (N, 128) in SMEM
            pl.BlockSpec((1, TP), lambda n, j: (0, j)),
            pl.BlockSpec((1, TP), lambda n, j: (0, j)),
            pl.BlockSpec((1, C, P), lambda n, j: (n, 0, 0)),
            pl.BlockSpec(ey.shape, lambda n, j: (0, 0)),
            pl.BlockSpec(ex.shape, lambda n, j: (0, 0)),
        ],
        out_specs=pl.BlockSpec((1, C, TP), lambda n, j: (n, 0, j)),
        out_shape=jax.ShapeDtypeStruct((N, C, P), x.dtype),
        compiler_params=pltpu.CompilerParams(
            dimension_semantics=("parallel", "arbitrary"),
            vmem_limit_bytes=_VMEM_LIMIT),
    )(theta_pad, xs, ys, img, ey, ex)
    return out.reshape(N, C, H, W)


# ---------------------------------------------------------------------------
# Module: parameters + forward
# ---------------------------------------------------------------------------

def init_params(key, input_sizes, loc_net_sizes):
    Cin, H = input_sizes
    L0, L1, L2 = loc_net_sizes
    F = L1 * (H // 2 // 2 // 2) ** 2
    k = jax.random.split(key, 6)
    return {
        "conv1_w": 0.05 * jax.random.normal(k[0], (L0, Cin, 5, 5), jnp.float32),
        "conv1_b": 0.05 * jax.random.normal(k[1], (L0,), jnp.float32),
        "conv2_w": 0.05 * jax.random.normal(k[2], (L1, L0, 5, 5), jnp.float32),
        "conv2_b": 0.05 * jax.random.normal(k[3], (L1,), jnp.float32),
        "fc1_w": 0.05 * jax.random.normal(k[4], (L2, F), jnp.float32),
        "fc1_b": 0.05 * jax.random.normal(k[5], (L2,), jnp.float32),
        # Matches the PyTorch __init__: last linear zeroed, bias = identity affine.
        "fc2_w": jnp.zeros((6, L2), jnp.float32),
        "fc2_b": jnp.array([1, 0, 0, 0, 1, 0], jnp.float32),
    }


def st_forward(x, p, *, batch_block=None):
    theta_pad = localization_theta(x, p, batch_block=batch_block)   # (N, 128)
    return spatial_transform(x, theta_pad)


# ---------------------------------------------------------------------------
# Pure-JAX reference (validation only)
# ---------------------------------------------------------------------------

def _ref_loc_features(x, p):
    def maxpool(v):
        return lax.reduce_window(v, -jnp.inf, lax.max, (1, 1, 2, 2), (1, 1, 2, 2), "VALID")

    def conv(v, w, b):
        y = lax.conv_general_dilated(v, w, (1, 1), ((2, 2), (2, 2)),
                                     dimension_numbers=("NCHW", "OIHW", "NCHW"),
                                     precision=lax.Precision.HIGHEST)
        return y + b[None, :, None, None]

    h = maxpool(x)
    h = jnp.maximum(conv(h, p["conv1_w"], p["conv1_b"]), 0.0)
    h = maxpool(h)
    h = jnp.maximum(conv(h, p["conv2_w"], p["conv2_b"]), 0.0)
    h = maxpool(h)
    return h.reshape(h.shape[0], -1)


def _ref_theta(x, p):
    f = _ref_loc_features(x, p)
    h = jnp.maximum(f @ p["fc1_w"].T + p["fc1_b"], 0.0)
    return h @ p["fc2_w"].T + p["fc2_b"]


def st_forward_ref(x, p):
    theta = _ref_theta(x, p)
    N, C, H, W = x.shape
    xl = jnp.linspace(-1.0, 1.0, W)
    yl = jnp.linspace(-1.0, 1.0, H)
    xx = jnp.broadcast_to(xl[None, :], (H, W))
    yy = jnp.broadcast_to(yl[:, None], (H, W))
    outs = []
    for n in range(N):
        t = theta[n]
        gx = t[0] * xx + t[1] * yy + t[2]
        gy = t[3] * xx + t[4] * yy + t[5]
        ix = (gx + 1.0) * 0.5 * (W - 1)
        iy = (gy + 1.0) * 0.5 * (H - 1)
        x0 = jnp.floor(ix); y0 = jnp.floor(iy)
        x1 = x0 + 1.0; y1 = y0 + 1.0
        wx1 = ix - x0; wx0 = 1.0 - wx1
        wy1 = iy - y0; wy0 = 1.0 - wy1

        def tap(xc, yc):
            inb = (xc >= 0) & (xc <= W - 1) & (yc >= 0) & (yc <= H - 1)
            xi = jnp.clip(xc, 0, W - 1).astype(jnp.int32)
            yi = jnp.clip(yc, 0, H - 1).astype(jnp.int32)
            v = x[n][:, yi, xi]
            return jnp.where(inb[None], v, 0.0)

        o = (tap(x0, y0) * (wx0 * wy0)[None] + tap(x1, y0) * (wx1 * wy0)[None]
             + tap(x0, y1) * (wx0 * wy1)[None] + tap(x1, y1) * (wx1 * wy1)[None])
        outs.append(o)
    return jnp.stack(outs, axis=0)


# ---------------------------------------------------------------------------

if __name__ == "__main__":
    input_sizes = (4, 16)       # (channels, spatial size)
    loc_net_sizes = (8, 8, 32)  # (loc conv1 ch, loc conv2 ch, loc fc hidden)

    key = jax.random.PRNGKey(0)
    kx, kp, kt = jax.random.split(key, 3)
    x = jax.random.normal(kx, (2, input_sizes[0], input_sizes[1], input_sizes[1]),
                          dtype=jnp.float32)
    params = init_params(kp, input_sizes, loc_net_sizes)

    # forward with the module's own init (fc2 weight zero, identity bias)
    out = jax.block_until_ready(st_forward(x, params))
    assert out.shape == x.shape

    # validation variant with a non-zero final linear so the whole localization
    # path + sampler are actually exercised.
    params_t = dict(params)
    params_t["fc2_w"] = 0.1 * jax.random.normal(kt, params["fc2_w"].shape, jnp.float32)

    theta = localization_theta(x, params_t)[:, :6]
    theta_ref = _ref_theta(x, params_t)
    out_t = st_forward(x, params_t)
    ref_t = st_forward_ref(x, params_t)
    ref_0 = st_forward_ref(x, params)

    assert jnp.allclose(theta, theta_ref, rtol=5e-3, atol=5e-3), \
        float(jnp.max(jnp.abs(theta - theta_ref)))
    assert jnp.allclose(out_t, ref_t, rtol=5e-3, atol=5e-3), \
        float(jnp.max(jnp.abs(out_t - ref_t)))
    assert jnp.allclose(out, ref_0, rtol=5e-3, atol=5e-3), \
        float(jnp.max(jnp.abs(out - ref_0)))

    print("KERNEL_OK")
</pallas_src>

<mosaic_0001>
module attributes {stable_mosaic.version = 11 : i64} {
  func.func @_loc_kernel(%arg0: i32, %arg1: memref<8x256xf32, #tpu.memory_space<vmem>>, %arg2: memref<256x256xf32, #tpu.memory_space<vmem>>, %arg3: memref<25x64x64xf32, #tpu.memory_space<vmem>>, %arg4: memref<25x16x8xf32, #tpu.memory_space<vmem>>, %arg5: memref<16x1xf32, #tpu.memory_space<vmem>>, %arg6: memref<64x64xf32, #tpu.memory_space<vmem>>, %arg7: memref<25x16x16xf32, #tpu.memory_space<vmem>>, %arg8: memref<25x16x16xf32, #tpu.memory_space<vmem>>, %arg9: memref<16x1xf32, #tpu.memory_space<vmem>>, %arg10: memref<16x128xf32, #tpu.memory_space<vmem>>, %arg11: memref<16x32xf32, #tpu.memory_space<vmem>>, %arg12: memref<2x16xf32, #tpu.memory_space<vmem>>, %arg13: memref<32x32xf32, #tpu.memory_space<vmem>>, %arg14: memref<1x32xf32, #tpu.memory_space<vmem>>, %arg15: memref<32x128xf32, #tpu.memory_space<vmem>>, %arg16: memref<1x128xf32, #tpu.memory_space<vmem>>, %arg17: memref<2x128xf32, #tpu.memory_space<vmem>>) attributes {dimension_semantics = [#tpu.dimension_semantics<parallel>], iteration_bounds = array<i64: 1>, scalar_prefetch = 0 : i64, scratch_operands = 0 : i64, tpu.core_type = #tpu.core_type<tc>, window_params = [{transform_indices = @transform_0, window_bounds = array<i64: 8, 256>}, {pipeline_mode = #tpu.pipeline_mode<synchronous>, transform_indices = @transform_1, window_bounds = array<i64: 256, 256>}, {pipeline_mode = #tpu.pipeline_mode<synchronous>, transform_indices = @transform_2, window_bounds = array<i64: 25, 64, 64>}, {pipeline_mode = #tpu.pipeline_mode<synchronous>, transform_indices = @transform_3, window_bounds = array<i64: 25, 16, 8>}, {pipeline_mode = #tpu.pipeline_mode<synchronous>, transform_indices = @transform_4, window_bounds = array<i64: 16, 1>}, {pipeline_mode = #tpu.pipeline_mode<synchronous>, transform_indices = @transform_5, window_bounds = array<i64: 64, 64>}, {pipeline_mode = #tpu.pipeline_mode<synchronous>, transform_indices = @transform_6, window_bounds = array<i64: 25, 16, 16>}, {pipeline_mode = #tpu.pipeline_mode<synchronous>, transform_indices = @transform_7, window_bounds = array<i64: 25, 16, 16>}, {pipeline_mode = #tpu.pipeline_mode<synchronous>, transform_indices = @transform_8, window_bounds = array<i64: 16, 1>}, {pipeline_mode = #tpu.pipeline_mode<synchronous>, transform_indices = @transform_9, window_bounds = array<i64: 16, 128>}, {pipeline_mode = #tpu.pipeline_mode<synchronous>, transform_indices = @transform_10, window_bounds = array<i64: 16, 32>}, {pipeline_mode = #tpu.pipeline_mode<synchronous>, transform_indices = @transform_11, window_bounds = array<i64: 2, 16>}, {pipeline_mode = #tpu.pipeline_mode<synchronous>, transform_indices = @transform_12, window_bounds = array<i64: 32, 32>}, {pipeline_mode = #tpu.pipeline_mode<synchronous>, transform_indices = @transform_13, window_bounds = array<i64: 1, 32>}, {pipeline_mode = #tpu.pipeline_mode<synchronous>, transform_indices = @transform_14, window_bounds = array<i64: 32, 128>}, {pipeline_mode = #tpu.pipeline_mode<synchronous>, transform_indices = @transform_15, window_bounds = array<i64: 1, 128>}, {transform_indices = @transform_16, window_bounds = array<i64: 2, 128>}]} {
    %c0 = arith.constant 0 : index
    %c0_0 = arith.constant 0 : index
    %0 = vector.load %arg1[%c0, %c0_0] : memref<8x256xf32, #tpu.memory_space<vmem>>, vector<8x256xf32>
    %c0_1 = arith.constant 0 : index
    %c0_2 = arith.constant 0 : index
    %1 = vector.load %arg2[%c0_1, %c0_2] : memref<256x256xf32, #tpu.memory_space<vmem>>, vector<256x256xf32>
    %cst = arith.constant dense<0.000000e+00> : vector<8x256xf32>
    %2 = tpu.matmul %0, %1, %cst {dimension_numbers = #tpu.dot_dimension_numbers<[1], [0], [0], [1], [0, 0, 1, 1], [], []>} : vector<8x256xf32>, vector<256x256xf32>, vector<8x256xf32> -> vector<8x256xf32>
    %3 = vector.extract_strided_slice %2 {offsets = [0, 0], sizes = [8, 64], strides = [1, 1]} : vector<8x256xf32> to vector<8x64xf32>
    %4 = vector.extract_strided_slice %2 {offsets = [0, 64], sizes = [8, 64], strides = [1, 1]} : vector<8x256xf32> to vector<8x64xf32>
    %5 = arith.maximumf %3, %4 : vector<8x64xf32>
    %6 = vector.extract_strided_slice %2 {offsets = [0, 128], sizes = [8, 64], strides = [1, 1]} : vector<8x256xf32> to vector<8x64xf32>
    %7 = vector.extract_strided_slice %2 {offsets = [0, 192], sizes = [8, 64], strides = [1, 1]} : vector<8x256xf32> to vector<8x64xf32>
    %8 = arith.maximumf %6, %7 : vector<8x64xf32>
    %9 = arith.maximumf %5, %8 : vector<8x64xf32>
    %c0_3 = arith.constant 0 : index
    %c0_4 = arith.constant 0 : index
    %c0_5 = arith.constant 0 : index
    %10 = vector.load %arg3[%c0_3, %c0_4, %c0_5] : memref<25x64x64xf32, #tpu.memory_space<vmem>>, vector<1x64x64xf32>
    %11 = vector.shape_cast %10 : vector<1x64x64xf32> to vector<64x64xf32>
    %cst_6 = arith.constant dense<0.000000e+00> : vector<8x64xf32>
    %12 = tpu.matmul %9, %11, %cst_6 {dimension_numbers = #tpu.dot_dimension_numbers<[1], [0], [0], [1], [0, 0, 1, 1], [], []>} : vector<8x64xf32>, vector<64x64xf32>, vector<8x64xf32> -> vector<8x64xf32>
    %c0_7 = arith.constant 0 : index
    %c0_8 = arith.constant 0 : index
    %c0_9 = arith.constant 0 : index
    %13 = vector.load %arg4[%c0_7, %c0_8, %c0_9] : memref<25x16x8xf32, #tpu.memory_space<vmem>>, vector<1x16x8xf32>
    %14 = vector.shape_cast %13 : vector<1x16x8xf32> to vector<16x8xf32>
    %cst_10 = arith.constant dense<0.000000e+00> : vector<16x64xf32>
    %15 = tpu.matmul %14, %12, %cst_10 {dimension_numbers = #tpu.dot_dimension_numbers<[1], [0], [0], [1], [0, 0, 1, 1], [], []>} : vector<16x8xf32>, vector<8x64xf32>, vector<16x64xf32> -> vector<16x64xf32>
    %c1 = arith.constant 1 : index
    %c0_11 = arith.constant 0 : index
    %c0_12 = arith.constant 0 : index
    %16 = vector.load %arg3[%c1, %c0_11, %c0_12] : memref<25x64x64xf32, #tpu.memory_space<vmem>>, vector<1x64x64xf32>
    %17 = vector.shape_cast %16 : vector<1x64x64xf32> to vector<64x64xf32>
    %cst_13 = arith.constant dense<0.000000e+00> : vector<8x64xf32>
    %18 = tpu.matmul %9, %17, %cst_13 {dimension_numbers = #tpu.dot_dimension_numbers<[1], [0], [0], [1], [0, 0, 1, 1], [], []>} : vector<8x64xf32>, vector<64x64xf32>, vector<8x64xf32> -> vector<8x64xf32>
    %c1_14 = arith.constant 1 : index
    %c0_15 = arith.constant 0 : index
    %c0_16 = arith.constant 0 : index
    %19 = vector.load %arg4[%c1_14, %c0_15, %c0_16] : memref<25x16x8xf32, #tpu.memory_space<vmem>>, vector<1x16x8xf32>
    %20 = vector.shape_cast %19 : vector<1x16x8xf32> to vector<16x8xf32>
    %cst_17 = arith.constant dense<0.000000e+00> : vector<16x64xf32>
    %21 = tpu.matmul %20, %18, %cst_17 {dimension_numbers = #tpu.dot_dimension_numbers<[1], [0], [0], [1], [0, 0, 1, 1], [], []>} : vector<16x8xf32>, vector<8x64xf32>, vector<16x64xf32> -> vector<16x64xf32>
    %22 = arith.addf %15, %21 : vector<16x64xf32>
    %c2 = arith.constant 2 : index
    %c0_18 = arith.constant 0 : index
    %c0_19 = arith.constant 0 : index
    %23 = vector.load %arg3[%c2, %c0_18, %c0_19] : memref<25x64x64xf32, #tpu.memory_space<vmem>>, vector<1x64x64xf32>
    %24 = vector.shape_cast %23 : vector<1x64x64xf32> to vector<64x64xf32>
    %cst_20 = arith.constant dense<0.000000e+00> : vector<8x64xf32>
    %25 = tpu.matmul %9, %24, %cst_20 {dimension_numbers = #tpu.dot_dimension_numbers<[1], [0], [0], [1], [0, 0, 1, 1], [], []>} : vector<8x64xf32>, vector<64x64xf32>, vector<8x64xf32> -> vector<8x64xf32>
    %c2_21 = arith.constant 2 : index
    %c0_22 = arith.constant 0 : index
    %c0_23 = arith.constant 0 : index
    %26 = vector.load %arg4[%c2_21, %c0_22, %c0_23] : memref<25x16x8xf32, #tpu.memory_space<vmem>>, vector<1x16x8xf32>
    %27 = vector.shape_cast %26 : vector<1x16x8xf32> to vector<16x8xf32>
    %cst_24 = arith.constant dense<0.000000e+00> : vector<16x64xf32>
    %28 = tpu.matmul %27, %25, %cst_24 {dimension_numbers = #tpu.dot_dimension_numbers<[1], [0], [0], [1], [0, 0, 1, 1], [], []>} : vector<16x8xf32>, vector<8x64xf32>, vector<16x64xf32> -> vector<16x64xf32>
    %29 = arith.addf %22, %28 : vector<16x64xf32>
    %c3 = arith.constant 3 : index
    %c0_25 = arith.constant 0 : index
    %c0_26 = arith.constant 0 : index
    %30 = vector.load %arg3[%c3, %c0_25, %c0_26] : memref<25x64x64xf32, #tpu.memory_space<vmem>>, vector<1x64x64xf32>
    %31 = vector.shape_cast %30 : vector<1x64x64xf32> to vector<64x64xf32>
    %cst_27 = arith.constant dense<0.000000e+00> : vector<8x64xf32>
    %32 = tpu.matmul %9, %31, %cst_27 {dimension_numbers = #tpu.dot_dimension_numbers<[1], [0], [0], [1], [0, 0, 1, 1], [], []>} : vector<8x64xf32>, vector<64x64xf32>, vector<8x64xf32> -> vector<8x64xf32>
    %c3_28 = arith.constant 3 : index
    %c0_29 = arith.constant 0 : index
    %c0_30 = arith.constant 0 : index
    %33 = vector.load %arg4[%c3_28, %c0_29, %c0_30] : memref<25x16x8xf32, #tpu.memory_space<vmem>>, vector<1x16x8xf32>
    %34 = vector.shape_cast %33 : vector<1x16x8xf32> to vector<16x8xf32>
    %cst_31 = arith.constant dense<0.000000e+00> : vector<16x64xf32>
    %35 = tpu.matmul %34, %32, %cst_31 {dimension_numbers = #tpu.dot_dimension_numbers<[1], [0], [0], [1], [0, 0, 1, 1], [], []>} : vector<16x8xf32>, vector<8x64xf32>, vector<16x64xf32> -> vector<16x64xf32>
    %36 = arith.addf %29, %35 : vector<16x64xf32>
    %c4 = arith.constant 4 : index
    %c0_32 = arith.constant 0 : index
    %c0_33 = arith.constant 0 : index
    %37 = vector.load %arg3[%c4, %c0_32, %c0_33] : memref<25x64x64xf32, #tpu.memory_space<vmem>>, vector<1x64x64xf32>
    %38 = vector.shape_cast %37 : vector<1x64x64xf32> to vector<64x64xf32>
    %cst_34 = arith.constant dense<0.000000e+00> : vector<8x64xf32>
    %39 = tpu.matmul %9, %38, %cst_34 {dimension_numbers = #tpu.dot_dimension_numbers<[1], [0], [0], [1], [0, 0, 1, 1], [], []>} : vector<8x64xf32>, vector<64x64xf32>, vector<8x64xf32> -> vector<8x64xf32>
    %c4_35 = arith.constant 4 : index
    %c0_36 = arith.constant 0 : index
    %c0_37 = arith.constant 0 : index
    %40 = vector.load %arg4[%c4_35, %c0_36, %c0_37] : memref<25x16x8xf32, #tpu.memory_space<vmem>>, vector<1x16x8xf32>
    %41 = vector.shape_cast %40 : vector<1x16x8xf32> to vector<16x8xf32>
    %cst_38 = arith.constant dense<0.000000e+00> : vector<16x64xf32>
    %42 = tpu.matmul %41, %39, %cst_38 {dimension_numbers = #tpu.dot_dimension_numbers<[1], [0], [0], [1], [0, 0, 1, 1], [], []>} : vector<16x8xf32>, vector<8x64xf32>, vector<16x64xf32> -> vector<16x64xf32>
    %43 = arith.addf %36, %42 : vector<16x64xf32>
    %c5 = arith.constant 5 : index
    %c0_39 = arith.constant 0 : index
    %c0_40 = arith.constant 0 : index
    %44 = vector.load %arg3[%c5, %c0_39, %c0_40] : memref<25x64x64xf32, #tpu.memory_space<vmem>>, vector<1x64x64xf32>
    %45 = vector.shape_cast %44 : vector<1x64x64xf32> to vector<64x64xf32>
    %cst_41 = arith.constant dense<0.000000e+00> : vector<8x64xf32>
    %46 = tpu.matmul %9, %45, %cst_41 {dimension_numbers = #tpu.dot_dimension_numbers<[1], [0], [0], [1], [0, 0, 1, 1], [], []>} : vector<8x64xf32>, vector<64x64xf32>, vector<8x64xf32> -> vector<8x64xf32>
    %c5_42 = arith.constant 5 : index
    %c0_43 = arith.constant 0 : index
    %c0_44 = arith.constant 0 : index
    %47 = vector.load %arg4[%c5_42, %c0_43, %c0_44] : memref<25x16x8xf32, #tpu.memory_space<vmem>>, vector<1x16x8xf32>
    %48 = vector.shape_cast %47 : vector<1x16x8xf32> to vector<16x8xf32>
    %cst_45 = arith.constant dense<0.000000e+00> : vector<16x64xf32>
    %49 = tpu.matmul %48, %46, %cst_45 {dimension_numbers = #tpu.dot_dimension_numbers<[1], [0], [0], [1], [0, 0, 1, 1], [], []>} : vector<16x8xf32>, vector<8x64xf32>, vector<16x64xf32> -> vector<16x64xf32>
    %50 = arith.addf %43, %49 : vector<16x64xf32>
    %c6 = arith.constant 6 : index
    %c0_46 = arith.constant 0 : index
    %c0_47 = arith.constant 0 : index
    %51 = vector.load %arg3[%c6, %c0_46, %c0_47] : memref<25x64x64xf32, #tpu.memory_space<vmem>>, vector<1x64x64xf32>
    %52 = vector.shape_cast %51 : vector<1x64x64xf32> to vector<64x64xf32>
    %cst_48 = arith.constant dense<0.000000e+00> : vector<8x64xf32>
    %53 = tpu.matmul %9, %52, %cst_48 {dimension_numbers = #tpu.dot_dimension_numbers<[1], [0], [0], [1], [0, 0, 1, 1], [], []>} : vector<8x64xf32>, vector<64x64xf32>, vector<8x64xf32> -> vector<8x64xf32>
    %c6_49 = arith.constant 6 : index
    %c0_50 = arith.constant 0 : index
    %c0_51 = arith.constant 0 : index
    %54 = vector.load %arg4[%c6_49, %c0_50, %c0_51] : memref<25x16x8xf32, #tpu.memory_space<vmem>>, vector<1x16x8xf32>
    %55 = vector.shape_cast %54 : vector<1x16x8xf32> to vector<16x8xf32>
    %cst_52 = arith.constant dense<0.000000e+00> : vector<16x64xf32>
    %56 = tpu.matmul %55, %53, %cst_52 {dimension_numbers = #tpu.dot_dimension_numbers<[1], [0], [0], [1], [0, 0, 1, 1], [], []>} : vector<16x8xf32>, vector<8x64xf32>, vector<16x64xf32> -> vector<16x64xf32>
    %57 = arith.addf %50, %56 : vector<16x64xf32>
    %c7 = arith.constant 7 : index
    %c0_53 = arith.constant 0 : index
    %c0_54 = arith.constant 0 : index
    %58 = vector.load %arg3[%c7, %c0_53, %c0_54] : memref<25x64x64xf32, #tpu.memory_space<vmem>>, vector<1x64x64xf32>
    %59 = vector.shape_cast %58 : vector<1x64x64xf32> to vector<64x64xf32>
    %cst_55 = arith.constant dense<0.000000e+00> : vector<8x64xf32>
    %60 = tpu.matmul %9, %59, %cst_55 {dimension_numbers = #tpu.dot_dimension_numbers<[1], [0], [0], [1], [0, 0, 1, 1], [], []>} : vector<8x64xf32>, vector<64x64xf32>, vector<8x64xf32> -> vector<8x64xf32>
    %c7_56 = arith.constant 7 : index
    %c0_57 = arith.constant 0 : index
    %c0_58 = arith.constant 0 : index
    %61 = vector.load %arg4[%c7_56, %c0_57, %c0_58] : memref<25x16x8xf32, #tpu.memory_space<vmem>>, vector<1x16x8xf32>
    %62 = vector.shape_cast %61 : vector<1x16x8xf32> to vector<16x8xf32>
    %cst_59 = arith.constant dense<0.000000e+00> : vector<16x64xf32>
    %63 = tpu.matmul %62, %60, %cst_59 {dimension_numbers = #tpu.dot_dimension_numbers<[1], [0], [0], [1], [0, 0, 1, 1], [], []>} : vector<16x8xf32>, vector<8x64xf32>, vector<16x64xf32> -> vector<16x64xf32>
    %64 = arith.addf %57, %63 : vector<16x64xf32>
    %c8 = arith.constant 8 : index
    %c0_60 = arith.constant 0 : index
    %c0_61 = arith.constant 0 : index
    %65 = vector.load %arg3[%c8, %c0_60, %c0_61] : memref<25x64x64xf32, #tpu.memory_space<vmem>>, vector<1x64x64xf32>
    %66 = vector.shape_cast %65 : vector<1x64x64xf32> to vector<64x64xf32>
    %cst_62 = arith.constant dense<0.000000e+00> : vector<8x64xf32>
    %67 = tpu.matmul %9, %66, %cst_62 {dimension_numbers = #tpu.dot_dimension_numbers<[1], [0], [0], [1], [0, 0, 1, 1], [], []>} : vector<8x64xf32>, vector<64x64xf32>, vector<8x64xf32> -> vector<8x64xf32>
    %c8_63 = arith.constant 8 : index
    %c0_64 = arith.constant 0 : index
    %c0_65 = arith.constant 0 : index
    %68 = vector.load %arg4[%c8_63, %c0_64, %c0_65] : memref<25x16x8xf32, #tpu.memory_space<vmem>>, vector<1x16x8xf32>
    %69 = vector.shape_cast %68 : vector<1x16x8xf32> to vector<16x8xf32>
    %cst_66 = arith.constant dense<0.000000e+00> : vector<16x64xf32>
    %70 = tpu.matmul %69, %67, %cst_66 {dimension_numbers = #tpu.dot_dimension_numbers<[1], [0], [0], [1], [0, 0, 1, 1], [], []>} : vector<16x8xf32>, vector<8x64xf32>, vector<16x64xf32> -> vector<16x64xf32>
    %71 = arith.addf %64, %70 : vector<16x64xf32>
    %c9 = arith.constant 9 : index
    %c0_67 = arith.constant 0 : index
    %c0_68 = arith.constant 0 : index
    %72 = vector.load %arg3[%c9, %c0_67, %c0_68] : memref<25x64x64xf32, #tpu.memory_space<vmem>>, vector<1x64x64xf32>
    %73 = vector.shape_cast %72 : vector<1x64x64xf32> to vector<64x64xf32>
    %cst_69 = arith.constant dense<0.000000e+00> : vector<8x64xf32>
    %74 = tpu.matmul %9, %73, %cst_69 {dimension_numbers = #tpu.dot_dimension_numbers<[1], [0], [0], [1], [0, 0, 1, 1], [], []>} : vector<8x64xf32>, vector<64x64xf32>, vector<8x64xf32> -> vector<8x64xf32>
    %c9_70 = arith.constant 9 : index
    %c0_71 = arith.constant 0 : index
    %c0_72 = arith.constant 0 : index
    %75 = vector.load %arg4[%c9_70, %c0_71, %c0_72] : memref<25x16x8xf32, #tpu.memory_space<vmem>>, vector<1x16x8xf32>
    %76 = vector.shape_cast %75 : vector<1x16x8xf32> to vector<16x8xf32>
    %cst_73 = arith.constant dense<0.000000e+00> : vector<16x64xf32>
    %77 = tpu.matmul %76, %74, %cst_73 {dimension_numbers = #tpu.dot_dimension_numbers<[1], [0], [0], [1], [0, 0, 1, 1], [], []>} : vector<16x8xf32>, vector<8x64xf32>, vector<16x64xf32> -> vector<16x64xf32>
    %78 = arith.addf %71, %77 : vector<16x64xf32>
    %c10 = arith.constant 10 : index
    %c0_74 = arith.constant 0 : index
    %c0_75 = arith.constant 0 : index
    %79 = vector.load %arg3[%c10, %c0_74, %c0_75] : memref<25x64x64xf32, #tpu.memory_space<vmem>>, vector<1x64x64xf32>
    %80 = vector.shape_cast %79 : vector<1x64x64xf32> to vector<64x64xf32>
    %cst_76 = arith.constant dense<0.000000e+00> : vector<8x64xf32>
    %81 = tpu.matmul %9, %80, %cst_76 {dimension_numbers = #tpu.dot_dimension_numbers<[1], [0], [0], [1], [0, 0, 1, 1], [], []>} : vector<8x64xf32>, vector<64x64xf32>, vector<8x64xf32> -> vector<8x64xf32>
    %c10_77 = arith.constant 10 : index
    %c0_78 = arith.constant 0 : index
    %c0_79 = arith.constant 0 : index
    %82 = vector.load %arg4[%c10_77, %c0_78, %c0_79] : memref<25x16x8xf32, #tpu.memory_space<vmem>>, vector<1x16x8xf32>
    %83 = vector.shape_cast %82 : vector<1x16x8xf32> to vector<16x8xf32>
    %cst_80 = arith.constant dense<0.000000e+00> : vector<16x64xf32>
    %84 = tpu.matmul %83, %81, %cst_80 {dimension_numbers = #tpu.dot_dimension_numbers<[1], [0], [0], [1], [0, 0, 1, 1], [], []>} : vector<16x8xf32>, vector<8x64xf32>, vector<16x64xf32> -> vector<16x64xf32>
    %85 = arith.addf %78, %84 : vector<16x64xf32>
    %c11 = arith.constant 11 : index
    %c0_81 = arith.constant 0 : index
    %c0_82 = arith.constant 0 : index
    %86 = vector.load %arg3[%c11, %c0_81, %c0_82] : memref<25x64x64xf32, #tpu.memory_space<vmem>>, vector<1x64x64xf32>
    %87 = vector.shape_cast %86 : vector<1x64x64xf32> to vector<64x64xf32>
    %cst_83 = arith.constant dense<0.000000e+00> : vector<8x64xf32>
    %88 = tpu.matmul %9, %87, %cst_83 {dimension_numbers = #tpu.dot_dimension_numbers<[1], [0], [0], [1], [0, 0, 1, 1], [], []>} : vector<8x64xf32>, vector<64x64xf32>, vector<8x64xf32> -> vector<8x64xf32>
    %c11_84 = arith.constant 11 : index
    %c0_85 = arith.constant 0 : index
    %c0_86 = arith.constant 0 : index
    %89 = vector.load %arg4[%c11_84, %c0_85, %c0_86] : memref<25x16x8xf32, #tpu.memory_space<vmem>>, vector<1x16x8xf32>
    %90 = vector.shape_cast %89 : vector<1x16x8xf32> to vector<16x8xf32>
    %cst_87 = arith.constant dense<0.000000e+00> : vector<16x64xf32>
    %91 = tpu.matmul %90, %88, %cst_87 {dimension_numbers = #tpu.dot_dimension_numbers<[1], [0], [0], [1], [0, 0, 1, 1], [], []>} : vector<16x8xf32>, vector<8x64xf32>, vector<16x64xf32> -> vector<16x64xf32>
    %92 = arith.addf %85, %91 : vector<16x64xf32>
    %c12 = arith.constant 12 : index
    %c0_88 = arith.constant 0 : index
    %c0_89 = arith.constant 0 : index
    %93 = vector.load %arg3[%c12, %c0_88, %c0_89] : memref<25x64x64xf32, #tpu.memory_space<vmem>>, vector<1x64x64xf32>
    %94 = vector.shape_cast %93 : vector<1x64x64xf32> to vector<64x64xf32>
    %cst_90 = arith.constant dense<0.000000e+00> : vector<8x64xf32>
    %95 = tpu.matmul %9, %94, %cst_90 {dimension_numbers = #tpu.dot_dimension_numbers<[1], [0], [0], [1], [0, 0, 1, 1], [], []>} : vector<8x64xf32>, vector<64x64xf32>, vector<8x64xf32> -> vector<8x64xf32>
    %c12_91 = arith.constant 12 : index
    %c0_92 = arith.constant 0 : index
    %c0_93 = arith.constant 0 : index
    %96 = vector.load %arg4[%c12_91, %c0_92, %c0_93] : memref<25x16x8xf32, #tpu.memory_space<vmem>>, vector<1x16x8xf32>
    %97 = vector.shape_cast %96 : vector<1x16x8xf32> to vector<16x8xf32>
    %cst_94 = arith.constant dense<0.000000e+00> : vector<16x64xf32>
    %98 = tpu.matmul %97, %95, %cst_94 {dimension_numbers = #tpu.dot_dimension_numbers<[1], [0], [0], [1], [0, 0, 1, 1], [], []>} : vector<16x8xf32>, vector<8x64xf32>, vector<16x64xf32> -> vector<16x64xf32>
    %99 = arith.addf %92, %98 : vector<16x64xf32>
    %c13 = arith.constant 13 : index
    %c0_95 = arith.constant 0 : index
    %c0_96 = arith.constant 0 : index
    %100 = vector.load %arg3[%c13, %c0_95, %c0_96] : memref<25x64x64xf32, #tpu.memory_space<vmem>>, vector<1x64x64xf32>
    %101 = vector.shape_cast %100 : vector<1x64x64xf32> to vector<64x64xf32>
    %cst_97 = arith.constant dense<0.000000e+00> : vector<8x64xf32>
    %102 = tpu.matmul %9, %101, %cst_97 {dimension_numbers = #tpu.dot_dimension_numbers<[1], [0], [0], [1], [0, 0, 1, 1], [], []>} : vector<8x64xf32>, vector<64x64xf32>, vector<8x64xf32> -> vector<8x64xf32>
    %c13_98 = arith.constant 13 : index
    %c0_99 = arith.constant 0 : index
    %c0_100 = arith.constant 0 : index
    %103 = vector.load %arg4[%c13_98, %c0_99, %c0_100] : memref<25x16x8xf32, #tpu.memory_space<vmem>>, vector<1x16x8xf32>
    %104 = vector.shape_cast %103 : vector<1x16x8xf32> to vector<16x8xf32>
    %cst_101 = arith.constant dense<0.000000e+00> : vector<16x64xf32>
    %105 = tpu.matmul %104, %102, %cst_101 {dimension_numbers = #tpu.dot_dimension_numbers<[1], [0], [0], [1], [0, 0, 1, 1], [], []>} : vector<16x8xf32>, vector<8x64xf32>, vector<16x64xf32> -> vector<16x64xf32>
    %106 = arith.addf %99, %105 : vector<16x64xf32>
    %c14 = arith.constant 14 : index
    %c0_102 = arith.constant 0 : index
    %c0_103 = arith.constant 0 : index
    %107 = vector.load %arg3[%c14, %c0_102, %c0_103] : memref<25x64x64xf32, #tpu.memory_space<vmem>>, vector<1x64x64xf32>
    %108 = vector.shape_cast %107 : vector<1x64x64xf32> to vector<64x64xf32>
    %cst_104 = arith.constant dense<0.000000e+00> : vector<8x64xf32>
    %109 = tpu.matmul %9, %108, %cst_104 {dimension_numbers = #tpu.dot_dimension_numbers<[1], [0], [0], [1], [0, 0, 1, 1], [], []>} : vector<8x64xf32>, vector<64x64xf32>, vector<8x64xf32> -> vector<8x64xf32>
    %c14_105 = arith.constant 14 : index
    %c0_106 = arith.constant 0 : index
    %c0_107 = arith.constant 0 : index
    %110 = vector.load %arg4[%c14_105, %c0_106, %c0_107] : memref<25x16x8xf32, #tpu.memory_space<vmem>>, vector<1x16x8xf32>
    %111 = vector.shape_cast %110 : vector<1x16x8xf32> to vector<16x8xf32>
    %cst_108 = arith.constant dense<0.000000e+00> : vector<16x64xf32>
    %112 = tpu.matmul %111, %109, %cst_108 {dimension_numbers = #tpu.dot_dimension_numbers<[1], [0], [0], [1], [0, 0, 1, 1], [], []>} : vector<16x8xf32>, vector<8x64xf32>, vector<16x64xf32> -> vector<16x64xf32>
    %113 = arith.addf %106, %112 : vector<16x64xf32>
    %c15 = arith.constant 15 : index
    %c0_109 = arith.constant 0 : index
    %c0_110 = arith.constant 0 : index
    %114 = vector.load %arg3[%c15, %c0_109, %c0_110] : memref<25x64x64xf32, #tpu.memory_space<vmem>>, vector<1x64x64xf32>
    %115 = vector.shape_cast %114 : vector<1x64x64xf32> to vector<64x64xf32>
    %cst_111 = arith.constant dense<0.000000e+00> : vector<8x64xf32>
    %116 = tpu.matmul %9, %115, %cst_111 {dimension_numbers = #tpu.dot_dimension_numbers<[1], [0], [0], [1], [0, 0, 1, 1], [], []>} : vector<8x64xf32>, vector<64x64xf32>, vector<8x64xf32> -> vector<8x64xf32>
    %c15_112 = arith.constant 15 : index
    %c0_113 = arith.constant 0 : index
    %c0_114 = arith.constant 0 : index
    %117 = vector.load %arg4[%c15_112, %c0_113, %c0_114] : memref<25x16x8xf32, #tpu.memory_space<vmem>>, vector<1x16x8xf32>
    %118 = vector.shape_cast %117 : vector<1x16x8xf32> to vector<16x8xf32>
    %cst_115 = arith.constant dense<0.000000e+00> : vector<16x64xf32>
    %119 = tpu.matmul %118, %116, %cst_115 {dimension_numbers = #tpu.dot_dimension_numbers<[1], [0], [0], [1], [0, 0, 1, 1], [], []>} : vector<16x8xf32>, vector<8x64xf32>, vector<16x64xf32> -> vector<16x64xf32>
    %120 = arith.addf %113, %119 : vector<16x64xf32>
    %c16 = arith.constant 16 : index
    %c0_116 = arith.constant 0 : index
    %c0_117 = arith.constant 0 : index
    %121 = vector.load %arg3[%c16, %c0_116, %c0_117] : memref<25x64x64xf32, #tpu.memory_space<vmem>>, vector<1x64x64xf32>
    %122 = vector.shape_cast %121 : vector<1x64x64xf32> to vector<64x64xf32>
    %cst_118 = arith.constant dense<0.000000e+00> : vector<8x64xf32>
    %123 = tpu.matmul %9, %122, %cst_118 {dimension_numbers = #tpu.dot_dimension_numbers<[1], [0], [0], [1], [0, 0, 1, 1], [], []>} : vector<8x64xf32>, vector<64x64xf32>, vector<8x64xf32> -> vector<8x64xf32>
    %c16_119 = arith.constant 16 : index
    %c0_120 = arith.constant 0 : index
    %c0_121 = arith.constant 0 : index
    %124 = vector.load %arg4[%c16_119, %c0_120, %c0_121] : memref<25x16x8xf32, #tpu.memory_space<vmem>>, vector<1x16x8xf32>
    %125 = vector.shape_cast %124 : vector<1x16x8xf32> to vector<16x8xf32>
    %cst_122 = arith.constant dense<0.000000e+00> : vector<16x64xf32>
    %126 = tpu.matmul %125, %123, %cst_122 {dimension_numbers = #tpu.dot_dimension_numbers<[1], [0], [0], [1], [0, 0, 1, 1], [], []>} : vector<16x8xf32>, vector<8x64xf32>, vector<16x64xf32> -> vector<16x64xf32>
    %127 = arith.addf %120, %126 : vector<16x64xf32>
    %c17 = arith.constant 17 : index
    %c0_123 = arith.constant 0 : index
    %c0_124 = arith.constant 0 : index
    %128 = vector.load %arg3[%c17, %c0_123, %c0_124] : memref<25x64x64xf32, #tpu.memory_space<vmem>>, vector<1x64x64xf32>
    %129 = vector.shape_cast %128 : vector<1x64x64xf32> to vector<64x64xf32>
    %cst_125 = arith.constant dense<0.000000e+00> : vector<8x64xf32>
    %130 = tpu.matmul %9, %129, %cst_125 {dimension_numbers = #tpu.dot_dimension_numbers<[1], [0], [0], [1], [0, 0, 1, 1], [], []>} : vector<8x64xf32>, vector<64x64xf32>, vector<8x64xf32> -> vector<8x64xf32>
    %c17_126 = arith.constant 17 : index
    %c0_127 = arith.constant 0 : index
    %c0_128 = arith.constant 0 : index
    %131 = vector.load %arg4[%c17_126, %c0_127, %c0_128] : memref<25x16x8xf32, #tpu.memory_space<vmem>>, vector<1x16x8xf32>
    %132 = vector.shape_cast %131 : vector<1x16x8xf32> to vector<16x8xf32>
    %cst_129 = arith.constant dense<0.000000e+00> : vector<16x64xf32>
    %133 = tpu.matmul %132, %130, %cst_129 {dimension_numbers = #tpu.dot_dimension_numbers<[1], [0], [0], [1], [0, 0, 1, 1], [], []>} : vector<16x8xf32>, vector<8x64xf32>, vector<16x64xf32> -> vector<16x64xf32>
    %134 = arith.addf %127, %133 : vector<16x64xf32>
    %c18 = arith.constant 18 : index
    %c0_130 = arith.constant 0 : index
    %c0_131 = arith.constant 0 : index
    %135 = vector.load %arg3[%c18, %c0_130, %c0_131] : memref<25x64x64xf32, #tpu.memory_space<vmem>>, vector<1x64x64xf32>
    %136 = vector.shape_cast %135 : vector<1x64x64xf32> to vector<64x64xf32>
    %cst_132 = arith.constant dense<0.000000e+00> : vector<8x64xf32>
    %137 = tpu.matmul %9, %136, %cst_132 {dimension_numbers = #tpu.dot_dimension_numbers<[1], [0], [0], [1], [0, 0, 1, 1], [], []>} : vector<8x64xf32>, vector<64x64xf32>, vector<8x64xf32> -> vector<8x64xf32>
    %c18_133 = arith.constant 18 : index
    %c0_134 = arith.constant 0 : index
    %c0_135 = arith.constant 0 : index
    %138 = vector.load %arg4[%c18_133, %c0_134, %c0_135] : memref<25x16x8xf32, #tpu.memory_space<vmem>>, vector<1x16x8xf32>
    %139 = vector.shape_cast %138 : vector<1x16x8xf32> to vector<16x8xf32>
    %cst_136 = arith.constant dense<0.000000e+00> : vector<16x64xf32>
    %140 = tpu.matmul %139, %137, %cst_136 {dimension_numbers = #tpu.dot_dimension_numbers<[1], [0], [0], [1], [0, 0, 1, 1], [], []>} : vector<16x8xf32>, vector<8x64xf32>, vector<16x64xf32> -> vector<16x64xf32>
    %141 = arith.addf %134, %140 : vector<16x64xf32>
    %c19 = arith.constant 19 : index
    %c0_137 = arith.constant 0 : index
    %c0_138 = arith.constant 0 : index
    %142 = vector.load %arg3[%c19, %c0_137, %c0_138] : memref<25x64x64xf32, #tpu.memory_space<vmem>>, vector<1x64x64xf32>
    %143 = vector.shape_cast %142 : vector<1x64x64xf32> to vector<64x64xf32>
    %cst_139 = arith.constant dense<0.000000e+00> : vector<8x64xf32>
    %144 = tpu.matmul %9, %143, %cst_139 {dimension_numbers = #tpu.dot_dimension_numbers<[1], [0], [0], [1], [0, 0, 1, 1], [], []>} : vector<8x64xf32>, vector<64x64xf32>, vector<8x64xf32> -> vector<8x64xf32>
    %c19_140 = arith.constant 19 : index
    %c0_141 = arith.constant 0 : index
    %c0_142 = arith.constant 0 : index
    %145 = vector.load %arg4[%c19_140, %c0_141, %c0_142] : memref<25x16x8xf32, #tpu.memory_space<vmem>>, vector<1x16x8xf32>
    %146 = vector.shape_cast %145 : vector<1x16x8xf32> to vector<16x8xf32>
    %cst_143 = arith.constant dense<0.000000e+00> : vector<16x64xf32>
    %147 = tpu.matmul %146, %144, %cst_143 {dimension_numbers = #tpu.dot_dimension_numbers<[1], [0], [0], [1], [0, 0, 1, 1], [], []>} : vector<16x8xf32>, vector<8x64xf32>, vector<16x64xf32> -> vector<16x64xf32>
    %148 = arith.addf %141, %147 : vector<16x64xf32>
    %c20 = arith.constant 20 : index
    %c0_144 = arith.constant 0 : index
    %c0_145 = arith.constant 0 : index
    %149 = vector.load %arg3[%c20, %c0_144, %c0_145] : memref<25x64x64xf32, #tpu.memory_space<vmem>>, vector<1x64x64xf32>
    %150 = vector.shape_cast %149 : vector<1x64x64xf32> to vector<64x64xf32>
    %cst_146 = arith.constant dense<0.000000e+00> : vector<8x64xf32>
    %151 = tpu.matmul %9, %150, %cst_146 {dimension_numbers = #tpu.dot_dimension_numbers<[1], [0], [0], [1], [0, 0, 1, 1], [], []>} : vector<8x64xf32>, vector<64x64xf32>, vector<8x64xf32> -> vector<8x64xf32>
    %c20_147 = arith.constant 20 : index
    %c0_148 = arith.constant 0 : index
    %c0_149 = arith.constant 0 : index
    %152 = vector.load %arg4[%c20_147, %c0_148, %c0_149] : memref<25x16x8xf32, #tpu.memory_space<vmem>>, vector<1x16x8xf32>
    %153 = vector.shape_cast %152 : vector<1x16x8xf32> to vector<16x8xf32>
    %cst_150 = arith.constant dense<0.000000e+00> : vector<16x64xf32>
    %154 = tpu.matmul %153, %151, %cst_150 {dimension_numbers = #tpu.dot_dimension_numbers<[1], [0], [0], [1], [0, 0, 1, 1], [], []>} : vector<16x8xf32>, vector<8x64xf32>, vector<16x64xf32> -> vector<16x64xf32>
    %155 = arith.addf %148, %154 : vector<16x64xf32>
    %c21 = arith.constant 21 : index
    %c0_151 = arith.constant 0 : index
    %c0_152 = arith.constant 0 : index
    %156 = vector.load %arg3[%c21, %c0_151, %c0_152] : memref<25x64x64xf32, #tpu.memory_space<vmem>>, vector<1x64x64xf32>
    %157 = vector.shape_cast %156 : vector<1x64x64xf32> to vector<64x64xf32>
    %cst_153 = arith.constant dense<0.000000e+00> : vector<8x64xf32>
    %158 = tpu.matmul %9, %157, %cst_153 {dimension_numbers = #tpu.dot_dimension_numbers<[1], [0], [0], [1], [0, 0, 1, 1], [], []>} : vector<8x64xf32>, vector<64x64xf32>, vector<8x64xf32> -> vector<8x64xf32>
    %c21_154 = arith.constant 21 : index
    %c0_155 = arith.constant 0 : index
    %c0_156 = arith.constant 0 : index
    %159 = vector.load %arg4[%c21_154, %c0_155, %c0_156] : memref<25x16x8xf32, #tpu.memory_space<vmem>>, vector<1x16x8xf32>
    %160 = vector.shape_cast %159 : vector<1x16x8xf32> to vector<16x8xf32>
    %cst_157 = arith.constant dense<0.000000e+00> : vector<16x64xf32>
    %161 = tpu.matmul %160, %158, %cst_157 {dimension_numbers = #tpu.dot_dimension_numbers<[1], [0], [0], [1], [0, 0, 1, 1], [], []>} : vector<16x8xf32>, vector<8x64xf32>, vector<16x64xf32> -> vector<16x64xf32>
    %162 = arith.addf %155, %161 : vector<16x64xf32>
    %c22 = arith.constant 22 : index
    %c0_158 = arith.constant 0 : index
    %c0_159 = arith.constant 0 : index
    %163 = vector.load %arg3[%c22, %c0_158, %c0_159] : memref<25x64x64xf32, #tpu.memory_space<vmem>>, vector<1x64x64xf32>
    %164 = vector.shape_cast %163 : vector<1x64x64xf32> to vector<64x64xf32>
    %cst_160 = arith.constant dense<0.000000e+00> : vector<8x64xf32>
    %165 = tpu.matmul %9, %164, %cst_160 {dimension_numbers = #tpu.dot_dimension_numbers<[1], [0], [0], [1], [0, 0, 1, 1], [], []>} : vector<8x64xf32>, vector<64x64xf32>, vector<8x64xf32> -> vector<8x64xf32>
    %c22_161 = arith.constant 22 : index
    %c0_162 = arith.constant 0 : index
    %c0_163 = arith.constant 0 : index
    %166 = vector.load %arg4[%c22_161, %c0_162, %c0_163] : memref<25x16x8xf32, #tpu.memory_space<vmem>>, vector<1x16x8xf32>
    %167 = vector.shape_cast %166 : vector<1x16x8xf32> to vector<16x8xf32>
    %cst_164 = arith.constant dense<0.000000e+00> : vector<16x64xf32>
    %168 = tpu.matmul %167, %165, %cst_164 {dimension_numbers = #tpu.dot_dimension_numbers<[1], [0], [0], [1], [0, 0, 1, 1], [], []>} : vector<16x8xf32>, vector<8x64xf32>, vector<16x64xf32> -> vector<16x64xf32>
    %169 = arith.addf %162, %168 : vector<16x64xf32>
    %c23 = arith.constant 23 : index
    %c0_165 = arith.constant 0 : index
    %c0_166 = arith.constant 0 : index
    %170 = vector.load %arg3[%c23, %c0_165, %c0_166] : memref<25x64x64xf32, #tpu.memory_space<vmem>>, vector<1x64x64xf32>
    %171 = vector.shape_cast %170 : vector<1x64x64xf32> to vector<64x64xf32>
    %cst_167 = arith.constant dense<0.000000e+00> : vector<8x64xf32>
    %172 = tpu.matmul %9, %171, %cst_167 {dimension_numbers = #tpu.dot_dimension_numbers<[1], [0], [0], [1], [0, 0, 1, 1], [], []>} : vector<8x64xf32>, vector<64x64xf32>, vector<8x64xf32> -> vector<8x64xf32>
    %c23_168 = arith.constant 23 : index
    %c0_169 = arith.constant 0 : index
    %c0_170 = arith.constant 0 : index
    %173 = vector.load %arg4[%c23_168, %c0_169, %c0_170] : memref<25x16x8xf32, #tpu.memory_space<vmem>>, vector<1x16x8xf32>
    %174 = vector.shape_cast %173 : vector<1x16x8xf32> to vector<16x8xf32>
    %cst_171 = arith.constant dense<0.000000e+00> : vector<16x64xf32>
    %175 = tpu.matmul %174, %172, %cst_171 {dimension_numbers = #tpu.dot_dimension_numbers<[1], [0], [0], [1], [0, 0, 1, 1], [], []>} : vector<16x8xf32>, vector<8x64xf32>, vector<16x64xf32> -> vector<16x64xf32>
    %176 = arith.addf %169, %175 : vector<16x64xf32>
    %c24 = arith.constant 24 : index
    %c0_172 = arith.constant 0 : index
    %c0_173 = arith.constant 0 : index
    %177 = vector.load %arg3[%c24, %c0_172, %c0_173] : memref<25x64x64xf32, #tpu.memory_space<vmem>>, vector<1x64x64xf32>
    %178 = vector.shape_cast %177 : vector<1x64x64xf32> to vector<64x64xf32>
    %cst_174 = arith.constant dense<0.000000e+00> : vector<8x64xf32>
    %179 = tpu.matmul %9, %178, %cst_174 {dimension_numbers = #tpu.dot_dimension_numbers<[1], [0], [0], [1], [0, 0, 1, 1], [], []>} : vector<8x64xf32>, vector<64x64xf32>, vector<8x64xf32> -> vector<8x64xf32>
    %c24_175 = arith.constant 24 : index
    %c0_176 = arith.constant 0 : index
    %c0_177 = arith.constant 0 : index
    %180 = vector.load %arg4[%c24_175, %c0_176, %c0_177] : memref<25x16x8xf32, #tpu.memory_space<vmem>>, vector<1x16x8xf32>
    %181 = vector.shape_cast %180 : vector<1x16x8xf32> to vector<16x8xf32>
    %cst_178 = arith.constant dense<0.000000e+00> : vector<16x64xf32>
    %182 = tpu.matmul %181, %179, %cst_178 {dimension_numbers = #tpu.dot_dimension_numbers<[1], [0], [0], [1], [0, 0, 1, 1], [], []>} : vector<16x8xf32>, vector<8x64xf32>, vector<16x64xf32> -> vector<16x64xf32>
    %183 = arith.addf %176, %182 : vector<16x64xf32>
    %c0_179 = arith.constant 0 : index
    %c0_180 = arith.constant 0 : index
    %184 = vector.load %arg5[%c0_179, %c0_180] : memref<16x1xf32, #tpu.memory_space<vmem>>, vector<16x1xf32>
    %185 = vector.broadcast %184 : vector<16x1xf32> to vector<16x64xf32>
    %186 = arith.addf %183, %185 : vector<16x64xf32>
    %cst_181 = arith.constant 0.000000e+00 : f32
    %187 = vector.broadcast %cst_181 : f32 to vector<16x64xf32>
    %188 = arith.maximumf %186, %187 : vector<16x64xf32>
    %c0_182 = arith.constant 0 : index
    %c0_183 = arith.constant 0 : index
    %189 = vector.load %arg6[%c0_182, %c0_183] : memref<64x64xf32, #tpu.memory_space<vmem>>, vector<64x64xf32>
    %cst_184 = arith.constant dense<0.000000e+00> : vector<16x64xf32>
    %190 = tpu.matmul %188, %189, %cst_184 {dimension_numbers = #tpu.dot_dimension_numbers<[1], [0], [0], [1], [0, 0, 1, 1], [], []>} : vector<16x64xf32>, vector<64x64xf32>, vector<16x64xf32> -> vector<16x64xf32>
    %191 = vector.extract_strided_slice %190 {offsets = [0, 0], sizes = [16, 16], strides = [1, 1]} : vector<16x64xf32> to vector<16x16xf32>
    %192 = vector.extract_strided_slice %190 {offsets = [0, 16], sizes = [16, 16], strides = [1, 1]} : vector<16x64xf32> to vector<16x16xf32>
    %193 = arith.maximumf %191, %192 : vector<16x16xf32>
    %194 = vector.extract_strided_slice %190 {offsets = [0, 32], sizes = [16, 16], strides = [1, 1]} : vector<16x64xf32> to vector<16x16xf32>
    %195 = vector.extract_strided_slice %190 {offsets = [0, 48], sizes = [16, 16], strides = [1, 1]} : vector<16x64xf32> to vector<16x16xf32>
    %196 = arith.maximumf %194, %195 : vector<16x16xf32>
    %197 = arith.maximumf %193, %196 : vector<16x16xf32>
    %c0_185 = arith.constant 0 : index
    %c0_186 = arith.constant 0 : index
    %c0_187 = arith.constant 0 : index
    %198 = vector.load %arg7[%c0_185, %c0_186, %c0_187] : memref<25x16x16xf32, #tpu.memory_space<vmem>>, vector<1x16x16xf32>
    %199 = vector.shape_cast %198 : vector<1x16x16xf32> to vector<16x16xf32>
    %cst_188 = arith.constant dense<0.000000e+00> : vector<16x16xf32>
    %200 = tpu.matmul %197, %199, %cst_188 {dimension_numbers = #tpu.dot_dimension_numbers<[1], [0], [0], [1], [0, 0, 1, 1], [], []>} : vector<16x16xf32>, vector<16x16xf32>, vector<16x16xf32> -> vector<16x16xf32>
    %c0_189 = arith.constant 0 : index
    %c0_190 = arith.constant 0 : index
    %c0_191 = arith.constant 0 : index
    %201 = vector.load %arg8[%c0_189, %c0_190, %c0_191] : memref<25x16x16xf32, #tpu.memory_space<vmem>>, vector<1x16x16xf32>
    %202 = vector.shape_cast %201 : vector<1x16x16xf32> to vector<16x16xf32>
    %cst_192 = arith.constant dense<0.000000e+00> : vector<16x16xf32>
    %203 = tpu.matmul %202, %200, %cst_192 {dimension_numbers = #tpu.dot_dimension_numbers<[1], [0], [0], [1], [0, 0, 1, 1], [], []>} : vector<16x16xf32>, vector<16x16xf32>, vector<16x16xf32> -> vector<16x16xf32>
    %c1_193 = arith.constant 1 : index
    %c0_194 = arith.constant 0 : index
    %c0_195 = arith.constant 0 : index
    %204 = vector.load %arg7[%c1_193, %c0_194, %c0_195] : memref<25x16x16xf32, #tpu.memory_space<vmem>>, vector<1x16x16xf32>
    %205 = vector.shape_cast %204 : vector<1x16x16xf32> to vector<16x16xf32>
    %cst_196 = arith.constant dense<0.000000e+00> : vector<16x16xf32>
    %206 = tpu.matmul %197, %205, %cst_196 {dimension_numbers = #tpu.dot_dimension_numbers<[1], [0], [0], [1], [0, 0, 1, 1], [], []>} : vector<16x16xf32>, vector<16x16xf32>, vector<16x16xf32> -> vector<16x16xf32>
    %c1_197 = arith.constant 1 : index
    %c0_198 = arith.constant 0 : index
    %c0_199 = arith.constant 0 : index
    %207 = vector.load %arg8[%c1_197, %c0_198, %c0_199] : memref<25x16x16xf32, #tpu.memory_space<vmem>>, vector<1x16x16xf32>
    %208 = vector.shape_cast %207 : vector<1x16x16xf32> to vector<16x16xf32>
    %cst_200 = arith.constant dense<0.000000e+00> : vector<16x16xf32>
    %209 = tpu.matmul %208, %206, %cst_200 {dimension_numbers = #tpu.dot_dimension_numbers<[1], [0], [0], [1], [0, 0, 1, 1], [], []>} : vector<16x16xf32>, vector<16x16xf32>, vector<16x16xf32> -> vector<16x16xf32>
    %210 = arith.addf %203, %209 : vector<16x16xf32>
    %c2_201 = arith.constant 2 : index
    %c0_202 = arith.constant 0 : index
    %c0_203 = arith.constant 0 : index
    %211 = vector.load %arg7[%c2_201, %c0_202, %c0_203] : memref<25x16x16xf32, #tpu.memory_space<vmem>>, vector<1x16x16xf32>
    %212 = vector.shape_cast %211 : vector<1x16x16xf32> to vector<16x16xf32>
    %cst_204 = arith.constant dense<0.000000e+00> : vector<16x16xf32>
    %213 = tpu.matmul %197, %212, %cst_204 {dimension_numbers = #tpu.dot_dimension_numbers<[1], [0], [0], [1], [0, 0, 1, 1], [], []>} : vector<16x16xf32>, vector<16x16xf32>, vector<16x16xf32> -> vector<16x16xf32>
    %c2_205 = arith.constant 2 : index
    %c0_206 = arith.constant 0 : index
    %c0_207 = arith.constant 0 : index
    %214 = vector.load %arg8[%c2_205, %c0_206, %c0_207] : memref<25x16x16xf32, #tpu.memory_space<vmem>>, vector<1x16x16xf32>
    %215 = vector.shape_cast %214 : vector<1x16x16xf32> to vector<16x16xf32>
    %cst_208 = arith.constant dense<0.000000e+00> : vector<16x16xf32>
    %216 = tpu.matmul %215, %213, %cst_208 {dimension_numbers = #tpu.dot_dimension_numbers<[1], [0], [0], [1], [0, 0, 1, 1], [], []>} : vector<16x16xf32>, vector<16x16xf32>, vector<16x16xf32> -> vector<16x16xf32>
    %217 = arith.addf %210, %216 : vector<16x16xf32>
    %c3_209 = arith.constant 3 : index
    %c0_210 = arith.constant 0 : index
    %c0_211 = arith.constant 0 : index
    %218 = vector.load %arg7[%c3_209, %c0_210, %c0_211] : memref<25x16x16xf32, #tpu.memory_space<vmem>>, vector<1x16x16xf32>
    %219 = vector.shape_cast %218 : vector<1x16x16xf32> to vector<16x16xf32>
    %cst_212 = arith.constant dense<0.000000e+00> : vector<16x16xf32>
    %220 = tpu.matmul %197, %219, %cst_212 {dimension_numbers = #tpu.dot_dimension_numbers<[1], [0], [0], [1], [0, 0, 1, 1], [], []>} : vector<16x16xf32>, vector<16x16xf32>, vector<16x16xf32> -> vector<16x16xf32>
    %c3_213 = arith.constant 3 : index
    %c0_214 = arith.constant 0 : index
    %c0_215 = arith.constant 0 : index
    %221 = vector.load %arg8[%c3_213, %c0_214, %c0_215] : memref<25x16x16xf32, #tpu.memory_space<vmem>>, vector<1x16x16xf32>
    %222 = vector.shape_cast %221 : vector<1x16x16xf32> to vector<16x16xf32>
    %cst_216 = arith.constant dense<0.000000e+00> : vector<16x16xf32>
    %223 = tpu.matmul %222, %220, %cst_216 {dimension_numbers = #tpu.dot_dimension_numbers<[1], [0], [0], [1], [0, 0, 1, 1], [], []>} : vector<16x16xf32>, vector<16x16xf32>, vector<16x16xf32> -> vector<16x16xf32>
    %224 = arith.addf %217, %223 : vector<16x16xf32>
    %c4_217 = arith.constant 4 : index
    %c0_218 = arith.constant 0 : index
    %c0_219 = arith.constant 0 : index
    %225 = vector.load %arg7[%c4_217, %c0_218, %c0_219] : memref<25x16x16xf32, #tpu.memory_space<vmem>>, vector<1x16x16xf32>
    %226 = vector.shape_cast %225 : vector<1x16x16xf32> to vector<16x16xf32>
    %cst_220 = arith.constant dense<0.000000e+00> : vector<16x16xf32>
    %227 = tpu.matmul %197, %226, %cst_220 {dimension_numbers = #tpu.dot_dimension_numbers<[1], [0], [0], [1], [0, 0, 1, 1], [], []>} : vector<16x16xf32>, vector<16x16xf32>, vector<16x16xf32> -> vector<16x16xf32>
    %c4_221 = arith.constant 4 : index
    %c0_222 = arith.constant 0 : index
    %c0_223 = arith.constant 0 : index
    %228 = vector.load %arg8[%c4_221, %c0_222, %c0_223] : memref<25x16x16xf32, #tpu.memory_space<vmem>>, vector<1x16x16xf32>
    %229 = vector.shape_cast %228 : vector<1x16x16xf32> to vector<16x16xf32>
    %cst_224 = arith.constant dense<0.000000e+00> : vector<16x16xf32>
    %230 = tpu.matmul %229, %227, %cst_224 {dimension_numbers = #tpu.dot_dimension_numbers<[1], [0], [0], [1], [0, 0, 1, 1], [], []>} : vector<16x16xf32>, vector<16x16xf32>, vector<16x16xf32> -> vector<16x16xf32>
    %231 = arith.addf %224, %230 : vector<16x16xf32>
    %c5_225 = arith.constant 5 : index
    %c0_226 = arith.constant 0 : index
    %c0_227 = arith.constant 0 : index
    %232 = vector.load %arg7[%c5_225, %c0_226, %c0_227] : memref<25x16x16xf32, #tpu.memory_space<vmem>>, vector<1x16x16xf32>
    %233 = vector.shape_cast %232 : vector<1x16x16xf32> to vector<16x16xf32>
    %cst_228 = arith.constant dense<0.000000e+00> : vector<16x16xf32>
    %234 = tpu.matmul %197, %233, %cst_228 {dimension_numbers = #tpu.dot_dimension_numbers<[1], [0], [0], [1], [0, 0, 1, 1], [], []>} : vector<16x16xf32>, vector<16x16xf32>, vector<16x16xf32> -> vector<16x16xf32>
    %c5_229 = arith.constant 5 : index
    %c0_230 = arith.constant 0 : index
    %c0_231 = arith.constant 0 : index
    %235 = vector.load %arg8[%c5_229, %c0_230, %c0_231] : memref<25x16x16xf32, #tpu.memory_space<vmem>>, vector<1x16x16xf32>
    %236 = vector.shape_cast %235 : vector<1x16x16xf32> to vector<16x16xf32>
    %cst_232 = arith.constant dense<0.000000e+00> : vector<16x16xf32>
    %237 = tpu.matmul %236, %234, %cst_232 {dimension_numbers = #tpu.dot_dimension_numbers<[1], [0], [0], [1], [0, 0, 1, 1], [], []>} : vector<16x16xf32>, vector<16x16xf32>, vector<16x16xf32> -> vector<16x16xf32>
    %238 = arith.addf %231, %237 : vector<16x16xf32>
    %c6_233 = arith.constant 6 : index
    %c0_234 = arith.constant 0 : index
    %c0_235 = arith.constant 0 : index
    %239 = vector.load %arg7[%c6_233, %c0_234, %c0_235] : memref<25x16x16xf32, #tpu.memory_space<vmem>>, vector<1x16x16xf32>
    %240 = vector.shape_cast %239 : vector<1x16x16xf32> to vector<16x16xf32>
    %cst_236 = arith.constant dense<0.000000e+00> : vector<16x16xf32>
    %241 = tpu.matmul %197, %240, %cst_236 {dimension_numbers = #tpu.dot_dimension_numbers<[1], [0], [0], [1], [0, 0, 1, 1], [], []>} : vector<16x16xf32>, vector<16x16xf32>, vector<16x16xf32> -> vector<16x16xf32>
    %c6_237 = arith.constant 6 : index
    %c0_238 = arith.constant 0 : index
    %c0_239 = arith.constant 0 : index
    %242 = vector.load %arg8[%c6_237, %c0_238, %c0_239] : memref<25x16x16xf32, #tpu.memory_space<vmem>>, vector<1x16x16xf32>
    %243 = vector.shape_cast %242 : vector<1x16x16xf32> to vector<16x16xf32>
    %cst_240 = arith.constant dense<0.000000e+00> : vector<16x16xf32>
    %244 = tpu.matmul %243, %241, %cst_240 {dimension_numbers = #tpu.dot_dimension_numbers<[1], [0], [0], [1], [0, 0, 1, 1], [], []>} : vector<16x16xf32>, vector<16x16xf32>, vector<16x16xf32> -> vector<16x16xf32>
    %245 = arith.addf %238, %244 : vector<16x16xf32>
    %c7_241 = arith.constant 7 : index
    %c0_242 = arith.constant 0 : index
    %c0_243 = arith.constant 0 : index
    %246 = vector.load %arg7[%c7_241, %c0_242, %c0_243] : memref<25x16x16xf32, #tpu.memory_space<vmem>>, vector<1x16x16xf32>
    %247 = vector.shape_cast %246 : vector<1x16x16xf32> to vector<16x16xf32>
    %cst_244 = arith.constant dense<0.000000e+00> : vector<16x16xf32>
    %248 = tpu.matmul %197, %247, %cst_244 {dimension_numbers = #tpu.dot_dimension_numbers<[1], [0], [0], [1], [0, 0, 1, 1], [], []>} : vector<16x16xf32>, vector<16x16xf32>, vector<16x16xf32> -> vector<16x16xf32>
    %c7_245 = arith.constant 7 : index
    %c0_246 = arith.constant 0 : index
    %c0_247 = arith.constant 0 : index
    %249 = vector.load %arg8[%c7_245, %c0_246, %c0_247] : memref<25x16x16xf32, #tpu.memory_space<vmem>>, vector<1x16x16xf32>
    %250 = vector.shape_cast %249 : vector<1x16x16xf32> to vector<16x16xf32>
    %cst_248 = arith.constant dense<0.000000e+00> : vector<16x16xf32>
    %251 = tpu.matmul %250, %248, %cst_248 {dimension_numbers = #tpu.dot_dimension_numbers<[1], [0], [0], [1], [0, 0, 1, 1], [], []>} : vector<16x16xf32>, vector<16x16xf32>, vector<16x16xf32> -> vector<16x16xf32>
    %252 = arith.addf %245, %251 : vector<16x16xf32>
    %c8_249 = arith.constant 8 : index
    %c0_250 = arith.constant 0 : index
    %c0_251 = arith.constant 0 : index
    %253 = vector.load %arg7[%c8_249, %c0_250, %c0_251] : memref<25x16x16xf32, #tpu.memory_space<vmem>>, vector<1x16x16xf32>
    %254 = vector.shape_cast %253 : vector<1x16x16xf32> to vector<16x16xf32>
    %cst_252 = arith.constant dense<0.000000e+00> : vector<16x16xf32>
    %255 = tpu.matmul %197, %254, %cst_252 {dimension_numbers = #tpu.dot_dimension_numbers<[1], [0], [0], [1], [0, 0, 1, 1], [], []>} : vector<16x16xf32>, vector<16x16xf32>, vector<16x16xf32> -> vector<16x16xf32>
    %c8_253 = arith.constant 8 : index
    %c0_254 = arith.constant 0 : index
    %c0_255 = arith.constant 0 : index
    %256 = vector.load %arg8[%c8_253, %c0_254, %c0_255] : memref<25x16x16xf32, #tpu.memory_space<vmem>>, vector<1x16x16xf32>
    %257 = vector.shape_cast %256 : vector<1x16x16xf32> to vector<16x16xf32>
    %cst_256 = arith.constant dense<0.000000e+00> : vector<16x16xf32>
    %258 = tpu.matmul %257, %255, %cst_256 {dimension_numbers = #tpu.dot_dimension_numbers<[1], [0], [0], [1], [0, 0, 1, 1], [], []>} : vector<16x16xf32>, vector<16x16xf32>, vector<16x16xf32> -> vector<16x16xf32>
    %259 = arith.addf %252, %258 : vector<16x16xf32>
    %c9_257 = arith.constant 9 : index
    %c0_258 = arith.constant 0 : index
    %c0_259 = arith.constant 0 : index
    %260 = vector.load %arg7[%c9_257, %c0_258, %c0_259] : memref<25x16x16xf32, #tpu.memory_space<vmem>>, vector<1x16x16xf32>
    %261 = vector.shape_cast %260 : vector<1x16x16xf32> to vector<16x16xf32>
    %cst_260 = arith.constant dense<0.000000e+00> : vector<16x16xf32>
    %262 = tpu.matmul %197, %261, %cst_260 {dimension_numbers = #tpu.dot_dimension_numbers<[1], [0], [0], [1], [0, 0, 1, 1], [], []>} : vector<16x16xf32>, vector<16x16xf32>, vector<16x16xf32> -> vector<16x16xf32>
    %c9_261 = arith.constant 9 : index
    %c0_262 = arith.constant 0 : index
    %c0_263 = arith.constant 0 : index
    %263 = vector.load %arg8[%c9_261, %c0_262, %c0_263] : memref<25x16x16xf32, #tpu.memory_space<vmem>>, vector<1x16x16xf32>
    %264 = vector.shape_cast %263 : vector<1x16x16xf32> to vector<16x16xf32>
    %cst_264 = arith.constant dense<0.000000e+00> : vector<16x16xf32>
    %265 = tpu.matmul %264, %262, %cst_264 {dimension_numbers = #tpu.dot_dimension_numbers<[1], [0], [0], [1], [0, 0, 1, 1], [], []>} : vector<16x16xf32>, vector<16x16xf32>, vector<16x16xf32> -> vector<16x16xf32>
    %266 = arith.addf %259, %265 : vector<16x16xf32>
    %c10_265 = arith.constant 10 : index
    %c0_266 = arith.constant 0 : index
    %c0_267 = arith.constant 0 : index
    %267 = vector.load %arg7[%c10_265, %c0_266, %c0_267] : memref<25x16x16xf32, #tpu.memory_space<vmem>>, vector<1x16x16xf32>
    %268 = vector.shape_cast %267 : vector<1x16x16xf32> to vector<16x16xf32>
    %cst_268 = arith.constant dense<0.000000e+00> : vector<16x16xf32>
    %269 = tpu.matmul %197, %268, %cst_268 {dimension_numbers = #tpu.dot_dimension_numbers<[1], [0], [0], [1], [0, 0, 1, 1], [], []>} : vector<16x16xf32>, vector<16x16xf32>, vector<16x16xf32> -> vector<16x16xf32>
    %c10_269 = arith.constant 10 : index
    %c0_270 = arith.constant 0 : index
    %c0_271 = arith.constant 0 : index
    %270 = vector.load %arg8[%c10_269, %c0_270, %c0_271] : memref<25x16x16xf32, #tpu.memory_space<vmem>>, vector<1x16x16xf32>
    %271 = vector.shape_cast %270 : vector<1x16x16xf32> to vector<16x16xf32>
    %cst_272 = arith.constant dense<0.000000e+00> : vector<16x16xf32>
    %272 = tpu.matmul %271, %269, %cst_272 {dimension_numbers = #tpu.dot_dimension_numbers<[1], [0], [0], [1], [0, 0, 1, 1], [], []>} : vector<16x16xf32>, vector<16x16xf32>, vector<16x16xf32> -> vector<16x16xf32>
    %273 = arith.addf %266, %272 : vector<16x16xf32>
    %c11_273 = arith.constant 11 : index
    %c0_274 = arith.constant 0 : index
    %c0_275 = arith.constant 0 : index
    %274 = vector.load %arg7[%c11_273, %c0_274, %c0_275] : memref<25x16x16xf32, #tpu.memory_space<vmem>>, vector<1x16x16xf32>
    %275 = vector.shape_cast %274 : vector<1x16x16xf32> to vector<16x16xf32>
    %cst_276 = arith.constant dense<0.000000e+00> : vector<16x16xf32>
    %276 = tpu.matmul %197, %275, %cst_276 {dimension_numbers = #tpu.dot_dimension_numbers<[1], [0], [0], [1], [0, 0, 1, 1], [], []>} : vector<16x16xf32>, vector<16x16xf32>, vector<16x16xf32> -> vector<16x16xf32>
    %c11_277 = arith.constant 11 : index
    %c0_278 = arith.constant 0 : index
    %c0_279 = arith.constant 0 : index
    %277 = vector.load %arg8[%c11_277, %c0_278, %c0_279] : memref<25x16x16xf32, #tpu.memory_space<vmem>>, vector<1x16x16xf32>
    %278 = vector.shape_cast %277 : vector<1x16x16xf32> to vector<16x16xf32>
    %cst_280 = arith.constant dense<0.000000e+00> : vector<16x16xf32>
    %279 = tpu.matmul %278, %276, %cst_280 {dimension_numbers = #tpu.dot_dimension_numbers<[1], [0], [0], [1], [0, 0, 1, 1], [], []>} : vector<16x16xf32>, vector<16x16xf32>, vector<16x16xf32> -> vector<16x16xf32>
    %280 = arith.addf %273, %279 : vector<16x16xf32>
    %c12_281 = arith.constant 12 : index
    %c0_282 = arith.constant 0 : index
    %c0_283 = arith.constant 0 : index
    %281 = vector.load %arg7[%c12_281, %c0_282, %c0_283] : memref<25x16x16xf32, #tpu.memory_space<vmem>>, vector<1x16x16xf32>
    %282 = vector.shape_cast %281 : vector<1x16x16xf32> to vector<16x16xf32>
    %cst_284 = arith.constant dense<0.000000e+00> : vector<16x16xf32>
    %283 = tpu.matmul %197, %282, %cst_284 {dimension_numbers = #tpu.dot_dimension_numbers<[1], [0], [0], [1], [0, 0, 1, 1], [], []>} : vector<16x16xf32>, vector<16x16xf32>, vector<16x16xf32> -> vector<16x16xf32>
    %c12_285 = arith.constant 12 : index
    %c0_286 = arith.constant 0 : index
    %c0_287 = arith.constant 0 : index
    %284 = vector.load %arg8[%c12_285, %c0_286, %c0_287] : memref<25x16x16xf32, #tpu.memory_space<vmem>>, vector<1x16x16xf32>
    %285 = vector.shape_cast %284 : vector<1x16x16xf32> to vector<16x16xf32>
    %cst_288 = arith.constant dense<0.000000e+00> : vector<16x16xf32>
    %286 = tpu.matmul %285, %283, %cst_288 {dimension_numbers = #tpu.dot_dimension_numbers<[1], [0], [0], [1], [0, 0, 1, 1], [], []>} : vector<16x16xf32>, vector<16x16xf32>, vector<16x16xf32> -> vector<16x16xf32>
    %287 = arith.addf %280, %286 : vector<16x16xf32>
    %c13_289 = arith.constant 13 : index
    %c0_290 = arith.constant 0 : index
    %c0_291 = arith.constant 0 : index
    %288 = vector.load %arg7[%c13_289, %c0_290, %c0_291] : memref<25x16x16xf32, #tpu.memory_space<vmem>>, vector<1x16x16xf32>
    %289 = vector.shape_cast %288 : vector<1x16x16xf32> to vector<16x16xf32>
    %cst_292 = arith.constant dense<0.000000e+00> : vector<16x16xf32>
    %290 = tpu.matmul %197, %289, %cst_292 {dimension_numbers = #tpu.dot_dimension_numbers<[1], [0], [0], [1], [0, 0, 1, 1], [], []>} : vector<16x16xf32>, vector<16x16xf32>, vector<16x16xf32> -> vector<16x16xf32>
    %c13_293 = arith.constant 13 : index
    %c0_294 = arith.constant 0 : index
    %c0_295 = arith.constant 0 : index
    %291 = vector.load %arg8[%c13_293, %c0_294, %c0_295] : memref<25x16x16xf32, #tpu.memory_space<vmem>>, vector<1x16x16xf32>
    %292 = vector.shape_cast %291 : vector<1x16x16xf32> to vector<16x16xf32>
    %cst_296 = arith.constant dense<0.000000e+00> : vector<16x16xf32>
    %293 = tpu.matmul %292, %290, %cst_296 {dimension_numbers = #tpu.dot_dimension_numbers<[1], [0], [0], [1], [0, 0, 1, 1], [], []>} : vector<16x16xf32>, vector<16x16xf32>, vector<16x16xf32> -> vector<16x16xf32>
    %294 = arith.addf %287, %293 : vector<16x16xf32>
    %c14_297 = arith.constant 14 : index
    %c0_298 = arith.constant 0 : index
    %c0_299 = arith.constant 0 : index
    %295 = vector.load %arg7[%c14_297, %c0_298, %c0_299] : memref<25x16x16xf32, #tpu.memory_space<vmem>>, vector<1x16x16xf32>
    %296 = vector.shape_cast %295 : vector<1x16x16xf32> to vector<16x16xf32>
    %cst_300 = arith.constant dense<0.000000e+00> : vector<16x16xf32>
    %297 = tpu.matmul %197, %296, %cst_300 {dimension_numbers = #tpu.dot_dimension_numbers<[1], [0], [0], [1], [0, 0, 1, 1], [], []>} : vector<16x16xf32>, vector<16x16xf32>, vector<16x16xf32> -> vector<16x16xf32>
    %c14_301 = arith.constant 14 : index
    %c0_302 = arith.constant 0 : index
    %c0_303 = arith.constant 0 : index
    %298 = vector.load %arg8[%c14_301, %c0_302, %c0_303] : memref<25x16x16xf32, #tpu.memory_space<vmem>>, vector<1x16x16xf32>
    %299 = vector.shape_cast %298 : vector<1x16x16xf32> to vector<16x16xf32>
    %cst_304 = arith.constant dense<0.000000e+00> : vector<16x16xf32>
    %300 = tpu.matmul %299, %297, %cst_304 {dimension_numbers = #tpu.dot_dimension_numbers<[1], [0], [0], [1], [0, 0, 1, 1], [], []>} : vector<16x16xf32>, vector<16x16xf32>, vector<16x16xf32> -> vector<16x16xf32>
    %301 = arith.addf %294, %300 : vector<16x16xf32>
    %c15_305 = arith.constant 15 : index
    %c0_306 = arith.constant 0 : index
    %c0_307 = arith.constant 0 : index
    %302 = vector.load %arg7[%c15_305, %c0_306, %c0_307] : memref<25x16x16xf32, #tpu.memory_space<vmem>>, vector<1x16x16xf32>
    %303 = vector.shape_cast %302 : vector<1x16x16xf32> to vector<16x16xf32>
    %cst_308 = arith.constant dense<0.000000e+00> : vector<16x16xf32>
    %304 = tpu.matmul %197, %303, %cst_308 {dimension_numbers = #tpu.dot_dimension_numbers<[1], [0], [0], [1], [0, 0, 1, 1], [], []>} : vector<16x16xf32>, vector<16x16xf32>, vector<16x16xf32> -> vector<16x16xf32>
    %c15_309 = arith.constant 15 : index
    %c0_310 = arith.constant 0 : index
    %c0_311 = arith.constant 0 : index
    %305 = vector.load %arg8[%c15_309, %c0_310, %c0_311] : memref<25x16x16xf32, #tpu.memory_space<vmem>>, vector<1x16x16xf32>
    %306 = vector.shape_cast %305 : vector<1x16x16xf32> to vector<16x16xf32>
    %cst_312 = arith.constant dense<0.000000e+00> : vector<16x16xf32>
    %307 = tpu.matmul %306, %304, %cst_312 {dimension_numbers = #tpu.dot_dimension_numbers<[1], [0], [0], [1], [0, 0, 1, 1], [], []>} : vector<16x16xf32>, vector<16x16xf32>, vector<16x16xf32> -> vector<16x16xf32>
    %308 = arith.addf %301, %307 : vector<16x16xf32>
    %c16_313 = arith.constant 16 : index
    %c0_314 = arith.constant 0 : index
    %c0_315 = arith.constant 0 : index
    %309 = vector.load %arg7[%c16_313, %c0_314, %c0_315] : memref<25x16x16xf32, #tpu.memory_space<vmem>>, vector<1x16x16xf32>
    %310 = vector.shape_cast %309 : vector<1x16x16xf32> to vector<16x16xf32>
    %cst_316 = arith.constant dense<0.000000e+00> : vector<16x16xf32>
    %311 = tpu.matmul %197, %310, %cst_316 {dimension_numbers = #tpu.dot_dimension_numbers<[1], [0], [0], [1], [0, 0, 1, 1], [], []>} : vector<16x16xf32>, vector<16x16xf32>, vector<16x16xf32> -> vector<16x16xf32>
    %c16_317 = arith.constant 16 : index
    %c0_318 = arith.constant 0 : index
    %c0_319 = arith.constant 0 : index
    %312 = vector.load %arg8[%c16_317, %c0_318, %c0_319] : memref<25x16x16xf32, #tpu.memory_space<vmem>>, vector<1x16x16xf32>
    %313 = vector.shape_cast %312 : vector<1x16x16xf32> to vector<16x16xf32>
    %cst_320 = arith.constant dense<0.000000e+00> : vector<16x16xf32>
    %314 = tpu.matmul %313, %311, %cst_320 {dimension_numbers = #tpu.dot_dimension_numbers<[1], [0], [0], [1], [0, 0, 1, 1], [], []>} : vector<16x16xf32>, vector<16x16xf32>, vector<16x16xf32> -> vector<16x16xf32>
    %315 = arith.addf %308, %314 : vector<16x16xf32>
    %c17_321 = arith.constant 17 : index
    %c0_322 = arith.constant 0 : index
    %c0_323 = arith.constant 0 : index
    %316 = vector.load %arg7[%c17_321, %c0_322, %c0_323] : memref<25x16x16xf32, #tpu.memory_space<vmem>>, vector<1x16x16xf32>
    %317 = vector.shape_cast %316 : vector<1x16x16xf32> to vector<16x16xf32>
    %cst_324 = arith.constant dense<0.000000e+00> : vector<16x16xf32>
    %318 = tpu.matmul %197, %317, %cst_324 {dimension_numbers = #tpu.dot_dimension_numbers<[1], [0], [0], [1], [0, 0, 1, 1], [], []>} : vector<16x16xf32>, vector<16x16xf32>, vector<16x16xf32> -> vector<16x16xf32>
    %c17_325 = arith.constant 17 : index
    %c0_326 = arith.constant 0 : index
    %c0_327 = arith.constant 0 : index
    %319 = vector.load %arg8[%c17_325, %c0_326, %c0_327] : memref<25x16x16xf32, #tpu.memory_space<vmem>>, vector<1x16x16xf32>
    %320 = vector.shape_cast %319 : vector<1x16x16xf32> to vector<16x16xf32>
    %cst_328 = arith.constant dense<0.000000e+00> : vector<16x16xf32>
    %321 = tpu.matmul %320, %318, %cst_328 {dimension_numbers = #tpu.dot_dimension_numbers<[1], [0], [0], [1], [0, 0, 1, 1], [], []>} : vector<16x16xf32>, vector<16x16xf32>, vector<16x16xf32> -> vector<16x16xf32>
    %322 = arith.addf %315, %321 : vector<16x16xf32>
    %c18_329 = arith.constant 18 : index
    %c0_330 = arith.constant 0 : index
    %c0_331 = arith.constant 0 : index
    %323 = vector.load %arg7[%c18_329, %c0_330, %c0_331] : memref<25x16x16xf32, #tpu.memory_space<vmem>>, vector<1x16x16xf32>
    %324 = vector.shape_cast %323 : vector<1x16x16xf32> to vector<16x16xf32>
    %cst_332 = arith.constant dense<0.000000e+00> : vector<16x16xf32>
    %325 = tpu.matmul %197, %324, %cst_332 {dimension_numbers = #tpu.dot_dimension_numbers<[1], [0], [0], [1], [0, 0, 1, 1], [], []>} : vector<16x16xf32>, vector<16x16xf32>, vector<16x16xf32> -> vector<16x16xf32>
    %c18_333 = arith.constant 18 : index
    %c0_334 = arith.constant 0 : index
    %c0_335 = arith.constant 0 : index
    %326 = vector.load %arg8[%c18_333, %c0_334, %c0_335] : memref<25x16x16xf32, #tpu.memory_space<vmem>>, vector<1x16x16xf32>
    %327 = vector.shape_cast %326 : vector<1x16x16xf32> to vector<16x16xf32>
    %cst_336 = arith.constant dense<0.000000e+00> : vector<16x16xf32>
    %328 = tpu.matmul %327, %325, %cst_336 {dimension_numbers = #tpu.dot_dimension_numbers<[1], [0], [0], [1], [0, 0, 1, 1], [], []>} : vector<16x16xf32>, vector<16x16xf32>, vector<16x16xf32> -> vector<16x16xf32>
    %329 = arith.addf %322, %328 : vector<16x16xf32>
    %c19_337 = arith.constant 19 : index
    %c0_338 = arith.constant 0 : index
    %c0_339 = arith.constant 0 : index
    %330 = vector.load %arg7[%c19_337, %c0_338, %c0_339] : memref<25x16x16xf32, #tpu.memory_space<vmem>>, vector<1x16x16xf32>
    %331 = vector.shape_cast %330 : vector<1x16x16xf32> to vector<16x16xf32>
    %cst_340 = arith.constant dense<0.000000e+00> : vector<16x16xf32>
    %332 = tpu.matmul %197, %331, %cst_340 {dimension_numbers = #tpu.dot_dimension_numbers<[1], [0], [0], [1], [0, 0, 1, 1], [], []>} : vector<16x16xf32>, vector<16x16xf32>, vector<16x16xf32> -> vector<16x16xf32>
    %c19_341 = arith.constant 19 : index
    %c0_342 = arith.constant 0 : index
    %c0_343 = arith.constant 0 : index
    %333 = vector.load %arg8[%c19_341, %c0_342, %c0_343] : memref<25x16x16xf32, #tpu.memory_space<vmem>>, vector<1x16x16xf32>
    %334 = vector.shape_cast %333 : vector<1x16x16xf32> to vector<16x16xf32>
    %cst_344 = arith.constant dense<0.000000e+00> : vector<16x16xf32>
    %335 = tpu.matmul %334, %332, %cst_344 {dimension_numbers = #tpu.dot_dimension_numbers<[1], [0], [0], [1], [0, 0, 1, 1], [], []>} : vector<16x16xf32>, vector<16x16xf32>, vector<16x16xf32> -> vector<16x16xf32>
    %336 = arith.addf %329, %335 : vector<16x16xf32>
    %c20_345 = arith.constant 20 : index
    %c0_346 = arith.constant 0 : index
    %c0_347 = arith.constant 0 : index
    %337 = vector.load %arg7[%c20_345, %c0_346, %c0_347] : memref<25x16x16xf32, #tpu.memory_space<vmem>>, vector<1x16x16xf32>
    %338 = vector.shape_cast %337 : vector<1x16x16xf32> to vector<16x16xf32>
    %cst_348 = arith.constant dense<0.000000e+00> : vector<16x16xf32>
    %339 = tpu.matmul %197, %338, %cst_348 {dimension_numbers = #tpu.dot_dimension_numbers<[1], [0], [0], [1], [0, 0, 1, 1], [], []>} : vector<16x16xf32>, vector<16x16xf32>, vector<16x16xf32> -> vector<16x16xf32>
    %c20_349 = arith.constant 20 : index
    %c0_350 = arith.constant 0 : index
    %c0_351 = arith.constant 0 : index
    %340 = vector.load %arg8[%c20_349, %c0_350, %c0_351] : memref<25x16x16xf32, #tpu.memory_space<vmem>>, vector<1x16x16xf32>
    %341 = vector.shape_cast %340 : vector<1x16x16xf32> to vector<16x16xf32>
    %cst_352 = arith.constant dense<0.000000e+00> : vector<16x16xf32>
    %342 = tpu.matmul %341, %339, %cst_352 {dimension_numbers = #tpu.dot_dimension_numbers<[1], [0], [0], [1], [0, 0, 1, 1], [], []>} : vector<16x16xf32>, vector<16x16xf32>, vector<16x16xf32> -> vector<16x16xf32>
    %343 = arith.addf %336, %342 : vector<16x16xf32>
    %c21_353 = arith.constant 21 : index
    %c0_354 = arith.constant 0 : index
    %c0_355 = arith.constant 0 : index
    %344 = vector.load %arg7[%c21_353, %c0_354, %c0_355] : memref<25x16x16xf32, #tpu.memory_space<vmem>>, vector<1x16x16xf32>
    %345 = vector.shape_cast %344 : vector<1x16x16xf32> to vector<16x16xf32>
    %cst_356 = arith.constant dense<0.000000e+00> : vector<16x16xf32>
    %346 = tpu.matmul %197, %345, %cst_356 {dimension_numbers = #tpu.dot_dimension_numbers<[1], [0], [0], [1], [0, 0, 1, 1], [], []>} : vector<16x16xf32>, vector<16x16xf32>, vector<16x16xf32> -> vector<16x16xf32>
    %c21_357 = arith.constant 21 : index
    %c0_358 = arith.constant 0 : index
    %c0_359 = arith.constant 0 : index
    %347 = vector.load %arg8[%c21_357, %c0_358, %c0_359] : memref<25x16x16xf32, #tpu.memory_space<vmem>>, vector<1x16x16xf32>
    %348 = vector.shape_cast %347 : vector<1x16x16xf32> to vector<16x16xf32>
    %cst_360 = arith.constant dense<0.000000e+00> : vector<16x16xf32>
    %349 = tpu.matmul %348, %346, %cst_360 {dimension_numbers = #tpu.dot_dimension_numbers<[1], [0], [0], [1], [0, 0, 1, 1], [], []>} : vector<16x16xf32>, vector<16x16xf32>, vector<16x16xf32> -> vector<16x16xf32>
    %350 = arith.addf %343, %349 : vector<16x16xf32>
    %c22_361 = arith.constant 22 : index
    %c0_362 = arith.constant 0 : index
    %c0_363 = arith.constant 0 : index
    %351 = vector.load %arg7[%c22_361, %c0_362, %c0_363] : memref<25x16x16xf32, #tpu.memory_space<vmem>>, vector<1x16x16xf32>
    %352 = vector.shape_cast %351 : vector<1x16x16xf32> to vector<16x16xf32>
    %cst_364 = arith.constant dense<0.000000e+00> : vector<16x16xf32>
    %353 = tpu.matmul %197, %352, %cst_364 {dimension_numbers = #tpu.dot_dimension_numbers<[1], [0], [0], [1], [0, 0, 1, 1], [], []>} : vector<16x16xf32>, vector<16x16xf32>, vector<16x16xf32> -> vector<16x16xf32>
    %c22_365 = arith.constant 22 : index
    %c0_366 = arith.constant 0 : index
    %c0_367 = arith.constant 0 : index
    %354 = vector.load %arg8[%c22_365, %c0_366, %c0_367] : memref<25x16x16xf32, #tpu.memory_space<vmem>>, vector<1x16x16xf32>
    %355 = vector.shape_cast %354 : vector<1x16x16xf32> to vector<16x16xf32>
    %cst_368 = arith.constant dense<0.000000e+00> : vector<16x16xf32>
    %356 = tpu.matmul %355, %353, %cst_368 {dimension_numbers = #tpu.dot_dimension_numbers<[1], [0], [0], [1], [0, 0, 1, 1], [], []>} : vector<16x16xf32>, vector<16x16xf32>, vector<16x16xf32> -> vector<16x16xf32>
    %357 = arith.addf %350, %356 : vector<16x16xf32>
    %c23_369 = arith.constant 23 : index
    %c0_370 = arith.constant 0 : index
    %c0_371 = arith.constant 0 : index
    %358 = vector.load %arg7[%c23_369, %c0_370, %c0_371] : memref<25x16x16xf32, #tpu.memory_space<vmem>>, vector<1x16x16xf32>
    %359 = vector.shape_cast %358 : vector<1x16x16xf32> to vector<16x16xf32>
    %cst_372 = arith.constant dense<0.000000e+00> : vector<16x16xf32>
    %360 = tpu.matmul %197, %359, %cst_372 {dimension_numbers = #tpu.dot_dimension_numbers<[1], [0], [0], [1], [0, 0, 1, 1], [], []>} : vector<16x16xf32>, vector<16x16xf32>, vector<16x16xf32> -> vector<16x16xf32>
    %c23_373 = arith.constant 23 : index
    %c0_374 = arith.constant 0 : index
    %c0_375 = arith.constant 0 : index
    %361 = vector.load %arg8[%c23_373, %c0_374, %c0_375] : memref<25x16x16xf32, #tpu.memory_space<vmem>>, vector<1x16x16xf32>
    %362 = vector.shape_cast %361 : vector<1x16x16xf32> to vector<16x16xf32>
    %cst_376 = arith.constant dense<0.000000e+00> : vector<16x16xf32>
    %363 = tpu.matmul %362, %360, %cst_376 {dimension_numbers = #tpu.dot_dimension_numbers<[1], [0], [0], [1], [0, 0, 1, 1], [], []>} : vector<16x16xf32>, vector<16x16xf32>, vector<16x16xf32> -> vector<16x16xf32>
    %364 = arith.addf %357, %363 : vector<16x16xf32>
    %c24_377 = arith.constant 24 : index
    %c0_378 = arith.constant 0 : index
    %c0_379 = arith.constant 0 : index
    %365 = vector.load %arg7[%c24_377, %c0_378, %c0_379] : memref<25x16x16xf32, #tpu.memory_space<vmem>>, vector<1x16x16xf32>
    %366 = vector.shape_cast %365 : vector<1x16x16xf32> to vector<16x16xf32>
    %cst_380 = arith.constant dense<0.000000e+00> : vector<16x16xf32>
    %367 = tpu.matmul %197, %366, %cst_380 {dimension_numbers = #tpu.dot_dimension_numbers<[1], [0], [0], [1], [0, 0, 1, 1], [], []>} : vector<16x16xf32>, vector<16x16xf32>, vector<16x16xf32> -> vector<16x16xf32>
    %c24_381 = arith.constant 24 : index
    %c0_382 = arith.constant 0 : index
    %c0_383 = arith.constant 0 : index
    %368 = vector.load %arg8[%c24_381, %c0_382, %c0_383] : memref<25x16x16xf32, #tpu.memory_space<vmem>>, vector<1x16x16xf32>
    %369 = vector.shape_cast %368 : vector<1x16x16xf32> to vector<16x16xf32>
    %cst_384 = arith.constant dense<0.000000e+00> : vector<16x16xf32>
    %370 = tpu.matmul %369, %367, %cst_384 {dimension_numbers = #tpu.dot_dimension_numbers<[1], [0], [0], [1], [0, 0, 1, 1], [], []>} : vector<16x16xf32>, vector<16x16xf32>, vector<16x16xf32> -> vector<16x16xf32>
    %371 = arith.addf %364, %370 : vector<16x16xf32>
    %c0_385 = arith.constant 0 : index
    %c0_386 = arith.constant 0 : index
    %372 = vector.load %arg9[%c0_385, %c0_386] : memref<16x1xf32, #tpu.memory_space<vmem>>, vector<16x1xf32>
    %373 = vector.broadcast %372 : vector<16x1xf32> to vector<16x16xf32>
    %374 = arith.addf %371, %373 : vector<16x16xf32>
    %cst_387 = arith.constant 0.000000e+00 : f32
    %375 = vector.broadcast %cst_387 : f32 to vector<16x16xf32>
    %376 = arith.maximumf %374, %375 : vector<16x16xf32>
    %c0_388 = arith.constant 0 : index
    %c0_389 = arith.constant 0 : index
    %377 = vector.load %arg10[%c0_388, %c0_389] : memref<16x128xf32, #tpu.memory_space<vmem>>, vector<16x128xf32>
    %cst_390 = arith.constant dense<0.000000e+00> : vector<16x128xf32>
    %378 = tpu.matmul %376, %377, %cst_390 {dimension_numbers = #tpu.dot_dimension_numbers<[1], [0], [0], [1], [0, 0, 1, 1], [], []>} : vector<16x16xf32>, vector<16x128xf32>, vector<16x128xf32> -> vector<16x128xf32>
    %379 = vector.extract_strided_slice %378 {offsets = [0, 0], sizes = [16, 32], strides = [1, 1]} : vector<16x128xf32> to vector<16x32xf32>
    %380 = vector.extract_strided_slice %378 {offsets = [0, 32], sizes = [16, 32], strides = [1, 1]} : vector<16x128xf32> to vector<16x32xf32>
    %381 = arith.maximumf %379, %380 : vector<16x32xf32>
    %382 = vector.extract_strided_slice %378 {offsets = [0, 64], sizes = [16, 32], strides = [1, 1]} : vector<16x128xf32> to vector<16x32xf32>
    %383 = vector.extract_strided_slice %378 {offsets = [0, 96], sizes = [16, 32], strides = [1, 1]} : vector<16x128xf32> to vector<16x32xf32>
    %384 = arith.maximumf %382, %383 : vector<16x32xf32>
    %385 = arith.maximumf %381, %384 : vector<16x32xf32>
    %c0_391 = arith.constant 0 : index
    %c0_392 = arith.constant 0 : index
    %386 = vector.load %arg12[%c0_391, %c0_392] : memref<2x16xf32, #tpu.memory_space<vmem>>, vector<2x16xf32>
    %c0_393 = arith.constant 0 : index
    %c0_394 = arith.constant 0 : index
    %387 = vector.load %arg11[%c0_393, %c0_394] : memref<16x32xf32, #tpu.memory_space<vmem>>, vector<16x32xf32>
    %388 = arith.mulf %387, %385 : vector<16x32xf32>
    %cst_395 = arith.constant dense<0.000000e+00> : vector<2x32xf32>
    %389 = tpu.matmul %386, %388, %cst_395 {dimension_numbers = #tpu.dot_dimension_numbers<[1], [0], [0], [1], [0, 0, 1, 1], [], []>} : vector<2x16xf32>, vector<16x32xf32>, vector<2x32xf32> -> vector<2x32xf32>
    %c0_396 = arith.constant 0 : index
    %c0_397 = arith.constant 0 : index
    %390 = vector.load %arg13[%c0_396, %c0_397] : memref<32x32xf32, #tpu.memory_space<vmem>>, vector<32x32xf32>
    %cst_398 = arith.constant dense<0.000000e+00> : vector<2x32xf32>
    %391 = tpu.matmul %389, %390, %cst_398 {dimension_numbers = #tpu.dot_dimension_numbers<[1], [0], [0], [1], [0, 0, 1, 1], [], []>} : vector<2x32xf32>, vector<32x32xf32>, vector<2x32xf32> -> vector<2x32xf32>
    %c0_399 = arith.constant 0 : index
    %c0_400 = arith.constant 0 : index
    %392 = vector.load %arg14[%c0_399, %c0_400] : memref<1x32xf32, #tpu.memory_space<vmem>>, vector<1x32xf32>
    %393 = vector.broadcast %392 : vector<1x32xf32> to vector<2x32xf32>
    %394 = arith.addf %391, %393 : vector<2x32xf32>
    %cst_401 = arith.constant 0.000000e+00 : f32
    %395 = vector.broadcast %cst_401 : f32 to vector<2x32xf32>
    %396 = arith.maximumf %394, %395 : vector<2x32xf32>
    %c0_402 = arith.constant 0 : index
    %c0_403 = arith.constant 0 : index
    %397 = vector.load %arg15[%c0_402, %c0_403] : memref<32x128xf32, #tpu.memory_space<vmem>>, vector<32x128xf32>
    %cst_404 = arith.constant dense<0.000000e+00> : vector<2x128xf32>
    %398 = tpu.matmul %396, %397, %cst_404 {dimension_numbers = #tpu.dot_dimension_numbers<[1], [0], [0], [1], [0, 0, 1, 1], [], []>} : vector<2x32xf32>, vector<32x128xf32>, vector<2x128xf32> -> vector<2x128xf32>
    %c0_405 = arith.constant 0 : index
    %c0_406 = arith.constant 0 : index
    %399 = vector.load %arg16[%c0_405, %c0_406] : memref<1x128xf32, #tpu.memory_space<vmem>>, vector<1x128xf32>
    %400 = vector.broadcast %399 : vector<1x128xf32> to vector<2x128xf32>
    %401 = arith.addf %398, %400 : vector<2x128xf32>
    %c0_407 = arith.constant 0 : index
    %c0_408 = arith.constant 0 : index
    %402 = vector.load %arg17[%c0_407, %c0_408] : memref<2x128xf32, #tpu.memory_space<vmem>>, vector<2x128xf32>
    tpu.vector_store %arg17[%c0_407, %c0_408], %401 {strides = array<i32>} : memref<2x128xf32, #tpu.memory_space<vmem>>, vector<2x128xf32>,
    return
  }
  func.func @transform_0(%arg0: i32) -> (i32, i32) {
    %c0_i32 = arith.constant 0 : i32
    %c0_i32_0 = arith.constant 0 : i32
    return %arg0, %c0_i32 : i32, i32
  }
  func.func @transform_1(%arg0: i32) -> (i32, i32) {
    %c0_i32 = arith.constant 0 : i32
    %c0_i32_0 = arith.constant 0 : i32
    %c0_i32_1 = arith.constant 0 : i32
    return %c0_i32, %c0_i32_0 : i32, i32
  }
  func.func @transform_2(%arg0: i32) -> (i32, i32, i32) {
    %c0_i32 = arith.constant 0 : i32
    %c0_i32_0 = arith.constant 0 : i32
    %c0_i32_1 = arith.constant 0 : i32
    %c0_i32_2 = arith.constant 0 : i32
    return %c0_i32, %c0_i32_0, %c0_i32_1 : i32, i32, i32
  }
  func.func @transform_3(%arg0: i32) -> (i32, i32, i32) {
    %c0_i32 = arith.constant 0 : i32
    %c0_i32_0 = arith.constant 0 : i32
    %c0_i32_1 = arith.constant 0 : i32
    %c0_i32_2 = arith.constant 0 : i32
    return %c0_i32, %c0_i32_0, %c0_i32_1 : i32, i32, i32
  }
  func.func @transform_4(%arg0: i32) -> (i32, i32) {
    %c0_i32 = arith.constant 0 : i32
    %c0_i32_0 = arith.constant 0 : i32
    %c0_i32_1 = arith.constant 0 : i32
    return %c0_i32, %c0_i32_0 : i32, i32
  }
  func.func @transform_5(%arg0: i32) -> (i32, i32) {
    %c0_i32 = arith.constant 0 : i32
    %c0_i32_0 = arith.constant 0 : i32
    %c0_i32_1 = arith.constant 0 : i32
    return %c0_i32, %c0_i32_0 : i32, i32
  }
  func.func @transform_6(%arg0: i32) -> (i32, i32, i32) {
    %c0_i32 = arith.constant 0 : i32
    %c0_i32_0 = arith.constant 0 : i32
    %c0_i32_1 = arith.constant 0 : i32
    %c0_i32_2 = arith.constant 0 : i32
    return %c0_i32, %c0_i32_0, %c0_i32_1 : i32, i32, i32
  }
  func.func @transform_7(%arg0: i32) -> (i32, i32, i32) {
    %c0_i32 = arith.constant 0 : i32
    %c0_i32_0 = arith.constant 0 : i32
    %c0_i32_1 = arith.constant 0 : i32
    %c0_i32_2 = arith.constant 0 : i32
    return %c0_i32, %c0_i32_0, %c0_i32_1 : i32, i32, i32
  }
  func.func @transform_8(%arg0: i32) -> (i32, i32) {
    %c0_i32 = arith.constant 0 : i32
    %c0_i32_0 = arith.constant 0 : i32
    %c0_i32_1 = arith.constant 0 : i32
    return %c0_i32, %c0_i32_0 : i32, i32
  }
  func.func @transform_9(%arg0: i32) -> (i32, i32) {
    %c0_i32 = arith.constant 0 : i32
    %c0_i32_0 = arith.constant 0 : i32
    %c0_i32_1 = arith.constant 0 : i32
    return %c0_i32, %c0_i32_0 : i32, i32
  }
  func.func @transform_10(%arg0: i32) -> (i32, i32) {
    %c0_i32 = arith.constant 0 : i32
    %c0_i32_0 = arith.constant 0 : i32
    %c0_i32_1 = arith.constant 0 : i32
    return %c0_i32, %c0_i32_0 : i32, i32
  }
  func.func @transform_11(%arg0: i32) -> (i32, i32) {
    %c0_i32 = arith.constant 0 : i32
    %c0_i32_0 = arith.constant 0 : i32
    %c0_i32_1 = arith.constant 0 : i32
    return %c0_i32, %c0_i32_0 : i32, i32
  }
  func.func @transform_12(%arg0: i32) -> (i32, i32) {
    %c0_i32 = arith.constant 0 : i32
    %c0_i32_0 = arith.constant 0 : i32
    %c0_i32_1 = arith.constant 0 : i32
    return %c0_i32, %c0_i32_0 : i32, i32
  }
  func.func @transform_13(%arg0: i32) -> (i32, i32) {
    %c0_i32 = arith.constant 0 : i32
    %c0_i32_0 = arith.constant 0 : i32
    %c0_i32_1 = arith.constant 0 : i32
    return %c0_i32, %c0_i32_0 : i32, i32
  }
  func.func @transform_14(%arg0: i32) -> (i32, i32) {
    %c0_i32 = arith.constant 0 : i32
    %c0_i32_0 = arith.constant 0 : i32
    %c0_i32_1 = arith.constant 0 : i32
    return %c0_i32, %c0_i32_0 : i32, i32
  }
  func.func @transform_15(%arg0: i32) -> (i32, i32) {
    %c0_i32 = arith.constant 0 : i32
    %c0_i32_0 = arith.constant 0 : i32
    %c0_i32_1 = arith.constant 0 : i32
    return %c0_i32, %c0_i32_0 : i32, i32
  }
  func.func @transform_16(%arg0: i32) -> (i32, i32) {
    %c0_i32 = arith.constant 0 : i32
    %c0_i32_0 = arith.constant 0 : i32
    return %arg0, %c0_i32 : i32, i32
  }
}

</mosaic_0001>

<llo_original>
// kernel: tpu_custom_call.1
$region0: #{tpu_custom_call.1}
  #allocation0 [shape = 'u32[]', space=smem, size = 0x4, offset = 0x4, fixed_abs, tag = 'smem constant byte address 0x4 - core index']
  #allocation1 [shape = 'u32[144,128]{1,0:T(1,128)}', space=vmem, size = 0x12000, scoped, tag = 'internal scratch']
  %s0 = inlined_call_operand.hbm [shape: f32[8,256], index: 0, kind: input, shape index: {}]
  %s1 = inlined_call_operand.hbm [shape: f32[256,256], index: 1, kind: input, shape index: {}]
  %s2 = inlined_call_operand.vmem [shape: f32[25,64,64], index: 2, kind: input, shape index: {}]
  %s3 = inlined_call_operand.vmem [shape: f32[25,16,8], index: 3, kind: input, shape index: {}]
  %s4 = inlined_call_operand.vmem [shape: f32[16,1], index: 4, kind: input, shape index: {}]
  %s5 = inlined_call_operand.hbm [shape: f32[64,64], index: 5, kind: input, shape index: {}]
  %s6 = inlined_call_operand.vmem [shape: f32[25,16,16], index: 6, kind: input, shape index: {}]
  %s7 = inlined_call_operand.vmem [shape: f32[25,16,16], index: 7, kind: input, shape index: {}]
  %s8 = inlined_call_operand.vmem [shape: f32[16,1], index: 8, kind: input, shape index: {}]
  %s9 = inlined_call_operand.hbm [shape: f32[16,128], index: 9, kind: input, shape index: {}]
  %s10 = inlined_call_operand.hbm [shape: f32[16,32], index: 10, kind: input, shape index: {}]
  %s11 = inlined_call_operand.vmem [shape: f32[2,16], index: 11, kind: input, shape index: {}]
  %s12 = inlined_call_operand.vmem [shape: f32[32,32], index: 12, kind: input, shape index: {}]
  %s13 = inlined_call_operand.vmem [shape: f32[1,32], index: 13, kind: input, shape index: {}]
  %s14 = inlined_call_operand.hbm [shape: f32[32,128], index: 14, kind: input, shape index: {}]
  %s15 = inlined_call_operand.vmem [shape: f32[1,128], index: 15, kind: input, shape index: {}]
  %s16 = inlined_call_operand.hbm [shape: f32[2,128], index: 16, kind: output, shape index: {}]
  %s17 = sld [smem:[#allocation0]]
  $region98: #{tpu_custom_call.1} parent=0
    _
  %s19 = ssub.s32 1, %s17
  %s20 = scalar_select 0, %s19, %s17
  $region1: #{tpu_custom_call.1} parent=0
    #allocation2 [shape = 'u8[8192]{0}', space=vmem, size = 0x2000, scoped, tag = 'input window, operand 0, single buffered']
    #allocation3 [shape = 's32[1]{0}', space=sflag, size = 0x4, scoped, tag = 'scoped memory for tpu_custom_call.1']
    #allocation4 [shape = 's32[1]{0}', space=sflag, size = 0x4, scoped, tag = 'scoped memory for tpu_custom_call.1']
    #allocation5 [shape = 'u8[262144]{0}', space=vmem, size = 0x40000, scoped, tag = 'input window, operand 1, single buffered']
    #allocation6 [shape = 's32[1]{0}', space=sflag, size = 0x4, scoped, tag = 'scoped memory for tpu_custom_call.1']
    #allocation7 [shape = 'u8[32768]{0}', space=vmem, size = 0x8000, scoped, tag = 'input window, operand 5, single buffered']
    #allocation8 [shape = 'u8[8192]{0}', space=vmem, size = 0x2000, scoped, tag = 'input window, operand 9, single buffered']
    #allocation9 [shape = 's32[1]{0}', space=sflag, size = 0x4, scoped, tag = 'scoped memory for tpu_custom_call.1']
    #allocation10 [shape = 'u8[8192]{0}', space=vmem, size = 0x2000, scoped, tag = 'input window, operand 10, single buffered']
    #allocation11 [shape = 'u8[16384]{0}', space=vmem, size = 0x4000, scoped, tag = 'input window, operand 14, single buffered']
    #allocation12 [shape = 's32[1]{0}', space=sflag, size = 0x4, scoped, tag = 'scoped memory for tpu_custom_call.1']
    #allocation13 [shape = 'u8[1024]{0}', space=vmem, size = 0x400, scoped, tag = 'output window, operand 0, single buffered']
    %21 = vsyncpa [#allocation3], 0
    %22 = vsyncpa [#allocation6], 0
    %23 = vsyncpa [#allocation9], 0
    %24 = vsyncpa [#allocation12], 0
    %25 = vsyncpa [#allocation4], 0
    // Predicated region
    $region2: #{tpu_custom_call.1} parent=1 // pred_check
      _
    $region3: #{tpu_custom_call.1} parent=1 // pred_check_branch
      %27 = sbr.rel (0) target = $region5
    $region4: #{tpu_custom_call.1} parent=1 // pred_region
      %s29 = ssub.s32 256, 256
      %30 = vsyncadd [#allocation3], %s29
      %s32 = sshll.u32 [#allocation2], 4
      %s33 = int_to_ptr.vmem [resolvable:$true] %s32
      %35 = dma.hbm_to_vmem [thread:$0]  %s0, 256, %s33, [#allocation3]
    $region5: #{tpu_custom_call.1} parent=1 // pred_fallthru
      _
    // Predicated region
    $region6: #{tpu_custom_call.1} parent=1 // pred_check
      _
    $region7: #{tpu_custom_call.1} parent=1 // pred_check_branch
      %37 = sbr.rel (0) target = $region9
    $region8: #{tpu_custom_call.1} parent=1 // pred_region
      %s39 = ssub.s32 8192, 8192
      %40 = vsyncadd [#allocation6], %s39
      %s41 = sshll.u32 [#allocation5], 4
      %s42 = int_to_ptr.vmem [resolvable:$true] %s41
      %47 = dma.hbm_to_vmem [thread:$0]  %s1, 8192, %s42, [#allocation6], 256, 256, 16
    $region9: #{tpu_custom_call.1} parent=1 // pred_fallthru
      _
    // Predicated region
    $region10: #{tpu_custom_call.1} parent=1 // pred_check
      _
    $region11: #{tpu_custom_call.1} parent=1 // pred_check_branch
      %49 = sbr.rel (0) target = $region13
    $region12: #{tpu_custom_call.1} parent=1 // pred_region
      _
    $region13: #{tpu_custom_call.1} parent=1 // pred_fallthru
      _
    // Predicated region
    $region14: #{tpu_custom_call.1} parent=1 // pred_check
      _
    $region15: #{tpu_custom_call.1} parent=1 // pred_check_branch
      %51 = sbr.rel (0) target = $region17
    $region16: #{tpu_custom_call.1} parent=1 // pred_region
      _
    $region17: #{tpu_custom_call.1} parent=1 // pred_fallthru
      _
    // Predicated region
    $region18: #{tpu_custom_call.1} parent=1 // pred_check
      _
    $region19: #{tpu_custom_call.1} parent=1 // pred_check_branch
      %53 = sbr.rel (0) target = $region21
    $region20: #{tpu_custom_call.1} parent=1 // pred_region
      _
    $region21: #{tpu_custom_call.1} parent=1 // pred_fallthru
      _
    // Predicated region
    $region22: #{tpu_custom_call.1} parent=1 // pred_check
      _
    $region23: #{tpu_custom_call.1} parent=1 // pred_check_branch
      %55 = sbr.rel (0) target = $region25
    $region24: #{tpu_custom_call.1} parent=1 // pred_region
      %s57 = ssub.s32 1024, 1024
      %58 = vsyncadd [#allocation6], %s57
      %s59 = sshll.u32 [#allocation7], 4
      %s60 = int_to_ptr.vmem [resolvable:$true] %s59
      %65 = dma.hbm_to_vmem [thread:$0]  %s5, 1024, %s60, [#allocation6], 128, 128, 8
    $region25: #{tpu_custom_call.1} parent=1 // pred_fallthru
      _
    // Predicated region
    $region26: #{tpu_custom_call.1} parent=1 // pred_check
      _
    $region27: #{tpu_custom_call.1} parent=1 // pred_check_branch
      %67 = sbr.rel (0) target = $region29
    $region28: #{tpu_custom_call.1} parent=1 // pred_region
      _
    $region29: #{tpu_custom_call.1} parent=1 // pred_fallthru
      _
    // Predicated region
    $region30: #{tpu_custom_call.1} parent=1 // pred_check
      _
    $region31: #{tpu_custom_call.1} parent=1 // pred_check_branch
      %69 = sbr.rel (0) target = $region33
    $region32: #{tpu_custom_call.1} parent=1 // pred_region
      _
    $region33: #{tpu_custom_call.1} parent=1 // pred_fallthru
      _
    // Predicated region
    $region34: #{tpu_custom_call.1} parent=1 // pred_check
      _
    $region35: #{tpu_custom_call.1} parent=1 // pred_check_branch
      %71 = sbr.rel (0) target = $region37
    $region36: #{tpu_custom_call.1} parent=1 // pred_region
      _
    $region37: #{tpu_custom_call.1} parent=1 // pred_fallthru
      _
    // Predicated region
    $region38: #{tpu_custom_call.1} parent=1 // pred_check
      _
    $region39: #{tpu_custom_call.1} parent=1 // pred_check_branch
      %73 = sbr.rel (0) target = $region41
    $region40: #{tpu_custom_call.1} parent=1 // pred_region
      %s75 = ssub.s32 256, 256
      %76 = vsyncadd [#allocation9], %s75
      %s77 = sshll.u32 [#allocation8], 4
      %s78 = int_to_ptr.vmem [resolvable:$true] %s77
      %83 = dma.hbm_to_vmem [thread:$0]  %s9, 256, %s78, [#allocation9], 128, 128, 8
    $region41: #{tpu_custom_call.1} parent=1 // pred_fallthru
      _
    // Predicated region
    $region42: #{tpu_custom_call.1} parent=1 // pred_check
      _
    $region43: #{tpu_custom_call.1} parent=1 // pred_check_branch
      %85 = sbr.rel (0) target = $region45
    $region44: #{tpu_custom_call.1} parent=1 // pred_region
      %s87 = ssub.s32 256, 256
      %88 = vsyncadd [#allocation9], %s87
      %s89 = sshll.u32 [#allocation10], 4
      %s90 = int_to_ptr.vmem [resolvable:$true] %s89
      %95 = dma.hbm_to_vmem [thread:$0]  %s10, 256, %s90, [#allocation9], 128, 128, 8
    $region45: #{tpu_custom_call.1} parent=1 // pred_fallthru
      _
    // Predicated region
    $region46: #{tpu_custom_call.1} parent=1 // pred_check
      _
    $region47: #{tpu_custom_call.1} parent=1 // pred_check_branch
      %97 = sbr.rel (0) target = $region49
    $region48: #{tpu_custom_call.1} parent=1 // pred_region
      _
    $region49: #{tpu_custom_call.1} parent=1 // pred_fallthru
      _
    // Predicated region
    $region50: #{tpu_custom_call.1} parent=1 // pred_check
      _
    $region51: #{tpu_custom_call.1} parent=1 // pred_check_branch
      %99 = sbr.rel (0) target = $region53
    $region52: #{tpu_custom_call.1} parent=1 // pred_region
      _
    $region53: #{tpu_custom_call.1} parent=1 // pred_fallthru
      _
    // Predicated region
    $region54: #{tpu_custom_call.1} parent=1 // pred_check
      _
    $region55: #{tpu_custom_call.1} parent=1 // pred_check_branch
      %101 = sbr.rel (0) target = $region57
    $region56: #{tpu_custom_call.1} parent=1 // pred_region
      _
    $region57: #{tpu_custom_call.1} parent=1 // pred_fallthru
      _
    // Predicated region
    $region58: #{tpu_custom_call.1} parent=1 // pred_check
      _
    $region59: #{tpu_custom_call.1} parent=1 // pred_check_branch
      %103 = sbr.rel (0) target = $region61
    $region60: #{tpu_custom_call.1} parent=1 // pred_region
      %s105 = ssub.s32 512, 512
      %106 = vsyncadd [#allocation12], %s105
      %s107 = sshll.u32 [#allocation11], 4
      %s108 = int_to_ptr.vmem [resolvable:$true] %s107
      %113 = dma.hbm_to_vmem [thread:$0]  %s14, 512, %s108, [#allocation12], 128, 128, 8
    $region61: #{tpu_custom_call.1} parent=1 // pred_fallthru
      _
    // Predicated region
    $region62: #{tpu_custom_call.1} parent=1 // pred_check
      _
    $region63: #{tpu_custom_call.1} parent=1 // pred_check_branch
      %115 = sbr.rel (0) target = $region65
    $region64: #{tpu_custom_call.1} parent=1 // pred_region
      _
    $region65: #{tpu_custom_call.1} parent=1 // pred_fallthru
      _
    // Predicated region
    $region66: #{tpu_custom_call.1} parent=1 // pred_check
      _
    $region67: #{tpu_custom_call.1} parent=1 // pred_check_branch
      %117 = sbr.rel (0) target = $region69
    $region68: #{tpu_custom_call.1} parent=1 // pred_region
      %118 = dma.done [#allocation3], 256
    $region69: #{tpu_custom_call.1} parent=1 // pred_fallthru
      _
    // Predicated region
    $region70: #{tpu_custom_call.1} parent=1 // pred_check
      _
    $region71: #{tpu_custom_call.1} parent=1 // pred_check_branch
      %120 = sbr.rel (0) target = $region73
    $region72: #{tpu_custom_call.1} parent=1 // pred_region
      %121 = dma.done [#allocation6], 8192
    $region73: #{tpu_custom_call.1} parent=1 // pred_fallthru
      _
    // Predicated region
    $region74: #{tpu_custom_call.1} parent=1 // pred_check
      _
    $region75: #{tpu_custom_call.1} parent=1 // pred_check_branch
      %123 = sbr.rel (0) target = $region77
    $region76: #{tpu_custom_call.1} parent=1 // pred_region
      %124 = dma.done [#allocation6], 1024
    $region77: #{tpu_custom_call.1} parent=1 // pred_fallthru
      _
    // Predicated region
    $region78: #{tpu_custom_call.1} parent=1 // pred_check
      _
    $region79: #{tpu_custom_call.1} parent=1 // pred_check_branch
      %126 = sbr.rel (0) target = $region81
    $region80: #{tpu_custom_call.1} parent=1 // pred_region
      %127 = dma.done [#allocation9], 256
    $region81: #{tpu_custom_call.1} parent=1 // pred_fallthru
      _
    // Predicated region
    $region82: #{tpu_custom_call.1} parent=1 // pred_check
      _
    $region83: #{tpu_custom_call.1} parent=1 // pred_check_branch
      %129 = sbr.rel (0) target = $region85
    $region84: #{tpu_custom_call.1} parent=1 // pred_region
      %130 = dma.done [#allocation9], 256
    $region85: #{tpu_custom_call.1} parent=1 // pred_fallthru
      _
    // Predicated region
    $region86: #{tpu_custom_call.1} parent=1 // pred_check
      _
    $region87: #{tpu_custom_call.1} parent=1 // pred_check_branch
      %132 = sbr.rel (0) target = $region89
    $region88: #{tpu_custom_call.1} parent=1 // pred_region
      %133 = dma.done [#allocation12], 512
    $region89: #{tpu_custom_call.1} parent=1 // pred_fallthru
      _
    %v134 = vld [vmem:[#allocation2] sm:$0xff]
    %v135 = vld [vmem:[#allocation2 + $0x8] sm:$0xff]
    %v136 = vld [vmem:[#allocation5] sm:$0xff]
    %v137 = vld [vmem:[#allocation5 + $0x8] sm:$0xff]
    %v138 = vld [vmem:[#allocation5 + $0x10] sm:$0xff]
    %v139 = vld [vmem:[#allocation5 + $0x18] sm:$0xff]
    %v140 = vld [vmem:[#allocation5 + $0x20] sm:$0xff]
    %v141 = vld [vmem:[#allocation5 + $0x28] sm:$0xff]
    %v142 = vld [vmem:[#allocation5 + $0x30] sm:$0xff]
    %v143 = vld [vmem:[#allocation5 + $0x38] sm:$0xff]
    %v144 = vld [vmem:[#allocation5 + $0x40] sm:$0xff]
    %v145 = vld [vmem:[#allocation5 + $0x48] sm:$0xff]
    %v146 = vld [vmem:[#allocation5 + $0x50] sm:$0xff]
    %v147 = vld [vmem:[#allocation5 + $0x58] sm:$0xff]
    %v148 = vld [vmem:[#allocation5 + $0x60] sm:$0xff]
    %v149 = vld [vmem:[#allocation5 + $0x68] sm:$0xff]
    %v150 = vld [vmem:[#allocation5 + $0x70] sm:$0xff]
    %v151 = vld [vmem:[#allocation5 + $0x78] sm:$0xff]
    %v152 = vld [vmem:[#allocation5 + $0x80] sm:$0xff]
    %v153 = vld [vmem:[#allocation5 + $0x88] sm:$0xff]
    %v154 = vld [vmem:[#allocation5 + $0x90] sm:$0xff]
    %v155 = vld [vmem:[#allocation5 + $0x98] sm:$0xff]
    %v156 = vld [vmem:[#allocation5 + $0xa0] sm:$0xff]
    %v157 = vld [vmem:[#allocation5 + $0xa8] sm:$0xff]
    %v158 = vld [vmem:[#allocation5 + $0xb0] sm:$0xff]
    %v159 = vld [vmem:[#allocation5 + $0xb8] sm:$0xff]
    %v160 = vld [vmem:[#allocation5 + $0xc0] sm:$0xff]
    %v161 = vld [vmem:[#allocation5 + $0xc8] sm:$0xff]
    %v162 = vld [vmem:[#allocation5 + $0xd0] sm:$0xff]
    %v163 = vld [vmem:[#allocation5 + $0xd8] sm:$0xff]
    %v164 = vld [vmem:[#allocation5 + $0xe0] sm:$0xff]
    %v165 = vld [vmem:[#allocation5 + $0xe8] sm:$0xff]
    %v166 = vld [vmem:[#allocation5 + $0xf0] sm:$0xff]
    %v167 = vld [vmem:[#allocation5 + $0xf8] sm:$0xff]
    %v168 = vld [vmem:[#allocation5 + $0x100] sm:$0xff]
    %v169 = vld [vmem:[#allocation5 + $0x108] sm:$0xff]
    %v170 = vld [vmem:[#allocation5 + $0x110] sm:$0xff]
    %v171 = vld [vmem:[#allocation5 + $0x118] sm:$0xff]
    %v172 = vld [vmem:[#allocation5 + $0x120] sm:$0xff]
    %v173 = vld [vmem:[#allocation5 + $0x128] sm:$0xff]
    %v174 = vld [vmem:[#allocation5 + $0x130] sm:$0xff]
    %v175 = vld [vmem:[#allocation5 + $0x138] sm:$0xff]
    %v176 = vld [vmem:[#allocation5 + $0x140] sm:$0xff]
    %v177 = vld [vmem:[#allocation5 + $0x148] sm:$0xff]
    %v178 = vld [vmem:[#allocation5 + $0x150] sm:$0xff]
    %v179 = vld [vmem:[#allocation5 + $0x158] sm:$0xff]
    %v180 = vld [vmem:[#allocation5 + $0x160] sm:$0xff]
    %v181 = vld [vmem:[#allocation5 + $0x168] sm:$0xff]
    %v182 = vld [vmem:[#allocation5 + $0x170] sm:$0xff]
    %v183 = vld [vmem:[#allocation5 + $0x178] sm:$0xff]
    %v184 = vld [vmem:[#allocation5 + $0x180] sm:$0xff]
    %v185 = vld [vmem:[#allocation5 + $0x188] sm:$0xff]
    %v186 = vld [vmem:[#allocation5 + $0x190] sm:$0xff]
    %v187 = vld [vmem:[#allocation5 + $0x198] sm:$0xff]
    %v188 = vld [vmem:[#allocation5 + $0x1a0] sm:$0xff]
    %v189 = vld [vmem:[#allocation5 + $0x1a8] sm:$0xff]
    %v190 = vld [vmem:[#allocation5 + $0x1b0] sm:$0xff]
    %v191 = vld [vmem:[#allocation5 + $0x1b8] sm:$0xff]
    %v192 = vld [vmem:[#allocation5 + $0x1c0] sm:$0xff]
    %v193 = vld [vmem:[#allocation5 + $0x1c8] sm:$0xff]
    %v194 = vld [vmem:[#allocation5 + $0x1d0] sm:$0xff]
    %v195 = vld [vmem:[#allocation5 + $0x1d8] sm:$0xff]
    %v196 = vld [vmem:[#allocation5 + $0x1e0] sm:$0xff]
    %v197 = vld [vmem:[#allocation5 + $0x1e8] sm:$0xff]
    %v198 = vld [vmem:[#allocation5 + $0x1f0] sm:$0xff]
    %v199 = vld [vmem:[#allocation5 + $0x1f8] sm:$0xff]
    %200 = vmatprep.subr.mxu0 %v137
    %201 = vmatpush1.msra.mxu0 %v136
    %202 = vmatprep.subr.mxu0 %v139
    %203 = vmatpush1.msra.mxu0 %v138
    %204 = vmatprep.subr.mxu0 %v141
    %205 = vmatpush1.msra.mxu0 %v140
    %206 = vmatprep.subr.mxu0 %v143
    %207 = vmatpush1.msra.mxu0 %v142
    %208 = vmatprep.subr.mxu0 %v145
    %209 = vmatpush1.msra.mxu0 %v144
    %210 = vmatprep.subr.mxu0 %v147
    %211 = vmatpush1.msra.mxu0 %v146
    %212 = vmatprep.subr.mxu0 %v149
    %213 = vmatpush1.msra.mxu0 %v148
    %214 = vmatprep.subr.mxu0 %v151
    %215 = vmatpush1.msra.mxu0 %v150
    %216 = vmatprep.subr.mxu0 %v153
    %217 = vmatpush1.msra.mxu0 %v152
    %218 = vmatprep.subr.mxu0 %v155
    %219 = vmatpush1.msra.mxu0 %v154
    %220 = vmatprep.subr.mxu0 %v157
    %221 = vmatpush1.msra.mxu0 %v156
    %222 = vmatprep.subr.mxu0 %v159
    %223 = vmatpush1.msra.mxu0 %v158
    %224 = vmatprep.subr.mxu0 %v161
    %225 = vmatpush1.msra.mxu0 %v160
    %226 = vmatprep.subr.mxu0 %v163
    %227 = vmatpush1.msra.mxu0 %v162
    %228 = vmatprep.subr.mxu0 %v165
    %229 = vmatpush1.msra.mxu0 %v164
    %230 = vmatprep.subr.mxu0 %v167
    %231 = vmatpush1.msra.mxu0 %v166
    %232 = vmatprep.subr.mxu0 %v169
    %233 = vmatpush1.msra.mxu0 %v168
    %234 = vmatprep.subr.mxu0 %v171
    %235 = vmatpush1.msra.mxu0 %v170
    %236 = vmatprep.subr.mxu0 %v173
    %237 = vmatpush1.msra.mxu0 %v172
    %238 = vmatprep.subr.mxu0 %v175
    %239 = vmatpush1.msra.mxu0 %v174
    %240 = vmatprep.subr.mxu0 %v177
    %241 = vmatpush1.msra.mxu0 %v176
    %242 = vmatprep.subr.mxu0 %v179
    %243 = vmatpush1.msra.mxu0 %v178
    %244 = vmatprep.subr.mxu0 %v181
    %245 = vmatpush1.msra.mxu0 %v180
    %246 = vmatprep.subr.mxu0 %v183
    %247 = vmatpush1.msra.mxu0 %v182
    %248 = vmatprep.subr.mxu0 %v185
    %249 = vmatpush1.msra.mxu0 %v184
    %250 = vmatprep.subr.mxu0 %v187
    %251 = vmatpush1.msra.mxu0 %v186
    %252 = vmatprep.subr.mxu0 %v189
    %253 = vmatpush1.msra.mxu0 %v188
    %254 = vmatprep.subr.mxu0 %v191
    %255 = vmatpush1.msra.mxu0 %v190
    %256 = vmatprep.subr.mxu0 %v193
    %257 = vmatpush1.msra.mxu0 %v192
    %258 = vmatprep.subr.mxu0 %v195
    %259 = vmatpush1.msra.mxu0 %v194
    %260 = vmatprep.subr.mxu0 %v197
    %261 = vmatpush1.msra.mxu0 %v196
    %262 = vmatprep.subr.mxu0 %v199
    %263 = vmatpush1.msra.mxu0 %v198
    %264 = vmatprep.mubr.f32.mxu0 %v135
    %265 = vmatmul.mubr.f32.gmra.mrb[0].mxu0 %v134
    %v266 = vpop.f32.mrb[0].mxu0
    %v267 = vadd.f32 0.0, %v266
    %v268 = vpop.f32.mrb[0].mxu0
    %v269 = vadd.f32 0.0, %v268
    %270 = vdwg.mxu0
    %272 = vrot.lane.b32.xlu0 %v267, 64
    %v273 = vpop.permute.xlu0 %272
    %v275 = vmax.f32 %v267, %v273
    %277 = vrot.lane.b32.xlu0 %v269, 64
    %v278 = vpop.permute.xlu0 %277
    %v280 = vmax.f32 %v269, %v278
    %v281 = vmax.f32 %v275, %v280
    %v282 = vld [vmem:[%s2] sm:$0xff]
    %v283 = vld [vmem:[%s2 + $0x8] sm:$0xff]
    %v284 = vld [vmem:[%s2 + $0x10] sm:$0xff]
    %v285 = vld [vmem:[%s2 + $0x18] sm:$0xff]
    %v286 = vld [vmem:[%s2 + $0x20] sm:$0xff]
    %v287 = vld [vmem:[%s2 + $0x28] sm:$0xff]
    %v288 = vld [vmem:[%s2 + $0x30] sm:$0xff]
    %v289 = vld [vmem:[%s2 + $0x38] sm:$0xff]
    %vm290 = vcmask 523264
    %v292 = vsel %vm290, %v281, 0
    %294 = vmatprep.subr.mxu0 0.0
    %295 = vmatpush1.msra.mxu0 %v282
    %296 = vmatprep.subr.mxu0 0.0
    %297 = vmatpush1.msra.mxu0 %v283
    %298 = vmatprep.subr.mxu0 0.0
    %299 = vmatpush1.msra.mxu0 %v284
    %300 = vmatprep.subr.mxu0 0.0
    %301 = vmatpush1.msra.mxu0 %v285
    %302 = vmatprep.subr.mxu0 0.0
    %303 = vmatpush1.msra.mxu0 %v286
    %304 = vmatprep.subr.mxu0 0.0
    %305 = vmatpush1.msra.mxu0 %v287
    %306 = vmatprep.subr.mxu0 0.0
    %307 = vmatpush1.msra.mxu0 %v288
    %308 = vmatprep.subr.mxu0 0.0
    %309 = vmatpush1.msra.mxu0 %v289
    %310 = vmatprep.subr.mxu0 0.0
    %311 = vmatpush1.msra.mxu0 0.0
    %312 = vmatprep.subr.mxu0 0.0
    %313 = vmatpush1.msra.mxu0 0.0
    %314 = vmatprep.subr.mxu0 0.0
    %315 = vmatpush1.msra.mxu0 0.0
    %316 = vmatprep.subr.mxu0 0.0
    %317 = vmatpush1.msra.mxu0 0.0
    %318 = vmatprep.subr.mxu0 0.0
    %319 = vmatpush1.msra.mxu0 0.0
    %320 = vmatprep.subr.mxu0 0.0
    %321 = vmatpush1.msra.mxu0 0.0
    %322 = vmatprep.subr.mxu0 0.0
    %323 = vmatpush1.msra.mxu0 0.0
    %324 = vmatprep.subr.mxu0 0.0
    %325 = vmatpush1.msra.mxu0 0.0
    %326 = vmatprep.subr.mxu0 0.0
    %327 = vmatpush1.msra.mxu0 0.0
    %328 = vmatprep.subr.mxu0 0.0
    %329 = vmatpush1.msra.mxu0 0.0
    %330 = vmatprep.subr.mxu0 0.0
    %331 = vmatpush1.msra.mxu0 0.0
    %332 = vmatprep.subr.mxu0 0.0
    %333 = vmatpush1.msra.mxu0 0.0
    %334 = vmatprep.subr.mxu0 0.0
    %335 = vmatpush1.msra.mxu0 0.0
    %336 = vmatprep.subr.mxu0 0.0
    %337 = vmatpush1.msra.mxu0 0.0
    %338 = vmatprep.subr.mxu0 0.0
    %339 = vmatpush1.msra.mxu0 0.0
    %340 = vmatprep.subr.mxu0 0.0
    %341 = vmatpush1.msra.mxu0 0.0
    %342 = vmatprep.subr.mxu0 0.0
    %343 = vmatpush1.msra.mxu0 0.0
    %344 = vmatprep.subr.mxu0 0.0
    %345 = vmatpush1.msra.mxu0 0.0
    %346 = vmatprep.subr.mxu0 0.0
    %347 = vmatpush1.msra.mxu0 0.0
    %348 = vmatprep.subr.mxu0 0.0
    %349 = vmatpush1.msra.mxu0 0.0
    %350 = vmatprep.subr.mxu0 0.0
    %351 = vmatpush1.msra.mxu0 0.0
    %352 = vmatprep.subr.mxu0 0.0
    %353 = vmatpush1.msra.mxu0 0.0
    %354 = vmatprep.subr.mxu0 0.0
    %355 = vmatpush1.msra.mxu0 0.0
    %356 = vmatprep.subr.mxu0 0.0
    %357 = vmatpush1.msra.mxu0 0.0
    %358 = vmatprep.mubr.f32.mxu0 0.0
    %359 = vmatmul.mubr.f32.gmra.mrb[0].mxu0 %v292
    %v360 = vpop.f32.mrb[0].mxu0
    %v361 = vadd.f32 0.0, %v360
    %v362 = vpop.f32.mrb[0].mxu0
    %363 = vdwg.mxu0
    %v364 = vld [vmem:[%s3] sm:$0xff]
    %v365 = vld [vmem:[%s3 + $0x8] sm:$0xff]
    %s366 = scalar_lea.vmem %s2, 64
    %v367 = vld [vmem:[%s366] sm:$0xff]
    %v368 = vld [vmem:[%s366 + $0x8] sm:$0xff]
    %v369 = vld [vmem:[%s366 + $0x10] sm:$0xff]
    %v370 = vld [vmem:[%s366 + $0x18] sm:$0xff]
    %v371 = vld [vmem:[%s366 + $0x20] sm:$0xff]
    %v372 = vld [vmem:[%s366 + $0x28] sm:$0xff]
    %v373 = vld [vmem:[%s366 + $0x30] sm:$0xff]
    %v374 = vld [vmem:[%s366 + $0x38] sm:$0xff]
    %375 = vmatprep.subr.mxu0 0.0
    %376 = vmatpush1.msra.mxu0 %v367
    %377 = vmatprep.subr.mxu0 0.0
    %378 = vmatpush1.msra.mxu0 %v368
    %379 = vmatprep.subr.mxu0 0.0
    %380 = vmatpush1.msra.mxu0 %v369
    %381 = vmatprep.subr.mxu0 0.0
    %382 = vmatpush1.msra.mxu0 %v370
    %383 = vmatprep.subr.mxu0 0.0
    %384 = vmatpush1.msra.mxu0 %v371
    %385 = vmatprep.subr.mxu0 0.0
    %386 = vmatpush1.msra.mxu0 %v372
    %387 = vmatprep.subr.mxu0 0.0
    %388 = vmatpush1.msra.mxu0 %v373
    %389 = vmatprep.subr.mxu0 0.0
    %390 = vmatpush1.msra.mxu0 %v374
    %391 = vmatprep.subr.mxu0 0.0
    %392 = vmatpush1.msra.mxu0 0.0
    %393 = vmatprep.subr.mxu0 0.0
    %394 = vmatpush1.msra.mxu0 0.0
    %395 = vmatprep.subr.mxu0 0.0
    %396 = vmatpush1.msra.mxu0 0.0
    %397 = vmatprep.subr.mxu0 0.0
    %398 = vmatpush1.msra.mxu0 0.0
    %399 = vmatprep.subr.mxu0 0.0
    %400 = vmatpush1.msra.mxu0 0.0
    %401 = vmatprep.subr.mxu0 0.0
    %402 = vmatpush1.msra.mxu0 0.0
    %403 = vmatprep.subr.mxu0 0.0
    %404 = vmatpush1.msra.mxu0 0.0
    %405 = vmatprep.subr.mxu0 0.0
    %406 = vmatpush1.msra.mxu0 0.0
    %407 = vmatprep.subr.mxu0 0.0
    %408 = vmatpush1.msra.mxu0 0.0
    %409 = vmatprep.subr.mxu0 0.0
    %410 = vmatpush1.msra.mxu0 0.0
    %411 = vmatprep.subr.mxu0 0.0
    %412 = vmatpush1.msra.mxu0 0.0
    %413 = vmatprep.subr.mxu0 0.0
    %414 = vmatpush1.msra.mxu0 0.0
    %415 = vmatprep.subr.mxu0 0.0
    %416 = vmatpush1.msra.mxu0 0.0
    %417 = vmatprep.subr.mxu0 0.0
    %418 = vmatpush1.msra.mxu0 0.0
    %419 = vmatprep.subr.mxu0 0.0
    %420 = vmatpush1.msra.mxu0 0.0
    %421 = vmatprep.subr.mxu0 0.0
    %422 = vmatpush1.msra.mxu0 0.0
    %423 = vmatprep.subr.mxu0 0.0
    %424 = vmatpush1.msra.mxu0 0.0
    %425 = vmatprep.subr.mxu0 0.0
    %426 = vmatpush1.msra.mxu0 0.0
    %427 = vmatprep.subr.mxu0 0.0
    %428 = vmatpush1.msra.mxu0 0.0
    %429 = vmatprep.subr.mxu0 0.0
    %430 = vmatpush1.msra.mxu0 0.0
    %431 = vmatprep.subr.mxu0 0.0
    %432 = vmatpush1.msra.mxu0 0.0
    %433 = vmatprep.subr.mxu0 0.0
    %434 = vmatpush1.msra.mxu0 0.0
    %435 = vmatprep.subr.mxu0 0.0
    %436 = vmatpush1.msra.mxu0 0.0
    %437 = vmatprep.subr.mxu0 0.0
    %438 = vmatpush1.msra.mxu0 0.0
    %439 = vmatprep.mubr.f32.mxu0 0.0
    %440 = vmatmul.mubr.f32.gmra.mrb[0].mxu0 %v292
    %v441 = vpop.f32.mrb[0].mxu0
    %v442 = vadd.f32 0.0, %v441
    %v443 = vpop.f32.mrb[0].mxu0
    %444 = vdwg.mxu0
    %s445 = scalar_lea.vmem %s3, 16
    %v446 = vld [vmem:[%s445] sm:$0xff]
    %v447 = vld [vmem:[%s445 + $0x8] sm:$0xff]
    %vm448 = vcmask 64512
    %v450 = vsel %vm448, %v446, 0
    %v453 = vsel %vm448, %v447, 0
    %455 = vmatprep.subr.mxu0 0.0
    %456 = vmatpush1.msra.mxu0 %v442
    %457 = vmatprep.subr.mxu0 0.0
    %458 = vmatpush1.msra.mxu0 0.0
    %459 = vmatprep.subr.mxu0 0.0
    %460 = vmatpush1.msra.mxu0 0.0
    %461 = vmatprep.subr.mxu0 0.0
    %462 = vmatpush1.msra.mxu0 0.0
    %463 = vmatprep.subr.mxu0 0.0
    %464 = vmatpush1.msra.mxu0 0.0
    %465 = vmatprep.subr.mxu0 0.0
    %466 = vmatpush1.msra.mxu0 0.0
    %467 = vmatprep.subr.mxu0 0.0
    %468 = vmatpush1.msra.mxu0 0.0
    %469 = vmatprep.subr.mxu0 0.0
    %470 = vmatpush1.msra.mxu0 0.0
    %471 = vmatprep.subr.mxu0 0.0
    %472 = vmatpush1.msra.mxu0 0.0
    %473 = vmatprep.subr.mxu0 0.0
    %474 = vmatpush1.msra.mxu0 0.0
    %475 = vmatprep.subr.mxu0 0.0
    %476 = vmatpush1.msra.mxu0 0.0
    %477 = vmatprep.subr.mxu0 0.0
    %478 = vmatpush1.msra.mxu0 0.0
    %479 = vmatprep.subr.mxu0 0.0
    %480 = vmatpush1.msra.mxu0 0.0
    %481 = vmatprep.subr.mxu0 0.0
    %482 = vmatpush1.msra.mxu0 0.0
    %483 = vmatprep.subr.mxu0 0.0
    %484 = vmatpush1.msra.mxu0 0.0
    %485 = vmatprep.subr.mxu0 0.0
    %486 = vmatpush1.msra.mxu0 0.0
    %487 = vmatprep.subr.mxu0 0.0
    %488 = vmatpush1.msra.mxu0 0.0
    %489 = vmatprep.subr.mxu0 0.0
    %490 = vmatpush1.msra.mxu0 0.0
    %491 = vmatprep.subr.mxu0 0.0
    %492 = vmatpush1.msra.mxu0 0.0
    %493 = vmatprep.subr.mxu0 0.0
    %494 = vmatpush1.msra.mxu0 0.0
    %495 = vmatprep.subr.mxu0 0.0
    %496 = vmatpush1.msra.mxu0 0.0
    %497 = vmatprep.subr.mxu0 0.0
    %498 = vmatpush1.msra.mxu0 0.0
    %499 = vmatprep.subr.mxu0 0.0
    %500 = vmatpush1.msra.mxu0 0.0
    %501 = vmatprep.subr.mxu0 0.0
    %502 = vmatpush1.msra.mxu0 0.0
    %503 = vmatprep.subr.mxu0 0.0
    %504 = vmatpush1.msra.mxu0 0.0
    %505 = vmatprep.subr.mxu0 0.0
    %506 = vmatpush1.msra.mxu0 0.0
    %507 = vmatprep.subr.mxu0 0.0
    %508 = vmatpush1.msra.mxu0 0.0
    %509 = vmatprep.subr.mxu0 0.0
    %510 = vmatpush1.msra.mxu0 0.0
    %511 = vmatprep.subr.mxu0 0.0
    %512 = vmatpush1.msra.mxu0 0.0
    %513 = vmatprep.subr.mxu0 0.0
    %514 = vmatpush1.msra.mxu0 0.0
    %515 = vmatprep.subr.mxu0 0.0
    %516 = vmatpush1.msra.mxu0 0.0
    %517 = vmatprep.subr.mxu0 0.0
    %518 = vmatpush1.msra.mxu0 0.0
    %519 = vmatprep.mubr.f32.mxu0 0.0
    %520 = vmatmul.mubr.f32.gmra.mrb[0].mxu0 %v450
    %v521 = vpop.f32.mrb[0].mxu0
    %v522 = vadd.f32 0.0, %v521
    %v523 = vpop.f32.mrb[0].mxu0
    %524 = vmatprep.mubr.f32.mxu0 0.0
    %525 = vmatmul.mubr.f32.gmra.mrb[0].mxu0 %v453
    %v526 = vpop.f32.mrb[0].mxu0
    %v527 = vadd.f32 0.0, %v526
    %v528 = vpop.f32.mrb[0].mxu0
    %529 = vdwg.mxu0
    %v531 = vsel %vm448, %v364, 0
    %v534 = vsel %vm448, %v365, 0
    %536 = vmatprep.subr.mxu0 0.0
    %537 = vmatpush1.msra.mxu0 %v361
    %538 = vmatprep.subr.mxu0 0.0
    %539 = vmatpush1.msra.mxu0 0.0
    %540 = vmatprep.subr.mxu0 0.0
    %541 = vmatpush1.msra.mxu0 0.0
    %542 = vmatprep.subr.mxu0 0.0
    %543 = vmatpush1.msra.mxu0 0.0
    %544 = vmatprep.subr.mxu0 0.0
    %545 = vmatpush1.msra.mxu0 0.0
    %546 = vmatprep.subr.mxu0 0.0
    %547 = vmatpush1.msra.mxu0 0.0
    %548 = vmatprep.subr.mxu0 0.0
    %549 = vmatpush1.msra.mxu0 0.0
    %550 = vmatprep.subr.mxu0 0.0
    %551 = vmatpush1.msra.mxu0 0.0
    %552 = vmatprep.subr.mxu0 0.0
    %553 = vmatpush1.msra.mxu0 0.0
    %554 = vmatprep.subr.mxu0 0.0
    %555 = vmatpush1.msra.mxu0 0.0
    %556 = vmatprep.subr.mxu0 0.0
    %557 = vmatpush1.msra.mxu0 0.0
    %558 = vmatprep.subr.mxu0 0.0
    %559 = vmatpush1.msra.mxu0 0.0
    %560 = vmatprep.subr.mxu0 0.0
    %561 = vmatpush1.msra.mxu0 0.0
    %562 = vmatprep.subr.mxu0 0.0
    %563 = vmatpush1.msra.mxu0 0.0
    %564 = vmatprep.subr.mxu0 0.0
    %565 = vmatpush1.msra.mxu0 0.0
    %566 = vmatprep.subr.mxu0 0.0
    %567 = vmatpush1.msra.mxu0 0.0
    %568 = vmatprep.subr.mxu0 0.0
    %569 = vmatpush1.msra.mxu0 0.0
    %570 = vmatprep.subr.mxu0 0.0
    %571 = vmatpush1.msra.mxu0 0.0
    %572 = vmatprep.subr.mxu0 0.0
    %573 = vmatpush1.msra.mxu0 0.0
    %574 = vmatprep.subr.mxu0 0.0
    %575 = vmatpush1.msra.mxu0 0.0
    %576 = vmatprep.subr.mxu0 0.0
    %577 = vmatpush1.msra.mxu0 0.0
    %578 = vmatprep.subr.mxu0 0.0
    %579 = vmatpush1.msra.mxu0 0.0
    %580 = vmatprep.subr.mxu0 0.0
    %581 = vmatpush1.msra.mxu0 0.0
    %582 = vmatprep.subr.mxu0 0.0
    %583 = vmatpush1.msra.mxu0 0.0
    %584 = vmatprep.subr.mxu0 0.0
    %585 = vmatpush1.msra.mxu0 0.0
    %586 = vmatprep.subr.mxu0 0.0
    %587 = vmatpush1.msra.mxu0 0.0
    %588 = vmatprep.subr.mxu0 0.0
    %589 = vmatpush1.msra.mxu0 0.0
    %590 = vmatprep.subr.mxu0 0.0
    %591 = vmatpush1.msra.mxu0 0.0
    %592 = vmatprep.subr.mxu0 0.0
    %593 = vmatpush1.msra.mxu0 0.0
    %594 = vmatprep.subr.mxu0 0.0
    %595 = vmatpush1.msra.mxu0 0.0
    %596 = vmatprep.subr.mxu0 0.0
    %597 = vmatpush1.msra.mxu0 0.0
    %598 = vmatprep.subr.mxu0 0.0
    %599 = vmatpush1.msra.mxu0 0.0
    %600 = vmatprep.mubr.f32.mxu0 0.0
    %601 = vmatmul.mubr.f32.gmra.mrb[0].mxu0 %v531
    %v602 = vpop.f32.mrb[0].mxu0
    %v603 = vadd.f32 %v522, %v602
    %v604 = vpop.f32.mrb[0].mxu0
    %605 = vmatprep.mubr.f32.mxu0 0.0
    %606 = vmatmul.mubr.f32.gmra.mrb[0].mxu0 %v534
    %v607 = vpop.f32.mrb[0].mxu0
    %v608 = vadd.f32 %v527, %v607
    %v609 = vpop.f32.mrb[0].mxu0
    %610 = vdwg.mxu0
    %s611 = scalar_lea.vmem %s2, 128
    %v612 = vld [vmem:[%s611] sm:$0xff]
    %v613 = vld [vmem:[%s611 + $0x8] sm:$0xff]
    %v614 = vld [vmem:[%s611 + $0x10] sm:$0xff]
    %v615 = vld [vmem:[%s611 + $0x18] sm:$0xff]
    %v616 = vld [vmem:[%s611 + $0x20] sm:$0xff]
    %v617 = vld [vmem:[%s611 + $0x28] sm:$0xff]
    %v618 = vld [vmem:[%s611 + $0x30] sm:$0xff]
    %v619 = vld [vmem:[%s611 + $0x38] sm:$0xff]
    %620 = vmatprep.subr.mxu0 0.0
    %621 = vmatpush1.msra.mxu0 %v612
    %622 = vmatprep.subr.mxu0 0.0
    %623 = vmatpush1.msra.mxu0 %v613
    %624 = vmatprep.subr.mxu0 0.0
    %625 = vmatpush1.msra.mxu0 %v614
    %626 = vmatprep.subr.mxu0 0.0
    %627 = vmatpush1.msra.mxu0 %v615
    %628 = vmatprep.subr.mxu0 0.0
    %629 = vmatpush1.msra.mxu0 %v616
    %630 = vmatprep.subr.mxu0 0.0
    %631 = vmatpush1.msra.mxu0 %v617
    %632 = vmatprep.subr.mxu0 0.0
    %633 = vmatpush1.msra.mxu0 %v618
    %634 = vmatprep.subr.mxu0 0.0
    %635 = vmatpush1.msra.mxu0 %v619
    %636 = vmatprep.subr.mxu0 0.0
    %637 = vmatpush1.msra.mxu0 0.0
    %638 = vmatprep.subr.mxu0 0.0
    %639 = vmatpush1.msra.mxu0 0.0
    %640 = vmatprep.subr.mxu0 0.0
    %641 = vmatpush1.msra.mxu0 0.0
    %642 = vmatprep.subr.mxu0 0.0
    %643 = vmatpush1.msra.mxu0 0.0
    %644 = vmatprep.subr.mxu0 0.0
    %645 = vmatpush1.msra.mxu0 0.0
    %646 = vmatprep.subr.mxu0 0.0
    %647 = vmatpush1.msra.mxu0 0.0
    %648 = vmatprep.subr.mxu0 0.0
    %649 = vmatpush1.msra.mxu0 0.0
    %650 = vmatprep.subr.mxu0 0.0
    %651 = vmatpush1.msra.mxu0 0.0
    %652 = vmatprep.subr.mxu0 0.0
    %653 = vmatpush1.msra.mxu0 0.0
    %654 = vmatprep.subr.mxu0 0.0
    %655 = vmatpush1.msra.mxu0 0.0
    %656 = vmatprep.subr.mxu0 0.0
    %657 = vmatpush1.msra.mxu0 0.0
    %658 = vmatprep.subr.mxu0 0.0
    %659 = vmatpush1.msra.mxu0 0.0
    %660 = vmatprep.subr.mxu0 0.0
    %661 = vmatpush1.msra.mxu0 0.0
    %662 = vmatprep.subr.mxu0 0.0
    %663 = vmatpush1.msra.mxu0 0.0
    %664 = vmatprep.subr.mxu0 0.0
    %665 = vmatpush1.msra.mxu0 0.0
    %666 = vmatprep.subr.mxu0 0.0
    %667 = vmatpush1.msra.mxu0 0.0
    %668 = vmatprep.subr.mxu0 0.0
    %669 = vmatpush1.msra.mxu0 0.0
    %670 = vmatprep.subr.mxu0 0.0
    %671 = vmatpush1.msra.mxu0 0.0
    %672 = vmatprep.subr.mxu0 0.0
    %673 = vmatpush1.msra.mxu0 0.0
    %674 = vmatprep.subr.mxu0 0.0
    %675 = vmatpush1.msra.mxu0 0.0
    %676 = vmatprep.subr.mxu0 0.0
    %677 = vmatpush1.msra.mxu0 0.0
    %678 = vmatprep.subr.mxu0 0.0
    %679 = vmatpush1.msra.mxu0 0.0
    %680 = vmatprep.subr.mxu0 0.0
    %681 = vmatpush1.msra.mxu0 0.0
    %682 = vmatprep.subr.mxu0 0.0
    %683 = vmatpush1.msra.mxu0 0.0
    %684 = vmatprep.mubr.f32.mxu0 0.0
    %685 = vmatmul.mubr.f32.gmra.mrb[0].mxu0 %v292
    %v686 = vpop.f32.mrb[0].mxu0
    %v687 = vadd.f32 0.0, %v686
    %v688 = vpop.f32.mrb[0].mxu0
    %689 = vdwg.mxu0
    %s690 = scalar_lea.vmem %s3, 32
    %v691 = vld [vmem:[%s690] sm:$0xff]
    %v692 = vld [vmem:[%s690 + $0x8] sm:$0xff]
    %v694 = vsel %vm448, %v691, 0
    %v697 = vsel %vm448, %v692, 0
    %699 = vmatprep.subr.mxu0 0.0
    %700 = vmatpush1.msra.mxu0 %v687
    %701 = vmatprep.subr.mxu0 0.0
    %702 = vmatpush1.msra.mxu0 0.0
    %703 = vmatprep.subr.mxu0 0.0
    %704 = vmatpush1.msra.mxu0 0.0
    %705 = vmatprep.subr.mxu0 0.0
    %706 = vmatpush1.msra.mxu0 0.0
    %707 = vmatprep.subr.mxu0 0.0
    %708 = vmatpush1.msra.mxu0 0.0
    %709 = vmatprep.subr.mxu0 0.0
    %710 = vmatpush1.msra.mxu0 0.0
    %711 = vmatprep.subr.mxu0 0.0
    %712 = vmatpush1.msra.mxu0 0.0
    %713 = vmatprep.subr.mxu0 0.0
    %714 = vmatpush1.msra.mxu0 0.0
    %715 = vmatprep.subr.mxu0 0.0
    %716 = vmatpush1.msra.mxu0 0.0
    %717 = vmatprep.subr.mxu0 0.0
    %718 = vmatpush1.msra.mxu0 0.0
    %719 = vmatprep.subr.mxu0 0.0
    %720 = vmatpush1.msra.mxu0 0.0
    %721 = vmatprep.subr.mxu0 0.0
    %722 = vmatpush1.msra.mxu0 0.0
    %723 = vmatprep.subr.mxu0 0.0
    %724 = vmatpush1.msra.mxu0 0.0
    %725 = vmatprep.subr.mxu0 0.0
    %726 = vmatpush1.msra.mxu0 0.0
    %727 = vmatprep.subr.mxu0 0.0
    %728 = vmatpush1.msra.mxu0 0.0
    %729 = vmatprep.subr.mxu0 0.0
    %730 = vmatpush1.msra.mxu0 0.0
    %731 = vmatprep.subr.mxu0 0.0
    %732 = vmatpush1.msra.mxu0 0.0
    %733 = vmatprep.subr.mxu0 0.0
    %734 = vmatpush1.msra.mxu0 0.0
    %735 = vmatprep.subr.mxu0 0.0
    %736 = vmatpush1.msra.mxu0 0.0
    %737 = vmatprep.subr.mxu0 0.0
    %738 = vmatpush1.msra.mxu0 0.0
    %739 = vmatprep.subr.mxu0 0.0
    %740 = vmatpush1.msra.mxu0 0.0
    %741 = vmatprep.subr.mxu0 0.0
    %742 = vmatpush1.msra.mxu0 0.0
    %743 = vmatprep.subr.mxu0 0.0
    %744 = vmatpush1.msra.mxu0 0.0
    %745 = vmatprep.subr.mxu0 0.0
    %746 = vmatpush1.msra.mxu0 0.0
    %747 = vmatprep.subr.mxu0 0.0
    %748 = vmatpush1.msra.mxu0 0.0
    %749 = vmatprep.subr.mxu0 0.0
    %750 = vmatpush1.msra.mxu0 0.0
    %751 = vmatprep.subr.mxu0 0.0
    %752 = vmatpush1.msra.mxu0 0.0
    %753 = vmatprep.subr.mxu0 0.0
    %754 = vmatpush1.msra.mxu0 0.0
    %755 = vmatprep.subr.mxu0 0.0
    %756 = vmatpush1.msra.mxu0 0.0
    %757 = vmatprep.subr.mxu0 0.0
    %758 = vmatpush1.msra.mxu0 0.0
    %759 = vmatprep.subr.mxu0 0.0
    %760 = vmatpush1.msra.mxu0 0.0
    %761 = vmatprep.subr.mxu0 0.0
    %762 = vmatpush1.msra.mxu0 0.0
    %763 = vmatprep.mubr.f32.mxu0 0.0
    %764 = vmatmul.mubr.f32.gmra.mrb[0].mxu0 %v694
    %v765 = vpop.f32.mrb[0].mxu0
    %v766 = vadd.f32 0.0, %v765
    %v767 = vpop.f32.mrb[0].mxu0
    %768 = vmatprep.mubr.f32.mxu0 0.0
    %769 = vmatmul.mubr.f32.gmra.mrb[0].mxu0 %v697
    %v770 = vpop.f32.mrb[0].mxu0
    %v771 = vadd.f32 0.0, %v770
    %v772 = vpop.f32.mrb[0].mxu0
    %773 = vdwg.mxu0
    %v774 = vadd.f32 %v603, %v766
    %v775 = vadd.f32 %v608, %v771
    %s776 = scalar_lea.vmem %s2, 192
    %v777 = vld [vmem:[%s776] sm:$0xff]
    %v778 = vld [vmem:[%s776 + $0x8] sm:$0xff]
    %v779 = vld [vmem:[%s776 + $0x10] sm:$0xff]
    %v780 = vld [vmem:[%s776 + $0x18] sm:$0xff]
    %v781 = vld [vmem:[%s776 + $0x20] sm:$0xff]
    %v782 = vld [vmem:[%s776 + $0x28] sm:$0xff]
    %v783 = vld [vmem:[%s776 + $0x30] sm:$0xff]
    %v784 = vld [vmem:[%s776 + $0x38] sm:$0xff]
    %785 = vmatprep.subr.mxu0 0.0
    %786 = vmatpush1.msra.mxu0 %v777
    %787 = vmatprep.subr.mxu0 0.0
    %788 = vmatpush1.msra.mxu0 %v778
    %789 = vmatprep.subr.mxu0 0.0
    %790 = vmatpush1.msra.mxu0 %v779
    %791 = vmatprep.subr.mxu0 0.0
    %792 = vmatpush1.msra.mxu0 %v780
    %793 = vmatprep.subr.mxu0 0.0
    %794 = vmatpush1.msra.mxu0 %v781
    %795 = vmatprep.subr.mxu0 0.0
    %796 = vmatpush1.msra.mxu0 %v782
    %797 = vmatprep.subr.mxu0 0.0
    %798 = vmatpush1.msra.mxu0 %v783
    %799 = vmatprep.subr.mxu0 0.0
    %800 = vmatpush1.msra.mxu0 %v784
    %801 = vmatprep.subr.mxu0 0.0
    %802 = vmatpush1.msra.mxu0 0.0
    %803 = vmatprep.subr.mxu0 0.0
    %804 = vmatpush1.msra.mxu0 0.0
    %805 = vmatprep.subr.mxu0 0.0
    %806 = vmatpush1.msra.mxu0 0.0
    %807 = vmatprep.subr.mxu0 0.0
    %808 = vmatpush1.msra.mxu0 0.0
    %809 = vmatprep.subr.mxu0 0.0
    %810 = vmatpush1.msra.mxu0 0.0
    %811 = vmatprep.subr.mxu0 0.0
    %812 = vmatpush1.msra.mxu0 0.0
    %813 = vmatprep.subr.mxu0 0.0
    %814 = vmatpush1.msra.mxu0 0.0
    %815 = vmatprep.subr.mxu0 0.0
    %816 = vmatpush1.msra.mxu0 0.0
    %817 = vmatprep.subr.mxu0 0.0
    %818 = vmatpush1.msra.mxu0 0.0
    %819 = vmatprep.subr.mxu0 0.0
    %820 = vmatpush1.msra.mxu0 0.0
    %821 = vmatprep.subr.mxu0 0.0
    %822 = vmatpush1.msra.mxu0 0.0
    %823 = vmatprep.subr.mxu0 0.0
    %824 = vmatpush1.msra.mxu0 0.0
    %825 = vmatprep.subr.mxu0 0.0
    %826 = vmatpush1.msra.mxu0 0.0
    %827 = vmatprep.subr.mxu0 0.0
    %828 = vmatpush1.msra.mxu0 0.0
    %829 = vmatprep.subr.mxu0 0.0
    %830 = vmatpush1.msra.mxu0 0.0
    %831 = vmatprep.subr.mxu0 0.0
    %832 = vmatpush1.msra.mxu0 0.0
    %833 = vmatprep.subr.mxu0 0.0
    %834 = vmatpush1.msra.mxu0 0.0
    %835 = vmatprep.subr.mxu0 0.0
    %836 = vmatpush1.msra.mxu0 0.0
    %837 = vmatprep.subr.mxu0 0.0
    %838 = vmatpush1.msra.mxu0 0.0
    %839 = vmatprep.subr.mxu0 0.0
    %840 = vmatpush1.msra.mxu0 0.0
    %841 = vmatprep.subr.mxu0 0.0
    %842 = vmatpush1.msra.mxu0 0.0
    %843 = vmatprep.subr.mxu0 0.0
    %844 = vmatpush1.msra.mxu0 0.0
    %845 = vmatprep.subr.mxu0 0.0
    %846 = vmatpush1.msra.mxu0 0.0
    %847 = vmatprep.subr.mxu0 0.0
    %848 = vmatpush1.msra.mxu0 0.0
    %849 = vmatprep.mubr.f32.mxu0 0.0
    %850 = vmatmul.mubr.f32.gmra.mrb[0].mxu0 %v292
    %v851 = vpop.f32.mrb[0].mxu0
    %v852 = vadd.f32 0.0, %v851
    %v853 = vpop.f32.mrb[0].mxu0
    %854 = vdwg.mxu0
    %s855 = scalar_lea.vmem %s3, 48
    %v856 = vld [vmem:[%s855] sm:$0xff]
    %v857 = vld [vmem:[%s855 + $0x8] sm:$0xff]
    %v859 = vsel %vm448, %v856, 0
    %v862 = vsel %vm448, %v857, 0
    %864 = vmatprep.subr.mxu0 0.0
    %865 = vmatpush1.msra.mxu0 %v852
    %866 = vmatprep.subr.mxu0 0.0
    %867 = vmatpush1.msra.mxu0 0.0
    %868 = vmatprep.subr.mxu0 0.0
    %869 = vmatpush1.msra.mxu0 0.0
    %870 = vmatprep.subr.mxu0 0.0
    %871 = vmatpush1.msra.mxu0 0.0
    %872 = vmatprep.subr.mxu0 0.0
    %873 = vmatpush1.msra.mxu0 0.0
    %874 = vmatprep.subr.mxu0 0.0
    %875 = vmatpush1.msra.mxu0 0.0
    %876 = vmatprep.subr.mxu0 0.0
    %877 = vmatpush1.msra.mxu0 0.0
    %878 = vmatprep.subr.mxu0 0.0
    %879 = vmatpush1.msra.mxu0 0.0
    %880 = vmatprep.subr.mxu0 0.0
    %881 = vmatpush1.msra.mxu0 0.0
    %882 = vmatprep.subr.mxu0 0.0
    %883 = vmatpush1.msra.mxu0 0.0
    %884 = vmatprep.subr.mxu0 0.0
    %885 = vmatpush1.msra.mxu0 0.0
    %886 = vmatprep.subr.mxu0 0.0
    %887 = vmatpush1.msra.mxu0 0.0
    %888 = vmatprep.subr.mxu0 0.0
    %889 = vmatpush1.msra.mxu0 0.0
    %890 = vmatprep.subr.mxu0 0.0
    %891 = vmatpush1.msra.mxu0 0.0
    %892 = vmatprep.subr.mxu0 0.0
    %893 = vmatpush1.msra.mxu0 0.0
    %894 = vmatprep.subr.mxu0 0.0
    %895 = vmatpush1.msra.mxu0 0.0
    %896 = vmatprep.subr.mxu0 0.0
    %897 = vmatpush1.msra.mxu0 0.0
    %898 = vmatprep.subr.mxu0 0.0
    %899 = vmatpush1.msra.mxu0 0.0
    %900 = vmatprep.subr.mxu0 0.0
    %901 = vmatpush1.msra.mxu0 0.0
    %902 = vmatprep.subr.mxu0 0.0
    %903 = vmatpush1.msra.mxu0 0.0
    %904 = vmatprep.subr.mxu0 0.0
    %905 = vmatpush1.msra.mxu0 0.0
    %906 = vmatprep.subr.mxu0 0.0
    %907 = vmatpush1.msra.mxu0 0.0
    %908 = vmatprep.subr.mxu0 0.0
    %909 = vmatpush1.msra.mxu0 0.0
    %910 = vmatprep.subr.mxu0 0.0
    %911 = vmatpush1.msra.mxu0 0.0
    %912 = vmatprep.subr.mxu0 0.0
    %913 = vmatpush1.msra.mxu0 0.0
    %914 = vmatprep.subr.mxu0 0.0
    %915 = vmatpush1.msra.mxu0 0.0
    %916 = vmatprep.subr.mxu0 0.0
    %917 = vmatpush1.msra.mxu0 0.0
    %918 = vmatprep.subr.mxu0 0.0
    %919 = vmatpush1.msra.mxu0 0.0
    %920 = vmatprep.subr.mxu0 0.0
    %921 = vmatpush1.msra.mxu0 0.0
    %922 = vmatprep.subr.mxu0 0.0
    %923 = vmatpush1.msra.mxu0 0.0
    %924 = vmatprep.subr.mxu0 0.0
    %925 = vmatpush1.msra.mxu0 0.0
    %926 = vmatprep.subr.mxu0 0.0
    %927 = vmatpush1.msra.mxu0 0.0
    %928 = vmatprep.mubr.f32.mxu0 0.0
    %929 = vmatmul.mubr.f32.gmra.mrb[0].mxu0 %v859
    %v930 = vpop.f32.mrb[0].mxu0
    %v931 = vadd.f32 0.0, %v930
    %v932 = vpop.f32.mrb[0].mxu0
    %933 = vmatprep.mubr.f32.mxu0 0.0
    %934 = vmatmul.mubr.f32.gmra.mrb[0].mxu0 %v862
    %v935 = vpop.f32.mrb[0].mxu0
    %v936 = vadd.f32 0.0, %v935
    %v937 = vpop.f32.mrb[0].mxu0
    %938 = vdwg.mxu0
    %v939 = vadd.f32 %v774, %v931
    %v940 = vadd.f32 %v775, %v936
    %s941 = scalar_lea.vmem %s2, 256
    %v942 = vld [vmem:[%s941] sm:$0xff]
    %v943 = vld [vmem:[%s941 + $0x8] sm:$0xff]
    %v944 = vld [vmem:[%s941 + $0x10] sm:$0xff]
    %v945 = vld [vmem:[%s941 + $0x18] sm:$0xff]
    %v946 = vld [vmem:[%s941 + $0x20] sm:$0xff]
    %v947 = vld [vmem:[%s941 + $0x28] sm:$0xff]
    %v948 = vld [vmem:[%s941 + $0x30] sm:$0xff]
    %v949 = vld [vmem:[%s941 + $0x38] sm:$0xff]
    %950 = vmatprep.subr.mxu0 0.0
    %951 = vmatpush1.msra.mxu0 %v942
    %952 = vmatprep.subr.mxu0 0.0
    %953 = vmatpush1.msra.mxu0 %v943
    %954 = vmatprep.subr.mxu0 0.0
    %955 = vmatpush1.msra.mxu0 %v944
    %956 = vmatprep.subr.mxu0 0.0
    %957 = vmatpush1.msra.mxu0 %v945
    %958 = vmatprep.subr.mxu0 0.0
    %959 = vmatpush1.msra.mxu0 %v946
    %960 = vmatprep.subr.mxu0 0.0
    %961 = vmatpush1.msra.mxu0 %v947
    %962 = vmatprep.subr.mxu0 0.0
    %963 = vmatpush1.msra.mxu0 %v948
    %964 = vmatprep.subr.mxu0 0.0
    %965 = vmatpush1.msra.mxu0 %v949
    %966 = vmatprep.subr.mxu0 0.0
    %967 = vmatpush1.msra.mxu0 0.0
    %968 = vmatprep.subr.mxu0 0.0
    %969 = vmatpush1.msra.mxu0 0.0
    %970 = vmatprep.subr.mxu0 0.0
    %971 = vmatpush1.msra.mxu0 0.0
    %972 = vmatprep.subr.mxu0 0.0
    %973 = vmatpush1.msra.mxu0 0.0
    %974 = vmatprep.subr.mxu0 0.0
    %975 = vmatpush1.msra.mxu0 0.0
    %976 = vmatprep.subr.mxu0 0.0
    %977 = vmatpush1.msra.mxu0 0.0
    %978 = vmatprep.subr.mxu0 0.0
    %979 = vmatpush1.msra.mxu0 0.0
    %980 = vmatprep.subr.mxu0 0.0
    %981 = vmatpush1.msra.mxu0 0.0
    %982 = vmatprep.subr.mxu0 0.0
    %983 = vmatpush1.msra.mxu0 0.0
    %984 = vmatprep.subr.mxu0 0.0
    %985 = vmatpush1.msra.mxu0 0.0
    %986 = vmatprep.subr.mxu0 0.0
    %987 = vmatpush1.msra.mxu0 0.0
    %988 = vmatprep.subr.mxu0 0.0
    %989 = vmatpush1.msra.mxu0 0.0
    %990 = vmatprep.subr.mxu0 0.0
    %991 = vmatpush1.msra.mxu0 0.0
    %992 = vmatprep.subr.mxu0 0.0
    %993 = vmatpush1.msra.mxu0 0.0
    %994 = vmatprep.subr.mxu0 0.0
    %995 = vmatpush1.msra.mxu0 0.0
    %996 = vmatprep.subr.mxu0 0.0
    %997 = vmatpush1.msra.mxu0 0.0
    %998 = vmatprep.subr.mxu0 0.0
    %999 = vmatpush1.msra.mxu0 0.0
    %1000 = vmatprep.subr.mxu0 0.0
    %1001 = vmatpush1.msra.mxu0 0.0
    %1002 = vmatprep.subr.mxu0 0.0
    %1003 = vmatpush1.msra.mxu0 0.0
    %1004 = vmatprep.subr.mxu0 0.0
    %1005 = vmatpush1.msra.mxu0 0.0
    %1006 = vmatprep.subr.mxu0 0.0
    %1007 = vmatpush1.msra.mxu0 0.0
    %1008 = vmatprep.subr.mxu0 0.0
    %1009 = vmatpush1.msra.mxu0 0.0
    %1010 = vmatprep.subr.mxu0 0.0
    %1011 = vmatpush1.msra.mxu0 0.0
    %1012 = vmatprep.subr.mxu0 0.0
    %1013 = vmatpush1.msra.mxu0 0.0
    %1014 = vmatprep.mubr.f32.mxu0 0.0
    %1015 = vmatmul.mubr.f32.gmra.mrb[0].mxu0 %v292
    %v1016 = vpop.f32.mrb[0].mxu0
    %v1017 = vadd.f32 0.0, %v1016
    %v1018 = vpop.f32.mrb[0].mxu0
    %1019 = vdwg.mxu0
    %s1020 = scalar_lea.vmem %s3, 64
    %v1021 = vld [vmem:[%s1020] sm:$0xff]
    %v1022 = vld [vmem:[%s1020 + $0x8] sm:$0xff]
    %v1024 = vsel %vm448, %v1021, 0
    %v1027 = vsel %vm448, %v1022, 0
    %1029 = vmatprep.subr.mxu0 0.0
    %1030 = vmatpush1.msra.mxu0 %v1017
    %1031 = vmatprep.subr.mxu0 0.0
    %1032 = vmatpush1.msra.mxu0 0.0
    %1033 = vmatprep.subr.mxu0 0.0
    %1034 = vmatpush1.msra.mxu0 0.0
    %1035 = vmatprep.subr.mxu0 0.0
    %1036 = vmatpush1.msra.mxu0 0.0
    %1037 = vmatprep.subr.mxu0 0.0
    %1038 = vmatpush1.msra.mxu0 0.0
    %1039 = vmatprep.subr.mxu0 0.0
    %1040 = vmatpush1.msra.mxu0 0.0
    %1041 = vmatprep.subr.mxu0 0.0
    %1042 = vmatpush1.msra.mxu0 0.0
    %1043 = vmatprep.subr.mxu0 0.0
    %1044 = vmatpush1.msra.mxu0 0.0
    %1045 = vmatprep.subr.mxu0 0.0
    %1046 = vmatpush1.msra.mxu0 0.0
    %1047 = vmatprep.subr.mxu0 0.0
    %1048 = vmatpush1.msra.mxu0 0.0
    %1049 = vmatprep.subr.mxu0 0.0
    %1050 = vmatpush1.msra.mxu0 0.0
    %1051 = vmatprep.subr.mxu0 0.0
    %1052 = vmatpush1.msra.mxu0 0.0
    %1053 = vmatprep.subr.mxu0 0.0
    %1054 = vmatpush1.msra.mxu0 0.0
    %1055 = vmatprep.subr.mxu0 0.0
    %1056 = vmatpush1.msra.mxu0 0.0
    %1057 = vmatprep.subr.mxu0 0.0
    %1058 = vmatpush1.msra.mxu0 0.0
    %1059 = vmatprep.subr.mxu0 0.0
    %1060 = vmatpush1.msra.mxu0 0.0
    %1061 = vmatprep.subr.mxu0 0.0
    %1062 = vmatpush1.msra.mxu0 0.0
    %1063 = vmatprep.subr.mxu0 0.0
    %1064 = vmatpush1.msra.mxu0 0.0
    %1065 = vmatprep.subr.mxu0 0.0
    %1066 = vmatpush1.msra.mxu0 0.0
    %1067 = vmatprep.subr.mxu0 0.0
    %1068 = vmatpush1.msra.mxu0 0.0
    %1069 = vmatprep.subr.mxu0 0.0
    %1070 = vmatpush1.msra.mxu0 0.0
    %1071 = vmatprep.subr.mxu0 0.0
    %1072 = vmatpush1.msra.mxu0 0.0
    %1073 = vmatprep.subr.mxu0 0.0
    %1074 = vmatpush1.msra.mxu0 0.0
    %1075 = vmatprep.subr.mxu0 0.0
    %1076 = vmatpush1.msra.mxu0 0.0
    %1077 = vmatprep.subr.mxu0 0.0
    %1078 = vmatpush1.msra.mxu0 0.0
    %1079 = vmatprep.subr.mxu0 0.0
    %1080 = vmatpush1.msra.mxu0 0.0
    %1081 = vmatprep.subr.mxu0 0.0
    %1082 = vmatpush1.msra.mxu0 0.0
    %1083 = vmatprep.subr.mxu0 0.0
    %1084 = vmatpush1.msra.mxu0 0.0
    %1085 = vmatprep.subr.mxu0 0.0
    %1086 = vmatpush1.msra.mxu0 0.0
    %1087 = vmatprep.subr.mxu0 0.0
    %1088 = vmatpush1.msra.mxu0 0.0
    %1089 = vmatprep.subr.mxu0 0.0
    %1090 = vmatpush1.msra.mxu0 0.0
    %1091 = vmatprep.subr.mxu0 0.0
    %1092 = vmatpush1.msra.mxu0 0.0
    %1093 = vmatprep.mubr.f32.mxu0 0.0
    %1094 = vmatmul.mubr.f32.gmra.mrb[0].mxu0 %v1024
    %v1095 = vpop.f32.mrb[0].mxu0
    %v1096 = vadd.f32 0.0, %v1095
    %v1097 = vpop.f32.mrb[0].mxu0
    %1098 = vmatprep.mubr.f32.mxu0 0.0
    %1099 = vmatmul.mubr.f32.gmra.mrb[0].mxu0 %v1027
    %v1100 = vpop.f32.mrb[0].mxu0
    %v1101 = vadd.f32 0.0, %v1100
    %v1102 = vpop.f32.mrb[0].mxu0
    %1103 = vdwg.mxu0
    %v1104 = vadd.f32 %v939, %v1096
    %v1105 = vadd.f32 %v940, %v1101
    %s1106 = scalar_lea.vmem %s2, 320
    %v1107 = vld [vmem:[%s1106] sm:$0xff]
    %v1108 = vld [vmem:[%s1106 + $0x8] sm:$0xff]
    %v1109 = vld [vmem:[%s1106 + $0x10] sm:$0xff]
    %v1110 = vld [vmem:[%s1106 + $0x18] sm:$0xff]
    %v1111 = vld [vmem:[%s1106 + $0x20] sm:$0xff]
    %v1112 = vld [vmem:[%s1106 + $0x28] sm:$0xff]
    %v1113 = vld [vmem:[%s1106 + $0x30] sm:$0xff]
    %v1114 = vld [vmem:[%s1106 + $0x38] sm:$0xff]
    %1115 = vmatprep.subr.mxu0 0.0
    %1116 = vmatpush1.msra.mxu0 %v1107
    %1117 = vmatprep.subr.mxu0 0.0
    %1118 = vmatpush1.msra.mxu0 %v1108
    %1119 = vmatprep.subr.mxu0 0.0
    %1120 = vmatpush1.msra.mxu0 %v1109
    %1121 = vmatprep.subr.mxu0 0.0
    %1122 = vmatpush1.msra.mxu0 %v1110
    %1123 = vmatprep.subr.mxu0 0.0
    %1124 = vmatpush1.msra.mxu0 %v1111
    %1125 = vmatprep.subr.mxu0 0.0
    %1126 = vmatpush1.msra.mxu0 %v1112
    %1127 = vmatprep.subr.mxu0 0.0
    %1128 = vmatpush1.msra.mxu0 %v1113
    %1129 = vmatprep.subr.mxu0 0.0
    %1130 = vmatpush1.msra.mxu0 %v1114
    %1131 = vmatprep.subr.mxu0 0.0
    %1132 = vmatpush1.msra.mxu0 0.0
    %1133 = vmatprep.subr.mxu0 0.0
    %1134 = vmatpush1.msra.mxu0 0.0
    %1135 = vmatprep.subr.mxu0 0.0
    %1136 = vmatpush1.msra.mxu0 0.0
    %1137 = vmatprep.subr.mxu0 0.0
    %1138 = vmatpush1.msra.mxu0 0.0
    %1139 = vmatprep.subr.mxu0 0.0
    %1140 = vmatpush1.msra.mxu0 0.0
    %1141 = vmatprep.subr.mxu0 0.0
    %1142 = vmatpush1.msra.mxu0 0.0
    %1143 = vmatprep.subr.mxu0 0.0
    %1144 = vmatpush1.msra.mxu0 0.0
    %1145 = vmatprep.subr.mxu0 0.0
    %1146 = vmatpush1.msra.mxu0 0.0
    %1147 = vmatprep.subr.mxu0 0.0
    %1148 = vmatpush1.msra.mxu0 0.0
    %1149 = vmatprep.subr.mxu0 0.0
    %1150 = vmatpush1.msra.mxu0 0.0
    %1151 = vmatprep.subr.mxu0 0.0
    %1152 = vmatpush1.msra.mxu0 0.0
    %1153 = vmatprep.subr.mxu0 0.0
    %1154 = vmatpush1.msra.mxu0 0.0
    %1155 = vmatprep.subr.mxu0 0.0
    %1156 = vmatpush1.msra.mxu0 0.0
    %1157 = vmatprep.subr.mxu0 0.0
    %1158 = vmatpush1.msra.mxu0 0.0
    %1159 = vmatprep.subr.mxu0 0.0
    %1160 = vmatpush1.msra.mxu0 0.0
    %1161 = vmatprep.subr.mxu0 0.0
    %1162 = vmatpush1.msra.mxu0 0.0
    %1163 = vmatprep.subr.mxu0 0.0
    %1164 = vmatpush1.msra.mxu0 0.0
    %1165 = vmatprep.subr.mxu0 0.0
    %1166 = vmatpush1.msra.mxu0 0.0
    %1167 = vmatprep.subr.mxu0 0.0
    %1168 = vmatpush1.msra.mxu0 0.0
    %1169 = vmatprep.subr.mxu0 0.0
    %1170 = vmatpush1.msra.mxu0 0.0
    %1171 = vmatprep.subr.mxu0 0.0
    %1172 = vmatpush1.msra.mxu0 0.0
    %1173 = vmatprep.subr.mxu0 0.0
    %1174 = vmatpush1.msra.mxu0 0.0
    %1175 = vmatprep.subr.mxu0 0.0
    %1176 = vmatpush1.msra.mxu0 0.0
    %1177 = vmatprep.subr.mxu0 0.0
    %1178 = vmatpush1.msra.mxu0 0.0
    %1179 = vmatprep.mubr.f32.mxu0 0.0
    %1180 = vmatmul.mubr.f32.gmra.mrb[0].mxu0 %v292
    %v1181 = vpop.f32.mrb[0].mxu0
    %v1182 = vadd.f32 0.0, %v1181
    %v1183 = vpop.f32.mrb[0].mxu0
    %1184 = vdwg.mxu0
    %s1185 = scalar_lea.vmem %s3, 80
    %v1186 = vld [vmem:[%s1185] sm:$0xff]
    %v1187 = vld [vmem:[%s1185 + $0x8] sm:$0xff]
    %v1189 = vsel %vm448, %v1186, 0
    %v1192 = vsel %vm448, %v1187, 0
    %1194 = vmatprep.subr.mxu0 0.0
    %1195 = vmatpush1.msra.mxu0 %v1182
    %1196 = vmatprep.subr.mxu0 0.0
    %1197 = vmatpush1.msra.mxu0 0.0
    %1198 = vmatprep.subr.mxu0 0.0
    %1199 = vmatpush1.msra.mxu0 0.0
    %1200 = vmatprep.subr.mxu0 0.0
    %1201 = vmatpush1.msra.mxu0 0.0
    %1202 = vmatprep.subr.mxu0 0.0
    %1203 = vmatpush1.msra.mxu0 0.0
    %1204 = vmatprep.subr.mxu0 0.0
    %1205 = vmatpush1.msra.mxu0 0.0
    %1206 = vmatprep.subr.mxu0 0.0
    %1207 = vmatpush1.msra.mxu0 0.0
    %1208 = vmatprep.subr.mxu0 0.0
    %1209 = vmatpush1.msra.mxu0 0.0
    %1210 = vmatprep.subr.mxu0 0.0
    %1211 = vmatpush1.msra.mxu0 0.0
    %1212 = vmatprep.subr.mxu0 0.0
    %1213 = vmatpush1.msra.mxu0 0.0
    %1214 = vmatprep.subr.mxu0 0.0
    %1215 = vmatpush1.msra.mxu0 0.0
    %1216 = vmatprep.subr.mxu0 0.0
    %1217 = vmatpush1.msra.mxu0 0.0
    %1218 = vmatprep.subr.mxu0 0.0
    %1219 = vmatpush1.msra.mxu0 0.0
    %1220 = vmatprep.subr.mxu0 0.0
    %1221 = vmatpush1.msra.mxu0 0.0
    %1222 = vmatprep.subr.mxu0 0.0
    %1223 = vmatpush1.msra.mxu0 0.0
    %1224 = vmatprep.subr.mxu0 0.0
    %1225 = vmatpush1.msra.mxu0 0.0
    %1226 = vmatprep.subr.mxu0 0.0
    %1227 = vmatpush1.msra.mxu0 0.0
    %1228 = vmatprep.subr.mxu0 0.0
    %1229 = vmatpush1.msra.mxu0 0.0
    %1230 = vmatprep.subr.mxu0 0.0
    %1231 = vmatpush1.msra.mxu0 0.0
    %1232 = vmatprep.subr.mxu0 0.0
    %1233 = vmatpush1.msra.mxu0 0.0
    %1234 = vmatprep.subr.mxu0 0.0
    %1235 = vmatpush1.msra.mxu0 0.0
    %1236 = vmatprep.subr.mxu0 0.0
    %1237 = vmatpush1.msra.mxu0 0.0
    %1238 = vmatprep.subr.mxu0 0.0
    %1239 = vmatpush1.msra.mxu0 0.0
    %1240 = vmatprep.subr.mxu0 0.0
    %1241 = vmatpush1.msra.mxu0 0.0
    %1242 = vmatprep.subr.mxu0 0.0
    %1243 = vmatpush1.msra.mxu0 0.0
    %1244 = vmatprep.subr.mxu0 0.0
    %1245 = vmatpush1.msra.mxu0 0.0
    %1246 = vmatprep.subr.mxu0 0.0
    %1247 = vmatpush1.msra.mxu0 0.0
    %1248 = vmatprep.subr.mxu0 0.0
    %1249 = vmatpush1.msra.mxu0 0.0
    %1250 = vmatprep.subr.mxu0 0.0
    %1251 = vmatpush1.msra.mxu0 0.0
    %1252 = vmatprep.subr.mxu0 0.0
    %1253 = vmatpush1.msra.mxu0 0.0
    %1254 = vmatprep.subr.mxu0 0.0
    %1255 = vmatpush1.msra.mxu0 0.0
    %1256 = vmatprep.subr.mxu0 0.0
    %1257 = vmatpush1.msra.mxu0 0.0
    %1258 = vmatprep.mubr.f32.mxu0 0.0
    %1259 = vmatmul.mubr.f32.gmra.mrb[0].mxu0 %v1189
    %v1260 = vpop.f32.mrb[0].mxu0
    %v1261 = vadd.f32 0.0, %v1260
    %v1262 = vpop.f32.mrb[0].mxu0
    %1263 = vmatprep.mubr.f32.mxu0 0.0
    %1264 = vmatmul.mubr.f32.gmra.mrb[0].mxu0 %v1192
    %v1265 = vpop.f32.mrb[0].mxu0
    %v1266 = vadd.f32 0.0, %v1265
    %v1267 = vpop.f32.mrb[0].mxu0
    %1268 = vdwg.mxu0
    %v1269 = vadd.f32 %v1104, %v1261
    %v1270 = vadd.f32 %v1105, %v1266
    %s1271 = scalar_lea.vmem %s2, 384
    %v1272 = vld [vmem:[%s1271] sm:$0xff]
    %v1273 = vld [vmem:[%s1271 + $0x8] sm:$0xff]
    %v1274 = vld [vmem:[%s1271 + $0x10] sm:$0xff]
    %v1275 = vld [vmem:[%s1271 + $0x18] sm:$0xff]
    %v1276 = vld [vmem:[%s1271 + $0x20] sm:$0xff]
    %v1277 = vld [vmem:[%s1271 + $0x28] sm:$0xff]
    %v1278 = vld [vmem:[%s1271 + $0x30] sm:$0xff]
    %v1279 = vld [vmem:[%s1271 + $0x38] sm:$0xff]
    %1280 = vmatprep.subr.mxu0 0.0
    %1281 = vmatpush1.msra.mxu0 %v1272
    %1282 = vmatprep.subr.mxu0 0.0
    %1283 = vmatpush1.msra.mxu0 %v1273
    %1284 = vmatprep.subr.mxu0 0.0
    %1285 = vmatpush1.msra.mxu0 %v1274
    %1286 = vmatprep.subr.mxu0 0.0
    %1287 = vmatpush1.msra.mxu0 %v1275
    %1288 = vmatprep.subr.mxu0 0.0
    %1289 = vmatpush1.msra.mxu0 %v1276
    %1290 = vmatprep.subr.mxu0 0.0
    %1291 = vmatpush1.msra.mxu0 %v1277
    %1292 = vmatprep.subr.mxu0 0.0
    %1293 = vmatpush1.msra.mxu0 %v1278
    %1294 = vmatprep.subr.mxu0 0.0
    %1295 = vmatpush1.msra.mxu0 %v1279
    %1296 = vmatprep.subr.mxu0 0.0
    %1297 = vmatpush1.msra.mxu0 0.0
    %1298 = vmatprep.subr.mxu0 0.0
    %1299 = vmatpush1.msra.mxu0 0.0
    %1300 = vmatprep.subr.mxu0 0.0
    %1301 = vmatpush1.msra.mxu0 0.0
    %1302 = vmatprep.subr.mxu0 0.0
    %1303 = vmatpush1.msra.mxu0 0.0
    %1304 = vmatprep.subr.mxu0 0.0
    %1305 = vmatpush1.msra.mxu0 0.0
    %1306 = vmatprep.subr.mxu0 0.0
    %1307 = vmatpush1.msra.mxu0 0.0
    %1308 = vmatprep.subr.mxu0 0.0
    %1309 = vmatpush1.msra.mxu0 0.0
    %1310 = vmatprep.subr.mxu0 0.0
    %1311 = vmatpush1.msra.mxu0 0.0
    %1312 = vmatprep.subr.mxu0 0.0
    %1313 = vmatpush1.msra.mxu0 0.0
    %1314 = vmatprep.subr.mxu0 0.0
    %1315 = vmatpush1.msra.mxu0 0.0
    %1316 = vmatprep.subr.mxu0 0.0
    %1317 = vmatpush1.msra.mxu0 0.0
    %1318 = vmatprep.subr.mxu0 0.0
    %1319 = vmatpush1.msra.mxu0 0.0
    %1320 = vmatprep.subr.mxu0 0.0
    %1321 = vmatpush1.msra.mxu0 0.0
    %1322 = vmatprep.subr.mxu0 0.0
    %1323 = vmatpush1.msra.mxu0 0.0
    %1324 = vmatprep.subr.mxu0 0.0
    %1325 = vmatpush1.msra.mxu0 0.0
    %1326 = vmatprep.subr.mxu0 0.0
    %1327 = vmatpush1.msra.mxu0 0.0
    %1328 = vmatprep.subr.mxu0 0.0
    %1329 = vmatpush1.msra.mxu0 0.0
    %1330 = vmatprep.subr.mxu0 0.0
    %1331 = vmatpush1.msra.mxu0 0.0
    %1332 = vmatprep.subr.mxu0 0.0
    %1333 = vmatpush1.msra.mxu0 0.0
    %1334 = vmatprep.subr.mxu0 0.0
    %1335 = vmatpush1.msra.mxu0 0.0
    %1336 = vmatprep.subr.mxu0 0.0
    %1337 = vmatpush1.msra.mxu0 0.0
    %1338 = vmatprep.subr.mxu0 0.0
    %1339 = vmatpush1.msra.mxu0 0.0
    %1340 = vmatprep.subr.mxu0 0.0
    %1341 = vmatpush1.msra.mxu0 0.0
    %1342 = vmatprep.subr.mxu0 0.0
    %1343 = vmatpush1.msra.mxu0 0.0
    %1344 = vmatprep.mubr.f32.mxu0 0.0
    %1345 = vmatmul.mubr.f32.gmra.mrb[0].mxu0 %v292
    %v1346 = vpop.f32.mrb[0].mxu0
    %v1347 = vadd.f32 0.0, %v1346
    %v1348 = vpop.f32.mrb[0].mxu0
    %1349 = vdwg.mxu0
    %s1350 = scalar_lea.vmem %s3, 96
    %v1351 = vld [vmem:[%s1350] sm:$0xff]
    %v1352 = vld [vmem:[%s1350 + $0x8] sm:$0xff]
    %v1354 = vsel %vm448, %v1351, 0
    %v1357 = vsel %vm448, %v1352, 0
    %1359 = vmatprep.subr.mxu0 0.0
    %1360 = vmatpush1.msra.mxu0 %v1347
    %1361 = vmatprep.subr.mxu0 0.0
    %1362 = vmatpush1.msra.mxu0 0.0
    %1363 = vmatprep.subr.mxu0 0.0
    %1364 = vmatpush1.msra.mxu0 0.0
    %1365 = vmatprep.subr.mxu0 0.0
    %1366 = vmatpush1.msra.mxu0 0.0
    %1367 = vmatprep.subr.mxu0 0.0
    %1368 = vmatpush1.msra.mxu0 0.0
    %1369 = vmatprep.subr.mxu0 0.0
    %1370 = vmatpush1.msra.mxu0 0.0
    %1371 = vmatprep.subr.mxu0 0.0
    %1372 = vmatpush1.msra.mxu0 0.0
    %1373 = vmatprep.subr.mxu0 0.0
    %1374 = vmatpush1.msra.mxu0 0.0
    %1375 = vmatprep.subr.mxu0 0.0
    %1376 = vmatpush1.msra.mxu0 0.0
    %1377 = vmatprep.subr.mxu0 0.0
    %1378 = vmatpush1.msra.mxu0 0.0
    %1379 = vmatprep.subr.mxu0 0.0
    %1380 = vmatpush1.msra.mxu0 0.0
    %1381 = vmatprep.subr.mxu0 0.0
    %1382 = vmatpush1.msra.mxu0 0.0
    %1383 = vmatprep.subr.mxu0 0.0
    %1384 = vmatpush1.msra.mxu0 0.0
    %1385 = vmatprep.subr.mxu0 0.0
    %1386 = vmatpush1.msra.mxu0 0.0
    %1387 = vmatprep.subr.mxu0 0.0
    %1388 = vmatpush1.msra.mxu0 0.0
    %1389 = vmatprep.subr.mxu0 0.0
    %1390 = vmatpush1.msra.mxu0 0.0
    %1391 = vmatprep.subr.mxu0 0.0
    %1392 = vmatpush1.msra.mxu0 0.0
    %1393 = vmatprep.subr.mxu0 0.0
    %1394 = vmatpush1.msra.mxu0 0.0
    %1395 = vmatprep.subr.mxu0 0.0
    %1396 = vmatpush1.msra.mxu0 0.0
    %1397 = vmatprep.subr.mxu0 0.0
    %1398 = vmatpush1.msra.mxu0 0.0
    %1399 = vmatprep.subr.mxu0 0.0
    %1400 = vmatpush1.msra.mxu0 0.0
    %1401 = vmatprep.subr.mxu0 0.0
    %1402 = vmatpush1.msra.mxu0 0.0
    %1403 = vmatprep.subr.mxu0 0.0
    %1404 = vmatpush1.msra.mxu0 0.0
    %1405 = vmatprep.subr.mxu0 0.0
    %1406 = vmatpush1.msra.mxu0 0.0
    %1407 = vmatprep.subr.mxu0 0.0
    %1408 = vmatpush1.msra.mxu0 0.0
    %1409 = vmatprep.subr.mxu0 0.0
    %1410 = vmatpush1.msra.mxu0 0.0
    %1411 = vmatprep.subr.mxu0 0.0
    %1412 = vmatpush1.msra.mxu0 0.0
    %1413 = vmatprep.subr.mxu0 0.0
    %1414 = vmatpush1.msra.mxu0 0.0
    %1415 = vmatprep.subr.mxu0 0.0
    %1416 = vmatpush1.msra.mxu0 0.0
    %1417 = vmatprep.subr.mxu0 0.0
    %1418 = vmatpush1.msra.mxu0 0.0
    %1419 = vmatprep.subr.mxu0 0.0
    %1420 = vmatpush1.msra.mxu0 0.0
    %1421 = vmatprep.subr.mxu0 0.0
    %1422 = vmatpush1.msra.mxu0 0.0
    %1423 = vmatprep.mubr.f32.mxu0 0.0
    %1424 = vmatmul.mubr.f32.gmra.mrb[0].mxu0 %v1354
    %v1425 = vpop.f32.mrb[0].mxu0
    %v1426 = vadd.f32 0.0, %v1425
    %v1427 = vpop.f32.mrb[0].mxu0
    %1428 = vmatprep.mubr.f32.mxu0 0.0
    %1429 = vmatmul.mubr.f32.gmra.mrb[0].mxu0 %v1357
    %v1430 = vpop.f32.mrb[0].mxu0
    %v1431 = vadd.f32 0.0, %v1430
    %v1432 = vpop.f32.mrb[0].mxu0
    %1433 = vdwg.mxu0
    %v1434 = vadd.f32 %v1269, %v1426
    %v1435 = vadd.f32 %v1270, %v1431
    %s1436 = scalar_lea.vmem %s2, 448
    %v1437 = vld [vmem:[%s1436] sm:$0xff]
    %v1438 = vld [vmem:[%s1436 + $0x8] sm:$0xff]
    %v1439 = vld [vmem:[%s1436 + $0x10] sm:$0xff]
    %v1440 = vld [vmem:[%s1436 + $0x18] sm:$0xff]
    %v1441 = vld [vmem:[%s1436 + $0x20] sm:$0xff]
    %v1442 = vld [vmem:[%s1436 + $0x28] sm:$0xff]
    %v1443 = vld [vmem:[%s1436 + $0x30] sm:$0xff]
    %v1444 = vld [vmem:[%s1436 + $0x38] sm:$0xff]
    %1445 = vmatprep.subr.mxu0 0.0
    %1446 = vmatpush1.msra.mxu0 %v1437
    %1447 = vmatprep.subr.mxu0 0.0
    %1448 = vmatpush1.msra.mxu0 %v1438
    %1449 = vmatprep.subr.mxu0 0.0
    %1450 = vmatpush1.msra.mxu0 %v1439
    %1451 = vmatprep.subr.mxu0 0.0
    %1452 = vmatpush1.msra.mxu0 %v1440
    %1453 = vmatprep.subr.mxu0 0.0
    %1454 = vmatpush1.msra.mxu0 %v1441
    %1455 = vmatprep.subr.mxu0 0.0
    %1456 = vmatpush1.msra.mxu0 %v1442
    %1457 = vmatprep.subr.mxu0 0.0
    %1458 = vmatpush1.msra.mxu0 %v1443
    %1459 = vmatprep.subr.mxu0 0.0
    %1460 = vmatpush1.msra.mxu0 %v1444
    %1461 = vmatprep.subr.mxu0 0.0
    %1462 = vmatpush1.msra.mxu0 0.0
    %1463 = vmatprep.subr.mxu0 0.0
    %1464 = vmatpush1.msra.mxu0 0.0
    %1465 = vmatprep.subr.mxu0 0.0
    %1466 = vmatpush1.msra.mxu0 0.0
    %1467 = vmatprep.subr.mxu0 0.0
    %1468 = vmatpush1.msra.mxu0 0.0
    %1469 = vmatprep.subr.mxu0 0.0
    %1470 = vmatpush1.msra.mxu0 0.0
    %1471 = vmatprep.subr.mxu0 0.0
    %1472 = vmatpush1.msra.mxu0 0.0
    %1473 = vmatprep.subr.mxu0 0.0
    %1474 = vmatpush1.msra.mxu0 0.0
    %1475 = vmatprep.subr.mxu0 0.0
    %1476 = vmatpush1.msra.mxu0 0.0
    %1477 = vmatprep.subr.mxu0 0.0
    %1478 = vmatpush1.msra.mxu0 0.0
    %1479 = vmatprep.subr.mxu0 0.0
    %1480 = vmatpush1.msra.mxu0 0.0
    %1481 = vmatprep.subr.mxu0 0.0
    %1482 = vmatpush1.msra.mxu0 0.0
    %1483 = vmatprep.subr.mxu0 0.0
    %1484 = vmatpush1.msra.mxu0 0.0
    %1485 = vmatprep.subr.mxu0 0.0
    %1486 = vmatpush1.msra.mxu0 0.0
    %1487 = vmatprep.subr.mxu0 0.0
    %1488 = vmatpush1.msra.mxu0 0.0
    %1489 = vmatprep.subr.mxu0 0.0
    %1490 = vmatpush1.msra.mxu0 0.0
    %1491 = vmatprep.subr.mxu0 0.0
    %1492 = vmatpush1.msra.mxu0 0.0
    %1493 = vmatprep.subr.mxu0 0.0
    %1494 = vmatpush1.msra.mxu0 0.0
    %1495 = vmatprep.subr.mxu0 0.0
    %1496 = vmatpush1.msra.mxu0 0.0
    %1497 = vmatprep.subr.mxu0 0.0
    %1498 = vmatpush1.msra.mxu0 0.0
    %1499 = vmatprep.subr.mxu0 0.0
    %1500 = vmatpush1.msra.mxu0 0.0
    %1501 = vmatprep.subr.mxu0 0.0
    %1502 = vmatpush1.msra.mxu0 0.0
    %1503 = vmatprep.subr.mxu0 0.0
    %1504 = vmatpush1.msra.mxu0 0.0
    %1505 = vmatprep.subr.mxu0 0.0
    %1506 = vmatpush1.msra.mxu0 0.0
    %1507 = vmatprep.subr.mxu0 0.0
    %1508 = vmatpush1.msra.mxu0 0.0
    %1509 = vmatprep.mubr.f32.mxu0 0.0
    %1510 = vmatmul.mubr.f32.gmra.mrb[0].mxu0 %v292
    %v1511 = vpop.f32.mrb[0].mxu0
    %v1512 = vadd.f32 0.0, %v1511
    %v1513 = vpop.f32.mrb[0].mxu0
    %1514 = vdwg.mxu0
    %s1515 = scalar_lea.vmem %s3, 112
    %v1516 = vld [vmem:[%s1515] sm:$0xff]
    %v1517 = vld [vmem:[%s1515 + $0x8] sm:$0xff]
    %v1519 = vsel %vm448, %v1516, 0
    %v1522 = vsel %vm448, %v1517, 0
    %1524 = vmatprep.subr.mxu0 0.0
    %1525 = vmatpush1.msra.mxu0 %v1512
    %1526 = vmatprep.subr.mxu0 0.0
    %1527 = vmatpush1.msra.mxu0 0.0
    %1528 = vmatprep.subr.mxu0 0.0
    %1529 = vmatpush1.msra.mxu0 0.0
    %1530 = vmatprep.subr.mxu0 0.0
    %1531 = vmatpush1.msra.mxu0 0.0
    %1532 = vmatprep.subr.mxu0 0.0
    %1533 = vmatpush1.msra.mxu0 0.0
    %1534 = vmatprep.subr.mxu0 0.0
    %1535 = vmatpush1.msra.mxu0 0.0
    %1536 = vmatprep.subr.mxu0 0.0
    %1537 = vmatpush1.msra.mxu0 0.0
    %1538 = vmatprep.subr.mxu0 0.0
    %1539 = vmatpush1.msra.mxu0 0.0
    %1540 = vmatprep.subr.mxu0 0.0
    %1541 = vmatpush1.msra.mxu0 0.0
    %1542 = vmatprep.subr.mxu0 0.0
    %1543 = vmatpush1.msra.mxu0 0.0
    %1544 = vmatprep.subr.mxu0 0.0
    %1545 = vmatpush1.msra.mxu0 0.0
    %1546 = vmatprep.subr.mxu0 0.0
    %1547 = vmatpush1.msra.mxu0 0.0
    %1548 = vmatprep.subr.mxu0 0.0
    %1549 = vmatpush1.msra.mxu0 0.0
    %1550 = vmatprep.subr.mxu0 0.0
    %1551 = vmatpush1.msra.mxu0 0.0
    %1552 = vmatprep.subr.mxu0 0.0
    %1553 = vmatpush1.msra.mxu0 0.0
    %1554 = vmatprep.subr.mxu0 0.0
    %1555 = vmatpush1.msra.mxu0 0.0
    %1556 = vmatprep.subr.mxu0 0.0
    %1557 = vmatpush1.msra.mxu0 0.0
    %1558 = vmatprep.subr.mxu0 0.0
    %1559 = vmatpush1.msra.mxu0 0.0
    %1560 = vmatprep.subr.mxu0 0.0
    %1561 = vmatpush1.msra.mxu0 0.0
    %1562 = vmatprep.subr.mxu0 0.0
    %1563 = vmatpush1.msra.mxu0 0.0
    %1564 = vmatprep.subr.mxu0 0.0
    %1565 = vmatpush1.msra.mxu0 0.0
    %1566 = vmatprep.subr.mxu0 0.0
    %1567 = vmatpush1.msra.mxu0 0.0
    %1568 = vmatprep.subr.mxu0 0.0
    %1569 = vmatpush1.msra.mxu0 0.0
    %1570 = vmatprep.subr.mxu0 0.0
    %1571 = vmatpush1.msra.mxu0 0.0
    %1572 = vmatprep.subr.mxu0 0.0
    %1573 = vmatpush1.msra.mxu0 0.0
    %1574 = vmatprep.subr.mxu0 0.0
    %1575 = vmatpush1.msra.mxu0 0.0
    %1576 = vmatprep.subr.mxu0 0.0
    %1577 = vmatpush1.msra.mxu0 0.0
    %1578 = vmatprep.subr.mxu0 0.0
    %1579 = vmatpush1.msra.mxu0 0.0
    %1580 = vmatprep.subr.mxu0 0.0
    %1581 = vmatpush1.msra.mxu0 0.0
    %1582 = vmatprep.subr.mxu0 0.0
    %1583 = vmatpush1.msra.mxu0 0.0
    %1584 = vmatprep.subr.mxu0 0.0
    %1585 = vmatpush1.msra.mxu0 0.0
    %1586 = vmatprep.subr.mxu0 0.0
    %1587 = vmatpush1.msra.mxu0 0.0
    %1588 = vmatprep.mubr.f32.mxu0 0.0
    %1589 = vmatmul.mubr.f32.gmra.mrb[0].mxu0 %v1519
    %v1590 = vpop.f32.mrb[0].mxu0
    %v1591 = vadd.f32 0.0, %v1590
    %v1592 = vpop.f32.mrb[0].mxu0
    %1593 = vmatprep.mubr.f32.mxu0 0.0
    %1594 = vmatmul.mubr.f32.gmra.mrb[0].mxu0 %v1522
    %v1595 = vpop.f32.mrb[0].mxu0
    %v1596 = vadd.f32 0.0, %v1595
    %v1597 = vpop.f32.mrb[0].mxu0
    %1598 = vdwg.mxu0
    %v1599 = vadd.f32 %v1434, %v1591
    %v1600 = vadd.f32 %v1435, %v1596
    %s1601 = scalar_lea.vmem %s2, 512
    %v1602 = vld [vmem:[%s1601] sm:$0xff]
    %v1603 = vld [vmem:[%s1601 + $0x8] sm:$0xff]
    %v1604 = vld [vmem:[%s1601 + $0x10] sm:$0xff]
    %v1605 = vld [vmem:[%s1601 + $0x18] sm:$0xff]
    %v1606 = vld [vmem:[%s1601 + $0x20] sm:$0xff]
    %v1607 = vld [vmem:[%s1601 + $0x28] sm:$0xff]
    %v1608 = vld [vmem:[%s1601 + $0x30] sm:$0xff]
    %v1609 = vld [vmem:[%s1601 + $0x38] sm:$0xff]
    %1610 = vmatprep.subr.mxu0 0.0
    %1611 = vmatpush1.msra.mxu0 %v1602
    %1612 = vmatprep.subr.mxu0 0.0
    %1613 = vmatpush1.msra.mxu0 %v1603
    %1614 = vmatprep.subr.mxu0 0.0
    %1615 = vmatpush1.msra.mxu0 %v1604
    %1616 = vmatprep.subr.mxu0 0.0
    %1617 = vmatpush1.msra.mxu0 %v1605
    %1618 = vmatprep.subr.mxu0 0.0
    %1619 = vmatpush1.msra.mxu0 %v1606
    %1620 = vmatprep.subr.mxu0 0.0
    %1621 = vmatpush1.msra.mxu0 %v1607
    %1622 = vmatprep.subr.mxu0 0.0
    %1623 = vmatpush1.msra.mxu0 %v1608
    %1624 = vmatprep.subr.mxu0 0.0
    %1625 = vmatpush1.msra.mxu0 %v1609
    %1626 = vmatprep.subr.mxu0 0.0
    %1627 = vmatpush1.msra.mxu0 0.0
    %1628 = vmatprep.subr.mxu0 0.0
    %1629 = vmatpush1.msra.mxu0 0.0
    %1630 = vmatprep.subr.mxu0 0.0
    %1631 = vmatpush1.msra.mxu0 0.0
    %1632 = vmatprep.subr.mxu0 0.0
    %1633 = vmatpush1.msra.mxu0 0.0
    %1634 = vmatprep.subr.mxu0 0.0
    %1635 = vmatpush1.msra.mxu0 0.0
    %1636 = vmatprep.subr.mxu0 0.0
    %1637 = vmatpush1.msra.mxu0 0.0
    %1638 = vmatprep.subr.mxu0 0.0
    %1639 = vmatpush1.msra.mxu0 0.0
    %1640 = vmatprep.subr.mxu0 0.0
    %1641 = vmatpush1.msra.mxu0 0.0
    %1642 = vmatprep.subr.mxu0 0.0
    %1643 = vmatpush1.msra.mxu0 0.0
    %1644 = vmatprep.subr.mxu0 0.0
    %1645 = vmatpush1.msra.mxu0 0.0
    %1646 = vmatprep.subr.mxu0 0.0
    %1647 = vmatpush1.msra.mxu0 0.0
    %1648 = vmatprep.subr.mxu0 0.0
    %1649 = vmatpush1.msra.mxu0 0.0
    %1650 = vmatprep.subr.mxu0 0.0
    %1651 = vmatpush1.msra.mxu0 0.0
    %1652 = vmatprep.subr.mxu0 0.0
    %1653 = vmatpush1.msra.mxu0 0.0
    %1654 = vmatprep.subr.mxu0 0.0
    %1655 = vmatpush1.msra.mxu0 0.0
    %1656 = vmatprep.subr.mxu0 0.0
    %1657 = vmatpush1.msra.mxu0 0.0
    %1658 = vmatprep.subr.mxu0 0.0
    %1659 = vmatpush1.msra.mxu0 0.0
    %1660 = vmatprep.subr.mxu0 0.0
    %1661 = vmatpush1.msra.mxu0 0.0
    %1662 = vmatprep.subr.mxu0 0.0
    %1663 = vmatpush1.msra.mxu0 0.0
    %1664 = vmatprep.subr.mxu0 0.0
    %1665 = vmatpush1.msra.mxu0 0.0
    %1666 = vmatprep.subr.mxu0 0.0
    %1667 = vmatpush1.msra.mxu0 0.0
    %1668 = vmatprep.subr.mxu0 0.0
    %1669 = vmatpush1.msra.mxu0 0.0
    %1670 = vmatprep.subr.mxu0 0.0
    %1671 = vmatpush1.msra.mxu0 0.0
    %1672 = vmatprep.subr.mxu0 0.0
    %1673 = vmatpush1.msra.mxu0 0.0
    %1674 = vmatprep.mubr.f32.mxu0 0.0
    %1675 = vmatmul.mubr.f32.gmra.mrb[0].mxu0 %v292
    %v1676 = vpop.f32.mrb[0].mxu0
    %v1677 = vadd.f32 0.0, %v1676
    %v1678 = vpop.f32.mrb[0].mxu0
    %1679 = vdwg.mxu0
    %s1680 = scalar_lea.vmem %s3, 128
    %v1681 = vld [vmem:[%s1680] sm:$0xff]
    %v1682 = vld [vmem:[%s1680 + $0x8] sm:$0xff]
    %v1684 = vsel %vm448, %v1681, 0
    %v1687 = vsel %vm448, %v1682, 0
    %1689 = vmatprep.subr.mxu0 0.0
    %1690 = vmatpush1.msra.mxu0 %v1677
    %1691 = vmatprep.subr.mxu0 0.0
    %1692 = vmatpush1.msra.mxu0 0.0
    %1693 = vmatprep.subr.mxu0 0.0
    %1694 = vmatpush1.msra.mxu0 0.0
    %1695 = vmatprep.subr.mxu0 0.0
    %1696 = vmatpush1.msra.mxu0 0.0
    %1697 = vmatprep.subr.mxu0 0.0
    %1698 = vmatpush1.msra.mxu0 0.0
    %1699 = vmatprep.subr.mxu0 0.0
    %1700 = vmatpush1.msra.mxu0 0.0
    %1701 = vmatprep.subr.mxu0 0.0
    %1702 = vmatpush1.msra.mxu0 0.0
    %1703 = vmatprep.subr.mxu0 0.0
    %1704 = vmatpush1.msra.mxu0 0.0
    %1705 = vmatprep.subr.mxu0 0.0
    %1706 = vmatpush1.msra.mxu0 0.0
    %1707 = vmatprep.subr.mxu0 0.0
    %1708 = vmatpush1.msra.mxu0 0.0
    %1709 = vmatprep.subr.mxu0 0.0
    %1710 = vmatpush1.msra.mxu0 0.0
    %1711 = vmatprep.subr.mxu0 0.0
    %1712 = vmatpush1.msra.mxu0 0.0
    %1713 = vmatprep.subr.mxu0 0.0
    %1714 = vmatpush1.msra.mxu0 0.0
    %1715 = vmatprep.subr.mxu0 0.0
    %1716 = vmatpush1.msra.mxu0 0.0
    %1717 = vmatprep.subr.mxu0 0.0
    %1718 = vmatpush1.msra.mxu0 0.0
    %1719 = vmatprep.subr.mxu0 0.0
    %1720 = vmatpush1.msra.mxu0 0.0
    %1721 = vmatprep.subr.mxu0 0.0
    %1722 = vmatpush1.msra.mxu0 0.0
    %1723 = vmatprep.subr.mxu0 0.0
    %1724 = vmatpush1.msra.mxu0 0.0
    %1725 = vmatprep.subr.mxu0 0.0
    %1726 = vmatpush1.msra.mxu0 0.0
    %1727 = vmatprep.subr.mxu0 0.0
    %1728 = vmatpush1.msra.mxu0 0.0
    %1729 = vmatprep.subr.mxu0 0.0
    %1730 = vmatpush1.msra.mxu0 0.0
    %1731 = vmatprep.subr.mxu0 0.0
    %1732 = vmatpush1.msra.mxu0 0.0
    %1733 = vmatprep.subr.mxu0 0.0
    %1734 = vmatpush1.msra.mxu0 0.0
    %1735 = vmatprep.subr.mxu0 0.0
    %1736 = vmatpush1.msra.mxu0 0.0
    %1737 = vmatprep.subr.mxu0 0.0
    %1738 = vmatpush1.msra.mxu0 0.0
    %1739 = vmatprep.subr.mxu0 0.0
    %1740 = vmatpush1.msra.mxu0 0.0
    %1741 = vmatprep.subr.mxu0 0.0
    %1742 = vmatpush1.msra.mxu0 0.0
    %1743 = vmatprep.subr.mxu0 0.0
    %1744 = vmatpush1.msra.mxu0 0.0
    %1745 = vmatprep.subr.mxu0 0.0
    %1746 = vmatpush1.msra.mxu0 0.0
    %1747 = vmatprep.subr.mxu0 0.0
    %1748 = vmatpush1.msra.mxu0 0.0
    %1749 = vmatprep.subr.mxu0 0.0
    %1750 = vmatpush1.msra.mxu0 0.0
    %1751 = vmatprep.subr.mxu0 0.0
    %1752 = vmatpush1.msra.mxu0 0.0
    %1753 = vmatprep.mubr.f32.mxu0 0.0
    %1754 = vmatmul.mubr.f32.gmra.mrb[0].mxu0 %v1684
    %v1755 = vpop.f32.mrb[0].mxu0
    %v1756 = vadd.f32 0.0, %v1755
    %v1757 = vpop.f32.mrb[0].mxu0
    %1758 = vmatprep.mubr.f32.mxu0 0.0
    %1759 = vmatmul.mubr.f32.gmra.mrb[0].mxu0 %v1687
    %v1760 = vpop.f32.mrb[0].mxu0
    %v1761 = vadd.f32 0.0, %v1760
    %v1762 = vpop.f32.mrb[0].mxu0
    %1763 = vdwg.mxu0
    %v1764 = vadd.f32 %v1599, %v1756
    %v1765 = vadd.f32 %v1600, %v1761
    %s1766 = scalar_lea.vmem %s2, 576
    %v1767 = vld [vmem:[%s1766] sm:$0xff]
    %v1768 = vld [vmem:[%s1766 + $0x8] sm:$0xff]
    %v1769 = vld [vmem:[%s1766 + $0x10] sm:$0xff]
    %v1770 = vld [vmem:[%s1766 + $0x18] sm:$0xff]
    %v1771 = vld [vmem:[%s1766 + $0x20] sm:$0xff]
    %v1772 = vld [vmem:[%s1766 + $0x28] sm:$0xff]
    %v1773 = vld [vmem:[%s1766 + $0x30] sm:$0xff]
    %v1774 = vld [vmem:[%s1766 + $0x38] sm:$0xff]
    %1775 = vmatprep.subr.mxu0 0.0
    %1776 = vmatpush1.msra.mxu0 %v1767
    %1777 = vmatprep.subr.mxu0 0.0
    %1778 = vmatpush1.msra.mxu0 %v1768
    %1779 = vmatprep.subr.mxu0 0.0
    %1780 = vmatpush1.msra.mxu0 %v1769
    %1781 = vmatprep.subr.mxu0 0.0
    %1782 = vmatpush1.msra.mxu0 %v1770
    %1783 = vmatprep.subr.mxu0 0.0
    %1784 = vmatpush1.msra.mxu0 %v1771
    %1785 = vmatprep.subr.mxu0 0.0
    %1786 = vmatpush1.msra.mxu0 %v1772
    %1787 = vmatprep.subr.mxu0 0.0
    %1788 = vmatpush1.msra.mxu0 %v1773
    %1789 = vmatprep.subr.mxu0 0.0
    %1790 = vmatpush1.msra.mxu0 %v1774
    %1791 = vmatprep.subr.mxu0 0.0
    %1792 = vmatpush1.msra.mxu0 0.0
    %1793 = vmatprep.subr.mxu0 0.0
    %1794 = vmatpush1.msra.mxu0 0.0
    %1795 = vmatprep.subr.mxu0 0.0
    %1796 = vmatpush1.msra.mxu0 0.0
    %1797 = vmatprep.subr.mxu0 0.0
    %1798 = vmatpush1.msra.mxu0 0.0
    %1799 = vmatprep.subr.mxu0 0.0
    %1800 = vmatpush1.msra.mxu0 0.0
    %1801 = vmatprep.subr.mxu0 0.0
    %1802 = vmatpush1.msra.mxu0 0.0
    %1803 = vmatprep.subr.mxu0 0.0
    %1804 = vmatpush1.msra.mxu0 0.0
    %1805 = vmatprep.subr.mxu0 0.0
    %1806 = vmatpush1.msra.mxu0 0.0
    %1807 = vmatprep.subr.mxu0 0.0
    %1808 = vmatpush1.msra.mxu0 0.0
    %1809 = vmatprep.subr.mxu0 0.0
    %1810 = vmatpush1.msra.mxu0 0.0
    %1811 = vmatprep.subr.mxu0 0.0
    %1812 = vmatpush1.msra.mxu0 0.0
    %1813 = vmatprep.subr.mxu0 0.0
    %1814 = vmatpush1.msra.mxu0 0.0
    %1815 = vmatprep.subr.mxu0 0.0
    %1816 = vmatpush1.msra.mxu0 0.0
    %1817 = vmatprep.subr.mxu0 0.0
    %1818 = vmatpush1.msra.mxu0 0.0
    %1819 = vmatprep.subr.mxu0 0.0
    %1820 = vmatpush1.msra.mxu0 0.0
    %1821 = vmatprep.subr.mxu0 0.0
    %1822 = vmatpush1.msra.mxu0 0.0
    %1823 = vmatprep.subr.mxu0 0.0
    %1824 = vmatpush1.msra.mxu0 0.0
    %1825 = vmatprep.subr.mxu0 0.0
    %1826 = vmatpush1.msra.mxu0 0.0
    %1827 = vmatprep.subr.mxu0 0.0
    %1828 = vmatpush1.msra.mxu0 0.0
    %1829 = vmatprep.subr.mxu0 0.0
    %1830 = vmatpush1.msra.mxu0 0.0
    %1831 = vmatprep.subr.mxu0 0.0
    %1832 = vmatpush1.msra.mxu0 0.0
    %1833 = vmatprep.subr.mxu0 0.0
    %1834 = vmatpush1.msra.mxu0 0.0
    %1835 = vmatprep.subr.mxu0 0.0
    %1836 = vmatpush1.msra.mxu0 0.0
    %1837 = vmatprep.subr.mxu0 0.0
    %1838 = vmatpush1.msra.mxu0 0.0
    %1839 = vmatprep.mubr.f32.mxu0 0.0
    %1840 = vmatmul.mubr.f32.gmra.mrb[0].mxu0 %v292
    %v1841 = vpop.f32.mrb[0].mxu0
    %v1842 = vadd.f32 0.0, %v1841
    %v1843 = vpop.f32.mrb[0].mxu0
    %1844 = vdwg.mxu0
    %s1845 = scalar_lea.vmem %s3, 144
    %v1846 = vld [vmem:[%s1845] sm:$0xff]
    %v1847 = vld [vmem:[%s1845 + $0x8] sm:$0xff]
    %v1849 = vsel %vm448, %v1846, 0
    %v1852 = vsel %vm448, %v1847, 0
    %1854 = vmatprep.subr.mxu0 0.0
    %1855 = vmatpush1.msra.mxu0 %v1842
    %1856 = vmatprep.subr.mxu0 0.0
    %1857 = vmatpush1.msra.mxu0 0.0
    %1858 = vmatprep.subr.mxu0 0.0
    %1859 = vmatpush1.msra.mxu0 0.0
    %1860 = vmatprep.subr.mxu0 0.0
    %1861 = vmatpush1.msra.mxu0 0.0
    %1862 = vmatprep.subr.mxu0 0.0
    %1863 = vmatpush1.msra.mxu0 0.0
    %1864 = vmatprep.subr.mxu0 0.0
    %1865 = vmatpush1.msra.mxu0 0.0
    %1866 = vmatprep.subr.mxu0 0.0
    %1867 = vmatpush1.msra.mxu0 0.0
    %1868 = vmatprep.subr.mxu0 0.0
    %1869 = vmatpush1.msra.mxu0 0.0
    %1870 = vmatprep.subr.mxu0 0.0
    %1871 = vmatpush1.msra.mxu0 0.0
    %1872 = vmatprep.subr.mxu0 0.0
    %1873 = vmatpush1.msra.mxu0 0.0
    %1874 = vmatprep.subr.mxu0 0.0
    %1875 = vmatpush1.msra.mxu0 0.0
    %1876 = vmatprep.subr.mxu0 0.0
    %1877 = vmatpush1.msra.mxu0 0.0
    %1878 = vmatprep.subr.mxu0 0.0
    %1879 = vmatpush1.msra.mxu0 0.0
    %1880 = vmatprep.subr.mxu0 0.0
    %1881 = vmatpush1.msra.mxu0 0.0
    %1882 = vmatprep.subr.mxu0 0.0
    %1883 = vmatpush1.msra.mxu0 0.0
    %1884 = vmatprep.subr.mxu0 0.0
    %1885 = vmatpush1.msra.mxu0 0.0
    %1886 = vmatprep.subr.mxu0 0.0
    %1887 = vmatpush1.msra.mxu0 0.0
    %1888 = vmatprep.subr.mxu0 0.0
    %1889 = vmatpush1.msra.mxu0 0.0
    %1890 = vmatprep.subr.mxu0 0.0
    %1891 = vmatpush1.msra.mxu0 0.0
    %1892 = vmatprep.subr.mxu0 0.0
    %1893 = vmatpush1.msra.mxu0 0.0
    %1894 = vmatprep.subr.mxu0 0.0
    %1895 = vmatpush1.msra.mxu0 0.0
    %1896 = vmatprep.subr.mxu0 0.0
    %1897 = vmatpush1.msra.mxu0 0.0
    %1898 = vmatprep.subr.mxu0 0.0
    %1899 = vmatpush1.msra.mxu0 0.0
    %1900 = vmatprep.subr.mxu0 0.0
    %1901 = vmatpush1.msra.mxu0 0.0
    %1902 = vmatprep.subr.mxu0 0.0
    %1903 = vmatpush1.msra.mxu0 0.0
    %1904 = vmatprep.subr.mxu0 0.0
    %1905 = vmatpush1.msra.mxu0 0.0
    %1906 = vmatprep.subr.mxu0 0.0
    %1907 = vmatpush1.msra.mxu0 0.0
    %1908 = vmatprep.subr.mxu0 0.0
    %1909 = vmatpush1.msra.mxu0 0.0
    %1910 = vmatprep.subr.mxu0 0.0
    %1911 = vmatpush1.msra.mxu0 0.0
    %1912 = vmatprep.subr.mxu0 0.0
    %1913 = vmatpush1.msra.mxu0 0.0
    %1914 = vmatprep.subr.mxu0 0.0
    %1915 = vmatpush1.msra.mxu0 0.0
    %1916 = vmatprep.subr.mxu0 0.0
    %1917 = vmatpush1.msra.mxu0 0.0
    %1918 = vmatprep.mubr.f32.mxu0 0.0
    %1919 = vmatmul.mubr.f32.gmra.mrb[0].mxu0 %v1849
    %v1920 = vpop.f32.mrb[0].mxu0
    %v1921 = vadd.f32 0.0, %v1920
    %v1922 = vpop.f32.mrb[0].mxu0
    %1923 = vmatprep.mubr.f32.mxu0 0.0
    %1924 = vmatmul.mubr.f32.gmra.mrb[0].mxu0 %v1852
    %v1925 = vpop.f32.mrb[0].mxu0
    %v1926 = vadd.f32 0.0, %v1925
    %v1927 = vpop.f32.mrb[0].mxu0
    %1928 = vdwg.mxu0
    %v1929 = vadd.f32 %v1764, %v1921
    %v1930 = vadd.f32 %v1765, %v1926
    %s1931 = scalar_lea.vmem %s2, 640
    %v1932 = vld [vmem:[%s1931] sm:$0xff]
    %v1933 = vld [vmem:[%s1931 + $0x8] sm:$0xff]
    %v1934 = vld [vmem:[%s1931 + $0x10] sm:$0xff]
    %v1935 = vld [vmem:[%s1931 + $0x18] sm:$0xff]
    %v1936 = vld [vmem:[%s1931 + $0x20] sm:$0xff]
    %v1937 = vld [vmem:[%s1931 + $0x28] sm:$0xff]
    %v1938 = vld [vmem:[%s1931 + $0x30] sm:$0xff]
    %v1939 = vld [vmem:[%s1931 + $0x38] sm:$0xff]
    %1940 = vmatprep.subr.mxu0 0.0
    %1941 = vmatpush1.msra.mxu0 %v1932
    %1942 = vmatprep.subr.mxu0 0.0
    %1943 = vmatpush1.msra.mxu0 %v1933
    %1944 = vmatprep.subr.mxu0 0.0
    %1945 = vmatpush1.msra.mxu0 %v1934
    %1946 = vmatprep.subr.mxu0 0.0
    %1947 = vmatpush1.msra.mxu0 %v1935
    %1948 = vmatprep.subr.mxu0 0.0
    %1949 = vmatpush1.msra.mxu0 %v1936
    %1950 = vmatprep.subr.mxu0 0.0
    %1951 = vmatpush1.msra.mxu0 %v1937
    %1952 = vmatprep.subr.mxu0 0.0
    %1953 = vmatpush1.msra.mxu0 %v1938
    %1954 = vmatprep.subr.mxu0 0.0
    %1955 = vmatpush1.msra.mxu0 %v1939
    %1956 = vmatprep.subr.mxu0 0.0
    %1957 = vmatpush1.msra.mxu0 0.0
    %1958 = vmatprep.subr.mxu0 0.0
    %1959 = vmatpush1.msra.mxu0 0.0
    %1960 = vmatprep.subr.mxu0 0.0
    %1961 = vmatpush1.msra.mxu0 0.0
    %1962 = vmatprep.subr.mxu0 0.0
    %1963 = vmatpush1.msra.mxu0 0.0
    %1964 = vmatprep.subr.mxu0 0.0
    %1965 = vmatpush1.msra.mxu0 0.0
    %1966 = vmatprep.subr.mxu0 0.0
    %1967 = vmatpush1.msra.mxu0 0.0
    %1968 = vmatprep.subr.mxu0 0.0
    %1969 = vmatpush1.msra.mxu0 0.0
    %1970 = vmatprep.subr.mxu0 0.0
    %1971 = vmatpush1.msra.mxu0 0.0
    %1972 = vmatprep.subr.mxu0 0.0
    %1973 = vmatpush1.msra.mxu0 0.0
    %1974 = vmatprep.subr.mxu0 0.0
    %1975 = vmatpush1.msra.mxu0 0.0
    %1976 = vmatprep.subr.mxu0 0.0
    %1977 = vmatpush1.msra.mxu0 0.0
    %1978 = vmatprep.subr.mxu0 0.0
    %1979 = vmatpush1.msra.mxu0 0.0
    %1980 = vmatprep.subr.mxu0 0.0
    %1981 = vmatpush1.msra.mxu0 0.0
    %1982 = vmatprep.subr.mxu0 0.0
    %1983 = vmatpush1.msra.mxu0 0.0
    %1984 = vmatprep.subr.mxu0 0.0
    %1985 = vmatpush1.msra.mxu0 0.0
    %1986 = vmatprep.subr.mxu0 0.0
    %1987 = vmatpush1.msra.mxu0 0.0
    %1988 = vmatprep.subr.mxu0 0.0
    %1989 = vmatpush1.msra.mxu0 0.0
    %1990 = vmatprep.subr.mxu0 0.0
    %1991 = vmatpush1.msra.mxu0 0.0
    %1992 = vmatprep.subr.mxu0 0.0
    %1993 = vmatpush1.msra.mxu0 0.0
    %1994 = vmatprep.subr.mxu0 0.0
    %1995 = vmatpush1.msra.mxu0 0.0
    %1996 = vmatprep.subr.mxu0 0.0
    %1997 = vmatpush1.msra.mxu0 0.0
    %1998 = vmatprep.subr.mxu0 0.0
    %1999 = vmatpush1.msra.mxu0 0.0
    %2000 = vmatprep.subr.mxu0 0.0
    %2001 = vmatpush1.msra.mxu0 0.0
    %2002 = vmatprep.subr.mxu0 0.0
    %2003 = vmatpush1.msra.mxu0 0.0
    %2004 = vmatprep.mubr.f32.mxu0 0.0
    %2005 = vmatmul.mubr.f32.gmra.mrb[0].mxu0 %v292
    %v2006 = vpop.f32.mrb[0].mxu0
    %v2007 = vadd.f32 0.0, %v2006
    %v2008 = vpop.f32.mrb[0].mxu0
    %2009 = vdwg.mxu0
    %s2010 = scalar_lea.vmem %s3, 160
    %v2011 = vld [vmem:[%s2010] sm:$0xff]
    %v2012 = vld [vmem:[%s2010 + $0x8] sm:$0xff]
    %v2014 = vsel %vm448, %v2011, 0
    %v2017 = vsel %vm448, %v2012, 0
    %2019 = vmatprep.subr.mxu0 0.0
    %2020 = vmatpush1.msra.mxu0 %v2007
    %2021 = vmatprep.subr.mxu0 0.0
    %2022 = vmatpush1.msra.mxu0 0.0
    %2023 = vmatprep.subr.mxu0 0.0
    %2024 = vmatpush1.msra.mxu0 0.0
    %2025 = vmatprep.subr.mxu0 0.0
    %2026 = vmatpush1.msra.mxu0 0.0
    %2027 = vmatprep.subr.mxu0 0.0
    %2028 = vmatpush1.msra.mxu0 0.0
    %2029 = vmatprep.subr.mxu0 0.0
    %2030 = vmatpush1.msra.mxu0 0.0
    %2031 = vmatprep.subr.mxu0 0.0
    %2032 = vmatpush1.msra.mxu0 0.0
    %2033 = vmatprep.subr.mxu0 0.0
    %2034 = vmatpush1.msra.mxu0 0.0
    %2035 = vmatprep.subr.mxu0 0.0
    %2036 = vmatpush1.msra.mxu0 0.0
    %2037 = vmatprep.subr.mxu0 0.0
    %2038 = vmatpush1.msra.mxu0 0.0
    %2039 = vmatprep.subr.mxu0 0.0
    %2040 = vmatpush1.msra.mxu0 0.0
    %2041 = vmatprep.subr.mxu0 0.0
    %2042 = vmatpush1.msra.mxu0 0.0
    %2043 = vmatprep.subr.mxu0 0.0
    %2044 = vmatpush1.msra.mxu0 0.0
    %2045 = vmatprep.subr.mxu0 0.0
    %2046 = vmatpush1.msra.mxu0 0.0
    %2047 = vmatprep.subr.mxu0 0.0
    %2048 = vmatpush1.msra.mxu0 0.0
    %2049 = vmatprep.subr.mxu0 0.0
    %2050 = vmatpush1.msra.mxu0 0.0
    %2051 = vmatprep.subr.mxu0 0.0
    %2052 = vmatpush1.msra.mxu0 0.0
    %2053 = vmatprep.subr.mxu0 0.0
    %2054 = vmatpush1.msra.mxu0 0.0
    %2055 = vmatprep.subr.mxu0 0.0
    %2056 = vmatpush1.msra.mxu0 0.0
    %2057 = vmatprep.subr.mxu0 0.0
    %2058 = vmatpush1.msra.mxu0 0.0
    %2059 = vmatprep.subr.mxu0 0.0
    %2060 = vmatpush1.msra.mxu0 0.0
    %2061 = vmatprep.subr.mxu0 0.0
    %2062 = vmatpush1.msra.mxu0 0.0
    %2063 = vmatprep.subr.mxu0 0.0
    %2064 = vmatpush1.msra.mxu0 0.0
    %2065 = vmatprep.subr.mxu0 0.0
    %2066 = vmatpush1.msra.mxu0 0.0
    %2067 = vmatprep.subr.mxu0 0.0
    %2068 = vmatpush1.msra.mxu0 0.0
    %2069 = vmatprep.subr.mxu0 0.0
    %2070 = vmatpush1.msra.mxu0 0.0
    %2071 = vmatprep.subr.mxu0 0.0
    %2072 = vmatpush1.msra.mxu0 0.0
    %2073 = vmatprep.subr.mxu0 0.0
    %2074 = vmatpush1.msra.mxu0 0.0
    %2075 = vmatprep.subr.mxu0 0.0
    %2076 = vmatpush1.msra.mxu0 0.0
    %2077 = vmatprep.subr.mxu0 0.0
    %2078 = vmatpush1.msra.mxu0 0.0
    %2079 = vmatprep.subr.mxu0 0.0
    %2080 = vmatpush1.msra.mxu0 0.0
    %2081 = vmatprep.subr.mxu0 0.0
    %2082 = vmatpush1.msra.mxu0 0.0
    %2083 = vmatprep.mubr.f32.mxu0 0.0
    %2084 = vmatmul.mubr.f32.gmra.mrb[0].mxu0 %v2014
    %v2085 = vpop.f32.mrb[0].mxu0
    %v2086 = vadd.f32 0.0, %v2085
    %v2087 = vpop.f32.mrb[0].mxu0
    %2088 = vmatprep.mubr.f32.mxu0 0.0
    %2089 = vmatmul.mubr.f32.gmra.mrb[0].mxu0 %v2017
    %v2090 = vpop.f32.mrb[0].mxu0
    %v2091 = vadd.f32 0.0, %v2090
    %v2092 = vpop.f32.mrb[0].mxu0
    %2093 = vdwg.mxu0
    %v2094 = vadd.f32 %v1929, %v2086
    %v2095 = vadd.f32 %v1930, %v2091
    %s2096 = scalar_lea.vmem %s2, 704
    %v2097 = vld [vmem:[%s2096] sm:$0xff]
    %v2098 = vld [vmem:[%s2096 + $0x8] sm:$0xff]
    %v2099 = vld [vmem:[%s2096 + $0x10] sm:$0xff]
    %v2100 = vld [vmem:[%s2096 + $0x18] sm:$0xff]
    %v2101 = vld [vmem:[%s2096 + $0x20] sm:$0xff]
    %v2102 = vld [vmem:[%s2096 + $0x28] sm:$0xff]
    %v2103 = vld [vmem:[%s2096 + $0x30] sm:$0xff]
    %v2104 = vld [vmem:[%s2096 + $0x38] sm:$0xff]
    %2105 = vmatprep.subr.mxu0 0.0
    %2106 = vmatpush1.msra.mxu0 %v2097
    %2107 = vmatprep.subr.mxu0 0.0
    %2108 = vmatpush1.msra.mxu0 %v2098
    %2109 = vmatprep.subr.mxu0 0.0
    %2110 = vmatpush1.msra.mxu0 %v2099
    %2111 = vmatprep.subr.mxu0 0.0
    %2112 = vmatpush1.msra.mxu0 %v2100
    %2113 = vmatprep.subr.mxu0 0.0
    %2114 = vmatpush1.msra.mxu0 %v2101
    %2115 = vmatprep.subr.mxu0 0.0
    %2116 = vmatpush1.msra.mxu0 %v2102
    %2117 = vmatprep.subr.mxu0 0.0
    %2118 = vmatpush1.msra.mxu0 %v2103
    %2119 = vmatprep.subr.mxu0 0.0
    %2120 = vmatpush1.msra.mxu0 %v2104
    %2121 = vmatprep.subr.mxu0 0.0
    %2122 = vmatpush1.msra.mxu0 0.0
    %2123 = vmatprep.subr.mxu0 0.0
    %2124 = vmatpush1.msra.mxu0 0.0
    %2125 = vmatprep.subr.mxu0 0.0
    %2126 = vmatpush1.msra.mxu0 0.0
    %2127 = vmatprep.subr.mxu0 0.0
    %2128 = vmatpush1.msra.mxu0 0.0
    %2129 = vmatprep.subr.mxu0 0.0
    %2130 = vmatpush1.msra.mxu0 0.0
    %2131 = vmatprep.subr.mxu0 0.0
    %2132 = vmatpush1.msra.mxu0 0.0
    %2133 = vmatprep.subr.mxu0 0.0
    %2134 = vmatpush1.msra.mxu0 0.0
    %2135 = vmatprep.subr.mxu0 0.0
    %2136 = vmatpush1.msra.mxu0 0.0
    %2137 = vmatprep.subr.mxu0 0.0
    %2138 = vmatpush1.msra.mxu0 0.0
    %2139 = vmatprep.subr.mxu0 0.0
    %2140 = vmatpush1.msra.mxu0 0.0
    %2141 = vmatprep.subr.mxu0 0.0
    %2142 = vmatpush1.msra.mxu0 0.0
    %2143 = vmatprep.subr.mxu0 0.0
    %2144 = vmatpush1.msra.mxu0 0.0
    %2145 = vmatprep.subr.mxu0 0.0
    %2146 = vmatpush1.msra.mxu0 0.0
    %2147 = vmatprep.subr.mxu0 0.0
    %2148 = vmatpush1.msra.mxu0 0.0
    %2149 = vmatprep.subr.mxu0 0.0
    %2150 = vmatpush1.msra.mxu0 0.0
    %2151 = vmatprep.subr.mxu0 0.0
    %2152 = vmatpush1.msra.mxu0 0.0
    %2153 = vmatprep.subr.mxu0 0.0
    %2154 = vmatpush1.msra.mxu0 0.0
    %2155 = vmatprep.subr.mxu0 0.0
    %2156 = vmatpush1.msra.mxu0 0.0
    %2157 = vmatprep.subr.mxu0 0.0
    %2158 = vmatpush1.msra.mxu0 0.0
    %2159 = vmatprep.subr.mxu0 0.0
    %2160 = vmatpush1.msra.mxu0 0.0
    %2161 = vmatprep.subr.mxu0 0.0
    %2162 = vmatpush1.msra.mxu0 0.0
    %2163 = vmatprep.subr.mxu0 0.0
    %2164 = vmatpush1.msra.mxu0 0.0
    %2165 = vmatprep.subr.mxu0 0.0
    %2166 = vmatpush1.msra.mxu0 0.0
    %2167 = vmatprep.subr.mxu0 0.0
    %2168 = vmatpush1.msra.mxu0 0.0
    %2169 = vmatprep.mubr.f32.mxu0 0.0
    %2170 = vmatmul.mubr.f32.gmra.mrb[0].mxu0 %v292
    %v2171 = vpop.f32.mrb[0].mxu0
    %v2172 = vadd.f32 0.0, %v2171
    %v2173 = vpop.f32.mrb[0].mxu0
    %2174 = vdwg.mxu0
    %s2175 = scalar_lea.vmem %s3, 176
    %v2176 = vld [vmem:[%s2175] sm:$0xff]
    %v2177 = vld [vmem:[%s2175 + $0x8] sm:$0xff]
    %v2179 = vsel %vm448, %v2176, 0
    %v2182 = vsel %vm448, %v2177, 0
    %2184 = vmatprep.subr.mxu0 0.0
    %2185 = vmatpush1.msra.mxu0 %v2172
    %2186 = vmatprep.subr.mxu0 0.0
    %2187 = vmatpush1.msra.mxu0 0.0
    %2188 = vmatprep.subr.mxu0 0.0
    %2189 = vmatpush1.msra.mxu0 0.0
    %2190 = vmatprep.subr.mxu0 0.0
    %2191 = vmatpush1.msra.mxu0 0.0
    %2192 = vmatprep.subr.mxu0 0.0
    %2193 = vmatpush1.msra.mxu0 0.0
    %2194 = vmatprep.subr.mxu0 0.0
    %2195 = vmatpush1.msra.mxu0 0.0
    %2196 = vmatprep.subr.mxu0 0.0
    %2197 = vmatpush1.msra.mxu0 0.0
    %2198 = vmatprep.subr.mxu0 0.0
    %2199 = vmatpush1.msra.mxu0 0.0
    %2200 = vmatprep.subr.mxu0 0.0
    %2201 = vmatpush1.msra.mxu0 0.0
    %2202 = vmatprep.subr.mxu0 0.0
    %2203 = vmatpush1.msra.mxu0 0.0
    %2204 = vmatprep.subr.mxu0 0.0
    %2205 = vmatpush1.msra.mxu0 0.0
    %2206 = vmatprep.subr.mxu0 0.0
    %2207 = vmatpush1.msra.mxu0 0.0
    %2208 = vmatprep.subr.mxu0 0.0
    %2209 = vmatpush1.msra.mxu0 0.0
    %2210 = vmatprep.subr.mxu0 0.0
    %2211 = vmatpush1.msra.mxu0 0.0
    %2212 = vmatprep.subr.mxu0 0.0
    %2213 = vmatpush1.msra.mxu0 0.0
    %2214 = vmatprep.subr.mxu0 0.0
    %2215 = vmatpush1.msra.mxu0 0.0
    %2216 = vmatprep.subr.mxu0 0.0
    %2217 = vmatpush1.msra.mxu0 0.0
    %2218 = vmatprep.subr.mxu0 0.0
    %2219 = vmatpush1.msra.mxu0 0.0
    %2220 = vmatprep.subr.mxu0 0.0
    %2221 = vmatpush1.msra.mxu0 0.0
    %2222 = vmatprep.subr.mxu0 0.0
    %2223 = vmatpush1.msra.mxu0 0.0
    %2224 = vmatprep.subr.mxu0 0.0
    %2225 = vmatpush1.msra.mxu0 0.0
    %2226 = vmatprep.subr.mxu0 0.0
    %2227 = vmatpush1.msra.mxu0 0.0
    %2228 = vmatprep.subr.mxu0 0.0
    %2229 = vmatpush1.msra.mxu0 0.0
    %2230 = vmatprep.subr.mxu0 0.0
    %2231 = vmatpush1.msra.mxu0 0.0
    %2232 = vmatprep.subr.mxu0 0.0
    %2233 = vmatpush1.msra.mxu0 0.0
    %2234 = vmatprep.subr.mxu0 0.0
    %2235 = vmatpush1.msra.mxu0 0.0
    %2236 = vmatprep.subr.mxu0 0.0
    %2237 = vmatpush1.msra.mxu0 0.0
    %2238 = vmatprep.subr.mxu0 0.0
    %2239 = vmatpush1.msra.mxu0 0.0
    %2240 = vmatprep.subr.mxu0 0.0
    %2241 = vmatpush1.msra.mxu0 0.0
    %2242 = vmatprep.subr.mxu0 0.0
    %2243 = vmatpush1.msra.mxu0 0.0
    %2244 = vmatprep.subr.mxu0 0.0
    %2245 = vmatpush1.msra.mxu0 0.0
    %2246 = vmatprep.subr.mxu0 0.0
    %2247 = vmatpush1.msra.mxu0 0.0
    %2248 = vmatprep.mubr.f32.mxu0 0.0
    %2249 = vmatmul.mubr.f32.gmra.mrb[0].mxu0 %v2179
    %v2250 = vpop.f32.mrb[0].mxu0
    %v2251 = vadd.f32 0.0, %v2250
    %v2252 = vpop.f32.mrb[0].mxu0
    %2253 = vmatprep.mubr.f32.mxu0 0.0
    %2254 = vmatmul.mubr.f32.gmra.mrb[0].mxu0 %v2182
    %v2255 = vpop.f32.mrb[0].mxu0
    %v2256 = vadd.f32 0.0, %v2255
    %v2257 = vpop.f32.mrb[0].mxu0
    %2258 = vdwg.mxu0
    %v2259 = vadd.f32 %v2094, %v2251
    %v2260 = vadd.f32 %v2095, %v2256
    %s2261 = scalar_lea.vmem %s2, 768
    %v2262 = vld [vmem:[%s2261] sm:$0xff]
    %v2263 = vld [vmem:[%s2261 + $0x8] sm:$0xff]
    %v2264 = vld [vmem:[%s2261 + $0x10] sm:$0xff]
    %v2265 = vld [vmem:[%s2261 + $0x18] sm:$0xff]
    %v2266 = vld [vmem:[%s2261 + $0x20] sm:$0xff]
    %v2267 = vld [vmem:[%s2261 + $0x28] sm:$0xff]
    %v2268 = vld [vmem:[%s2261 + $0x30] sm:$0xff]
    %v2269 = vld [vmem:[%s2261 + $0x38] sm:$0xff]
    %2270 = vmatprep.subr.mxu0 0.0
    %2271 = vmatpush1.msra.mxu0 %v2262
    %2272 = vmatprep.subr.mxu0 0.0
    %2273 = vmatpush1.msra.mxu0 %v2263
    %2274 = vmatprep.subr.mxu0 0.0
    %2275 = vmatpush1.msra.mxu0 %v2264
    %2276 = vmatprep.subr.mxu0 0.0
    %2277 = vmatpush1.msra.mxu0 %v2265
    %2278 = vmatprep.subr.mxu0 0.0
    %2279 = vmatpush1.msra.mxu0 %v2266
    %2280 = vmatprep.subr.mxu0 0.0
    %2281 = vmatpush1.msra.mxu0 %v2267
    %2282 = vmatprep.subr.mxu0 0.0
    %2283 = vmatpush1.msra.mxu0 %v2268
    %2284 = vmatprep.subr.mxu0 0.0
    %2285 = vmatpush1.msra.mxu0 %v2269
    %2286 = vmatprep.subr.mxu0 0.0
    %2287 = vmatpush1.msra.mxu0 0.0
    %2288 = vmatprep.subr.mxu0 0.0
    %2289 = vmatpush1.msra.mxu0 0.0
    %2290 = vmatprep.subr.mxu0 0.0
    %2291 = vmatpush1.msra.mxu0 0.0
    %2292 = vmatprep.subr.mxu0 0.0
    %2293 = vmatpush1.msra.mxu0 0.0
    %2294 = vmatprep.subr.mxu0 0.0
    %2295 = vmatpush1.msra.mxu0 0.0
    %2296 = vmatprep.subr.mxu0 0.0
    %2297 = vmatpush1.msra.mxu0 0.0
    %2298 = vmatprep.subr.mxu0 0.0
    %2299 = vmatpush1.msra.mxu0 0.0
    %2300 = vmatprep.subr.mxu0 0.0
    %2301 = vmatpush1.msra.mxu0 0.0
    %2302 = vmatprep.subr.mxu0 0.0
    %2303 = vmatpush1.msra.mxu0 0.0
    %2304 = vmatprep.subr.mxu0 0.0
    %2305 = vmatpush1.msra.mxu0 0.0
    %2306 = vmatprep.subr.mxu0 0.0
    %2307 = vmatpush1.msra.mxu0 0.0
    %2308 = vmatprep.subr.mxu0 0.0
    %2309 = vmatpush1.msra.mxu0 0.0
    %2310 = vmatprep.subr.mxu0 0.0
    %2311 = vmatpush1.msra.mxu0 0.0
    %2312 = vmatprep.subr.mxu0 0.0
    %2313 = vmatpush1.msra.mxu0 0.0
    %2314 = vmatprep.subr.mxu0 0.0
    %2315 = vmatpush1.msra.mxu0 0.0
    %2316 = vmatprep.subr.mxu0 0.0
    %2317 = vmatpush1.msra.mxu0 0.0
    %2318 = vmatprep.subr.mxu0 0.0
    %2319 = vmatpush1.msra.mxu0 0.0
    %2320 = vmatprep.subr.mxu0 0.0
    %2321 = vmatpush1.msra.mxu0 0.0
    %2322 = vmatprep.subr.mxu0 0.0
    %2323 = vmatpush1.msra.mxu0 0.0
    %2324 = vmatprep.subr.mxu0 0.0
    %2325 = vmatpush1.msra.mxu0 0.0
    %2326 = vmatprep.subr.mxu0 0.0
    %2327 = vmatpush1.msra.mxu0 0.0
    %2328 = vmatprep.subr.mxu0 0.0
    %2329 = vmatpush1.msra.mxu0 0.0
    %2330 = vmatprep.subr.mxu0 0.0
    %2331 = vmatpush1.msra.mxu0 0.0
    %2332 = vmatprep.subr.mxu0 0.0
    %2333 = vmatpush1.msra.mxu0 0.0
    %2334 = vmatprep.mubr.f32.mxu0 0.0
    %2335 = vmatmul.mubr.f32.gmra.mrb[0].mxu0 %v292
    %v2336 = vpop.f32.mrb[0].mxu0
    %v2337 = vadd.f32 0.0, %v2336
    %v2338 = vpop.f32.mrb[0].mxu0
    %2339 = vdwg.mxu0
    %s2340 = scalar_lea.vmem %s3, 192
    %v2341 = vld [vmem:[%s2340] sm:$0xff]
    %v2342 = vld [vmem:[%s2340 + $0x8] sm:$0xff]
    %v2344 = vsel %vm448, %v2341, 0
    %v2347 = vsel %vm448, %v2342, 0
    %2349 = vmatprep.subr.mxu0 0.0
    %2350 = vmatpush1.msra.mxu0 %v2337
    %2351 = vmatprep.subr.mxu0 0.0
    %2352 = vmatpush1.msra.mxu0 0.0
    %2353 = vmatprep.subr.mxu0 0.0
    %2354 = vmatpush1.msra.mxu0 0.0
    %2355 = vmatprep.subr.mxu0 0.0
    %2356 = vmatpush1.msra.mxu0 0.0
    %2357 = vmatprep.subr.mxu0 0.0
    %2358 = vmatpush1.msra.mxu0 0.0
    %2359 = vmatprep.subr.mxu0 0.0
    %2360 = vmatpush1.msra.mxu0 0.0
    %2361 = vmatprep.subr.mxu0 0.0
    %2362 = vmatpush1.msra.mxu0 0.0
    %2363 = vmatprep.subr.mxu0 0.0
    %2364 = vmatpush1.msra.mxu0 0.0
    %2365 = vmatprep.subr.mxu0 0.0
    %2366 = vmatpush1.msra.mxu0 0.0
    %2367 = vmatprep.subr.mxu0 0.0
    %2368 = vmatpush1.msra.mxu0 0.0
    %2369 = vmatprep.subr.mxu0 0.0
    %2370 = vmatpush1.msra.mxu0 0.0
    %2371 = vmatprep.subr.mxu0 0.0
    %2372 = vmatpush1.msra.mxu0 0.0
    %2373 = vmatprep.subr.mxu0 0.0
    %2374 = vmatpush1.msra.mxu0 0.0
    %2375 = vmatprep.subr.mxu0 0.0
    %2376 = vmatpush1.msra.mxu0 0.0
    %2377 = vmatprep.subr.mxu0 0.0
    %2378 = vmatpush1.msra.mxu0 0.0
    %2379 = vmatprep.subr.mxu0 0.0
    %2380 = vmatpush1.msra.mxu0 0.0
    %2381 = vmatprep.subr.mxu0 0.0
    %2382 = vmatpush1.msra.mxu0 0.0
    %2383 = vmatprep.subr.mxu0 0.0
    %2384 = vmatpush1.msra.mxu0 0.0
    %2385 = vmatprep.subr.mxu0 0.0
    %2386 = vmatpush1.msra.mxu0 0.0
    %2387 = vmatprep.subr.mxu0 0.0
    %2388 = vmatpush1.msra.mxu0 0.0
    %2389 = vmatprep.subr.mxu0 0.0
    %2390 = vmatpush1.msra.mxu0 0.0
    %2391 = vmatprep.subr.mxu0 0.0
    %2392 = vmatpush1.msra.mxu0 0.0
    %2393 = vmatprep.subr.mxu0 0.0
    %2394 = vmatpush1.msra.mxu0 0.0
    %2395 = vmatprep.subr.mxu0 0.0
    %2396 = vmatpush1.msra.mxu0 0.0
    %2397 = vmatprep.subr.mxu0 0.0
    %2398 = vmatpush1.msra.mxu0 0.0
    %2399 = vmatprep.subr.mxu0 0.0
    %2400 = vmatpush1.msra.mxu0 0.0
    %2401 = vmatprep.subr.mxu0 0.0
    %2402 = vmatpush1.msra.mxu0 0.0
    %2403 = vmatprep.subr.mxu0 0.0
    %2404 = vmatpush1.msra.mxu0 0.0
    %2405 = vmatprep.subr.mxu0 0.0
    %2406 = vmatpush1.msra.mxu0 0.0
    %2407 = vmatprep.subr.mxu0 0.0
    %2408 = vmatpush1.msra.mxu0 0.0
    %2409 = vmatprep.subr.mxu0 0.0
    %2410 = vmatpush1.msra.mxu0 0.0
    %2411 = vmatprep.subr.mxu0 0.0
    %2412 = vmatpush1.msra.mxu0 0.0
    %2413 = vmatprep.mubr.f32.mxu0 0.0
    %2414 = vmatmul.mubr.f32.gmra.mrb[0].mxu0 %v2344
    %v2415 = vpop.f32.mrb[0].mxu0
    %v2416 = vadd.f32 0.0, %v2415
    %v2417 = vpop.f32.mrb[0].mxu0
    %2418 = vmatprep.mubr.f32.mxu0 0.0
    %2419 = vmatmul.mubr.f32.gmra.mrb[0].mxu0 %v2347
    %v2420 = vpop.f32.mrb[0].mxu0
    %v2421 = vadd.f32 0.0, %v2420
    %v2422 = vpop.f32.mrb[0].mxu0
    %2423 = vdwg.mxu0
    %v2424 = vadd.f32 %v2259, %v2416
    %v2425 = vadd.f32 %v2260, %v2421
    %s2426 = scalar_lea.vmem %s2, 832
    %v2427 = vld [vmem:[%s2426] sm:$0xff]
    %v2428 = vld [vmem:[%s2426 + $0x8] sm:$0xff]
    %v2429 = vld [vmem:[%s2426 + $0x10] sm:$0xff]
    %v2430 = vld [vmem:[%s2426 + $0x18] sm:$0xff]
    %v2431 = vld [vmem:[%s2426 + $0x20] sm:$0xff]
    %v2432 = vld [vmem:[%s2426 + $0x28] sm:$0xff]
    %v2433 = vld [vmem:[%s2426 + $0x30] sm:$0xff]
    %v2434 = vld [vmem:[%s2426 + $0x38] sm:$0xff]
    %2435 = vmatprep.subr.mxu0 0.0
    %2436 = vmatpush1.msra.mxu0 %v2427
    %2437 = vmatprep.subr.mxu0 0.0
    %2438 = vmatpush1.msra.mxu0 %v2428
    %2439 = vmatprep.subr.mxu0 0.0
    %2440 = vmatpush1.msra.mxu0 %v2429
    %2441 = vmatprep.subr.mxu0 0.0
    %2442 = vmatpush1.msra.mxu0 %v2430
    %2443 = vmatprep.subr.mxu0 0.0
    %2444 = vmatpush1.msra.mxu0 %v2431
    %2445 = vmatprep.subr.mxu0 0.0
    %2446 = vmatpush1.msra.mxu0 %v2432
    %2447 = vmatprep.subr.mxu0 0.0
    %2448 = vmatpush1.msra.mxu0 %v2433
    %2449 = vmatprep.subr.mxu0 0.0
    %2450 = vmatpush1.msra.mxu0 %v2434
    %2451 = vmatprep.subr.mxu0 0.0
    %2452 = vmatpush1.msra.mxu0 0.0
    %2453 = vmatprep.subr.mxu0 0.0
    %2454 = vmatpush1.msra.mxu0 0.0
    %2455 = vmatprep.subr.mxu0 0.0
    %2456 = vmatpush1.msra.mxu0 0.0
    %2457 = vmatprep.subr.mxu0 0.0
    %2458 = vmatpush1.msra.mxu0 0.0
    %2459 = vmatprep.subr.mxu0 0.0
    %2460 = vmatpush1.msra.mxu0 0.0
    %2461 = vmatprep.subr.mxu0 0.0
    %2462 = vmatpush1.msra.mxu0 0.0
    %2463 = vmatprep.subr.mxu0 0.0
    %2464 = vmatpush1.msra.mxu0 0.0
    %2465 = vmatprep.subr.mxu0 0.0
    %2466 = vmatpush1.msra.mxu0 0.0
    %2467 = vmatprep.subr.mxu0 0.0
    %2468 = vmatpush1.msra.mxu0 0.0
    %2469 = vmatprep.subr.mxu0 0.0
    %2470 = vmatpush1.msra.mxu0 0.0
    %2471 = vmatprep.subr.mxu0 0.0
    %2472 = vmatpush1.msra.mxu0 0.0
    %2473 = vmatprep.subr.mxu0 0.0
    %2474 = vmatpush1.msra.mxu0 0.0
    %2475 = vmatprep.subr.mxu0 0.0
    %2476 = vmatpush1.msra.mxu0 0.0
    %2477 = vmatprep.subr.mxu0 0.0
    %2478 = vmatpush1.msra.mxu0 0.0
    %2479 = vmatprep.subr.mxu0 0.0
    %2480 = vmatpush1.msra.mxu0 0.0
    %2481 = vmatprep.subr.mxu0 0.0
    %2482 = vmatpush1.msra.mxu0 0.0
    %2483 = vmatprep.subr.mxu0 0.0
    %2484 = vmatpush1.msra.mxu0 0.0
    %2485 = vmatprep.subr.mxu0 0.0
    %2486 = vmatpush1.msra.mxu0 0.0
    %2487 = vmatprep.subr.mxu0 0.0
    %2488 = vmatpush1.msra.mxu0 0.0
    %2489 = vmatprep.subr.mxu0 0.0
    %2490 = vmatpush1.msra.mxu0 0.0
    %2491 = vmatprep.subr.mxu0 0.0
    %2492 = vmatpush1.msra.mxu0 0.0
    %2493 = vmatprep.subr.mxu0 0.0
    %2494 = vmatpush1.msra.mxu0 0.0
    %2495 = vmatprep.subr.mxu0 0.0
    %2496 = vmatpush1.msra.mxu0 0.0
    %2497 = vmatprep.subr.mxu0 0.0
    %2498 = vmatpush1.msra.mxu0 0.0
    %2499 = vmatprep.mubr.f32.mxu0 0.0
    %2500 = vmatmul.mubr.f32.gmra.mrb[0].mxu0 %v292
    %v2501 = vpop.f32.mrb[0].mxu0
    %v2502 = vadd.f32 0.0, %v2501
    %v2503 = vpop.f32.mrb[0].mxu0
    %2504 = vdwg.mxu0
    %s2505 = scalar_lea.vmem %s3, 208
    %v2506 = vld [vmem:[%s2505] sm:$0xff]
    %v2507 = vld [vmem:[%s2505 + $0x8] sm:$0xff]
    %v2509 = vsel %vm448, %v2506, 0
    %v2512 = vsel %vm448, %v2507, 0
    %2514 = vmatprep.subr.mxu0 0.0
    %2515 = vmatpush1.msra.mxu0 %v2502
    %2516 = vmatprep.subr.mxu0 0.0
    %2517 = vmatpush1.msra.mxu0 0.0
    %2518 = vmatprep.subr.mxu0 0.0
    %2519 = vmatpush1.msra.mxu0 0.0
    %2520 = vmatprep.subr.mxu0 0.0
    %2521 = vmatpush1.msra.mxu0 0.0
    %2522 = vmatprep.subr.mxu0 0.0
    %2523 = vmatpush1.msra.mxu0 0.0
    %2524 = vmatprep.subr.mxu0 0.0
    %2525 = vmatpush1.msra.mxu0 0.0
    %2526 = vmatprep.subr.mxu0 0.0
    %2527 = vmatpush1.msra.mxu0 0.0
    %2528 = vmatprep.subr.mxu0 0.0
    %2529 = vmatpush1.msra.mxu0 0.0
    %2530 = vmatprep.subr.mxu0 0.0
    %2531 = vmatpush1.msra.mxu0 0.0
    %2532 = vmatprep.subr.mxu0 0.0
    %2533 = vmatpush1.msra.mxu0 0.0
    %2534 = vmatprep.subr.mxu0 0.0
    %2535 = vmatpush1.msra.mxu0 0.0
    %2536 = vmatprep.subr.mxu0 0.0
    %2537 = vmatpush1.msra.mxu0 0.0
    %2538 = vmatprep.subr.mxu0 0.0
    %2539 = vmatpush1.msra.mxu0 0.0
    %2540 = vmatprep.subr.mxu0 0.0
    %2541 = vmatpush1.msra.mxu0 0.0
    %2542 = vmatprep.subr.mxu0 0.0
    %2543 = vmatpush1.msra.mxu0 0.0
    %2544 = vmatprep.subr.mxu0 0.0
    %2545 = vmatpush1.msra.mxu0 0.0
    %2546 = vmatprep.subr.mxu0 0.0
    %2547 = vmatpush1.msra.mxu0 0.0
    %2548 = vmatprep.subr.mxu0 0.0
    %2549 = vmatpush1.msra.mxu0 0.0
    %2550 = vmatprep.subr.mxu0 0.0
    %2551 = vmatpush1.msra.mxu0 0.0
    %2552 = vmatprep.subr.mxu0 0.0
    %2553 = vmatpush1.msra.mxu0 0.0
    %2554 = vmatprep.subr.mxu0 0.0
    %2555 = vmatpush1.msra.mxu0 0.0
    %2556 = vmatprep.subr.mxu0 0.0
    %2557 = vmatpush1.msra.mxu0 0.0
    %2558 = vmatprep.subr.mxu0 0.0
    %2559 = vmatpush1.msra.mxu0 0.0
    %2560 = vmatprep.subr.mxu0 0.0
    %2561 = vmatpush1.msra.mxu0 0.0
    %2562 = vmatprep.subr.mxu0 0.0
    %2563 = vmatpush1.msra.mxu0 0.0
    %2564 = vmatprep.subr.mxu0 0.0
    %2565 = vmatpush1.msra.mxu0 0.0
    %2566 = vmatprep.subr.mxu0 0.0
    %2567 = vmatpush1.msra.mxu0 0.0
    %2568 = vmatprep.subr.mxu0 0.0
    %2569 = vmatpush1.msra.mxu0 0.0
    %2570 = vmatprep.subr.mxu0 0.0
    %2571 = vmatpush1.msra.mxu0 0.0
    %2572 = vmatprep.subr.mxu0 0.0
    %2573 = vmatpush1.msra.mxu0 0.0
    %2574 = vmatprep.subr.mxu0 0.0
    %2575 = vmatpush1.msra.mxu0 0.0
    %2576 = vmatprep.subr.mxu0 0.0
    %2577 = vmatpush1.msra.mxu0 0.0
    %2578 = vmatprep.mubr.f32.mxu0 0.0
    %2579 = vmatmul.mubr.f32.gmra.mrb[0].mxu0 %v2509
    %v2580 = vpop.f32.mrb[0].mxu0
    %v2581 = vadd.f32 0.0, %v2580
    %v2582 = vpop.f32.mrb[0].mxu0
    %2583 = vmatprep.mubr.f32.mxu0 0.0
    %2584 = vmatmul.mubr.f32.gmra.mrb[0].mxu0 %v2512
    %v2585 = vpop.f32.mrb[0].mxu0
    %v2586 = vadd.f32 0.0, %v2585
    %v2587 = vpop.f32.mrb[0].mxu0
    %2588 = vdwg.mxu0
    %v2589 = vadd.f32 %v2424, %v2581
    %v2590 = vadd.f32 %v2425, %v2586
    %s2591 = scalar_lea.vmem %s2, 896
    %v2592 = vld [vmem:[%s2591] sm:$0xff]
    %v2593 = vld [vmem:[%s2591 + $0x8] sm:$0xff]
    %v2594 = vld [vmem:[%s2591 + $0x10] sm:$0xff]
    %v2595 = vld [vmem:[%s2591 + $0x18] sm:$0xff]
    %v2596 = vld [vmem:[%s2591 + $0x20] sm:$0xff]
    %v2597 = vld [vmem:[%s2591 + $0x28] sm:$0xff]
    %v2598 = vld [vmem:[%s2591 + $0x30] sm:$0xff]
    %v2599 = vld [vmem:[%s2591 + $0x38] sm:$0xff]
    %2600 = vmatprep.subr.mxu0 0.0
    %2601 = vmatpush1.msra.mxu0 %v2592
    %2602 = vmatprep.subr.mxu0 0.0
    %2603 = vmatpush1.msra.mxu0 %v2593
    %2604 = vmatprep.subr.mxu0 0.0
    %2605 = vmatpush1.msra.mxu0 %v2594
    %2606 = vmatprep.subr.mxu0 0.0
    %2607 = vmatpush1.msra.mxu0 %v2595
    %2608 = vmatprep.subr.mxu0 0.0
    %2609 = vmatpush1.msra.mxu0 %v2596
    %2610 = vmatprep.subr.mxu0 0.0
    %2611 = vmatpush1.msra.mxu0 %v2597
    %2612 = vmatprep.subr.mxu0 0.0
    %2613 = vmatpush1.msra.mxu0 %v2598
    %2614 = vmatprep.subr.mxu0 0.0
    %2615 = vmatpush1.msra.mxu0 %v2599
    %2616 = vmatprep.subr.mxu0 0.0
    %2617 = vmatpush1.msra.mxu0 0.0
    %2618 = vmatprep.subr.mxu0 0.0
    %2619 = vmatpush1.msra.mxu0 0.0
    %2620 = vmatprep.subr.mxu0 0.0
    %2621 = vmatpush1.msra.mxu0 0.0
    %2622 = vmatprep.subr.mxu0 0.0
    %2623 = vmatpush1.msra.mxu0 0.0
    %2624 = vmatprep.subr.mxu0 0.0
    %2625 = vmatpush1.msra.mxu0 0.0
    %2626 = vmatprep.subr.mxu0 0.0
    %2627 = vmatpush1.msra.mxu0 0.0
    %2628 = vmatprep.subr.mxu0 0.0
    %2629 = vmatpush1.msra.mxu0 0.0
    %2630 = vmatprep.subr.mxu0 0.0
    %2631 = vmatpush1.msra.mxu0 0.0
    %2632 = vmatprep.subr.mxu0 0.0
    %2633 = vmatpush1.msra.mxu0 0.0
    %2634 = vmatprep.subr.mxu0 0.0
    %2635 = vmatpush1.msra.mxu0 0.0
    %2636 = vmatprep.subr.mxu0 0.0
    %2637 = vmatpush1.msra.mxu0 0.0
    %2638 = vmatprep.subr.mxu0 0.0
    %2639 = vmatpush1.msra.mxu0 0.0
    %2640 = vmatprep.subr.mxu0 0.0
    %2641 = vmatpush1.msra.mxu0 0.0
    %2642 = vmatprep.subr.mxu0 0.0
    %2643 = vmatpush1.msra.mxu0 0.0
    %2644 = vmatprep.subr.mxu0 0.0
    %2645 = vmatpush1.msra.mxu0 0.0
    %2646 = vmatprep.subr.mxu0 0.0
    %2647 = vmatpush1.msra.mxu0 0.0
    %2648 = vmatprep.subr.mxu0 0.0
    %2649 = vmatpush1.msra.mxu0 0.0
    %2650 = vmatprep.subr.mxu0 0.0
    %2651 = vmatpush1.msra.mxu0 0.0
    %2652 = vmatprep.subr.mxu0 0.0
    %2653 = vmatpush1.msra.mxu0 0.0
    %2654 = vmatprep.subr.mxu0 0.0
    %2655 = vmatpush1.msra.mxu0 0.0
    %2656 = vmatprep.subr.mxu0 0.0
    %2657 = vmatpush1.msra.mxu0 0.0
    %2658 = vmatprep.subr.mxu0 0.0
    %2659 = vmatpush1.msra.mxu0 0.0
    %2660 = vmatprep.subr.mxu0 0.0
    %2661 = vmatpush1.msra.mxu0 0.0
    %2662 = vmatprep.subr.mxu0 0.0
    %2663 = vmatpush1.msra.mxu0 0.0
    %2664 = vmatprep.mubr.f32.mxu0 0.0
    %2665 = vmatmul.mubr.f32.gmra.mrb[0].mxu0 %v292
    %v2666 = vpop.f32.mrb[0].mxu0
    %v2667 = vadd.f32 0.0, %v2666
    %v2668 = vpop.f32.mrb[0].mxu0
    %2669 = vdwg.mxu0
    %s2670 = scalar_lea.vmem %s3, 224
    %v2671 = vld [vmem:[%s2670] sm:$0xff]
    %v2672 = vld [vmem:[%s2670 + $0x8] sm:$0xff]
    %v2674 = vsel %vm448, %v2671, 0
    %v2677 = vsel %vm448, %v2672, 0
    %2679 = vmatprep.subr.mxu0 0.0
    %2680 = vmatpush1.msra.mxu0 %v2667
    %2681 = vmatprep.subr.mxu0 0.0
    %2682 = vmatpush1.msra.mxu0 0.0
    %2683 = vmatprep.subr.mxu0 0.0
    %2684 = vmatpush1.msra.mxu0 0.0
    %2685 = vmatprep.subr.mxu0 0.0
    %2686 = vmatpush1.msra.mxu0 0.0
    %2687 = vmatprep.subr.mxu0 0.0
    %2688 = vmatpush1.msra.mxu0 0.0
    %2689 = vmatprep.subr.mxu0 0.0
    %2690 = vmatpush1.msra.mxu0 0.0
    %2691 = vmatprep.subr.mxu0 0.0
    %2692 = vmatpush1.msra.mxu0 0.0
    %2693 = vmatprep.subr.mxu0 0.0
    %2694 = vmatpush1.msra.mxu0 0.0
    %2695 = vmatprep.subr.mxu0 0.0
    %2696 = vmatpush1.msra.mxu0 0.0
    %2697 = vmatprep.subr.mxu0 0.0
    %2698 = vmatpush1.msra.mxu0 0.0
    %2699 = vmatprep.subr.mxu0 0.0
    %2700 = vmatpush1.msra.mxu0 0.0
    %2701 = vmatprep.subr.mxu0 0.0
    %2702 = vmatpush1.msra.mxu0 0.0
    %2703 = vmatprep.subr.mxu0 0.0
    %2704 = vmatpush1.msra.mxu0 0.0
    %2705 = vmatprep.subr.mxu0 0.0
    %2706 = vmatpush1.msra.mxu0 0.0
    %2707 = vmatprep.subr.mxu0 0.0
    %2708 = vmatpush1.msra.mxu0 0.0
    %2709 = vmatprep.subr.mxu0 0.0
    %2710 = vmatpush1.msra.mxu0 0.0
    %2711 = vmatprep.subr.mxu0 0.0
    %2712 = vmatpush1.msra.mxu0 0.0
    %2713 = vmatprep.subr.mxu0 0.0
    %2714 = vmatpush1.msra.mxu0 0.0
    %2715 = vmatprep.subr.mxu0 0.0
    %2716 = vmatpush1.msra.mxu0 0.0
    %2717 = vmatprep.subr.mxu0 0.0
    %2718 = vmatpush1.msra.mxu0 0.0
    %2719 = vmatprep.subr.mxu0 0.0
    %2720 = vmatpush1.msra.mxu0 0.0
    %2721 = vmatprep.subr.mxu0 0.0
    %2722 = vmatpush1.msra.mxu0 0.0
    %2723 = vmatprep.subr.mxu0 0.0
    %2724 = vmatpush1.msra.mxu0 0.0
    %2725 = vmatprep.subr.mxu0 0.0
    %2726 = vmatpush1.msra.mxu0 0.0
    %2727 = vmatprep.subr.mxu0 0.0
    %2728 = vmatpush1.msra.mxu0 0.0
    %2729 = vmatprep.subr.mxu0 0.0
    %2730 = vmatpush1.msra.mxu0 0.0
    %2731 = vmatprep.subr.mxu0 0.0
    %2732 = vmatpush1.msra.mxu0 0.0
    %2733 = vmatprep.subr.mxu0 0.0
    %2734 = vmatpush1.msra.mxu0 0.0
    %2735 = vmatprep.subr.mxu0 0.0
    %2736 = vmatpush1.msra.mxu0 0.0
    %2737 = vmatprep.subr.mxu0 0.0
    %2738 = vmatpush1.msra.mxu0 0.0
    %2739 = vmatprep.subr.mxu0 0.0
    %2740 = vmatpush1.msra.mxu0 0.0
    %2741 = vmatprep.subr.mxu0 0.0
    %2742 = vmatpush1.msra.mxu0 0.0
    %2743 = vmatprep.mubr.f32.mxu0 0.0
    %2744 = vmatmul.mubr.f32.gmra.mrb[0].mxu0 %v2674
    %v2745 = vpop.f32.mrb[0].mxu0
    %v2746 = vadd.f32 0.0, %v2745
    %v2747 = vpop.f32.mrb[0].mxu0
    %2748 = vmatprep.mubr.f32.mxu0 0.0
    %2749 = vmatmul.mubr.f32.gmra.mrb[0].mxu0 %v2677
    %v2750 = vpop.f32.mrb[0].mxu0
    %v2751 = vadd.f32 0.0, %v2750
    %v2752 = vpop.f32.mrb[0].mxu0
    %2753 = vdwg.mxu0
    %v2754 = vadd.f32 %v2589, %v2746
    %v2755 = vadd.f32 %v2590, %v2751
    %s2756 = scalar_lea.vmem %s2, 960
    %v2757 = vld [vmem:[%s2756] sm:$0xff]
    %v2758 = vld [vmem:[%s2756 + $0x8] sm:$0xff]
    %v2759 = vld [vmem:[%s2756 + $0x10] sm:$0xff]
    %v2760 = vld [vmem:[%s2756 + $0x18] sm:$0xff]
    %v2761 = vld [vmem:[%s2756 + $0x20] sm:$0xff]
    %v2762 = vld [vmem:[%s2756 + $0x28] sm:$0xff]
    %v2763 = vld [vmem:[%s2756 + $0x30] sm:$0xff]
    %v2764 = vld [vmem:[%s2756 + $0x38] sm:$0xff]
    %2765 = vmatprep.subr.mxu0 0.0
    %2766 = vmatpush1.msra.mxu0 %v2757
    %2767 = vmatprep.subr.mxu0 0.0
    %2768 = vmatpush1.msra.mxu0 %v2758
    %2769 = vmatprep.subr.mxu0 0.0
    %2770 = vmatpush1.msra.mxu0 %v2759
    %2771 = vmatprep.subr.mxu0 0.0
    %2772 = vmatpush1.msra.mxu0 %v2760
    %2773 = vmatprep.subr.mxu0 0.0
    %2774 = vmatpush1.msra.mxu0 %v2761
    %2775 = vmatprep.subr.mxu0 0.0
    %2776 = vmatpush1.msra.mxu0 %v2762
    %2777 = vmatprep.subr.mxu0 0.0
    %2778 = vmatpush1.msra.mxu0 %v2763
    %2779 = vmatprep.subr.mxu0 0.0
    %2780 = vmatpush1.msra.mxu0 %v2764
    %2781 = vmatprep.subr.mxu0 0.0
    %2782 = vmatpush1.msra.mxu0 0.0
    %2783 = vmatprep.subr.mxu0 0.0
    %2784 = vmatpush1.msra.mxu0 0.0
    %2785 = vmatprep.subr.mxu0 0.0
    %2786 = vmatpush1.msra.mxu0 0.0
    %2787 = vmatprep.subr.mxu0 0.0
    %2788 = vmatpush1.msra.mxu0 0.0
    %2789 = vmatprep.subr.mxu0 0.0
    %2790 = vmatpush1.msra.mxu0 0.0
    %2791 = vmatprep.subr.mxu0 0.0
    %2792 = vmatpush1.msra.mxu0 0.0
    %2793 = vmatprep.subr.mxu0 0.0
    %2794 = vmatpush1.msra.mxu0 0.0
    %2795 = vmatprep.subr.mxu0 0.0
    %2796 = vmatpush1.msra.mxu0 0.0
    %2797 = vmatprep.subr.mxu0 0.0
    %2798 = vmatpush1.msra.mxu0 0.0
    %2799 = vmatprep.subr.mxu0 0.0
    %2800 = vmatpush1.msra.mxu0 0.0
    %2801 = vmatprep.subr.mxu0 0.0
    %2802 = vmatpush1.msra.mxu0 0.0
    %2803 = vmatprep.subr.mxu0 0.0
    %2804 = vmatpush1.msra.mxu0 0.0
    %2805 = vmatprep.subr.mxu0 0.0
    %2806 = vmatpush1.msra.mxu0 0.0
    %2807 = vmatprep.subr.mxu0 0.0
    %2808 = vmatpush1.msra.mxu0 0.0
    %2809 = vmatprep.subr.mxu0 0.0
    %2810 = vmatpush1.msra.mxu0 0.0
    %2811 = vmatprep.subr.mxu0 0.0
    %2812 = vmatpush1.msra.mxu0 0.0
    %2813 = vmatprep.subr.mxu0 0.0
    %2814 = vmatpush1.msra.mxu0 0.0
    %2815 = vmatprep.subr.mxu0 0.0
    %2816 = vmatpush1.msra.mxu0 0.0
    %2817 = vmatprep.subr.mxu0 0.0
    %2818 = vmatpush1.msra.mxu0 0.0
    %2819 = vmatprep.subr.mxu0 0.0
    %2820 = vmatpush1.msra.mxu0 0.0
    %2821 = vmatprep.subr.mxu0 0.0
    %2822 = vmatpush1.msra.mxu0 0.0
    %2823 = vmatprep.subr.mxu0 0.0
    %2824 = vmatpush1.msra.mxu0 0.0
    %2825 = vmatprep.subr.mxu0 0.0
    %2826 = vmatpush1.msra.mxu0 0.0
    %2827 = vmatprep.subr.mxu0 0.0
    %2828 = vmatpush1.msra.mxu0 0.0
    %2829 = vmatprep.mubr.f32.mxu0 0.0
    %2830 = vmatmul.mubr.f32.gmra.mrb[0].mxu0 %v292
    %v2831 = vpop.f32.mrb[0].mxu0
    %v2832 = vadd.f32 0.0, %v2831
    %v2833 = vpop.f32.mrb[0].mxu0
    %2834 = vdwg.mxu0
    %s2835 = scalar_lea.vmem %s3, 240
    %v2836 = vld [vmem:[%s2835] sm:$0xff]
    %v2837 = vld [vmem:[%s2835 + $0x8] sm:$0xff]
    %v2839 = vsel %vm448, %v2836, 0
    %v2842 = vsel %vm448, %v2837, 0
    %2844 = vmatprep.subr.mxu0 0.0
    %2845 = vmatpush1.msra.mxu0 %v2832
    %2846 = vmatprep.subr.mxu0 0.0
    %2847 = vmatpush1.msra.mxu0 0.0
    %2848 = vmatprep.subr.mxu0 0.0
    %2849 = vmatpush1.msra.mxu0 0.0
    %2850 = vmatprep.subr.mxu0 0.0
    %2851 = vmatpush1.msra.mxu0 0.0
    %2852 = vmatprep.subr.mxu0 0.0
    %2853 = vmatpush1.msra.mxu0 0.0
    %2854 = vmatprep.subr.mxu0 0.0
    %2855 = vmatpush1.msra.mxu0 0.0
    %2856 = vmatprep.subr.mxu0 0.0
    %2857 = vmatpush1.msra.mxu0 0.0
    %2858 = vmatprep.subr.mxu0 0.0
    %2859 = vmatpush1.msra.mxu0 0.0
    %2860 = vmatprep.subr.mxu0 0.0
    %2861 = vmatpush1.msra.mxu0 0.0
    %2862 = vmatprep.subr.mxu0 0.0
    %2863 = vmatpush1.msra.mxu0 0.0
    %2864 = vmatprep.subr.mxu0 0.0
    %2865 = vmatpush1.msra.mxu0 0.0
    %2866 = vmatprep.subr.mxu0 0.0
    %2867 = vmatpush1.msra.mxu0 0.0
    %2868 = vmatprep.subr.mxu0 0.0
    %2869 = vmatpush1.msra.mxu0 0.0
    %2870 = vmatprep.subr.mxu0 0.0
    %2871 = vmatpush1.msra.mxu0 0.0
    %2872 = vmatprep.subr.mxu0 0.0
    %2873 = vmatpush1.msra.mxu0 0.0
    %2874 = vmatprep.subr.mxu0 0.0
    %2875 = vmatpush1.msra.mxu0 0.0
    %2876 = vmatprep.subr.mxu0 0.0
    %2877 = vmatpush1.msra.mxu0 0.0
    %2878 = vmatprep.subr.mxu0 0.0
    %2879 = vmatpush1.msra.mxu0 0.0
    %2880 = vmatprep.subr.mxu0 0.0
    %2881 = vmatpush1.msra.mxu0 0.0
    %2882 = vmatprep.subr.mxu0 0.0
    %2883 = vmatpush1.msra.mxu0 0.0
    %2884 = vmatprep.subr.mxu0 0.0
    %2885 = vmatpush1.msra.mxu0 0.0
    %2886 = vmatprep.subr.mxu0 0.0
    %2887 = vmatpush1.msra.mxu0 0.0
    %2888 = vmatprep.subr.mxu0 0.0
    %2889 = vmatpush1.msra.mxu0 0.0
    %2890 = vmatprep.subr.mxu0 0.0
    %2891 = vmatpush1.msra.mxu0 0.0
    %2892 = vmatprep.subr.mxu0 0.0
    %2893 = vmatpush1.msra.mxu0 0.0
    %2894 = vmatprep.subr.mxu0 0.0
    %2895 = vmatpush1.msra.mxu0 0.0
    %2896 = vmatprep.subr.mxu0 0.0
    %2897 = vmatpush1.msra.mxu0 0.0
    %2898 = vmatprep.subr.mxu0 0.0
    %2899 = vmatpush1.msra.mxu0 0.0
    %2900 = vmatprep.subr.mxu0 0.0
    %2901 = vmatpush1.msra.mxu0 0.0
    %2902 = vmatprep.subr.mxu0 0.0
    %2903 = vmatpush1.msra.mxu0 0.0
    %2904 = vmatprep.subr.mxu0 0.0
    %2905 = vmatpush1.msra.mxu0 0.0
    %2906 = vmatprep.subr.mxu0 0.0
    %2907 = vmatpush1.msra.mxu0 0.0
    %2908 = vmatprep.mubr.f32.mxu0 0.0
    %2909 = vmatmul.mubr.f32.gmra.mrb[0].mxu0 %v2839
    %v2910 = vpop.f32.mrb[0].mxu0
    %v2911 = vadd.f32 0.0, %v2910
    %v2912 = vpop.f32.mrb[0].mxu0
    %2913 = vmatprep.mubr.f32.mxu0 0.0
    %2914 = vmatmul.mubr.f32.gmra.mrb[0].mxu0 %v2842
    %v2915 = vpop.f32.mrb[0].mxu0
    %v2916 = vadd.f32 0.0, %v2915
    %v2917 = vpop.f32.mrb[0].mxu0
    %2918 = vdwg.mxu0
    %v2919 = vadd.f32 %v2754, %v2911
    %v2920 = vadd.f32 %v2755, %v2916
    %s2921 = scalar_lea.vmem %s2, 1024
    %v2922 = vld [vmem:[%s2921] sm:$0xff]
    %v2923 = vld [vmem:[%s2921 + $0x8] sm:$0xff]
    %v2924 = vld [vmem:[%s2921 + $0x10] sm:$0xff]
    %v2925 = vld [vmem:[%s2921 + $0x18] sm:$0xff]
    %v2926 = vld [vmem:[%s2921 + $0x20] sm:$0xff]
    %v2927 = vld [vmem:[%s2921 + $0x28] sm:$0xff]
    %v2928 = vld [vmem:[%s2921 + $0x30] sm:$0xff]
    %v2929 = vld [vmem:[%s2921 + $0x38] sm:$0xff]
    %2930 = vmatprep.subr.mxu0 0.0
    %2931 = vmatpush1.msra.mxu0 %v2922
    %2932 = vmatprep.subr.mxu0 0.0
    %2933 = vmatpush1.msra.mxu0 %v2923
    %2934 = vmatprep.subr.mxu0 0.0
    %2935 = vmatpush1.msra.mxu0 %v2924
    %2936 = vmatprep.subr.mxu0 0.0
    %2937 = vmatpush1.msra.mxu0 %v2925
    %2938 = vmatprep.subr.mxu0 0.0
    %2939 = vmatpush1.msra.mxu0 %v2926
    %2940 = vmatprep.subr.mxu0 0.0
    %2941 = vmatpush1.msra.mxu0 %v2927
    %2942 = vmatprep.subr.mxu0 0.0
    %2943 = vmatpush1.msra.mxu0 %v2928
    %2944 = vmatprep.subr.mxu0 0.0
    %2945 = vmatpush1.msra.mxu0 %v2929
    %2946 = vmatprep.subr.mxu0 0.0
    %2947 = vmatpush1.msra.mxu0 0.0
    %2948 = vmatprep.subr.mxu0 0.0
    %2949 = vmatpush1.msra.mxu0 0.0
    %2950 = vmatprep.subr.mxu0 0.0
    %2951 = vmatpush1.msra.mxu0 0.0
    %2952 = vmatprep.subr.mxu0 0.0
    %2953 = vmatpush1.msra.mxu0 0.0
    %2954 = vmatprep.subr.mxu0 0.0
    %2955 = vmatpush1.msra.mxu0 0.0
    %2956 = vmatprep.subr.mxu0 0.0
    %2957 = vmatpush1.msra.mxu0 0.0
    %2958 = vmatprep.subr.mxu0 0.0
    %2959 = vmatpush1.msra.mxu0 0.0
    %2960 = vmatprep.subr.mxu0 0.0
    %2961 = vmatpush1.msra.mxu0 0.0
    %2962 = vmatprep.subr.mxu0 0.0
    %2963 = vmatpush1.msra.mxu0 0.0
    %2964 = vmatprep.subr.mxu0 0.0
    %2965 = vmatpush1.msra.mxu0 0.0
    %2966 = vmatprep.subr.mxu0 0.0
    %2967 = vmatpush1.msra.mxu0 0.0
    %2968 = vmatprep.subr.mxu0 0.0
    %2969 = vmatpush1.msra.mxu0 0.0
    %2970 = vmatprep.subr.mxu0 0.0
    %2971 = vmatpush1.msra.mxu0 0.0
    %2972 = vmatprep.subr.mxu0 0.0
    %2973 = vmatpush1.msra.mxu0 0.0
    %2974 = vmatprep.subr.mxu0 0.0
    %2975 = vmatpush1.msra.mxu0 0.0
    %2976 = vmatprep.subr.mxu0 0.0
    %2977 = vmatpush1.msra.mxu0 0.0
    %2978 = vmatprep.subr.mxu0 0.0
    %2979 = vmatpush1.msra.mxu0 0.0
    %2980 = vmatprep.subr.mxu0 0.0
    %2981 = vmatpush1.msra.mxu0 0.0
    %2982 = vmatprep.subr.mxu0 0.0
    %2983 = vmatpush1.msra.mxu0 0.0
    %2984 = vmatprep.subr.mxu0 0.0
    %2985 = vmatpush1.msra.mxu0 0.0
    %2986 = vmatprep.subr.mxu0 0.0
    %2987 = vmatpush1.msra.mxu0 0.0
    %2988 = vmatprep.subr.mxu0 0.0
    %2989 = vmatpush1.msra.mxu0 0.0
    %2990 = vmatprep.subr.mxu0 0.0
    %2991 = vmatpush1.msra.mxu0 0.0
    %2992 = vmatprep.subr.mxu0 0.0
    %2993 = vmatpush1.msra.mxu0 0.0
    %2994 = vmatprep.mubr.f32.mxu0 0.0
    %2995 = vmatmul.mubr.f32.gmra.mrb[0].mxu0 %v292
    %v2996 = vpop.f32.mrb[0].mxu0
    %v2997 = vadd.f32 0.0, %v2996
    %v2998 = vpop.f32.mrb[0].mxu0
    %2999 = vdwg.mxu0
    %s3000 = scalar_lea.vmem %s3, 256
    %v3001 = vld [vmem:[%s3000] sm:$0xff]
    %v3002 = vld [vmem:[%s3000 + $0x8] sm:$0xff]
    %v3004 = vsel %vm448, %v3001, 0
    %v3007 = vsel %vm448, %v3002, 0
    %3009 = vmatprep.subr.mxu0 0.0
    %3010 = vmatpush1.msra.mxu0 %v2997
    %3011 = vmatprep.subr.mxu0 0.0
    %3012 = vmatpush1.msra.mxu0 0.0
    %3013 = vmatprep.subr.mxu0 0.0
    %3014 = vmatpush1.msra.mxu0 0.0
    %3015 = vmatprep.subr.mxu0 0.0
    %3016 = vmatpush1.msra.mxu0 0.0
    %3017 = vmatprep.subr.mxu0 0.0
    %3018 = vmatpush1.msra.mxu0 0.0
    %3019 = vmatprep.subr.mxu0 0.0
    %3020 = vmatpush1.msra.mxu0 0.0
    %3021 = vmatprep.subr.mxu0 0.0
    %3022 = vmatpush1.msra.mxu0 0.0
    %3023 = vmatprep.subr.mxu0 0.0
    %3024 = vmatpush1.msra.mxu0 0.0
    %3025 = vmatprep.subr.mxu0 0.0
    %3026 = vmatpush1.msra.mxu0 0.0
    %3027 = vmatprep.subr.mxu0 0.0
    %3028 = vmatpush1.msra.mxu0 0.0
    %3029 = vmatprep.subr.mxu0 0.0
    %3030 = vmatpush1.msra.mxu0 0.0
    %3031 = vmatprep.subr.mxu0 0.0
    %3032 = vmatpush1.msra.mxu0 0.0
    %3033 = vmatprep.subr.mxu0 0.0
    %3034 = vmatpush1.msra.mxu0 0.0
    %3035 = vmatprep.subr.mxu0 0.0
    %3036 = vmatpush1.msra.mxu0 0.0
    %3037 = vmatprep.subr.mxu0 0.0
    %3038 = vmatpush1.msra.mxu0 0.0
    %3039 = vmatprep.subr.mxu0 0.0
    %3040 = vmatpush1.msra.mxu0 0.0
    %3041 = vmatprep.subr.mxu0 0.0
    %3042 = vmatpush1.msra.mxu0 0.0
    %3043 = vmatprep.subr.mxu0 0.0
    %3044 = vmatpush1.msra.mxu0 0.0
    %3045 = vmatprep.subr.mxu0 0.0
    %3046 = vmatpush1.msra.mxu0 0.0
    %3047 = vmatprep.subr.mxu0 0.0
    %3048 = vmatpush1.msra.mxu0 0.0
    %3049 = vmatprep.subr.mxu0 0.0
    %3050 = vmatpush1.msra.mxu0 0.0
    %3051 = vmatprep.subr.mxu0 0.0
    %3052 = vmatpush1.msra.mxu0 0.0
    %3053 = vmatprep.subr.mxu0 0.0
    %3054 = vmatpush1.msra.mxu0 0.0
    %3055 = vmatprep.subr.mxu0 0.0
    %3056 = vmatpush1.msra.mxu0 0.0
    %3057 = vmatprep.subr.mxu0 0.0
    %3058 = vmatpush1.msra.mxu0 0.0
    %3059 = vmatprep.subr.mxu0 0.0
    %3060 = vmatpush1.msra.mxu0 0.0
    %3061 = vmatprep.subr.mxu0 0.0
    %3062 = vmatpush1.msra.mxu0 0.0
    %3063 = vmatprep.subr.mxu0 0.0
    %3064 = vmatpush1.msra.mxu0 0.0
    %3065 = vmatprep.subr.mxu0 0.0
    %3066 = vmatpush1.msra.mxu0 0.0
    %3067 = vmatprep.subr.mxu0 0.0
    %3068 = vmatpush1.msra.mxu0 0.0
    %3069 = vmatprep.subr.mxu0 0.0
    %3070 = vmatpush1.msra.mxu0 0.0
    %3071 = vmatprep.subr.mxu0 0.0
    %3072 = vmatpush1.msra.mxu0 0.0
    %3073 = vmatprep.mubr.f32.mxu0 0.0
    %3074 = vmatmul.mubr.f32.gmra.mrb[0].mxu0 %v3004
    %v3075 = vpop.f32.mrb[0].mxu0
    %v3076 = vadd.f32 0.0, %v3075
    %v3077 = vpop.f32.mrb[0].mxu0
    %3078 = vmatprep.mubr.f32.mxu0 0.0
    %3079 = vmatmul.mubr.f32.gmra.mrb[0].mxu0 %v3007
    %v3080 = vpop.f32.mrb[0].mxu0
    %v3081 = vadd.f32 0.0, %v3080
    %v3082 = vpop.f32.mrb[0].mxu0
    %3083 = vdwg.mxu0
    %v3084 = vadd.f32 %v2919, %v3076
    %v3085 = vadd.f32 %v2920, %v3081
    %s3086 = scalar_lea.vmem %s2, 1088
    %v3087 = vld [vmem:[%s3086] sm:$0xff]
    %v3088 = vld [vmem:[%s3086 + $0x8] sm:$0xff]
    %v3089 = vld [vmem:[%s3086 + $0x10] sm:$0xff]
    %v3090 = vld [vmem:[%s3086 + $0x18] sm:$0xff]
    %v3091 = vld [vmem:[%s3086 + $0x20] sm:$0xff]
    %v3092 = vld [vmem:[%s3086 + $0x28] sm:$0xff]
    %v3093 = vld [vmem:[%s3086 + $0x30] sm:$0xff]
    %v3094 = vld [vmem:[%s3086 + $0x38] sm:$0xff]
    %3095 = vmatprep.subr.mxu0 0.0
    %3096 = vmatpush1.msra.mxu0 %v3087
    %3097 = vmatprep.subr.mxu0 0.0
    %3098 = vmatpush1.msra.mxu0 %v3088
    %3099 = vmatprep.subr.mxu0 0.0
    %3100 = vmatpush1.msra.mxu0 %v3089
    %3101 = vmatprep.subr.mxu0 0.0
    %3102 = vmatpush1.msra.mxu0 %v3090
    %3103 = vmatprep.subr.mxu0 0.0
    %3104 = vmatpush1.msra.mxu0 %v3091
    %3105 = vmatprep.subr.mxu0 0.0
    %3106 = vmatpush1.msra.mxu0 %v3092
    %3107 = vmatprep.subr.mxu0 0.0
    %3108 = vmatpush1.msra.mxu0 %v3093
    %3109 = vmatprep.subr.mxu0 0.0
    %3110 = vmatpush1.msra.mxu0 %v3094
    %3111 = vmatprep.subr.mxu0 0.0
    %3112 = vmatpush1.msra.mxu0 0.0
    %3113 = vmatprep.subr.mxu0 0.0
    %3114 = vmatpush1.msra.mxu0 0.0
    %3115 = vmatprep.subr.mxu0 0.0
    %3116 = vmatpush1.msra.mxu0 0.0
    %3117 = vmatprep.subr.mxu0 0.0
    %3118 = vmatpush1.msra.mxu0 0.0
    %3119 = vmatprep.subr.mxu0 0.0
    %3120 = vmatpush1.msra.mxu0 0.0
    %3121 = vmatprep.subr.mxu0 0.0
    %3122 = vmatpush1.msra.mxu0 0.0
    %3123 = vmatprep.subr.mxu0 0.0
    %3124 = vmatpush1.msra.mxu0 0.0
    %3125 = vmatprep.subr.mxu0 0.0
    %3126 = vmatpush1.msra.mxu0 0.0
    %3127 = vmatprep.subr.mxu0 0.0
    %3128 = vmatpush1.msra.mxu0 0.0
    %3129 = vmatprep.subr.mxu0 0.0
    %3130 = vmatpush1.msra.mxu0 0.0
    %3131 = vmatprep.subr.mxu0 0.0
    %3132 = vmatpush1.msra.mxu0 0.0
    %3133 = vmatprep.subr.mxu0 0.0
    %3134 = vmatpush1.msra.mxu0 0.0
    %3135 = vmatprep.subr.mxu0 0.0
    %3136 = vmatpush1.msra.mxu0 0.0
    %3137 = vmatprep.subr.mxu0 0.0
    %3138 = vmatpush1.msra.mxu0 0.0
    %3139 = vmatprep.subr.mxu0 0.0
    %3140 = vmatpush1.msra.mxu0 0.0
    %3141 = vmatprep.subr.mxu0 0.0
    %3142 = vmatpush1.msra.mxu0 0.0
    %3143 = vmatprep.subr.mxu0 0.0
    %3144 = vmatpush1.msra.mxu0 0.0
    %3145 = vmatprep.subr.mxu0 0.0
    %3146 = vmatpush1.msra.mxu0 0.0
    %3147 = vmatprep.subr.mxu0 0.0
    %3148 = vmatpush1.msra.mxu0 0.0
    %3149 = vmatprep.subr.mxu0 0.0
    %3150 = vmatpush1.msra.mxu0 0.0
    %3151 = vmatprep.subr.mxu0 0.0
    %3152 = vmatpush1.msra.mxu0 0.0
    %3153 = vmatprep.subr.mxu0 0.0
    %3154 = vmatpush1.msra.mxu0 0.0
    %3155 = vmatprep.subr.mxu0 0.0
    %3156 = vmatpush1.msra.mxu0 0.0
    %3157 = vmatprep.subr.mxu0 0.0
    %3158 = vmatpush1.msra.mxu0 0.0
    %3159 = vmatprep.mubr.f32.mxu0 0.0
    %3160 = vmatmul.mubr.f32.gmra.mrb[0].mxu0 %v292
    %v3161 = vpop.f32.mrb[0].mxu0
    %v3162 = vadd.f32 0.0, %v3161
    %v3163 = vpop.f32.mrb[0].mxu0
    %3164 = vdwg.mxu0
    %s3165 = scalar_lea.vmem %s3, 272
    %v3166 = vld [vmem:[%s3165] sm:$0xff]
    %v3167 = vld [vmem:[%s3165 + $0x8] sm:$0xff]
    %v3169 = vsel %vm448, %v3166, 0
    %v3172 = vsel %vm448, %v3167, 0
    %3174 = vmatprep.subr.mxu0 0.0
    %3175 = vmatpush1.msra.mxu0 %v3162
    %3176 = vmatprep.subr.mxu0 0.0
    %3177 = vmatpush1.msra.mxu0 0.0
    %3178 = vmatprep.subr.mxu0 0.0
    %3179 = vmatpush1.msra.mxu0 0.0
    %3180 = vmatprep.subr.mxu0 0.0
    %3181 = vmatpush1.msra.mxu0 0.0
    %3182 = vmatprep.subr.mxu0 0.0
    %3183 = vmatpush1.msra.mxu0 0.0
    %3184 = vmatprep.subr.mxu0 0.0
    %3185 = vmatpush1.msra.mxu0 0.0
    %3186 = vmatprep.subr.mxu0 0.0
    %3187 = vmatpush1.msra.mxu0 0.0
    %3188 = vmatprep.subr.mxu0 0.0
    %3189 = vmatpush1.msra.mxu0 0.0
    %3190 = vmatprep.subr.mxu0 0.0
    %3191 = vmatpush1.msra.mxu0 0.0
    %3192 = vmatprep.subr.mxu0 0.0
    %3193 = vmatpush1.msra.mxu0 0.0
    %3194 = vmatprep.subr.mxu0 0.0
    %3195 = vmatpush1.msra.mxu0 0.0
    %3196 = vmatprep.subr.mxu0 0.0
    %3197 = vmatpush1.msra.mxu0 0.0
    %3198 = vmatprep.subr.mxu0 0.0
    %3199 = vmatpush1.msra.mxu0 0.0
    %3200 = vmatprep.subr.mxu0 0.0
    %3201 = vmatpush1.msra.mxu0 0.0
    %3202 = vmatprep.subr.mxu0 0.0
    %3203 = vmatpush1.msra.mxu0 0.0
    %3204 = vmatprep.subr.mxu0 0.0
    %3205 = vmatpush1.msra.mxu0 0.0
    %3206 = vmatprep.subr.mxu0 0.0
    %3207 = vmatpush1.msra.mxu0 0.0
    %3208 = vmatprep.subr.mxu0 0.0
    %3209 = vmatpush1.msra.mxu0 0.0
    %3210 = vmatprep.subr.mxu0 0.0
    %3211 = vmatpush1.msra.mxu0 0.0
    %3212 = vmatprep.subr.mxu0 0.0
    %3213 = vmatpush1.msra.mxu0 0.0
    %3214 = vmatprep.subr.mxu0 0.0
    %3215 = vmatpush1.msra.mxu0 0.0
    %3216 = vmatprep.subr.mxu0 0.0
    %3217 = vmatpush1.msra.mxu0 0.0
    %3218 = vmatprep.subr.mxu0 0.0
    %3219 = vmatpush1.msra.mxu0 0.0
    %3220 = vmatprep.subr.mxu0 0.0
    %3221 = vmatpush1.msra.mxu0 0.0
    %3222 = vmatprep.subr.mxu0 0.0
    %3223 = vmatpush1.msra.mxu0 0.0
    %3224 = vmatprep.subr.mxu0 0.0
    %3225 = vmatpush1.msra.mxu0 0.0
    %3226 = vmatprep.subr.mxu0 0.0
    %3227 = vmatpush1.msra.mxu0 0.0
    %3228 = vmatprep.subr.mxu0 0.0
    %3229 = vmatpush1.msra.mxu0 0.0
    %3230 = vmatprep.subr.mxu0 0.0
    %3231 = vmatpush1.msra.mxu0 0.0
    %3232 = vmatprep.subr.mxu0 0.0
    %3233 = vmatpush1.msra.mxu0 0.0
    %3234 = vmatprep.subr.mxu0 0.0
    %3235 = vmatpush1.msra.mxu0 0.0
    %3236 = vmatprep.subr.mxu0 0.0
    %3237 = vmatpush1.msra.mxu0 0.0
    %3238 = vmatprep.mubr.f32.mxu0 0.0
    %3239 = vmatmul.mubr.f32.gmra.mrb[0].mxu0 %v3169
    %v3240 = vpop.f32.mrb[0].mxu0
    %v3241 = vadd.f32 0.0, %v3240
    %v3242 = vpop.f32.mrb[0].mxu0
    %3243 = vmatprep.mubr.f32.mxu0 0.0
    %3244 = vmatmul.mubr.f32.gmra.mrb[0].mxu0 %v3172
    %v3245 = vpop.f32.mrb[0].mxu0
    %v3246 = vadd.f32 0.0, %v3245
    %v3247 = vpop.f32.mrb[0].mxu0
    %3248 = vdwg.mxu0
    %v3249 = vadd.f32 %v3084, %v3241
    %v3250 = vadd.f32 %v3085, %v3246
    %s3251 = scalar_lea.vmem %s2, 1152
    %v3252 = vld [vmem:[%s3251] sm:$0xff]
    %v3253 = vld [vmem:[%s3251 + $0x8] sm:$0xff]
    %v3254 = vld [vmem:[%s3251 + $0x10] sm:$0xff]
    %v3255 = vld [vmem:[%s3251 + $0x18] sm:$0xff]
    %v3256 = vld [vmem:[%s3251 + $0x20] sm:$0xff]
    %v3257 = vld [vmem:[%s3251 + $0x28] sm:$0xff]
    %v3258 = vld [vmem:[%s3251 + $0x30] sm:$0xff]
    %v3259 = vld [vmem:[%s3251 + $0x38] sm:$0xff]
    %3260 = vmatprep.subr.mxu0 0.0
    %3261 = vmatpush1.msra.mxu0 %v3252
    %3262 = vmatprep.subr.mxu0 0.0
    %3263 = vmatpush1.msra.mxu0 %v3253
    %3264 = vmatprep.subr.mxu0 0.0
    %3265 = vmatpush1.msra.mxu0 %v3254
    %3266 = vmatprep.subr.mxu0 0.0
    %3267 = vmatpush1.msra.mxu0 %v3255
    %3268 = vmatprep.subr.mxu0 0.0
    %3269 = vmatpush1.msra.mxu0 %v3256
    %3270 = vmatprep.subr.mxu0 0.0
    %3271 = vmatpush1.msra.mxu0 %v3257
    %3272 = vmatprep.subr.mxu0 0.0
    %3273 = vmatpush1.msra.mxu0 %v3258
    %3274 = vmatprep.subr.mxu0 0.0
    %3275 = vmatpush1.msra.mxu0 %v3259
    %3276 = vmatprep.subr.mxu0 0.0
    %3277 = vmatpush1.msra.mxu0 0.0
    %3278 = vmatprep.subr.mxu0 0.0
    %3279 = vmatpush1.msra.mxu0 0.0
    %3280 = vmatprep.subr.mxu0 0.0
    %3281 = vmatpush1.msra.mxu0 0.0
    %3282 = vmatprep.subr.mxu0 0.0
    %3283 = vmatpush1.msra.mxu0 0.0
    %3284 = vmatprep.subr.mxu0 0.0
    %3285 = vmatpush1.msra.mxu0 0.0
    %3286 = vmatprep.subr.mxu0 0.0
    %3287 = vmatpush1.msra.mxu0 0.0
    %3288 = vmatprep.subr.mxu0 0.0
    %3289 = vmatpush1.msra.mxu0 0.0
    %3290 = vmatprep.subr.mxu0 0.0
    %3291 = vmatpush1.msra.mxu0 0.0
    %3292 = vmatprep.subr.mxu0 0.0
    %3293 = vmatpush1.msra.mxu0 0.0
    %3294 = vmatprep.subr.mxu0 0.0
    %3295 = vmatpush1.msra.mxu0 0.0
    %3296 = vmatprep.subr.mxu0 0.0
    %3297 = vmatpush1.msra.mxu0 0.0
    %3298 = vmatprep.subr.mxu0 0.0
    %3299 = vmatpush1.msra.mxu0 0.0
    %3300 = vmatprep.subr.mxu0 0.0
    %3301 = vmatpush1.msra.mxu0 0.0
    %3302 = vmatprep.subr.mxu0 0.0
    %3303 = vmatpush1.msra.mxu0 0.0
    %3304 = vmatprep.subr.mxu0 0.0
    %3305 = vmatpush1.msra.mxu0 0.0
    %3306 = vmatprep.subr.mxu0 0.0
    %3307 = vmatpush1.msra.mxu0 0.0
    %3308 = vmatprep.subr.mxu0 0.0
    %3309 = vmatpush1.msra.mxu0 0.0
    %3310 = vmatprep.subr.mxu0 0.0
    %3311 = vmatpush1.msra.mxu0 0.0
    %3312 = vmatprep.subr.mxu0 0.0
    %3313 = vmatpush1.msra.mxu0 0.0
    %3314 = vmatprep.subr.mxu0 0.0
    %3315 = vmatpush1.msra.mxu0 0.0
    %3316 = vmatprep.subr.mxu0 0.0
    %3317 = vmatpush1.msra.mxu0 0.0
    %3318 = vmatprep.subr.mxu0 0.0
    %3319 = vmatpush1.msra.mxu0 0.0
    %3320 = vmatprep.subr.mxu0 0.0
    %3321 = vmatpush1.msra.mxu0 0.0
    %3322 = vmatprep.subr.mxu0 0.0
    %3323 = vmatpush1.msra.mxu0 0.0
    %3324 = vmatprep.mubr.f32.mxu0 0.0
    %3325 = vmatmul.mubr.f32.gmra.mrb[0].mxu0 %v292
    %v3326 = vpop.f32.mrb[0].mxu0
    %v3327 = vadd.f32 0.0, %v3326
    %v3328 = vpop.f32.mrb[0].mxu0
    %3329 = vdwg.mxu0
    %s3330 = scalar_lea.vmem %s3, 288
    %v3331 = vld [vmem:[%s3330] sm:$0xff]
    %v3332 = vld [vmem:[%s3330 + $0x8] sm:$0xff]
    %v3334 = vsel %vm448, %v3331, 0
    %v3337 = vsel %vm448, %v3332, 0
    %3339 = vmatprep.subr.mxu0 0.0
    %3340 = vmatpush1.msra.mxu0 %v3327
    %3341 = vmatprep.subr.mxu0 0.0
    %3342 = vmatpush1.msra.mxu0 0.0
    %3343 = vmatprep.subr.mxu0 0.0
    %3344 = vmatpush1.msra.mxu0 0.0
    %3345 = vmatprep.subr.mxu0 0.0
    %3346 = vmatpush1.msra.mxu0 0.0
    %3347 = vmatprep.subr.mxu0 0.0
    %3348 = vmatpush1.msra.mxu0 0.0
    %3349 = vmatprep.subr.mxu0 0.0
    %3350 = vmatpush1.msra.mxu0 0.0
    %3351 = vmatprep.subr.mxu0 0.0
    %3352 = vmatpush1.msra.mxu0 0.0
    %3353 = vmatprep.subr.mxu0 0.0
    %3354 = vmatpush1.msra.mxu0 0.0
    %3355 = vmatprep.subr.mxu0 0.0
    %3356 = vmatpush1.msra.mxu0 0.0
    %3357 = vmatprep.subr.mxu0 0.0
    %3358 = vmatpush1.msra.mxu0 0.0
    %3359 = vmatprep.subr.mxu0 0.0
    %3360 = vmatpush1.msra.mxu0 0.0
    %3361 = vmatprep.subr.mxu0 0.0
    %3362 = vmatpush1.msra.mxu0 0.0
    %3363 = vmatprep.subr.mxu0 0.0
    %3364 = vmatpush1.msra.mxu0 0.0
    %3365 = vmatprep.subr.mxu0 0.0
    %3366 = vmatpush1.msra.mxu0 0.0
    %3367 = vmatprep.subr.mxu0 0.0
    %3368 = vmatpush1.msra.mxu0 0.0
    %3369 = vmatprep.subr.mxu0 0.0
    %3370 = vmatpush1.msra.mxu0 0.0
    %3371 = vmatprep.subr.mxu0 0.0
    %3372 = vmatpush1.msra.mxu0 0.0
    %3373 = vmatprep.subr.mxu0 0.0
    %3374 = vmatpush1.msra.mxu0 0.0
    %3375 = vmatprep.subr.mxu0 0.0
    %3376 = vmatpush1.msra.mxu0 0.0
    %3377 = vmatprep.subr.mxu0 0.0
    %3378 = vmatpush1.msra.mxu0 0.0
    %3379 = vmatprep.subr.mxu0 0.0
    %3380 = vmatpush1.msra.mxu0 0.0
    %3381 = vmatprep.subr.mxu0 0.0
    %3382 = vmatpush1.msra.mxu0 0.0
    %3383 = vmatprep.subr.mxu0 0.0
    %3384 = vmatpush1.msra.mxu0 0.0
    %3385 = vmatprep.subr.mxu0 0.0
    %3386 = vmatpush1.msra.mxu0 0.0
    %3387 = vmatprep.subr.mxu0 0.0
    %3388 = vmatpush1.msra.mxu0 0.0
    %3389 = vmatprep.subr.mxu0 0.0
    %3390 = vmatpush1.msra.mxu0 0.0
    %3391 = vmatprep.subr.mxu0 0.0
    %3392 = vmatpush1.msra.mxu0 0.0
    %3393 = vmatprep.subr.mxu0 0.0
    %3394 = vmatpush1.msra.mxu0 0.0
    %3395 = vmatprep.subr.mxu0 0.0
    %3396 = vmatpush1.msra.mxu0 0.0
    %3397 = vmatprep.subr.mxu0 0.0
    %3398 = vmatpush1.msra.mxu0 0.0
    %3399 = vmatprep.subr.mxu0 0.0
    %3400 = vmatpush1.msra.mxu0 0.0
    %3401 = vmatprep.subr.mxu0 0.0
    %3402 = vmatpush1.msra.mxu0 0.0
    %3403 = vmatprep.mubr.f32.mxu0 0.0
    %3404 = vmatmul.mubr.f32.gmra.mrb[0].mxu0 %v3334
    %v3405 = vpop.f32.mrb[0].mxu0
    %v3406 = vadd.f32 0.0, %v3405
    %v3407 = vpop.f32.mrb[0].mxu0
    %3408 = vmatprep.mubr.f32.mxu0 0.0
    %3409 = vmatmul.mubr.f32.gmra.mrb[0].mxu0 %v3337
    %v3410 = vpop.f32.mrb[0].mxu0
    %v3411 = vadd.f32 0.0, %v3410
    %v3412 = vpop.f32.mrb[0].mxu0
    %3413 = vdwg.mxu0
    %v3414 = vadd.f32 %v3249, %v3406
    %v3415 = vadd.f32 %v3250, %v3411
    %s3416 = scalar_lea.vmem %s2, 1216
    %v3417 = vld [vmem:[%s3416] sm:$0xff]
    %v3418 = vld [vmem:[%s3416 + $0x8] sm:$0xff]
    %v3419 = vld [vmem:[%s3416 + $0x10] sm:$0xff]
    %v3420 = vld [vmem:[%s3416 + $0x18] sm:$0xff]
    %v3421 = vld [vmem:[%s3416 + $0x20] sm:$0xff]
    %v3422 = vld [vmem:[%s3416 + $0x28] sm:$0xff]
    %v3423 = vld [vmem:[%s3416 + $0x30] sm:$0xff]
    %v3424 = vld [vmem:[%s3416 + $0x38] sm:$0xff]
    %3425 = vmatprep.subr.mxu0 0.0
    %3426 = vmatpush1.msra.mxu0 %v3417
    %3427 = vmatprep.subr.mxu0 0.0
    %3428 = vmatpush1.msra.mxu0 %v3418
    %3429 = vmatprep.subr.mxu0 0.0
    %3430 = vmatpush1.msra.mxu0 %v3419
    %3431 = vmatprep.subr.mxu0 0.0
    %3432 = vmatpush1.msra.mxu0 %v3420
    %3433 = vmatprep.subr.mxu0 0.0
    %3434 = vmatpush1.msra.mxu0 %v3421
    %3435 = vmatprep.subr.mxu0 0.0
    %3436 = vmatpush1.msra.mxu0 %v3422
    %3437 = vmatprep.subr.mxu0 0.0
    %3438 = vmatpush1.msra.mxu0 %v3423
    %3439 = vmatprep.subr.mxu0 0.0
    %3440 = vmatpush1.msra.mxu0 %v3424
    %3441 = vmatprep.subr.mxu0 0.0
    %3442 = vmatpush1.msra.mxu0 0.0
    %3443 = vmatprep.subr.mxu0 0.0
    %3444 = vmatpush1.msra.mxu0 0.0
    %3445 = vmatprep.subr.mxu0 0.0
    %3446 = vmatpush1.msra.mxu0 0.0
    %3447 = vmatprep.subr.mxu0 0.0
    %3448 = vmatpush1.msra.mxu0 0.0
    %3449 = vmatprep.subr.mxu0 0.0
    %3450 = vmatpush1.msra.mxu0 0.0
    %3451 = vmatprep.subr.mxu0 0.0
    %3452 = vmatpush1.msra.mxu0 0.0
    %3453 = vmatprep.subr.mxu0 0.0
    %3454 = vmatpush1.msra.mxu0 0.0
    %3455 = vmatprep.subr.mxu0 0.0
    %3456 = vmatpush1.msra.mxu0 0.0
    %3457 = vmatprep.subr.mxu0 0.0
    %3458 = vmatpush1.msra.mxu0 0.0
    %3459 = vmatprep.subr.mxu0 0.0
    %3460 = vmatpush1.msra.mxu0 0.0
    %3461 = vmatprep.subr.mxu0 0.0
    %3462 = vmatpush1.msra.mxu0 0.0
    %3463 = vmatprep.subr.mxu0 0.0
    %3464 = vmatpush1.msra.mxu0 0.0
    %3465 = vmatprep.subr.mxu0 0.0
    %3466 = vmatpush1.msra.mxu0 0.0
    %3467 = vmatprep.subr.mxu0 0.0
    %3468 = vmatpush1.msra.mxu0 0.0
    %3469 = vmatprep.subr.mxu0 0.0
    %3470 = vmatpush1.msra.mxu0 0.0
    %3471 = vmatprep.subr.mxu0 0.0
    %3472 = vmatpush1.msra.mxu0 0.0
    %3473 = vmatprep.subr.mxu0 0.0
    %3474 = vmatpush1.msra.mxu0 0.0
    %3475 = vmatprep.subr.mxu0 0.0
    %3476 = vmatpush1.msra.mxu0 0.0
    %3477 = vmatprep.subr.mxu0 0.0
    %3478 = vmatpush1.msra.mxu0 0.0
    %3479 = vmatprep.subr.mxu0 0.0
    %3480 = vmatpush1.msra.mxu0 0.0
    %3481 = vmatprep.subr.mxu0 0.0
    %3482 = vmatpush1.msra.mxu0 0.0
    %3483 = vmatprep.subr.mxu0 0.0
    %3484 = vmatpush1.msra.mxu0 0.0
    %3485 = vmatprep.subr.mxu0 0.0
    %3486 = vmatpush1.msra.mxu0 0.0
    %3487 = vmatprep.subr.mxu0 0.0
    %3488 = vmatpush1.msra.mxu0 0.0
    %3489 = vmatprep.mubr.f32.mxu0 0.0
    %3490 = vmatmul.mubr.f32.gmra.mrb[0].mxu0 %v292
    %v3491 = vpop.f32.mrb[0].mxu0
    %v3492 = vadd.f32 0.0, %v3491
    %v3493 = vpop.f32.mrb[0].mxu0
    %3494 = vdwg.mxu0
    %s3495 = scalar_lea.vmem %s3, 304
    %v3496 = vld [vmem:[%s3495] sm:$0xff]
    %v3497 = vld [vmem:[%s3495 + $0x8] sm:$0xff]
    %v3499 = vsel %vm448, %v3496, 0
    %v3502 = vsel %vm448, %v3497, 0
    %3504 = vmatprep.subr.mxu0 0.0
    %3505 = vmatpush1.msra.mxu0 %v3492
    %3506 = vmatprep.subr.mxu0 0.0
    %3507 = vmatpush1.msra.mxu0 0.0
    %3508 = vmatprep.subr.mxu0 0.0
    %3509 = vmatpush1.msra.mxu0 0.0
    %3510 = vmatprep.subr.mxu0 0.0
    %3511 = vmatpush1.msra.mxu0 0.0
    %3512 = vmatprep.subr.mxu0 0.0
    %3513 = vmatpush1.msra.mxu0 0.0
    %3514 = vmatprep.subr.mxu0 0.0
    %3515 = vmatpush1.msra.mxu0 0.0
    %3516 = vmatprep.subr.mxu0 0.0
    %3517 = vmatpush1.msra.mxu0 0.0
    %3518 = vmatprep.subr.mxu0 0.0
    %3519 = vmatpush1.msra.mxu0 0.0
    %3520 = vmatprep.subr.mxu0 0.0
    %3521 = vmatpush1.msra.mxu0 0.0
    %3522 = vmatprep.subr.mxu0 0.0
    %3523 = vmatpush1.msra.mxu0 0.0
    %3524 = vmatprep.subr.mxu0 0.0
    %3525 = vmatpush1.msra.mxu0 0.0
    %3526 = vmatprep.subr.mxu0 0.0
    %3527 = vmatpush1.msra.mxu0 0.0
    %3528 = vmatprep.subr.mxu0 0.0
    %3529 = vmatpush1.msra.mxu0 0.0
    %3530 = vmatprep.subr.mxu0 0.0
    %3531 = vmatpush1.msra.mxu0 0.0
    %3532 = vmatprep.subr.mxu0 0.0
    %3533 = vmatpush1.msra.mxu0 0.0
    %3534 = vmatprep.subr.mxu0 0.0
    %3535 = vmatpush1.msra.mxu0 0.0
    %3536 = vmatprep.subr.mxu0 0.0
    %3537 = vmatpush1.msra.mxu0 0.0
    %3538 = vmatprep.subr.mxu0 0.0
    %3539 = vmatpush1.msra.mxu0 0.0
    %3540 = vmatprep.subr.mxu0 0.0
    %3541 = vmatpush1.msra.mxu0 0.0
    %3542 = vmatprep.subr.mxu0 0.0
    %3543 = vmatpush1.msra.mxu0 0.0
    %3544 = vmatprep.subr.mxu0 0.0
    %3545 = vmatpush1.msra.mxu0 0.0
    %3546 = vmatprep.subr.mxu0 0.0
    %3547 = vmatpush1.msra.mxu0 0.0
    %3548 = vmatprep.subr.mxu0 0.0
    %3549 = vmatpush1.msra.mxu0 0.0
    %3550 = vmatprep.subr.mxu0 0.0
    %3551 = vmatpush1.msra.mxu0 0.0
    %3552 = vmatprep.subr.mxu0 0.0
    %3553 = vmatpush1.msra.mxu0 0.0
    %3554 = vmatprep.subr.mxu0 0.0
    %3555 = vmatpush1.msra.mxu0 0.0
    %3556 = vmatprep.subr.mxu0 0.0
    %3557 = vmatpush1.msra.mxu0 0.0
    %3558 = vmatprep.subr.mxu0 0.0
    %3559 = vmatpush1.msra.mxu0 0.0
    %3560 = vmatprep.subr.mxu0 0.0
    %3561 = vmatpush1.msra.mxu0 0.0
    %3562 = vmatprep.subr.mxu0 0.0
    %3563 = vmatpush1.msra.mxu0 0.0
    %3564 = vmatprep.subr.mxu0 0.0
    %3565 = vmatpush1.msra.mxu0 0.0
    %3566 = vmatprep.subr.mxu0 0.0
    %3567 = vmatpush1.msra.mxu0 0.0
    %3568 = vmatprep.mubr.f32.mxu0 0.0
    %3569 = vmatmul.mubr.f32.gmra.mrb[0].mxu0 %v3499
    %v3570 = vpop.f32.mrb[0].mxu0
    %v3571 = vadd.f32 0.0, %v3570
    %v3572 = vpop.f32.mrb[0].mxu0
    %3573 = vmatprep.mubr.f32.mxu0 0.0
    %3574 = vmatmul.mubr.f32.gmra.mrb[0].mxu0 %v3502
    %v3575 = vpop.f32.mrb[0].mxu0
    %v3576 = vadd.f32 0.0, %v3575
    %v3577 = vpop.f32.mrb[0].mxu0
    %3578 = vdwg.mxu0
    %v3579 = vadd.f32 %v3414, %v3571
    %v3580 = vadd.f32 %v3415, %v3576
    %s3581 = scalar_lea.vmem %s2, 1280
    %v3582 = vld [vmem:[%s3581] sm:$0xff]
    %v3583 = vld [vmem:[%s3581 + $0x8] sm:$0xff]
    %v3584 = vld [vmem:[%s3581 + $0x10] sm:$0xff]
    %v3585 = vld [vmem:[%s3581 + $0x18] sm:$0xff]
    %v3586 = vld [vmem:[%s3581 + $0x20] sm:$0xff]
    %v3587 = vld [vmem:[%s3581 + $0x28] sm:$0xff]
    %v3588 = vld [vmem:[%s3581 + $0x30] sm:$0xff]
    %v3589 = vld [vmem:[%s3581 + $0x38] sm:$0xff]
    %3590 = vmatprep.subr.mxu0 0.0
    %3591 = vmatpush1.msra.mxu0 %v3582
    %3592 = vmatprep.subr.mxu0 0.0
    %3593 = vmatpush1.msra.mxu0 %v3583
    %3594 = vmatprep.subr.mxu0 0.0
    %3595 = vmatpush1.msra.mxu0 %v3584
    %3596 = vmatprep.subr.mxu0 0.0
    %3597 = vmatpush1.msra.mxu0 %v3585
    %3598 = vmatprep.subr.mxu0 0.0
    %3599 = vmatpush1.msra.mxu0 %v3586
    %3600 = vmatprep.subr.mxu0 0.0
    %3601 = vmatpush1.msra.mxu0 %v3587
    %3602 = vmatprep.subr.mxu0 0.0
    %3603 = vmatpush1.msra.mxu0 %v3588
    %3604 = vmatprep.subr.mxu0 0.0
    %3605 = vmatpush1.msra.mxu0 %v3589
    %3606 = vmatprep.subr.mxu0 0.0
    %3607 = vmatpush1.msra.mxu0 0.0
    %3608 = vmatprep.subr.mxu0 0.0
    %3609 = vmatpush1.msra.mxu0 0.0
    %3610 = vmatprep.subr.mxu0 0.0
    %3611 = vmatpush1.msra.mxu0 0.0
    %3612 = vmatprep.subr.mxu0 0.0
    %3613 = vmatpush1.msra.mxu0 0.0
    %3614 = vmatprep.subr.mxu0 0.0
    %3615 = vmatpush1.msra.mxu0 0.0
    %3616 = vmatprep.subr.mxu0 0.0
    %3617 = vmatpush1.msra.mxu0 0.0
    %3618 = vmatprep.subr.mxu0 0.0
    %3619 = vmatpush1.msra.mxu0 0.0
    %3620 = vmatprep.subr.mxu0 0.0
    %3621 = vmatpush1.msra.mxu0 0.0
    %3622 = vmatprep.subr.mxu0 0.0
    %3623 = vmatpush1.msra.mxu0 0.0
    %3624 = vmatprep.subr.mxu0 0.0
    %3625 = vmatpush1.msra.mxu0 0.0
    %3626 = vmatprep.subr.mxu0 0.0
    %3627 = vmatpush1.msra.mxu0 0.0
    %3628 = vmatprep.subr.mxu0 0.0
    %3629 = vmatpush1.msra.mxu0 0.0
    %3630 = vmatprep.subr.mxu0 0.0
    %3631 = vmatpush1.msra.mxu0 0.0
    %3632 = vmatprep.subr.mxu0 0.0
    %3633 = vmatpush1.msra.mxu0 0.0
    %3634 = vmatprep.subr.mxu0 0.0
    %3635 = vmatpush1.msra.mxu0 0.0
    %3636 = vmatprep.subr.mxu0 0.0
    %3637 = vmatpush1.msra.mxu0 0.0
    %3638 = vmatprep.subr.mxu0 0.0
    %3639 = vmatpush1.msra.mxu0 0.0
    %3640 = vmatprep.subr.mxu0 0.0
    %3641 = vmatpush1.msra.mxu0 0.0
    %3642 = vmatprep.subr.mxu0 0.0
    %3643 = vmatpush1.msra.mxu0 0.0
    %3644 = vmatprep.subr.mxu0 0.0
    %3645 = vmatpush1.msra.mxu0 0.0
    %3646 = vmatprep.subr.mxu0 0.0
    %3647 = vmatpush1.msra.mxu0 0.0
    %3648 = vmatprep.subr.mxu0 0.0
    %3649 = vmatpush1.msra.mxu0 0.0
    %3650 = vmatprep.subr.mxu0 0.0
    %3651 = vmatpush1.msra.mxu0 0.0
    %3652 = vmatprep.subr.mxu0 0.0
    %3653 = vmatpush1.msra.mxu0 0.0
    %3654 = vmatprep.mubr.f32.mxu0 0.0
    %3655 = vmatmul.mubr.f32.gmra.mrb[0].mxu0 %v292
    %v3656 = vpop.f32.mrb[0].mxu0
    %v3657 = vadd.f32 0.0, %v3656
    %v3658 = vpop.f32.mrb[0].mxu0
    %3659 = vdwg.mxu0
    %s3660 = scalar_lea.vmem %s3, 320
    %v3661 = vld [vmem:[%s3660] sm:$0xff]
    %v3662 = vld [vmem:[%s3660 + $0x8] sm:$0xff]
    %v3664 = vsel %vm448, %v3661, 0
    %v3667 = vsel %vm448, %v3662, 0
    %3669 = vmatprep.subr.mxu0 0.0
    %3670 = vmatpush1.msra.mxu0 %v3657
    %3671 = vmatprep.subr.mxu0 0.0
    %3672 = vmatpush1.msra.mxu0 0.0
    %3673 = vmatprep.subr.mxu0 0.0
    %3674 = vmatpush1.msra.mxu0 0.0
    %3675 = vmatprep.subr.mxu0 0.0
    %3676 = vmatpush1.msra.mxu0 0.0
    %3677 = vmatprep.subr.mxu0 0.0
    %3678 = vmatpush1.msra.mxu0 0.0
    %3679 = vmatprep.subr.mxu0 0.0
    %3680 = vmatpush1.msra.mxu0 0.0
    %3681 = vmatprep.subr.mxu0 0.0
    %3682 = vmatpush1.msra.mxu0 0.0
    %3683 = vmatprep.subr.mxu0 0.0
    %3684 = vmatpush1.msra.mxu0 0.0
    %3685 = vmatprep.subr.mxu0 0.0
    %3686 = vmatpush1.msra.mxu0 0.0
    %3687 = vmatprep.subr.mxu0 0.0
    %3688 = vmatpush1.msra.mxu0 0.0
    %3689 = vmatprep.subr.mxu0 0.0
    %3690 = vmatpush1.msra.mxu0 0.0
    %3691 = vmatprep.subr.mxu0 0.0
    %3692 = vmatpush1.msra.mxu0 0.0
    %3693 = vmatprep.subr.mxu0 0.0
    %3694 = vmatpush1.msra.mxu0 0.0
    %3695 = vmatprep.subr.mxu0 0.0
    %3696 = vmatpush1.msra.mxu0 0.0
    %3697 = vmatprep.subr.mxu0 0.0
    %3698 = vmatpush1.msra.mxu0 0.0
    %3699 = vmatprep.subr.mxu0 0.0
    %3700 = vmatpush1.msra.mxu0 0.0
    %3701 = vmatprep.subr.mxu0 0.0
    %3702 = vmatpush1.msra.mxu0 0.0
    %3703 = vmatprep.subr.mxu0 0.0
    %3704 = vmatpush1.msra.mxu0 0.0
    %3705 = vmatprep.subr.mxu0 0.0
    %3706 = vmatpush1.msra.mxu0 0.0
    %3707 = vmatprep.subr.mxu0 0.0
    %3708 = vmatpush1.msra.mxu0 0.0
    %3709 = vmatprep.subr.mxu0 0.0
    %3710 = vmatpush1.msra.mxu0 0.0
    %3711 = vmatprep.subr.mxu0 0.0
    %3712 = vmatpush1.msra.mxu0 0.0
    %3713 = vmatprep.subr.mxu0 0.0
    %3714 = vmatpush1.msra.mxu0 0.0
    %3715 = vmatprep.subr.mxu0 0.0
    %3716 = vmatpush1.msra.mxu0 0.0
    %3717 = vmatprep.subr.mxu0 0.0
    %3718 = vmatpush1.msra.mxu0 0.0
    %3719 = vmatprep.subr.mxu0 0.0
    %3720 = vmatpush1.msra.mxu0 0.0
    %3721 = vmatprep.subr.mxu0 0.0
    %3722 = vmatpush1.msra.mxu0 0.0
    %3723 = vmatprep.subr.mxu0 0.0
    %3724 = vmatpush1.msra.mxu0 0.0
    %3725 = vmatprep.subr.mxu0 0.0
    %3726 = vmatpush1.msra.mxu0 0.0
    %3727 = vmatprep.subr.mxu0 0.0
    %3728 = vmatpush1.msra.mxu0 0.0
    %3729 = vmatprep.subr.mxu0 0.0
    %3730 = vmatpush1.msra.mxu0 0.0
    %3731 = vmatprep.subr.mxu0 0.0
    %3732 = vmatpush1.msra.mxu0 0.0
    %3733 = vmatprep.mubr.f32.mxu0 0.0
    %3734 = vmatmul.mubr.f32.gmra.mrb[0].mxu0 %v3664
    %v3735 = vpop.f32.mrb[0].mxu0
    %v3736 = vadd.f32 0.0, %v3735
    %v3737 = vpop.f32.mrb[0].mxu0
    %3738 = vmatprep.mubr.f32.mxu0 0.0
    %3739 = vmatmul.mubr.f32.gmra.mrb[0].mxu0 %v3667
    %v3740 = vpop.f32.mrb[0].mxu0
    %v3741 = vadd.f32 0.0, %v3740
    %v3742 = vpop.f32.mrb[0].mxu0
    %3743 = vdwg.mxu0
    %v3744 = vadd.f32 %v3579, %v3736
    %v3745 = vadd.f32 %v3580, %v3741
    %s3746 = scalar_lea.vmem %s2, 1344
    %v3747 = vld [vmem:[%s3746] sm:$0xff]
    %v3748 = vld [vmem:[%s3746 + $0x8] sm:$0xff]
    %v3749 = vld [vmem:[%s3746 + $0x10] sm:$0xff]
    %v3750 = vld [vmem:[%s3746 + $0x18] sm:$0xff]
    %v3751 = vld [vmem:[%s3746 + $0x20] sm:$0xff]
    %v3752 = vld [vmem:[%s3746 + $0x28] sm:$0xff]
    %v3753 = vld [vmem:[%s3746 + $0x30] sm:$0xff]
    %v3754 = vld [vmem:[%s3746 + $0x38] sm:$0xff]
    %3755 = vmatprep.subr.mxu0 0.0
    %3756 = vmatpush1.msra.mxu0 %v3747
    %3757 = vmatprep.subr.mxu0 0.0
    %3758 = vmatpush1.msra.mxu0 %v3748
    %3759 = vmatprep.subr.mxu0 0.0
    %3760 = vmatpush1.msra.mxu0 %v3749
    %3761 = vmatprep.subr.mxu0 0.0
    %3762 = vmatpush1.msra.mxu0 %v3750
    %3763 = vmatprep.subr.mxu0 0.0
    %3764 = vmatpush1.msra.mxu0 %v3751
    %3765 = vmatprep.subr.mxu0 0.0
    %3766 = vmatpush1.msra.mxu0 %v3752
    %3767 = vmatprep.subr.mxu0 0.0
    %3768 = vmatpush1.msra.mxu0 %v3753
    %3769 = vmatprep.subr.mxu0 0.0
    %3770 = vmatpush1.msra.mxu0 %v3754
    %3771 = vmatprep.subr.mxu0 0.0
    %3772 = vmatpush1.msra.mxu0 0.0
    %3773 = vmatprep.subr.mxu0 0.0
    %3774 = vmatpush1.msra.mxu0 0.0
    %3775 = vmatprep.subr.mxu0 0.0
    %3776 = vmatpush1.msra.mxu0 0.0
    %3777 = vmatprep.subr.mxu0 0.0
    %3778 = vmatpush1.msra.mxu0 0.0
    %3779 = vmatprep.subr.mxu0 0.0
    %3780 = vmatpush1.msra.mxu0 0.0
    %3781 = vmatprep.subr.mxu0 0.0
    %3782 = vmatpush1.msra.mxu0 0.0
    %3783 = vmatprep.subr.mxu0 0.0
    %3784 = vmatpush1.msra.mxu0 0.0
    %3785 = vmatprep.subr.mxu0 0.0
    %3786 = vmatpush1.msra.mxu0 0.0
    %3787 = vmatprep.subr.mxu0 0.0
    %3788 = vmatpush1.msra.mxu0 0.0
    %3789 = vmatprep.subr.mxu0 0.0
    %3790 = vmatpush1.msra.mxu0 0.0
    %3791 = vmatprep.subr.mxu0 0.0
    %3792 = vmatpush1.msra.mxu0 0.0
    %3793 = vmatprep.subr.mxu0 0.0
    %3794 = vmatpush1.msra.mxu0 0.0
    %3795 = vmatprep.subr.mxu0 0.0
    %3796 = vmatpush1.msra.mxu0 0.0
    %3797 = vmatprep.subr.mxu0 0.0
    %3798 = vmatpush1.msra.mxu0 0.0
    %3799 = vmatprep.subr.mxu0 0.0
    %3800 = vmatpush1.msra.mxu0 0.0
    %3801 = vmatprep.subr.mxu0 0.0
    %3802 = vmatpush1.msra.mxu0 0.0
    %3803 = vmatprep.subr.mxu0 0.0
    %3804 = vmatpush1.msra.mxu0 0.0
    %3805 = vmatprep.subr.mxu0 0.0
    %3806 = vmatpush1.msra.mxu0 0.0
    %3807 = vmatprep.subr.mxu0 0.0
    %3808 = vmatpush1.msra.mxu0 0.0
    %3809 = vmatprep.subr.mxu0 0.0
    %3810 = vmatpush1.msra.mxu0 0.0
    %3811 = vmatprep.subr.mxu0 0.0
    %3812 = vmatpush1.msra.mxu0 0.0
    %3813 = vmatprep.subr.mxu0 0.0
    %3814 = vmatpush1.msra.mxu0 0.0
    %3815 = vmatprep.subr.mxu0 0.0
    %3816 = vmatpush1.msra.mxu0 0.0
    %3817 = vmatprep.subr.mxu0 0.0
    %3818 = vmatpush1.msra.mxu0 0.0
    %3819 = vmatprep.mubr.f32.mxu0 0.0
    %3820 = vmatmul.mubr.f32.gmra.mrb[0].mxu0 %v292
    %v3821 = vpop.f32.mrb[0].mxu0
    %v3822 = vadd.f32 0.0, %v3821
    %v3823 = vpop.f32.mrb[0].mxu0
    %3824 = vdwg.mxu0
    %s3825 = scalar_lea.vmem %s3, 336
    %v3826 = vld [vmem:[%s3825] sm:$0xff]
    %v3827 = vld [vmem:[%s3825 + $0x8] sm:$0xff]
    %v3829 = vsel %vm448, %v3826, 0
    %v3832 = vsel %vm448, %v3827, 0
    %3834 = vmatprep.subr.mxu0 0.0
    %3835 = vmatpush1.msra.mxu0 %v3822
    %3836 = vmatprep.subr.mxu0 0.0
    %3837 = vmatpush1.msra.mxu0 0.0
    %3838 = vmatprep.subr.mxu0 0.0
    %3839 = vmatpush1.msra.mxu0 0.0
    %3840 = vmatprep.subr.mxu0 0.0
    %3841 = vmatpush1.msra.mxu0 0.0
    %3842 = vmatprep.subr.mxu0 0.0
    %3843 = vmatpush1.msra.mxu0 0.0
    %3844 = vmatprep.subr.mxu0 0.0
    %3845 = vmatpush1.msra.mxu0 0.0
    %3846 = vmatprep.subr.mxu0 0.0
    %3847 = vmatpush1.msra.mxu0 0.0
    %3848 = vmatprep.subr.mxu0 0.0
    %3849 = vmatpush1.msra.mxu0 0.0
    %3850 = vmatprep.subr.mxu0 0.0
    %3851 = vmatpush1.msra.mxu0 0.0
    %3852 = vmatprep.subr.mxu0 0.0
    %3853 = vmatpush1.msra.mxu0 0.0
    %3854 = vmatprep.subr.mxu0 0.0
    %3855 = vmatpush1.msra.mxu0 0.0
    %3856 = vmatprep.subr.mxu0 0.0
    %3857 = vmatpush1.msra.mxu0 0.0
    %3858 = vmatprep.subr.mxu0 0.0
    %3859 = vmatpush1.msra.mxu0 0.0
    %3860 = vmatprep.subr.mxu0 0.0
    %3861 = vmatpush1.msra.mxu0 0.0
    %3862 = vmatprep.subr.mxu0 0.0
    %3863 = vmatpush1.msra.mxu0 0.0
    %3864 = vmatprep.subr.mxu0 0.0
    %3865 = vmatpush1.msra.mxu0 0.0
    %3866 = vmatprep.subr.mxu0 0.0
    %3867 = vmatpush1.msra.mxu0 0.0
    %3868 = vmatprep.subr.mxu0 0.0
    %3869 = vmatpush1.msra.mxu0 0.0
    %3870 = vmatprep.subr.mxu0 0.0
    %3871 = vmatpush1.msra.mxu0 0.0
    %3872 = vmatprep.subr.mxu0 0.0
    %3873 = vmatpush1.msra.mxu0 0.0
    %3874 = vmatprep.subr.mxu0 0.0
    %3875 = vmatpush1.msra.mxu0 0.0
    %3876 = vmatprep.subr.mxu0 0.0
    %3877 = vmatpush1.msra.mxu0 0.0
    %3878 = vmatprep.subr.mxu0 0.0
    %3879 = vmatpush1.msra.mxu0 0.0
    %3880 = vmatprep.subr.mxu0 0.0
    %3881 = vmatpush1.msra.mxu0 0.0
    %3882 = vmatprep.subr.mxu0 0.0
    %3883 = vmatpush1.msra.mxu0 0.0
    %3884 = vmatprep.subr.mxu0 0.0
    %3885 = vmatpush1.msra.mxu0 0.0
    %3886 = vmatprep.subr.mxu0 0.0
    %3887 = vmatpush1.msra.mxu0 0.0
    %3888 = vmatprep.subr.mxu0 0.0
    %3889 = vmatpush1.msra.mxu0 0.0
    %3890 = vmatprep.subr.mxu0 0.0
    %3891 = vmatpush1.msra.mxu0 0.0
    %3892 = vmatprep.subr.mxu0 0.0
    %3893 = vmatpush1.msra.mxu0 0.0
    %3894 = vmatprep.subr.mxu0 0.0
    %3895 = vmatpush1.msra.mxu0 0.0
    %3896 = vmatprep.subr.mxu0 0.0
    %3897 = vmatpush1.msra.mxu0 0.0
    %3898 = vmatprep.mubr.f32.mxu0 0.0
    %3899 = vmatmul.mubr.f32.gmra.mrb[0].mxu0 %v3829
    %v3900 = vpop.f32.mrb[0].mxu0
    %v3901 = vadd.f32 0.0, %v3900
    %v3902 = vpop.f32.mrb[0].mxu0
    %3903 = vmatprep.mubr.f32.mxu0 0.0
    %3904 = vmatmul.mubr.f32.gmra.mrb[0].mxu0 %v3832
    %v3905 = vpop.f32.mrb[0].mxu0
    %v3906 = vadd.f32 0.0, %v3905
    %v3907 = vpop.f32.mrb[0].mxu0
    %3908 = vdwg.mxu0
    %v3909 = vadd.f32 %v3744, %v3901
    %v3910 = vadd.f32 %v3745, %v3906
    %s3911 = scalar_lea.vmem %s2, 1408
    %v3912 = vld [vmem:[%s3911] sm:$0xff]
    %v3913 = vld [vmem:[%s3911 + $0x8] sm:$0xff]
    %v3914 = vld [vmem:[%s3911 + $0x10] sm:$0xff]
    %v3915 = vld [vmem:[%s3911 + $0x18] sm:$0xff]
    %v3916 = vld [vmem:[%s3911 + $0x20] sm:$0xff]
    %v3917 = vld [vmem:[%s3911 + $0x28] sm:$0xff]
    %v3918 = vld [vmem:[%s3911 + $0x30] sm:$0xff]
    %v3919 = vld [vmem:[%s3911 + $0x38] sm:$0xff]
    %3920 = vmatprep.subr.mxu0 0.0
    %3921 = vmatpush1.msra.mxu0 %v3912
    %3922 = vmatprep.subr.mxu0 0.0
    %3923 = vmatpush1.msra.mxu0 %v3913
    %3924 = vmatprep.subr.mxu0 0.0
    %3925 = vmatpush1.msra.mxu0 %v3914
    %3926 = vmatprep.subr.mxu0 0.0
    %3927 = vmatpush1.msra.mxu0 %v3915
    %3928 = vmatprep.subr.mxu0 0.0
    %3929 = vmatpush1.msra.mxu0 %v3916
    %3930 = vmatprep.subr.mxu0 0.0
    %3931 = vmatpush1.msra.mxu0 %v3917
    %3932 = vmatprep.subr.mxu0 0.0
    %3933 = vmatpush1.msra.mxu0 %v3918
    %3934 = vmatprep.subr.mxu0 0.0
    %3935 = vmatpush1.msra.mxu0 %v3919
    %3936 = vmatprep.subr.mxu0 0.0
    %3937 = vmatpush1.msra.mxu0 0.0
    %3938 = vmatprep.subr.mxu0 0.0
    %3939 = vmatpush1.msra.mxu0 0.0
    %3940 = vmatprep.subr.mxu0 0.0
    %3941 = vmatpush1.msra.mxu0 0.0
    %3942 = vmatprep.subr.mxu0 0.0
    %3943 = vmatpush1.msra.mxu0 0.0
    %3944 = vmatprep.subr.mxu0 0.0
    %3945 = vmatpush1.msra.mxu0 0.0
    %3946 = vmatprep.subr.mxu0 0.0
    %3947 = vmatpush1.msra.mxu0 0.0
    %3948 = vmatprep.subr.mxu0 0.0
    %3949 = vmatpush1.msra.mxu0 0.0
    %3950 = vmatprep.subr.mxu0 0.0
    %3951 = vmatpush1.msra.mxu0 0.0
    %3952 = vmatprep.subr.mxu0 0.0
    %3953 = vmatpush1.msra.mxu0 0.0
    %3954 = vmatprep.subr.mxu0 0.0
    %3955 = vmatpush1.msra.mxu0 0.0
    %3956 = vmatprep.subr.mxu0 0.0
    %3957 = vmatpush1.msra.mxu0 0.0
    %3958 = vmatprep.subr.mxu0 0.0
    %3959 = vmatpush1.msra.mxu0 0.0
    %3960 = vmatprep.subr.mxu0 0.0
    %3961 = vmatpush1.msra.mxu0 0.0
    %3962 = vmatprep.subr.mxu0 0.0
    %3963 = vmatpush1.msra.mxu0 0.0
    %3964 = vmatprep.subr.mxu0 0.0
    %3965 = vmatpush1.msra.mxu0 0.0
    %3966 = vmatprep.subr.mxu0 0.0
    %3967 = vmatpush1.msra.mxu0 0.0
    %3968 = vmatprep.subr.mxu0 0.0
    %3969 = vmatpush1.msra.mxu0 0.0
    %3970 = vmatprep.subr.mxu0 0.0
    %3971 = vmatpush1.msra.mxu0 0.0
    %3972 = vmatprep.subr.mxu0 0.0
    %3973 = vmatpush1.msra.mxu0 0.0
    %3974 = vmatprep.subr.mxu0 0.0
    %3975 = vmatpush1.msra.mxu0 0.0
    %3976 = vmatprep.subr.mxu0 0.0
    %3977 = vmatpush1.msra.mxu0 0.0
    %3978 = vmatprep.subr.mxu0 0.0
    %3979 = vmatpush1.msra.mxu0 0.0
    %3980 = vmatprep.subr.mxu0 0.0
    %3981 = vmatpush1.msra.mxu0 0.0
    %3982 = vmatprep.subr.mxu0 0.0
    %3983 = vmatpush1.msra.mxu0 0.0
    %3984 = vmatprep.mubr.f32.mxu0 0.0
    %3985 = vmatmul.mubr.f32.gmra.mrb[0].mxu0 %v292
    %v3986 = vpop.f32.mrb[0].mxu0
    %v3987 = vadd.f32 0.0, %v3986
    %v3988 = vpop.f32.mrb[0].mxu0
    %3989 = vdwg.mxu0
    %s3990 = scalar_lea.vmem %s3, 352
    %v3991 = vld [vmem:[%s3990] sm:$0xff]
    %v3992 = vld [vmem:[%s3990 + $0x8] sm:$0xff]
    %v3994 = vsel %vm448, %v3991, 0
    %v3997 = vsel %vm448, %v3992, 0
    %3999 = vmatprep.subr.mxu0 0.0
    %4000 = vmatpush1.msra.mxu0 %v3987
    %4001 = vmatprep.subr.mxu0 0.0
    %4002 = vmatpush1.msra.mxu0 0.0
    %4003 = vmatprep.subr.mxu0 0.0
    %4004 = vmatpush1.msra.mxu0 0.0
    %4005 = vmatprep.subr.mxu0 0.0
    %4006 = vmatpush1.msra.mxu0 0.0
    %4007 = vmatprep.subr.mxu0 0.0
    %4008 = vmatpush1.msra.mxu0 0.0
    %4009 = vmatprep.subr.mxu0 0.0
    %4010 = vmatpush1.msra.mxu0 0.0
    %4011 = vmatprep.subr.mxu0 0.0
    %4012 = vmatpush1.msra.mxu0 0.0
    %4013 = vmatprep.subr.mxu0 0.0
    %4014 = vmatpush1.msra.mxu0 0.0
    %4015 = vmatprep.subr.mxu0 0.0
    %4016 = vmatpush1.msra.mxu0 0.0
    %4017 = vmatprep.subr.mxu0 0.0
    %4018 = vmatpush1.msra.mxu0 0.0
    %4019 = vmatprep.subr.mxu0 0.0
    %4020 = vmatpush1.msra.mxu0 0.0
    %4021 = vmatprep.subr.mxu0 0.0
    %4022 = vmatpush1.msra.mxu0 0.0
    %4023 = vmatprep.subr.mxu0 0.0
    %4024 = vmatpush1.msra.mxu0 0.0
    %4025 = vmatprep.subr.mxu0 0.0
    %4026 = vmatpush1.msra.mxu0 0.0
    %4027 = vmatprep.subr.mxu0 0.0
    %4028 = vmatpush1.msra.mxu0 0.0
    %4029 = vmatprep.subr.mxu0 0.0
    %4030 = vmatpush1.msra.mxu0 0.0
    %4031 = vmatprep.subr.mxu0 0.0
    %4032 = vmatpush1.msra.mxu0 0.0
    %4033 = vmatprep.subr.mxu0 0.0
    %4034 = vmatpush1.msra.mxu0 0.0
    %4035 = vmatprep.subr.mxu0 0.0
    %4036 = vmatpush1.msra.mxu0 0.0
    %4037 = vmatprep.subr.mxu0 0.0
    %4038 = vmatpush1.msra.mxu0 0.0
    %4039 = vmatprep.subr.mxu0 0.0
    %4040 = vmatpush1.msra.mxu0 0.0
    %4041 = vmatprep.subr.mxu0 0.0
    %4042 = vmatpush1.msra.mxu0 0.0
    %4043 = vmatprep.subr.mxu0 0.0
    %4044 = vmatpush1.msra.mxu0 0.0
    %4045 = vmatprep.subr.mxu0 0.0
    %4046 = vmatpush1.msra.mxu0 0.0
    %4047 = vmatprep.subr.mxu0 0.0
    %4048 = vmatpush1.msra.mxu0 0.0
    %4049 = vmatprep.subr.mxu0 0.0
    %4050 = vmatpush1.msra.mxu0 0.0
    %4051 = vmatprep.subr.mxu0 0.0
    %4052 = vmatpush1.msra.mxu0 0.0
    %4053 = vmatprep.subr.mxu0 0.0
    %4054 = vmatpush1.msra.mxu0 0.0
    %4055 = vmatprep.subr.mxu0 0.0
    %4056 = vmatpush1.msra.mxu0 0.0
    %4057 = vmatprep.subr.mxu0 0.0
    %4058 = vmatpush1.msra.mxu0 0.0
    %4059 = vmatprep.subr.mxu0 0.0
    %4060 = vmatpush1.msra.mxu0 0.0
    %4061 = vmatprep.subr.mxu0 0.0
    %4062 = vmatpush1.msra.mxu0 0.0
    %4063 = vmatprep.mubr.f32.mxu0 0.0
    %4064 = vmatmul.mubr.f32.gmra.mrb[0].mxu0 %v3994
    %v4065 = vpop.f32.mrb[0].mxu0
    %v4066 = vadd.f32 0.0, %v4065
    %v4067 = vpop.f32.mrb[0].mxu0
    %4068 = vmatprep.mubr.f32.mxu0 0.0
    %4069 = vmatmul.mubr.f32.gmra.mrb[0].mxu0 %v3997
    %v4070 = vpop.f32.mrb[0].mxu0
    %v4071 = vadd.f32 0.0, %v4070
    %v4072 = vpop.f32.mrb[0].mxu0
    %4073 = vdwg.mxu0
    %v4074 = vadd.f32 %v3909, %v4066
    %v4075 = vadd.f32 %v3910, %v4071
    %s4076 = scalar_lea.vmem %s2, 1472
    %v4077 = vld [vmem:[%s4076] sm:$0xff]
    %v4078 = vld [vmem:[%s4076 + $0x8] sm:$0xff]
    %v4079 = vld [vmem:[%s4076 + $0x10] sm:$0xff]
    %v4080 = vld [vmem:[%s4076 + $0x18] sm:$0xff]
    %v4081 = vld [vmem:[%s4076 + $0x20] sm:$0xff]
    %v4082 = vld [vmem:[%s4076 + $0x28] sm:$0xff]
    %v4083 = vld [vmem:[%s4076 + $0x30] sm:$0xff]
    %v4084 = vld [vmem:[%s4076 + $0x38] sm:$0xff]
    %4085 = vmatprep.subr.mxu0 0.0
    %4086 = vmatpush1.msra.mxu0 %v4077
    %4087 = vmatprep.subr.mxu0 0.0
    %4088 = vmatpush1.msra.mxu0 %v4078
    %4089 = vmatprep.subr.mxu0 0.0
    %4090 = vmatpush1.msra.mxu0 %v4079
    %4091 = vmatprep.subr.mxu0 0.0
    %4092 = vmatpush1.msra.mxu0 %v4080
    %4093 = vmatprep.subr.mxu0 0.0
    %4094 = vmatpush1.msra.mxu0 %v4081
    %4095 = vmatprep.subr.mxu0 0.0
    %4096 = vmatpush1.msra.mxu0 %v4082
    %4097 = vmatprep.subr.mxu0 0.0
    %4098 = vmatpush1.msra.mxu0 %v4083
    %4099 = vmatprep.subr.mxu0 0.0
    %4100 = vmatpush1.msra.mxu0 %v4084
    %4101 = vmatprep.subr.mxu0 0.0
    %4102 = vmatpush1.msra.mxu0 0.0
    %4103 = vmatprep.subr.mxu0 0.0
    %4104 = vmatpush1.msra.mxu0 0.0
    %4105 = vmatprep.subr.mxu0 0.0
    %4106 = vmatpush1.msra.mxu0 0.0
    %4107 = vmatprep.subr.mxu0 0.0
    %4108 = vmatpush1.msra.mxu0 0.0
    %4109 = vmatprep.subr.mxu0 0.0
    %4110 = vmatpush1.msra.mxu0 0.0
    %4111 = vmatprep.subr.mxu0 0.0
    %4112 = vmatpush1.msra.mxu0 0.0
    %4113 = vmatprep.subr.mxu0 0.0
    %4114 = vmatpush1.msra.mxu0 0.0
    %4115 = vmatprep.subr.mxu0 0.0
    %4116 = vmatpush1.msra.mxu0 0.0
    %4117 = vmatprep.subr.mxu0 0.0
    %4118 = vmatpush1.msra.mxu0 0.0
    %4119 = vmatprep.subr.mxu0 0.0
    %4120 = vmatpush1.msra.mxu0 0.0
    %4121 = vmatprep.subr.mxu0 0.0
    %4122 = vmatpush1.msra.mxu0 0.0
    %4123 = vmatprep.subr.mxu0 0.0
    %4124 = vmatpush1.msra.mxu0 0.0
    %4125 = vmatprep.subr.mxu0 0.0
    %4126 = vmatpush1.msra.mxu0 0.0
    %4127 = vmatprep.subr.mxu0 0.0
    %4128 = vmatpush1.msra.mxu0 0.0
    %4129 = vmatprep.subr.mxu0 0.0
    %4130 = vmatpush1.msra.mxu0 0.0
    %4131 = vmatprep.subr.mxu0 0.0
    %4132 = vmatpush1.msra.mxu0 0.0
    %4133 = vmatprep.subr.mxu0 0.0
    %4134 = vmatpush1.msra.mxu0 0.0
    %4135 = vmatprep.subr.mxu0 0.0
    %4136 = vmatpush1.msra.mxu0 0.0
    %4137 = vmatprep.subr.mxu0 0.0
    %4138 = vmatpush1.msra.mxu0 0.0
    %4139 = vmatprep.subr.mxu0 0.0
    %4140 = vmatpush1.msra.mxu0 0.0
    %4141 = vmatprep.subr.mxu0 0.0
    %4142 = vmatpush1.msra.mxu0 0.0
    %4143 = vmatprep.subr.mxu0 0.0
    %4144 = vmatpush1.msra.mxu0 0.0
    %4145 = vmatprep.subr.mxu0 0.0
    %4146 = vmatpush1.msra.mxu0 0.0
    %4147 = vmatprep.subr.mxu0 0.0
    %4148 = vmatpush1.msra.mxu0 0.0
    %4149 = vmatprep.mubr.f32.mxu0 0.0
    %4150 = vmatmul.mubr.f32.gmra.mrb[0].mxu0 %v292
    %v4151 = vpop.f32.mrb[0].mxu0
    %v4152 = vadd.f32 0.0, %v4151
    %v4153 = vpop.f32.mrb[0].mxu0
    %4154 = vdwg.mxu0
    %s4155 = scalar_lea.vmem %s3, 368
    %v4156 = vld [vmem:[%s4155] sm:$0xff]
    %v4157 = vld [vmem:[%s4155 + $0x8] sm:$0xff]
    %v4159 = vsel %vm448, %v4156, 0
    %v4162 = vsel %vm448, %v4157, 0
    %4164 = vmatprep.subr.mxu0 0.0
    %4165 = vmatpush1.msra.mxu0 %v4152
    %4166 = vmatprep.subr.mxu0 0.0
    %4167 = vmatpush1.msra.mxu0 0.0
    %4168 = vmatprep.subr.mxu0 0.0
    %4169 = vmatpush1.msra.mxu0 0.0
    %4170 = vmatprep.subr.mxu0 0.0
    %4171 = vmatpush1.msra.mxu0 0.0
    %4172 = vmatprep.subr.mxu0 0.0
    %4173 = vmatpush1.msra.mxu0 0.0
    %4174 = vmatprep.subr.mxu0 0.0
    %4175 = vmatpush1.msra.mxu0 0.0
    %4176 = vmatprep.subr.mxu0 0.0
    %4177 = vmatpush1.msra.mxu0 0.0
    %4178 = vmatprep.subr.mxu0 0.0
    %4179 = vmatpush1.msra.mxu0 0.0
    %4180 = vmatprep.subr.mxu0 0.0
    %4181 = vmatpush1.msra.mxu0 0.0
    %4182 = vmatprep.subr.mxu0 0.0
    %4183 = vmatpush1.msra.mxu0 0.0
    %4184 = vmatprep.subr.mxu0 0.0
    %4185 = vmatpush1.msra.mxu0 0.0
    %4186 = vmatprep.subr.mxu0 0.0
    %4187 = vmatpush1.msra.mxu0 0.0
    %4188 = vmatprep.subr.mxu0 0.0
    %4189 = vmatpush1.msra.mxu0 0.0
    %4190 = vmatprep.subr.mxu0 0.0
    %4191 = vmatpush1.msra.mxu0 0.0
    %4192 = vmatprep.subr.mxu0 0.0
    %4193 = vmatpush1.msra.mxu0 0.0
    %4194 = vmatprep.subr.mxu0 0.0
    %4195 = vmatpush1.msra.mxu0 0.0
    %4196 = vmatprep.subr.mxu0 0.0
    %4197 = vmatpush1.msra.mxu0 0.0
    %4198 = vmatprep.subr.mxu0 0.0
    %4199 = vmatpush1.msra.mxu0 0.0
    %4200 = vmatprep.subr.mxu0 0.0
    %4201 = vmatpush1.msra.mxu0 0.0
    %4202 = vmatprep.subr.mxu0 0.0
    %4203 = vmatpush1.msra.mxu0 0.0
    %4204 = vmatprep.subr.mxu0 0.0
    %4205 = vmatpush1.msra.mxu0 0.0
    %4206 = vmatprep.subr.mxu0 0.0
    %4207 = vmatpush1.msra.mxu0 0.0
    %4208 = vmatprep.subr.mxu0 0.0
    %4209 = vmatpush1.msra.mxu0 0.0
    %4210 = vmatprep.subr.mxu0 0.0
    %4211 = vmatpush1.msra.mxu0 0.0
    %4212 = vmatprep.subr.mxu0 0.0
    %4213 = vmatpush1.msra.mxu0 0.0
    %4214 = vmatprep.subr.mxu0 0.0
    %4215 = vmatpush1.msra.mxu0 0.0
    %4216 = vmatprep.subr.mxu0 0.0
    %4217 = vmatpush1.msra.mxu0 0.0
    %4218 = vmatprep.subr.mxu0 0.0
    %4219 = vmatpush1.msra.mxu0 0.0
    %4220 = vmatprep.subr.mxu0 0.0
    %4221 = vmatpush1.msra.mxu0 0.0
    %4222 = vmatprep.subr.mxu0 0.0
    %4223 = vmatpush1.msra.mxu0 0.0
    %4224 = vmatprep.subr.mxu0 0.0
    %4225 = vmatpush1.msra.mxu0 0.0
    %4226 = vmatprep.subr.mxu0 0.0
    %4227 = vmatpush1.msra.mxu0 0.0
    %4228 = vmatprep.mubr.f32.mxu0 0.0
    %4229 = vmatmul.mubr.f32.gmra.mrb[0].mxu0 %v4159
    %v4230 = vpop.f32.mrb[0].mxu0
    %v4231 = vadd.f32 0.0, %v4230
    %v4232 = vpop.f32.mrb[0].mxu0
    %4233 = vmatprep.mubr.f32.mxu0 0.0
    %4234 = vmatmul.mubr.f32.gmra.mrb[0].mxu0 %v4162
    %v4235 = vpop.f32.mrb[0].mxu0
    %v4236 = vadd.f32 0.0, %v4235
    %v4237 = vpop.f32.mrb[0].mxu0
    %4238 = vdwg.mxu0
    %v4239 = vadd.f32 %v4074, %v4231
    %v4240 = vadd.f32 %v4075, %v4236
    %s4241 = scalar_lea.vmem %s2, 1536
    %v4242 = vld [vmem:[%s4241] sm:$0xff]
    %v4243 = vld [vmem:[%s4241 + $0x8] sm:$0xff]
    %v4244 = vld [vmem:[%s4241 + $0x10] sm:$0xff]
    %v4245 = vld [vmem:[%s4241 + $0x18] sm:$0xff]
    %v4246 = vld [vmem:[%s4241 + $0x20] sm:$0xff]
    %v4247 = vld [vmem:[%s4241 + $0x28] sm:$0xff]
    %v4248 = vld [vmem:[%s4241 + $0x30] sm:$0xff]
    %v4249 = vld [vmem:[%s4241 + $0x38] sm:$0xff]
    %4250 = vmatprep.subr.mxu0 0.0
    %4251 = vmatpush1.msra.mxu0 %v4242
    %4252 = vmatprep.subr.mxu0 0.0
    %4253 = vmatpush1.msra.mxu0 %v4243
    %4254 = vmatprep.subr.mxu0 0.0
    %4255 = vmatpush1.msra.mxu0 %v4244
    %4256 = vmatprep.subr.mxu0 0.0
    %4257 = vmatpush1.msra.mxu0 %v4245
    %4258 = vmatprep.subr.mxu0 0.0
    %4259 = vmatpush1.msra.mxu0 %v4246
    %4260 = vmatprep.subr.mxu0 0.0
    %4261 = vmatpush1.msra.mxu0 %v4247
    %4262 = vmatprep.subr.mxu0 0.0
    %4263 = vmatpush1.msra.mxu0 %v4248
    %4264 = vmatprep.subr.mxu0 0.0
    %4265 = vmatpush1.msra.mxu0 %v4249
    %4266 = vmatprep.subr.mxu0 0.0
    %4267 = vmatpush1.msra.mxu0 0.0
    %4268 = vmatprep.subr.mxu0 0.0
    %4269 = vmatpush1.msra.mxu0 0.0
    %4270 = vmatprep.subr.mxu0 0.0
    %4271 = vmatpush1.msra.mxu0 0.0
    %4272 = vmatprep.subr.mxu0 0.0
    %4273 = vmatpush1.msra.mxu0 0.0
    %4274 = vmatprep.subr.mxu0 0.0
    %4275 = vmatpush1.msra.mxu0 0.0
    %4276 = vmatprep.subr.mxu0 0.0
    %4277 = vmatpush1.msra.mxu0 0.0
    %4278 = vmatprep.subr.mxu0 0.0
    %4279 = vmatpush1.msra.mxu0 0.0
    %4280 = vmatprep.subr.mxu0 0.0
    %4281 = vmatpush1.msra.mxu0 0.0
    %4282 = vmatprep.subr.mxu0 0.0
    %4283 = vmatpush1.msra.mxu0 0.0
    %4284 = vmatprep.subr.mxu0 0.0
    %4285 = vmatpush1.msra.mxu0 0.0
    %4286 = vmatprep.subr.mxu0 0.0
    %4287 = vmatpush1.msra.mxu0 0.0
    %4288 = vmatprep.subr.mxu0 0.0
    %4289 = vmatpush1.msra.mxu0 0.0
    %4290 = vmatprep.subr.mxu0 0.0
    %4291 = vmatpush1.msra.mxu0 0.0
    %4292 = vmatprep.subr.mxu0 0.0
    %4293 = vmatpush1.msra.mxu0 0.0
    %4294 = vmatprep.subr.mxu0 0.0
    %4295 = vmatpush1.msra.mxu0 0.0
    %4296 = vmatprep.subr.mxu0 0.0
    %4297 = vmatpush1.msra.mxu0 0.0
    %4298 = vmatprep.subr.mxu0 0.0
    %4299 = vmatpush1.msra.mxu0 0.0
    %4300 = vmatprep.subr.mxu0 0.0
    %4301 = vmatpush1.msra.mxu0 0.0
    %4302 = vmatprep.subr.mxu0 0.0
    %4303 = vmatpush1.msra.mxu0 0.0
    %4304 = vmatprep.subr.mxu0 0.0
    %4305 = vmatpush1.msra.mxu0 0.0
    %4306 = vmatprep.subr.mxu0 0.0
    %4307 = vmatpush1.msra.mxu0 0.0
    %4308 = vmatprep.subr.mxu0 0.0
    %4309 = vmatpush1.msra.mxu0 0.0
    %4310 = vmatprep.subr.mxu0 0.0
    %4311 = vmatpush1.msra.mxu0 0.0
    %4312 = vmatprep.subr.mxu0 0.0
    %4313 = vmatpush1.msra.mxu0 0.0
    %4314 = vmatprep.mubr.f32.mxu0 0.0
    %4315 = vmatmul.mubr.f32.gmra.mrb[0].mxu0 %v292
    %v4316 = vpop.f32.mrb[0].mxu0
    %v4317 = vadd.f32 0.0, %v4316
    %v4318 = vpop.f32.mrb[0].mxu0
    %4319 = vdwg.mxu0
    %s4320 = scalar_lea.vmem %s3, 384
    %v4321 = vld [vmem:[%s4320] sm:$0xff]
    %v4322 = vld [vmem:[%s4320 + $0x8] sm:$0xff]
    %v4324 = vsel %vm448, %v4321, 0
    %v4327 = vsel %vm448, %v4322, 0
    %4329 = vmatprep.subr.mxu0 0.0
    %4330 = vmatpush1.msra.mxu0 %v4317
    %4331 = vmatprep.subr.mxu0 0.0
    %4332 = vmatpush1.msra.mxu0 0.0
    %4333 = vmatprep.subr.mxu0 0.0
    %4334 = vmatpush1.msra.mxu0 0.0
    %4335 = vmatprep.subr.mxu0 0.0
    %4336 = vmatpush1.msra.mxu0 0.0
    %4337 = vmatprep.subr.mxu0 0.0
    %4338 = vmatpush1.msra.mxu0 0.0
    %4339 = vmatprep.subr.mxu0 0.0
    %4340 = vmatpush1.msra.mxu0 0.0
    %4341 = vmatprep.subr.mxu0 0.0
    %4342 = vmatpush1.msra.mxu0 0.0
    %4343 = vmatprep.subr.mxu0 0.0
    %4344 = vmatpush1.msra.mxu0 0.0
    %4345 = vmatprep.subr.mxu0 0.0
    %4346 = vmatpush1.msra.mxu0 0.0
    %4347 = vmatprep.subr.mxu0 0.0
    %4348 = vmatpush1.msra.mxu0 0.0
    %4349 = vmatprep.subr.mxu0 0.0
    %4350 = vmatpush1.msra.mxu0 0.0
    %4351 = vmatprep.subr.mxu0 0.0
    %4352 = vmatpush1.msra.mxu0 0.0
    %4353 = vmatprep.subr.mxu0 0.0
    %4354 = vmatpush1.msra.mxu0 0.0
    %4355 = vmatprep.subr.mxu0 0.0
    %4356 = vmatpush1.msra.mxu0 0.0
    %4357 = vmatprep.subr.mxu0 0.0
    %4358 = vmatpush1.msra.mxu0 0.0
    %4359 = vmatprep.subr.mxu0 0.0
    %4360 = vmatpush1.msra.mxu0 0.0
    %4361 = vmatprep.subr.mxu0 0.0
    %4362 = vmatpush1.msra.mxu0 0.0
    %4363 = vmatprep.subr.mxu0 0.0
    %4364 = vmatpush1.msra.mxu0 0.0
    %4365 = vmatprep.subr.mxu0 0.0
    %4366 = vmatpush1.msra.mxu0 0.0
    %4367 = vmatprep.subr.mxu0 0.0
    %4368 = vmatpush1.msra.mxu0 0.0
    %4369 = vmatprep.subr.mxu0 0.0
    %4370 = vmatpush1.msra.mxu0 0.0
    %4371 = vmatprep.subr.mxu0 0.0
    %4372 = vmatpush1.msra.mxu0 0.0
    %4373 = vmatprep.subr.mxu0 0.0
    %4374 = vmatpush1.msra.mxu0 0.0
    %4375 = vmatprep.subr.mxu0 0.0
    %4376 = vmatpush1.msra.mxu0 0.0
    %4377 = vmatprep.subr.mxu0 0.0
    %4378 = vmatpush1.msra.mxu0 0.0
    %4379 = vmatprep.subr.mxu0 0.0
    %4380 = vmatpush1.msra.mxu0 0.0
    %4381 = vmatprep.subr.mxu0 0.0
    %4382 = vmatpush1.msra.mxu0 0.0
    %4383 = vmatprep.subr.mxu0 0.0
    %4384 = vmatpush1.msra.mxu0 0.0
    %4385 = vmatprep.subr.mxu0 0.0
    %4386 = vmatpush1.msra.mxu0 0.0
    %4387 = vmatprep.subr.mxu0 0.0
    %4388 = vmatpush1.msra.mxu0 0.0
    %4389 = vmatprep.subr.mxu0 0.0
    %4390 = vmatpush1.msra.mxu0 0.0
    %4391 = vmatprep.subr.mxu0 0.0
    %4392 = vmatpush1.msra.mxu0 0.0
    %4393 = vmatprep.mubr.f32.mxu0 0.0
    %4394 = vmatmul.mubr.f32.gmra.mrb[0].mxu0 %v4324
    %v4395 = vpop.f32.mrb[0].mxu0
    %v4396 = vadd.f32 0.0, %v4395
    %v4397 = vpop.f32.mrb[0].mxu0
    %4398 = vmatprep.mubr.f32.mxu0 0.0
    %4399 = vmatmul.mubr.f32.gmra.mrb[0].mxu0 %v4327
    %v4400 = vpop.f32.mrb[0].mxu0
    %v4401 = vadd.f32 0.0, %v4400
    %v4402 = vpop.f32.mrb[0].mxu0
    %4403 = vdwg.mxu0
    %v4404 = vadd.f32 %v4239, %v4396
    %v4405 = vadd.f32 %v4240, %v4401
    %v4406 = vld [vmem:[%s4] sm:$0xff]
    %v4407 = vld [vmem:[%s4 + $0x8] sm:$0xff]
    %4409 = vset.pattern.permute.xlu0 0
    %4410 = vperm.xlu0 %4409, %v4406
    %v4411 = vpop.permute.xlu0 %4410
    %4414 = vset.pattern.permute.xlu0 0
    %4415 = vperm.xlu0 %4414, %v4407
    %v4416 = vpop.permute.xlu0 %4415
    %v4418 = vadd.f32 %v4404, %v4411
    %v4419 = vadd.f32 %v4405, %v4416
    %v4420 = vmax.f32 %v4418, 0.0
    %v4421 = vmax.f32 %v4419, 0.0
    %v4422 = vld [vmem:[#allocation7] sm:$0xff]
    %v4423 = vld [vmem:[#allocation7 + $0x8] sm:$0xff]
    %v4424 = vld [vmem:[#allocation7 + $0x10] sm:$0xff]
    %v4425 = vld [vmem:[#allocation7 + $0x18] sm:$0xff]
    %v4426 = vld [vmem:[#allocation7 + $0x20] sm:$0xff]
    %v4427 = vld [vmem:[#allocation7 + $0x28] sm:$0xff]
    %v4428 = vld [vmem:[#allocation7 + $0x30] sm:$0xff]
    %v4429 = vld [vmem:[#allocation7 + $0x38] sm:$0xff]
    %v4431 = vsel %vm290, %v4420, 0
    %v4434 = vsel %vm290, %v4421, 0
    %4436 = vmatprep.subr.mxu0 0.0
    %4437 = vmatpush1.msra.mxu0 %v4422
    %4438 = vmatprep.subr.mxu0 0.0
    %4439 = vmatpush1.msra.mxu0 %v4423
    %4440 = vmatprep.subr.mxu0 0.0
    %4441 = vmatpush1.msra.mxu0 %v4424
    %4442 = vmatprep.subr.mxu0 0.0
    %4443 = vmatpush1.msra.mxu0 %v4425
    %4444 = vmatprep.subr.mxu0 0.0
    %4445 = vmatpush1.msra.mxu0 %v4426
    %4446 = vmatprep.subr.mxu0 0.0
    %4447 = vmatpush1.msra.mxu0 %v4427
    %4448 = vmatprep.subr.mxu0 0.0
    %4449 = vmatpush1.msra.mxu0 %v4428
    %4450 = vmatprep.subr.mxu0 0.0
    %4451 = vmatpush1.msra.mxu0 %v4429
    %4452 = vmatprep.subr.mxu0 0.0
    %4453 = vmatpush1.msra.mxu0 0.0
    %4454 = vmatprep.subr.mxu0 0.0
    %4455 = vmatpush1.msra.mxu0 0.0
    %4456 = vmatprep.subr.mxu0 0.0
    %4457 = vmatpush1.msra.mxu0 0.0
    %4458 = vmatprep.subr.mxu0 0.0
    %4459 = vmatpush1.msra.mxu0 0.0
    %4460 = vmatprep.subr.mxu0 0.0
    %4461 = vmatpush1.msra.mxu0 0.0
    %4462 = vmatprep.subr.mxu0 0.0
    %4463 = vmatpush1.msra.mxu0 0.0
    %4464 = vmatprep.subr.mxu0 0.0
    %4465 = vmatpush1.msra.mxu0 0.0
    %4466 = vmatprep.subr.mxu0 0.0
    %4467 = vmatpush1.msra.mxu0 0.0
    %4468 = vmatprep.subr.mxu0 0.0
    %4469 = vmatpush1.msra.mxu0 0.0
    %4470 = vmatprep.subr.mxu0 0.0
    %4471 = vmatpush1.msra.mxu0 0.0
    %4472 = vmatprep.subr.mxu0 0.0
    %4473 = vmatpush1.msra.mxu0 0.0
    %4474 = vmatprep.subr.mxu0 0.0
    %4475 = vmatpush1.msra.mxu0 0.0
    %4476 = vmatprep.subr.mxu0 0.0
    %4477 = vmatpush1.msra.mxu0 0.0
    %4478 = vmatprep.subr.mxu0 0.0
    %4479 = vmatpush1.msra.mxu0 0.0
    %4480 = vmatprep.subr.mxu0 0.0
    %4481 = vmatpush1.msra.mxu0 0.0
    %4482 = vmatprep.subr.mxu0 0.0
    %4483 = vmatpush1.msra.mxu0 0.0
    %4484 = vmatprep.subr.mxu0 0.0
    %4485 = vmatpush1.msra.mxu0 0.0
    %4486 = vmatprep.subr.mxu0 0.0
    %4487 = vmatpush1.msra.mxu0 0.0
    %4488 = vmatprep.subr.mxu0 0.0
    %4489 = vmatpush1.msra.mxu0 0.0
    %4490 = vmatprep.subr.mxu0 0.0
    %4491 = vmatpush1.msra.mxu0 0.0
    %4492 = vmatprep.subr.mxu0 0.0
    %4493 = vmatpush1.msra.mxu0 0.0
    %4494 = vmatprep.subr.mxu0 0.0
    %4495 = vmatpush1.msra.mxu0 0.0
    %4496 = vmatprep.subr.mxu0 0.0
    %4497 = vmatpush1.msra.mxu0 0.0
    %4498 = vmatprep.subr.mxu0 0.0
    %4499 = vmatpush1.msra.mxu0 0.0
    %4500 = vmatprep.mubr.f32.mxu0 0.0
    %4501 = vmatmul.mubr.f32.gmra.mrb[0].mxu0 %v4431
    %v4502 = vpop.f32.mrb[0].mxu0
    %v4503 = vadd.f32 0.0, %v4502
    %v4504 = vpop.f32.mrb[0].mxu0
    %4505 = vmatprep.mubr.f32.mxu0 0.0
    %4506 = vmatmul.mubr.f32.gmra.mrb[0].mxu0 %v4434
    %v4507 = vpop.f32.mrb[0].mxu0
    %v4508 = vadd.f32 0.0, %v4507
    %v4509 = vpop.f32.mrb[0].mxu0
    %4510 = vdwg.mxu0
    %4513 = vrot.lane.b32.xlu0 %v4503, 112
    %v4514 = vpop.permute.xlu0 %4513
    %4515 = vrot.lane.b32.xlu0 %v4508, 112
    %v4516 = vpop.permute.xlu0 %4515
    %v4519 = vmax.f32 %v4503, %v4514
    %v4520 = vmax.f32 %v4508, %v4516
    %4523 = vrot.lane.b32.xlu0 %v4519, 96
    %v4524 = vpop.permute.xlu0 %4523
    %4525 = vrot.lane.b32.xlu0 %v4520, 96
    %v4526 = vpop.permute.xlu0 %4525
    %v4529 = vmax.f32 %v4519, %v4524
    %v4530 = vmax.f32 %v4520, %v4526
    %v4531 = vld [vmem:[%s6] sm:$0xff]
    %v4532 = vld [vmem:[%s6 + $0x8] sm:$0xff]
    %vm4533 = vcmask 130048
    %v4535 = vsel %vm4533, %v4529, 0
    %v4538 = vsel %vm4533, %v4530, 0
    %4540 = vmatprep.subr.mxu0 0.0
    %4541 = vmatpush1.msra.mxu0 %v4531
    %4542 = vmatprep.subr.mxu0 0.0
    %4543 = vmatpush1.msra.mxu0 %v4532
    %4544 = vmatprep.subr.mxu0 0.0
    %4545 = vmatpush1.msra.mxu0 0.0
    %4546 = vmatprep.subr.mxu0 0.0
    %4547 = vmatpush1.msra.mxu0 0.0
    %4548 = vmatprep.subr.mxu0 0.0
    %4549 = vmatpush1.msra.mxu0 0.0
    %4550 = vmatprep.subr.mxu0 0.0
    %4551 = vmatpush1.msra.mxu0 0.0
    %4552 = vmatprep.subr.mxu0 0.0
    %4553 = vmatpush1.msra.mxu0 0.0
    %4554 = vmatprep.subr.mxu0 0.0
    %4555 = vmatpush1.msra.mxu0 0.0
    %4556 = vmatprep.subr.mxu0 0.0
    %4557 = vmatpush1.msra.mxu0 0.0
    %4558 = vmatprep.subr.mxu0 0.0
    %4559 = vmatpush1.msra.mxu0 0.0
    %4560 = vmatprep.subr.mxu0 0.0
    %4561 = vmatpush1.msra.mxu0 0.0
    %4562 = vmatprep.subr.mxu0 0.0
    %4563 = vmatpush1.msra.mxu0 0.0
    %4564 = vmatprep.subr.mxu0 0.0
    %4565 = vmatpush1.msra.mxu0 0.0
    %4566 = vmatprep.subr.mxu0 0.0
    %4567 = vmatpush1.msra.mxu0 0.0
    %4568 = vmatprep.subr.mxu0 0.0
    %4569 = vmatpush1.msra.mxu0 0.0
    %4570 = vmatprep.subr.mxu0 0.0
    %4571 = vmatpush1.msra.mxu0 0.0
    %4572 = vmatprep.subr.mxu0 0.0
    %4573 = vmatpush1.msra.mxu0 0.0
    %4574 = vmatprep.subr.mxu0 0.0
    %4575 = vmatpush1.msra.mxu0 0.0
    %4576 = vmatprep.subr.mxu0 0.0
    %4577 = vmatpush1.msra.mxu0 0.0
    %4578 = vmatprep.subr.mxu0 0.0
    %4579 = vmatpush1.msra.mxu0 0.0
    %4580 = vmatprep.subr.mxu0 0.0
    %4581 = vmatpush1.msra.mxu0 0.0
    %4582 = vmatprep.subr.mxu0 0.0
    %4583 = vmatpush1.msra.mxu0 0.0
    %4584 = vmatprep.subr.mxu0 0.0
    %4585 = vmatpush1.msra.mxu0 0.0
    %4586 = vmatprep.subr.mxu0 0.0
    %4587 = vmatpush1.msra.mxu0 0.0
    %4588 = vmatprep.subr.mxu0 0.0
    %4589 = vmatpush1.msra.mxu0 0.0
    %4590 = vmatprep.subr.mxu0 0.0
    %4591 = vmatpush1.msra.mxu0 0.0
    %4592 = vmatprep.subr.mxu0 0.0
    %4593 = vmatpush1.msra.mxu0 0.0
    %4594 = vmatprep.subr.mxu0 0.0
    %4595 = vmatpush1.msra.mxu0 0.0
    %4596 = vmatprep.subr.mxu0 0.0
    %4597 = vmatpush1.msra.mxu0 0.0
    %4598 = vmatprep.subr.mxu0 0.0
    %4599 = vmatpush1.msra.mxu0 0.0
    %4600 = vmatprep.subr.mxu0 0.0
    %4601 = vmatpush1.msra.mxu0 0.0
    %4602 = vmatprep.subr.mxu0 0.0
    %4603 = vmatpush1.msra.mxu0 0.0
    %4604 = vmatprep.mubr.f32.mxu0 0.0
    %4605 = vmatmul.mubr.f32.gmra.mrb[0].mxu0 %v4535
    %v4606 = vpop.f32.mrb[0].mxu0
    %v4607 = vadd.f32 0.0, %v4606
    %v4608 = vpop.f32.mrb[0].mxu0
    %4609 = vmatprep.mubr.f32.mxu0 0.0
    %4610 = vmatmul.mubr.f32.gmra.mrb[0].mxu0 %v4538
    %v4611 = vpop.f32.mrb[0].mxu0
    %v4612 = vadd.f32 0.0, %v4611
    %v4613 = vpop.f32.mrb[0].mxu0
    %4614 = vdwg.mxu0
    %v4615 = vld [vmem:[%s7] sm:$0xff]
    %v4616 = vld [vmem:[%s7 + $0x8] sm:$0xff]
    %s4617 = scalar_lea.vmem %s6, 16
    %v4618 = vld [vmem:[%s4617] sm:$0xff]
    %v4619 = vld [vmem:[%s4617 + $0x8] sm:$0xff]
    %4620 = vmatprep.subr.mxu0 0.0
    %4621 = vmatpush1.msra.mxu0 %v4618
    %4622 = vmatprep.subr.mxu0 0.0
    %4623 = vmatpush1.msra.mxu0 %v4619
    %4624 = vmatprep.subr.mxu0 0.0
    %4625 = vmatpush1.msra.mxu0 0.0
    %4626 = vmatprep.subr.mxu0 0.0
    %4627 = vmatpush1.msra.mxu0 0.0
    %4628 = vmatprep.subr.mxu0 0.0
    %4629 = vmatpush1.msra.mxu0 0.0
    %4630 = vmatprep.subr.mxu0 0.0
    %4631 = vmatpush1.msra.mxu0 0.0
    %4632 = vmatprep.subr.mxu0 0.0
    %4633 = vmatpush1.msra.mxu0 0.0
    %4634 = vmatprep.subr.mxu0 0.0
    %4635 = vmatpush1.msra.mxu0 0.0
    %4636 = vmatprep.subr.mxu0 0.0
    %4637 = vmatpush1.msra.mxu0 0.0
    %4638 = vmatprep.subr.mxu0 0.0
    %4639 = vmatpush1.msra.mxu0 0.0
    %4640 = vmatprep.subr.mxu0 0.0
    %4641 = vmatpush1.msra.mxu0 0.0
    %4642 = vmatprep.subr.mxu0 0.0
    %4643 = vmatpush1.msra.mxu0 0.0
    %4644 = vmatprep.subr.mxu0 0.0
    %4645 = vmatpush1.msra.mxu0 0.0
    %4646 = vmatprep.subr.mxu0 0.0
    %4647 = vmatpush1.msra.mxu0 0.0
    %4648 = vmatprep.subr.mxu0 0.0
    %4649 = vmatpush1.msra.mxu0 0.0
    %4650 = vmatprep.subr.mxu0 0.0
    %4651 = vmatpush1.msra.mxu0 0.0
    %4652 = vmatprep.subr.mxu0 0.0
    %4653 = vmatpush1.msra.mxu0 0.0
    %4654 = vmatprep.subr.mxu0 0.0
    %4655 = vmatpush1.msra.mxu0 0.0
    %4656 = vmatprep.subr.mxu0 0.0
    %4657 = vmatpush1.msra.mxu0 0.0
    %4658 = vmatprep.subr.mxu0 0.0
    %4659 = vmatpush1.msra.mxu0 0.0
    %4660 = vmatprep.subr.mxu0 0.0
    %4661 = vmatpush1.msra.mxu0 0.0
    %4662 = vmatprep.subr.mxu0 0.0
    %4663 = vmatpush1.msra.mxu0 0.0
    %4664 = vmatprep.subr.mxu0 0.0
    %4665 = vmatpush1.msra.mxu0 0.0
    %4666 = vmatprep.subr.mxu0 0.0
    %4667 = vmatpush1.msra.mxu0 0.0
    %4668 = vmatprep.subr.mxu0 0.0
    %4669 = vmatpush1.msra.mxu0 0.0
    %4670 = vmatprep.subr.mxu0 0.0
    %4671 = vmatpush1.msra.mxu0 0.0
    %4672 = vmatprep.subr.mxu0 0.0
    %4673 = vmatpush1.msra.mxu0 0.0
    %4674 = vmatprep.subr.mxu0 0.0
    %4675 = vmatpush1.msra.mxu0 0.0
    %4676 = vmatprep.subr.mxu0 0.0
    %4677 = vmatpush1.msra.mxu0 0.0
    %4678 = vmatprep.subr.mxu0 0.0
    %4679 = vmatpush1.msra.mxu0 0.0
    %4680 = vmatprep.subr.mxu0 0.0
    %4681 = vmatpush1.msra.mxu0 0.0
    %4682 = vmatprep.subr.mxu0 0.0
    %4683 = vmatpush1.msra.mxu0 0.0
    %4684 = vmatprep.mubr.f32.mxu0 0.0
    %4685 = vmatmul.mubr.f32.gmra.mrb[0].mxu0 %v4535
    %v4686 = vpop.f32.mrb[0].mxu0
    %v4687 = vadd.f32 0.0, %v4686
    %v4688 = vpop.f32.mrb[0].mxu0
    %4689 = vmatprep.mubr.f32.mxu0 0.0
    %4690 = vmatmul.mubr.f32.gmra.mrb[0].mxu0 %v4538
    %v4691 = vpop.f32.mrb[0].mxu0
    %v4692 = vadd.f32 0.0, %v4691
    %v4693 = vpop.f32.mrb[0].mxu0
    %4694 = vdwg.mxu0
    %s4695 = scalar_lea.vmem %s7, 16
    %v4696 = vld [vmem:[%s4695] sm:$0xff]
    %v4697 = vld [vmem:[%s4695 + $0x8] sm:$0xff]
    %v4699 = vsel %vm4533, %v4696, 0
    %v4702 = vsel %vm4533, %v4697, 0
    %4704 = vmatprep.subr.mxu0 0.0
    %4705 = vmatpush1.msra.mxu0 %v4687
    %4706 = vmatprep.subr.mxu0 0.0
    %4707 = vmatpush1.msra.mxu0 %v4692
    %4708 = vmatprep.subr.mxu0 0.0
    %4709 = vmatpush1.msra.mxu0 0.0
    %4710 = vmatprep.subr.mxu0 0.0
    %4711 = vmatpush1.msra.mxu0 0.0
    %4712 = vmatprep.subr.mxu0 0.0
    %4713 = vmatpush1.msra.mxu0 0.0
    %4714 = vmatprep.subr.mxu0 0.0
    %4715 = vmatpush1.msra.mxu0 0.0
    %4716 = vmatprep.subr.mxu0 0.0
    %4717 = vmatpush1.msra.mxu0 0.0
    %4718 = vmatprep.subr.mxu0 0.0
    %4719 = vmatpush1.msra.mxu0 0.0
    %4720 = vmatprep.subr.mxu0 0.0
    %4721 = vmatpush1.msra.mxu0 0.0
    %4722 = vmatprep.subr.mxu0 0.0
    %4723 = vmatpush1.msra.mxu0 0.0
    %4724 = vmatprep.subr.mxu0 0.0
    %4725 = vmatpush1.msra.mxu0 0.0
    %4726 = vmatprep.subr.mxu0 0.0
    %4727 = vmatpush1.msra.mxu0 0.0
    %4728 = vmatprep.subr.mxu0 0.0
    %4729 = vmatpush1.msra.mxu0 0.0
    %4730 = vmatprep.subr.mxu0 0.0
    %4731 = vmatpush1.msra.mxu0 0.0
    %4732 = vmatprep.subr.mxu0 0.0
    %4733 = vmatpush1.msra.mxu0 0.0
    %4734 = vmatprep.subr.mxu0 0.0
    %4735 = vmatpush1.msra.mxu0 0.0
    %4736 = vmatprep.subr.mxu0 0.0
    %4737 = vmatpush1.msra.mxu0 0.0
    %4738 = vmatprep.subr.mxu0 0.0
    %4739 = vmatpush1.msra.mxu0 0.0
    %4740 = vmatprep.subr.mxu0 0.0
    %4741 = vmatpush1.msra.mxu0 0.0
    %4742 = vmatprep.subr.mxu0 0.0
    %4743 = vmatpush1.msra.mxu0 0.0
    %4744 = vmatprep.subr.mxu0 0.0
    %4745 = vmatpush1.msra.mxu0 0.0
    %4746 = vmatprep.subr.mxu0 0.0
    %4747 = vmatpush1.msra.mxu0 0.0
    %4748 = vmatprep.subr.mxu0 0.0
    %4749 = vmatpush1.msra.mxu0 0.0
    %4750 = vmatprep.subr.mxu0 0.0
    %4751 = vmatpush1.msra.mxu0 0.0
    %4752 = vmatprep.subr.mxu0 0.0
    %4753 = vmatpush1.msra.mxu0 0.0
    %4754 = vmatprep.subr.mxu0 0.0
    %4755 = vmatpush1.msra.mxu0 0.0
    %4756 = vmatprep.subr.mxu0 0.0
    %4757 = vmatpush1.msra.mxu0 0.0
    %4758 = vmatprep.subr.mxu0 0.0
    %4759 = vmatpush1.msra.mxu0 0.0
    %4760 = vmatprep.subr.mxu0 0.0
    %4761 = vmatpush1.msra.mxu0 0.0
    %4762 = vmatprep.subr.mxu0 0.0
    %4763 = vmatpush1.msra.mxu0 0.0
    %4764 = vmatprep.subr.mxu0 0.0
    %4765 = vmatpush1.msra.mxu0 0.0
    %4766 = vmatprep.subr.mxu0 0.0
    %4767 = vmatpush1.msra.mxu0 0.0
    %4768 = vmatprep.mubr.f32.mxu0 0.0
    %4769 = vmatmul.mubr.f32.gmra.mrb[0].mxu0 %v4699
    %v4770 = vpop.f32.mrb[0].mxu0
    %v4771 = vadd.f32 0.0, %v4770
    %v4772 = vpop.f32.mrb[0].mxu0
    %4773 = vmatprep.mubr.f32.mxu0 0.0
    %4774 = vmatmul.mubr.f32.gmra.mrb[0].mxu0 %v4702
    %v4775 = vpop.f32.mrb[0].mxu0
    %v4776 = vadd.f32 0.0, %v4775
    %v4777 = vpop.f32.mrb[0].mxu0
    %4778 = vdwg.mxu0
    %v4780 = vsel %vm4533, %v4615, 0
    %v4783 = vsel %vm4533, %v4616, 0
    %4785 = vmatprep.subr.mxu0 0.0
    %4786 = vmatpush1.msra.mxu0 %v4607
    %4787 = vmatprep.subr.mxu0 0.0
    %4788 = vmatpush1.msra.mxu0 %v4612
    %4789 = vmatprep.subr.mxu0 0.0
    %4790 = vmatpush1.msra.mxu0 0.0
    %4791 = vmatprep.subr.mxu0 0.0
    %4792 = vmatpush1.msra.mxu0 0.0
    %4793 = vmatprep.subr.mxu0 0.0
    %4794 = vmatpush1.msra.mxu0 0.0
    %4795 = vmatprep.subr.mxu0 0.0
    %4796 = vmatpush1.msra.mxu0 0.0
    %4797 = vmatprep.subr.mxu0 0.0
    %4798 = vmatpush1.msra.mxu0 0.0
    %4799 = vmatprep.subr.mxu0 0.0
    %4800 = vmatpush1.msra.mxu0 0.0
    %4801 = vmatprep.subr.mxu0 0.0
    %4802 = vmatpush1.msra.mxu0 0.0
    %4803 = vmatprep.subr.mxu0 0.0
    %4804 = vmatpush1.msra.mxu0 0.0
    %4805 = vmatprep.subr.mxu0 0.0
    %4806 = vmatpush1.msra.mxu0 0.0
    %4807 = vmatprep.subr.mxu0 0.0
    %4808 = vmatpush1.msra.mxu0 0.0
    %4809 = vmatprep.subr.mxu0 0.0
    %4810 = vmatpush1.msra.mxu0 0.0
    %4811 = vmatprep.subr.mxu0 0.0
    %4812 = vmatpush1.msra.mxu0 0.0
    %4813 = vmatprep.subr.mxu0 0.0
    %4814 = vmatpush1.msra.mxu0 0.0
    %4815 = vmatprep.subr.mxu0 0.0
    %4816 = vmatpush1.msra.mxu0 0.0
    %4817 = vmatprep.subr.mxu0 0.0
    %4818 = vmatpush1.msra.mxu0 0.0
    %4819 = vmatprep.subr.mxu0 0.0
    %4820 = vmatpush1.msra.mxu0 0.0
    %4821 = vmatprep.subr.mxu0 0.0
    %4822 = vmatpush1.msra.mxu0 0.0
    %4823 = vmatprep.subr.mxu0 0.0
    %4824 = vmatpush1.msra.mxu0 0.0
    %4825 = vmatprep.subr.mxu0 0.0
    %4826 = vmatpush1.msra.mxu0 0.0
    %4827 = vmatprep.subr.mxu0 0.0
    %4828 = vmatpush1.msra.mxu0 0.0
    %4829 = vmatprep.subr.mxu0 0.0
    %4830 = vmatpush1.msra.mxu0 0.0
    %4831 = vmatprep.subr.mxu0 0.0
    %4832 = vmatpush1.msra.mxu0 0.0
    %4833 = vmatprep.subr.mxu0 0.0
    %4834 = vmatpush1.msra.mxu0 0.0
    %4835 = vmatprep.subr.mxu0 0.0
    %4836 = vmatpush1.msra.mxu0 0.0
    %4837 = vmatprep.subr.mxu0 0.0
    %4838 = vmatpush1.msra.mxu0 0.0
    %4839 = vmatprep.subr.mxu0 0.0
    %4840 = vmatpush1.msra.mxu0 0.0
    %4841 = vmatprep.subr.mxu0 0.0
    %4842 = vmatpush1.msra.mxu0 0.0
    %4843 = vmatprep.subr.mxu0 0.0
    %4844 = vmatpush1.msra.mxu0 0.0
    %4845 = vmatprep.subr.mxu0 0.0
    %4846 = vmatpush1.msra.mxu0 0.0
    %4847 = vmatprep.subr.mxu0 0.0
    %4848 = vmatpush1.msra.mxu0 0.0
    %4849 = vmatprep.mubr.f32.mxu0 0.0
    %4850 = vmatmul.mubr.f32.gmra.mrb[0].mxu0 %v4780
    %v4851 = vpop.f32.mrb[0].mxu0
    %v4852 = vadd.f32 %v4771, %v4851
    %v4853 = vpop.f32.mrb[0].mxu0
    %4854 = vmatprep.mubr.f32.mxu0 0.0
    %4855 = vmatmul.mubr.f32.gmra.mrb[0].mxu0 %v4783
    %v4856 = vpop.f32.mrb[0].mxu0
    %v4857 = vadd.f32 %v4776, %v4856
    %v4858 = vpop.f32.mrb[0].mxu0
    %4859 = vdwg.mxu0
    %s4860 = scalar_lea.vmem %s6, 32
    %v4861 = vld [vmem:[%s4860] sm:$0xff]
    %v4862 = vld [vmem:[%s4860 + $0x8] sm:$0xff]
    %4863 = vmatprep.subr.mxu0 0.0
    %4864 = vmatpush1.msra.mxu0 %v4861
    %4865 = vmatprep.subr.mxu0 0.0
    %4866 = vmatpush1.msra.mxu0 %v4862
    %4867 = vmatprep.subr.mxu0 0.0
    %4868 = vmatpush1.msra.mxu0 0.0
    %4869 = vmatprep.subr.mxu0 0.0
    %4870 = vmatpush1.msra.mxu0 0.0
    %4871 = vmatprep.subr.mxu0 0.0
    %4872 = vmatpush1.msra.mxu0 0.0
    %4873 = vmatprep.subr.mxu0 0.0
    %4874 = vmatpush1.msra.mxu0 0.0
    %4875 = vmatprep.subr.mxu0 0.0
    %4876 = vmatpush1.msra.mxu0 0.0
    %4877 = vmatprep.subr.mxu0 0.0
    %4878 = vmatpush1.msra.mxu0 0.0
    %4879 = vmatprep.subr.mxu0 0.0
    %4880 = vmatpush1.msra.mxu0 0.0
    %4881 = vmatprep.subr.mxu0 0.0
    %4882 = vmatpush1.msra.mxu0 0.0
    %4883 = vmatprep.subr.mxu0 0.0
    %4884 = vmatpush1.msra.mxu0 0.0
    %4885 = vmatprep.subr.mxu0 0.0
    %4886 = vmatpush1.msra.mxu0 0.0
    %4887 = vmatprep.subr.mxu0 0.0
    %4888 = vmatpush1.msra.mxu0 0.0
    %4889 = vmatprep.subr.mxu0 0.0
    %4890 = vmatpush1.msra.mxu0 0.0
    %4891 = vmatprep.subr.mxu0 0.0
    %4892 = vmatpush1.msra.mxu0 0.0
    %4893 = vmatprep.subr.mxu0 0.0
    %4894 = vmatpush1.msra.mxu0 0.0
    %4895 = vmatprep.subr.mxu0 0.0
    %4896 = vmatpush1.msra.mxu0 0.0
    %4897 = vmatprep.subr.mxu0 0.0
    %4898 = vmatpush1.msra.mxu0 0.0
    %4899 = vmatprep.subr.mxu0 0.0
    %4900 = vmatpush1.msra.mxu0 0.0
    %4901 = vmatprep.subr.mxu0 0.0
    %4902 = vmatpush1.msra.mxu0 0.0
    %4903 = vmatprep.subr.mxu0 0.0
    %4904 = vmatpush1.msra.mxu0 0.0
    %4905 = vmatprep.subr.mxu0 0.0
    %4906 = vmatpush1.msra.mxu0 0.0
    %4907 = vmatprep.subr.mxu0 0.0
    %4908 = vmatpush1.msra.mxu0 0.0
    %4909 = vmatprep.subr.mxu0 0.0
    %4910 = vmatpush1.msra.mxu0 0.0
    %4911 = vmatprep.subr.mxu0 0.0
    %4912 = vmatpush1.msra.mxu0 0.0
    %4913 = vmatprep.subr.mxu0 0.0
    %4914 = vmatpush1.msra.mxu0 0.0
    %4915 = vmatprep.subr.mxu0 0.0
    %4916 = vmatpush1.msra.mxu0 0.0
    %4917 = vmatprep.subr.mxu0 0.0
    %4918 = vmatpush1.msra.mxu0 0.0
    %4919 = vmatprep.subr.mxu0 0.0
    %4920 = vmatpush1.msra.mxu0 0.0
    %4921 = vmatprep.subr.mxu0 0.0
    %4922 = vmatpush1.msra.mxu0 0.0
    %4923 = vmatprep.subr.mxu0 0.0
    %4924 = vmatpush1.msra.mxu0 0.0
    %4925 = vmatprep.subr.mxu0 0.0
    %4926 = vmatpush1.msra.mxu0 0.0
    %4927 = vmatprep.mubr.f32.mxu0 0.0
    %4928 = vmatmul.mubr.f32.gmra.mrb[0].mxu0 %v4535
    %v4929 = vpop.f32.mrb[0].mxu0
    %v4930 = vadd.f32 0.0, %v4929
    %v4931 = vpop.f32.mrb[0].mxu0
    %4932 = vmatprep.mubr.f32.mxu0 0.0
    %4933 = vmatmul.mubr.f32.gmra.mrb[0].mxu0 %v4538
    %v4934 = vpop.f32.mrb[0].mxu0
    %v4935 = vadd.f32 0.0, %v4934
    %v4936 = vpop.f32.mrb[0].mxu0
    %4937 = vdwg.mxu0
    %s4938 = scalar_lea.vmem %s7, 32
    %v4939 = vld [vmem:[%s4938] sm:$0xff]
    %v4940 = vld [vmem:[%s4938 + $0x8] sm:$0xff]
    %v4942 = vsel %vm4533, %v4939, 0
    %v4945 = vsel %vm4533, %v4940, 0
    %4947 = vmatprep.subr.mxu0 0.0
    %4948 = vmatpush1.msra.mxu0 %v4930
    %4949 = vmatprep.subr.mxu0 0.0
    %4950 = vmatpush1.msra.mxu0 %v4935
    %4951 = vmatprep.subr.mxu0 0.0
    %4952 = vmatpush1.msra.mxu0 0.0
    %4953 = vmatprep.subr.mxu0 0.0
    %4954 = vmatpush1.msra.mxu0 0.0
    %4955 = vmatprep.subr.mxu0 0.0
    %4956 = vmatpush1.msra.mxu0 0.0
    %4957 = vmatprep.subr.mxu0 0.0
    %4958 = vmatpush1.msra.mxu0 0.0
    %4959 = vmatprep.subr.mxu0 0.0
    %4960 = vmatpush1.msra.mxu0 0.0
    %4961 = vmatprep.subr.mxu0 0.0
    %4962 = vmatpush1.msra.mxu0 0.0
    %4963 = vmatprep.subr.mxu0 0.0
    %4964 = vmatpush1.msra.mxu0 0.0
    %4965 = vmatprep.subr.mxu0 0.0
    %4966 = vmatpush1.msra.mxu0 0.0
    %4967 = vmatprep.subr.mxu0 0.0
    %4968 = vmatpush1.msra.mxu0 0.0
    %4969 = vmatprep.subr.mxu0 0.0
    %4970 = vmatpush1.msra.mxu0 0.0
    %4971 = vmatprep.subr.mxu0 0.0
    %4972 = vmatpush1.msra.mxu0 0.0
    %4973 = vmatprep.subr.mxu0 0.0
    %4974 = vmatpush1.msra.mxu0 0.0
    %4975 = vmatprep.subr.mxu0 0.0
    %4976 = vmatpush1.msra.mxu0 0.0
    %4977 = vmatprep.subr.mxu0 0.0
    %4978 = vmatpush1.msra.mxu0 0.0
    %4979 = vmatprep.subr.mxu0 0.0
    %4980 = vmatpush1.msra.mxu0 0.0
    %4981 = vmatprep.subr.mxu0 0.0
    %4982 = vmatpush1.msra.mxu0 0.0
    %4983 = vmatprep.subr.mxu0 0.0
    %4984 = vmatpush1.msra.mxu0 0.0
    %4985 = vmatprep.subr.mxu0 0.0
    %4986 = vmatpush1.msra.mxu0 0.0
    %4987 = vmatprep.subr.mxu0 0.0
    %4988 = vmatpush1.msra.mxu0 0.0
    %4989 = vmatprep.subr.mxu0 0.0
    %4990 = vmatpush1.msra.mxu0 0.0
    %4991 = vmatprep.subr.mxu0 0.0
    %4992 = vmatpush1.msra.mxu0 0.0
    %4993 = vmatprep.subr.mxu0 0.0
    %4994 = vmatpush1.msra.mxu0 0.0
    %4995 = vmatprep.subr.mxu0 0.0
    %4996 = vmatpush1.msra.mxu0 0.0
    %4997 = vmatprep.subr.mxu0 0.0
    %4998 = vmatpush1.msra.mxu0 0.0
    %4999 = vmatprep.subr.mxu0 0.0
    %5000 = vmatpush1.msra.mxu0 0.0
    %5001 = vmatprep.subr.mxu0 0.0
    %5002 = vmatpush1.msra.mxu0 0.0
    %5003 = vmatprep.subr.mxu0 0.0
    %5004 = vmatpush1.msra.mxu0 0.0
    %5005 = vmatprep.subr.mxu0 0.0
    %5006 = vmatpush1.msra.mxu0 0.0
    %5007 = vmatprep.subr.mxu0 0.0
    %5008 = vmatpush1.msra.mxu0 0.0
    %5009 = vmatprep.subr.mxu0 0.0
    %5010 = vmatpush1.msra.mxu0 0.0
    %5011 = vmatprep.mubr.f32.mxu0 0.0
    %5012 = vmatmul.mubr.f32.gmra.mrb[0].mxu0 %v4942
    %v5013 = vpop.f32.mrb[0].mxu0
    %v5014 = vadd.f32 0.0, %v5013
    %v5015 = vpop.f32.mrb[0].mxu0
    %5016 = vmatprep.mubr.f32.mxu0 0.0
    %5017 = vmatmul.mubr.f32.gmra.mrb[0].mxu0 %v4945
    %v5018 = vpop.f32.mrb[0].mxu0
    %v5019 = vadd.f32 0.0, %v5018
    %v5020 = vpop.f32.mrb[0].mxu0
    %5021 = vdwg.mxu0
    %v5022 = vadd.f32 %v4852, %v5014
    %v5023 = vadd.f32 %v4857, %v5019
    %s5024 = scalar_lea.vmem %s6, 48
    %v5025 = vld [vmem:[%s5024] sm:$0xff]
    %v5026 = vld [vmem:[%s5024 + $0x8] sm:$0xff]
    %5027 = vmatprep.subr.mxu0 0.0
    %5028 = vmatpush1.msra.mxu0 %v5025
    %5029 = vmatprep.subr.mxu0 0.0
    %5030 = vmatpush1.msra.mxu0 %v5026
    %5031 = vmatprep.subr.mxu0 0.0
    %5032 = vmatpush1.msra.mxu0 0.0
    %5033 = vmatprep.subr.mxu0 0.0
    %5034 = vmatpush1.msra.mxu0 0.0
    %5035 = vmatprep.subr.mxu0 0.0
    %5036 = vmatpush1.msra.mxu0 0.0
    %5037 = vmatprep.subr.mxu0 0.0
    %5038 = vmatpush1.msra.mxu0 0.0
    %5039 = vmatprep.subr.mxu0 0.0
    %5040 = vmatpush1.msra.mxu0 0.0
    %5041 = vmatprep.subr.mxu0 0.0
    %5042 = vmatpush1.msra.mxu0 0.0
    %5043 = vmatprep.subr.mxu0 0.0
    %5044 = vmatpush1.msra.mxu0 0.0
    %5045 = vmatprep.subr.mxu0 0.0
    %5046 = vmatpush1.msra.mxu0 0.0
    %5047 = vmatprep.subr.mxu0 0.0
    %5048 = vmatpush1.msra.mxu0 0.0
    %5049 = vmatprep.subr.mxu0 0.0
    %5050 = vmatpush1.msra.mxu0 0.0
    %5051 = vmatprep.subr.mxu0 0.0
    %5052 = vmatpush1.msra.mxu0 0.0
    %5053 = vmatprep.subr.mxu0 0.0
    %5054 = vmatpush1.msra.mxu0 0.0
    %5055 = vmatprep.subr.mxu0 0.0
    %5056 = vmatpush1.msra.mxu0 0.0
    %5057 = vmatprep.subr.mxu0 0.0
    %5058 = vmatpush1.msra.mxu0 0.0
    %5059 = vmatprep.subr.mxu0 0.0
    %5060 = vmatpush1.msra.mxu0 0.0
    %5061 = vmatprep.subr.mxu0 0.0
    %5062 = vmatpush1.msra.mxu0 0.0
    %5063 = vmatprep.subr.mxu0 0.0
    %5064 = vmatpush1.msra.mxu0 0.0
    %5065 = vmatprep.subr.mxu0 0.0
    %5066 = vmatpush1.msra.mxu0 0.0
    %5067 = vmatprep.subr.mxu0 0.0
    %5068 = vmatpush1.msra.mxu0 0.0
    %5069 = vmatprep.subr.mxu0 0.0
    %5070 = vmatpush1.msra.mxu0 0.0
    %5071 = vmatprep.subr.mxu0 0.0
    %5072 = vmatpush1.msra.mxu0 0.0
    %5073 = vmatprep.subr.mxu0 0.0
    %5074 = vmatpush1.msra.mxu0 0.0
    %5075 = vmatprep.subr.mxu0 0.0
    %5076 = vmatpush1.msra.mxu0 0.0
    %5077 = vmatprep.subr.mxu0 0.0
    %5078 = vmatpush1.msra.mxu0 0.0
    %5079 = vmatprep.subr.mxu0 0.0
    %5080 = vmatpush1.msra.mxu0 0.0
    %5081 = vmatprep.subr.mxu0 0.0
    %5082 = vmatpush1.msra.mxu0 0.0
    %5083 = vmatprep.subr.mxu0 0.0
    %5084 = vmatpush1.msra.mxu0 0.0
    %5085 = vmatprep.subr.mxu0 0.0
    %5086 = vmatpush1.msra.mxu0 0.0
    %5087 = vmatprep.subr.mxu0 0.0
    %5088 = vmatpush1.msra.mxu0 0.0
    %5089 = vmatprep.subr.mxu0 0.0
    %5090 = vmatpush1.msra.mxu0 0.0
    %5091 = vmatprep.mubr.f32.mxu0 0.0
    %5092 = vmatmul.mubr.f32.gmra.mrb[0].mxu0 %v4535
    %v5093 = vpop.f32.mrb[0].mxu0
    %v5094 = vadd.f32 0.0, %v5093
    %v5095 = vpop.f32.mrb[0].mxu0
    %5096 = vmatprep.mubr.f32.mxu0 0.0
    %5097 = vmatmul.mubr.f32.gmra.mrb[0].mxu0 %v4538
    %v5098 = vpop.f32.mrb[0].mxu0
    %v5099 = vadd.f32 0.0, %v5098
    %v5100 = vpop.f32.mrb[0].mxu0
    %5101 = vdwg.mxu0
    %s5102 = scalar_lea.vmem %s7, 48
    %v5103 = vld [vmem:[%s5102] sm:$0xff]
    %v5104 = vld [vmem:[%s5102 + $0x8] sm:$0xff]
    %v5106 = vsel %vm4533, %v5103, 0
    %v5109 = vsel %vm4533, %v5104, 0
    %5111 = vmatprep.subr.mxu0 0.0
    %5112 = vmatpush1.msra.mxu0 %v5094
    %5113 = vmatprep.subr.mxu0 0.0
    %5114 = vmatpush1.msra.mxu0 %v5099
    %5115 = vmatprep.subr.mxu0 0.0
    %5116 = vmatpush1.msra.mxu0 0.0
    %5117 = vmatprep.subr.mxu0 0.0
    %5118 = vmatpush1.msra.mxu0 0.0
    %5119 = vmatprep.subr.mxu0 0.0
    %5120 = vmatpush1.msra.mxu0 0.0
    %5121 = vmatprep.subr.mxu0 0.0
    %5122 = vmatpush1.msra.mxu0 0.0
    %5123 = vmatprep.subr.mxu0 0.0
    %5124 = vmatpush1.msra.mxu0 0.0
    %5125 = vmatprep.subr.mxu0 0.0
    %5126 = vmatpush1.msra.mxu0 0.0
    %5127 = vmatprep.subr.mxu0 0.0
    %5128 = vmatpush1.msra.mxu0 0.0
    %5129 = vmatprep.subr.mxu0 0.0
    %5130 = vmatpush1.msra.mxu0 0.0
    %5131 = vmatprep.subr.mxu0 0.0
    %5132 = vmatpush1.msra.mxu0 0.0
    %5133 = vmatprep.subr.mxu0 0.0
    %5134 = vmatpush1.msra.mxu0 0.0
    %5135 = vmatprep.subr.mxu0 0.0
    %5136 = vmatpush1.msra.mxu0 0.0
    %5137 = vmatprep.subr.mxu0 0.0
    %5138 = vmatpush1.msra.mxu0 0.0
    %5139 = vmatprep.subr.mxu0 0.0
    %5140 = vmatpush1.msra.mxu0 0.0
    %5141 = vmatprep.subr.mxu0 0.0
    %5142 = vmatpush1.msra.mxu0 0.0
    %5143 = vmatprep.subr.mxu0 0.0
    %5144 = vmatpush1.msra.mxu0 0.0
    %5145 = vmatprep.subr.mxu0 0.0
    %5146 = vmatpush1.msra.mxu0 0.0
    %5147 = vmatprep.subr.mxu0 0.0
    %5148 = vmatpush1.msra.mxu0 0.0
    %5149 = vmatprep.subr.mxu0 0.0
    %5150 = vmatpush1.msra.mxu0 0.0
    %5151 = vmatprep.subr.mxu0 0.0
    %5152 = vmatpush1.msra.mxu0 0.0
    %5153 = vmatprep.subr.mxu0 0.0
    %5154 = vmatpush1.msra.mxu0 0.0
    %5155 = vmatprep.subr.mxu0 0.0
    %5156 = vmatpush1.msra.mxu0 0.0
    %5157 = vmatprep.subr.mxu0 0.0
    %5158 = vmatpush1.msra.mxu0 0.0
    %5159 = vmatprep.subr.mxu0 0.0
    %5160 = vmatpush1.msra.mxu0 0.0
    %5161 = vmatprep.subr.mxu0 0.0
    %5162 = vmatpush1.msra.mxu0 0.0
    %5163 = vmatprep.subr.mxu0 0.0
    %5164 = vmatpush1.msra.mxu0 0.0
    %5165 = vmatprep.subr.mxu0 0.0
    %5166 = vmatpush1.msra.mxu0 0.0
    %5167 = vmatprep.subr.mxu0 0.0
    %5168 = vmatpush1.msra.mxu0 0.0
    %5169 = vmatprep.subr.mxu0 0.0
    %5170 = vmatpush1.msra.mxu0 0.0
    %5171 = vmatprep.subr.mxu0 0.0
    %5172 = vmatpush1.msra.mxu0 0.0
    %5173 = vmatprep.subr.mxu0 0.0
    %5174 = vmatpush1.msra.mxu0 0.0
    %5175 = vmatprep.mubr.f32.mxu0 0.0
    %5176 = vmatmul.mubr.f32.gmra.mrb[0].mxu0 %v5106
    %v5177 = vpop.f32.mrb[0].mxu0
    %v5178 = vadd.f32 0.0, %v5177
    %v5179 = vpop.f32.mrb[0].mxu0
    %5180 = vmatprep.mubr.f32.mxu0 0.0
    %5181 = vmatmul.mubr.f32.gmra.mrb[0].mxu0 %v5109
    %v5182 = vpop.f32.mrb[0].mxu0
    %v5183 = vadd.f32 0.0, %v5182
    %v5184 = vpop.f32.mrb[0].mxu0
    %5185 = vdwg.mxu0
    %v5186 = vadd.f32 %v5022, %v5178
    %v5187 = vadd.f32 %v5023, %v5183
    %s5188 = scalar_lea.vmem %s6, 64
    %v5189 = vld [vmem:[%s5188] sm:$0xff]
    %v5190 = vld [vmem:[%s5188 + $0x8] sm:$0xff]
    %5191 = vmatprep.subr.mxu0 0.0
    %5192 = vmatpush1.msra.mxu0 %v5189
    %5193 = vmatprep.subr.mxu0 0.0
    %5194 = vmatpush1.msra.mxu0 %v5190
    %5195 = vmatprep.subr.mxu0 0.0
    %5196 = vmatpush1.msra.mxu0 0.0
    %5197 = vmatprep.subr.mxu0 0.0
    %5198 = vmatpush1.msra.mxu0 0.0
    %5199 = vmatprep.subr.mxu0 0.0
    %5200 = vmatpush1.msra.mxu0 0.0
    %5201 = vmatprep.subr.mxu0 0.0
    %5202 = vmatpush1.msra.mxu0 0.0
    %5203 = vmatprep.subr.mxu0 0.0
    %5204 = vmatpush1.msra.mxu0 0.0
    %5205 = vmatprep.subr.mxu0 0.0
    %5206 = vmatpush1.msra.mxu0 0.0
    %5207 = vmatprep.subr.mxu0 0.0
    %5208 = vmatpush1.msra.mxu0 0.0
    %5209 = vmatprep.subr.mxu0 0.0
    %5210 = vmatpush1.msra.mxu0 0.0
    %5211 = vmatprep.subr.mxu0 0.0
    %5212 = vmatpush1.msra.mxu0 0.0
    %5213 = vmatprep.subr.mxu0 0.0
    %5214 = vmatpush1.msra.mxu0 0.0
    %5215 = vmatprep.subr.mxu0 0.0
    %5216 = vmatpush1.msra.mxu0 0.0
    %5217 = vmatprep.subr.mxu0 0.0
    %5218 = vmatpush1.msra.mxu0 0.0
    %5219 = vmatprep.subr.mxu0 0.0
    %5220 = vmatpush1.msra.mxu0 0.0
    %5221 = vmatprep.subr.mxu0 0.0
    %5222 = vmatpush1.msra.mxu0 0.0
    %5223 = vmatprep.subr.mxu0 0.0
    %5224 = vmatpush1.msra.mxu0 0.0
    %5225 = vmatprep.subr.mxu0 0.0
    %5226 = vmatpush1.msra.mxu0 0.0
    %5227 = vmatprep.subr.mxu0 0.0
    %5228 = vmatpush1.msra.mxu0 0.0
    %5229 = vmatprep.subr.mxu0 0.0
    %5230 = vmatpush1.msra.mxu0 0.0
    %5231 = vmatprep.subr.mxu0 0.0
    %5232 = vmatpush1.msra.mxu0 0.0
    %5233 = vmatprep.subr.mxu0 0.0
    %5234 = vmatpush1.msra.mxu0 0.0
    %5235 = vmatprep.subr.mxu0 0.0
    %5236 = vmatpush1.msra.mxu0 0.0
    %5237 = vmatprep.subr.mxu0 0.0
    %5238 = vmatpush1.msra.mxu0 0.0
    %5239 = vmatprep.subr.mxu0 0.0
    %5240 = vmatpush1.msra.mxu0 0.0
    %5241 = vmatprep.subr.mxu0 0.0
    %5242 = vmatpush1.msra.mxu0 0.0
    %5243 = vmatprep.subr.mxu0 0.0
    %5244 = vmatpush1.msra.mxu0 0.0
    %5245 = vmatprep.subr.mxu0 0.0
    %5246 = vmatpush1.msra.mxu0 0.0
    %5247 = vmatprep.subr.mxu0 0.0
    %5248 = vmatpush1.msra.mxu0 0.0
    %5249 = vmatprep.subr.mxu0 0.0
    %5250 = vmatpush1.msra.mxu0 0.0
    %5251 = vmatprep.subr.mxu0 0.0
    %5252 = vmatpush1.msra.mxu0 0.0
    %5253 = vmatprep.subr.mxu0 0.0
    %5254 = vmatpush1.msra.mxu0 0.0
    %5255 = vmatprep.mubr.f32.mxu0 0.0
    %5256 = vmatmul.mubr.f32.gmra.mrb[0].mxu0 %v4535
    %v5257 = vpop.f32.mrb[0].mxu0
    %v5258 = vadd.f32 0.0, %v5257
    %v5259 = vpop.f32.mrb[0].mxu0
    %5260 = vmatprep.mubr.f32.mxu0 0.0
    %5261 = vmatmul.mubr.f32.gmra.mrb[0].mxu0 %v4538
    %v5262 = vpop.f32.mrb[0].mxu0
    %v5263 = vadd.f32 0.0, %v5262
    %v5264 = vpop.f32.mrb[0].mxu0
    %5265 = vdwg.mxu0
    %s5266 = scalar_lea.vmem %s7, 64
    %v5267 = vld [vmem:[%s5266] sm:$0xff]
    %v5268 = vld [vmem:[%s5266 + $0x8] sm:$0xff]
    %v5270 = vsel %vm4533, %v5267, 0
    %v5273 = vsel %vm4533, %v5268, 0
    %5275 = vmatprep.subr.mxu0 0.0
    %5276 = vmatpush1.msra.mxu0 %v5258
    %5277 = vmatprep.subr.mxu0 0.0
    %5278 = vmatpush1.msra.mxu0 %v5263
    %5279 = vmatprep.subr.mxu0 0.0
    %5280 = vmatpush1.msra.mxu0 0.0
    %5281 = vmatprep.subr.mxu0 0.0
    %5282 = vmatpush1.msra.mxu0 0.0
    %5283 = vmatprep.subr.mxu0 0.0
    %5284 = vmatpush1.msra.mxu0 0.0
    %5285 = vmatprep.subr.mxu0 0.0
    %5286 = vmatpush1.msra.mxu0 0.0
    %5287 = vmatprep.subr.mxu0 0.0
    %5288 = vmatpush1.msra.mxu0 0.0
    %5289 = vmatprep.subr.mxu0 0.0
    %5290 = vmatpush1.msra.mxu0 0.0
    %5291 = vmatprep.subr.mxu0 0.0
    %5292 = vmatpush1.msra.mxu0 0.0
    %5293 = vmatprep.subr.mxu0 0.0
    %5294 = vmatpush1.msra.mxu0 0.0
    %5295 = vmatprep.subr.mxu0 0.0
    %5296 = vmatpush1.msra.mxu0 0.0
    %5297 = vmatprep.subr.mxu0 0.0
    %5298 = vmatpush1.msra.mxu0 0.0
    %5299 = vmatprep.subr.mxu0 0.0
    %5300 = vmatpush1.msra.mxu0 0.0
    %5301 = vmatprep.subr.mxu0 0.0
    %5302 = vmatpush1.msra.mxu0 0.0
    %5303 = vmatprep.subr.mxu0 0.0
    %5304 = vmatpush1.msra.mxu0 0.0
    %5305 = vmatprep.subr.mxu0 0.0
    %5306 = vmatpush1.msra.mxu0 0.0
    %5307 = vmatprep.subr.mxu0 0.0
    %5308 = vmatpush1.msra.mxu0 0.0
    %5309 = vmatprep.subr.mxu0 0.0
    %5310 = vmatpush1.msra.mxu0 0.0
    %5311 = vmatprep.subr.mxu0 0.0
    %5312 = vmatpush1.msra.mxu0 0.0
    %5313 = vmatprep.subr.mxu0 0.0
    %5314 = vmatpush1.msra.mxu0 0.0
    %5315 = vmatprep.subr.mxu0 0.0
    %5316 = vmatpush1.msra.mxu0 0.0
    %5317 = vmatprep.subr.mxu0 0.0
    %5318 = vmatpush1.msra.mxu0 0.0
    %5319 = vmatprep.subr.mxu0 0.0
    %5320 = vmatpush1.msra.mxu0 0.0
    %5321 = vmatprep.subr.mxu0 0.0
    %5322 = vmatpush1.msra.mxu0 0.0
    %5323 = vmatprep.subr.mxu0 0.0
    %5324 = vmatpush1.msra.mxu0 0.0
    %5325 = vmatprep.subr.mxu0 0.0
    %5326 = vmatpush1.msra.mxu0 0.0
    %5327 = vmatprep.subr.mxu0 0.0
    %5328 = vmatpush1.msra.mxu0 0.0
    %5329 = vmatprep.subr.mxu0 0.0
    %5330 = vmatpush1.msra.mxu0 0.0
    %5331 = vmatprep.subr.mxu0 0.0
    %5332 = vmatpush1.msra.mxu0 0.0
    %5333 = vmatprep.subr.mxu0 0.0
    %5334 = vmatpush1.msra.mxu0 0.0
    %5335 = vmatprep.subr.mxu0 0.0
    %5336 = vmatpush1.msra.mxu0 0.0
    %5337 = vmatprep.subr.mxu0 0.0
    %5338 = vmatpush1.msra.mxu0 0.0
    %5339 = vmatprep.mubr.f32.mxu0 0.0
    %5340 = vmatmul.mubr.f32.gmra.mrb[0].mxu0 %v5270
    %v5341 = vpop.f32.mrb[0].mxu0
    %v5342 = vadd.f32 0.0, %v5341
    %v5343 = vpop.f32.mrb[0].mxu0
    %5344 = vmatprep.mubr.f32.mxu0 0.0
    %5345 = vmatmul.mubr.f32.gmra.mrb[0].mxu0 %v5273
    %v5346 = vpop.f32.mrb[0].mxu0
    %v5347 = vadd.f32 0.0, %v5346
    %v5348 = vpop.f32.mrb[0].mxu0
    %5349 = vdwg.mxu0
    %v5350 = vadd.f32 %v5186, %v5342
    %v5351 = vadd.f32 %v5187, %v5347
    %s5352 = scalar_lea.vmem %s6, 80
    %v5353 = vld [vmem:[%s5352] sm:$0xff]
    %v5354 = vld [vmem:[%s5352 + $0x8] sm:$0xff]
    %5355 = vmatprep.subr.mxu0 0.0
    %5356 = vmatpush1.msra.mxu0 %v5353
    %5357 = vmatprep.subr.mxu0 0.0
    %5358 = vmatpush1.msra.mxu0 %v5354
    %5359 = vmatprep.subr.mxu0 0.0
    %5360 = vmatpush1.msra.mxu0 0.0
    %5361 = vmatprep.subr.mxu0 0.0
    %5362 = vmatpush1.msra.mxu0 0.0
    %5363 = vmatprep.subr.mxu0 0.0
    %5364 = vmatpush1.msra.mxu0 0.0
    %5365 = vmatprep.subr.mxu0 0.0
    %5366 = vmatpush1.msra.mxu0 0.0
    %5367 = vmatprep.subr.mxu0 0.0
    %5368 = vmatpush1.msra.mxu0 0.0
    %5369 = vmatprep.subr.mxu0 0.0
    %5370 = vmatpush1.msra.mxu0 0.0
    %5371 = vmatprep.subr.mxu0 0.0
    %5372 = vmatpush1.msra.mxu0 0.0
    %5373 = vmatprep.subr.mxu0 0.0
    %5374 = vmatpush1.msra.mxu0 0.0
    %5375 = vmatprep.subr.mxu0 0.0
    %5376 = vmatpush1.msra.mxu0 0.0
    %5377 = vmatprep.subr.mxu0 0.0
    %5378 = vmatpush1.msra.mxu0 0.0
    %5379 = vmatprep.subr.mxu0 0.0
    %5380 = vmatpush1.msra.mxu0 0.0
    %5381 = vmatprep.subr.mxu0 0.0
    %5382 = vmatpush1.msra.mxu0 0.0
    %5383 = vmatprep.subr.mxu0 0.0
    %5384 = vmatpush1.msra.mxu0 0.0
    %5385 = vmatprep.subr.mxu0 0.0
    %5386 = vmatpush1.msra.mxu0 0.0
    %5387 = vmatprep.subr.mxu0 0.0
    %5388 = vmatpush1.msra.mxu0 0.0
    %5389 = vmatprep.subr.mxu0 0.0
    %5390 = vmatpush1.msra.mxu0 0.0
    %5391 = vmatprep.subr.mxu0 0.0
    %5392 = vmatpush1.msra.mxu0 0.0
    %5393 = vmatprep.subr.mxu0 0.0
    %5394 = vmatpush1.msra.mxu0 0.0
    %5395 = vmatprep.subr.mxu0 0.0
    %5396 = vmatpush1.msra.mxu0 0.0
    %5397 = vmatprep.subr.mxu0 0.0
    %5398 = vmatpush1.msra.mxu0 0.0
    %5399 = vmatprep.subr.mxu0 0.0
    %5400 = vmatpush1.msra.mxu0 0.0
    %5401 = vmatprep.subr.mxu0 0.0
    %5402 = vmatpush1.msra.mxu0 0.0
    %5403 = vmatprep.subr.mxu0 0.0
    %5404 = vmatpush1.msra.mxu0 0.0
    %5405 = vmatprep.subr.mxu0 0.0
    %5406 = vmatpush1.msra.mxu0 0.0
    %5407 = vmatprep.subr.mxu0 0.0
    %5408 = vmatpush1.msra.mxu0 0.0
    %5409 = vmatprep.subr.mxu0 0.0
    %5410 = vmatpush1.msra.mxu0 0.0
    %5411 = vmatprep.subr.mxu0 0.0
    %5412 = vmatpush1.msra.mxu0 0.0
    %5413 = vmatprep.subr.mxu0 0.0
    %5414 = vmatpush1.msra.mxu0 0.0
    %5415 = vmatprep.subr.mxu0 0.0
    %5416 = vmatpush1.msra.mxu0 0.0
    %5417 = vmatprep.subr.mxu0 0.0
    %5418 = vmatpush1.msra.mxu0 0.0
    %5419 = vmatprep.mubr.f32.mxu0 0.0
    %5420 = vmatmul.mubr.f32.gmra.mrb[0].mxu0 %v4535
    %v5421 = vpop.f32.mrb[0].mxu0
    %v5422 = vadd.f32 0.0, %v5421
    %v5423 = vpop.f32.mrb[0].mxu0
    %5424 = vmatprep.mubr.f32.mxu0 0.0
    %5425 = vmatmul.mubr.f32.gmra.mrb[0].mxu0 %v4538
    %v5426 = vpop.f32.mrb[0].mxu0
    %v5427 = vadd.f32 0.0, %v5426
    %v5428 = vpop.f32.mrb[0].mxu0
    %5429 = vdwg.mxu0
    %s5430 = scalar_lea.vmem %s7, 80
    %v5431 = vld [vmem:[%s5430] sm:$0xff]
    %v5432 = vld [vmem:[%s5430 + $0x8] sm:$0xff]
    %v5434 = vsel %vm4533, %v5431, 0
    %v5437 = vsel %vm4533, %v5432, 0
    %5439 = vmatprep.subr.mxu0 0.0
    %5440 = vmatpush1.msra.mxu0 %v5422
    %5441 = vmatprep.subr.mxu0 0.0
    %5442 = vmatpush1.msra.mxu0 %v5427
    %5443 = vmatprep.subr.mxu0 0.0
    %5444 = vmatpush1.msra.mxu0 0.0
    %5445 = vmatprep.subr.mxu0 0.0
    %5446 = vmatpush1.msra.mxu0 0.0
    %5447 = vmatprep.subr.mxu0 0.0
    %5448 = vmatpush1.msra.mxu0 0.0
    %5449 = vmatprep.subr.mxu0 0.0
    %5450 = vmatpush1.msra.mxu0 0.0
    %5451 = vmatprep.subr.mxu0 0.0
    %5452 = vmatpush1.msra.mxu0 0.0
    %5453 = vmatprep.subr.mxu0 0.0
    %5454 = vmatpush1.msra.mxu0 0.0
    %5455 = vmatprep.subr.mxu0 0.0
    %5456 = vmatpush1.msra.mxu0 0.0
    %5457 = vmatprep.subr.mxu0 0.0
    %5458 = vmatpush1.msra.mxu0 0.0
    %5459 = vmatprep.subr.mxu0 0.0
    %5460 = vmatpush1.msra.mxu0 0.0
    %5461 = vmatprep.subr.mxu0 0.0
    %5462 = vmatpush1.msra.mxu0 0.0
    %5463 = vmatprep.subr.mxu0 0.0
    %5464 = vmatpush1.msra.mxu0 0.0
    %5465 = vmatprep.subr.mxu0 0.0
    %5466 = vmatpush1.msra.mxu0 0.0
    %5467 = vmatprep.subr.mxu0 0.0
    %5468 = vmatpush1.msra.mxu0 0.0
    %5469 = vmatprep.subr.mxu0 0.0
    %5470 = vmatpush1.msra.mxu0 0.0
    %5471 = vmatprep.subr.mxu0 0.0
    %5472 = vmatpush1.msra.mxu0 0.0
    %5473 = vmatprep.subr.mxu0 0.0
    %5474 = vmatpush1.msra.mxu0 0.0
    %5475 = vmatprep.subr.mxu0 0.0
    %5476 = vmatpush1.msra.mxu0 0.0
    %5477 = vmatprep.subr.mxu0 0.0
    %5478 = vmatpush1.msra.mxu0 0.0
    %5479 = vmatprep.subr.mxu0 0.0
    %5480 = vmatpush1.msra.mxu0 0.0
    %5481 = vmatprep.subr.mxu0 0.0
    %5482 = vmatpush1.msra.mxu0 0.0
    %5483 = vmatprep.subr.mxu0 0.0
    %5484 = vmatpush1.msra.mxu0 0.0
    %5485 = vmatprep.subr.mxu0 0.0
    %5486 = vmatpush1.msra.mxu0 0.0
    %5487 = vmatprep.subr.mxu0 0.0
    %5488 = vmatpush1.msra.mxu0 0.0
    %5489 = vmatprep.subr.mxu0 0.0
    %5490 = vmatpush1.msra.mxu0 0.0
    %5491 = vmatprep.subr.mxu0 0.0
    %5492 = vmatpush1.msra.mxu0 0.0
    %5493 = vmatprep.subr.mxu0 0.0
    %5494 = vmatpush1.msra.mxu0 0.0
    %5495 = vmatprep.subr.mxu0 0.0
    %5496 = vmatpush1.msra.mxu0 0.0
    %5497 = vmatprep.subr.mxu0 0.0
    %5498 = vmatpush1.msra.mxu0 0.0
    %5499 = vmatprep.subr.mxu0 0.0
    %5500 = vmatpush1.msra.mxu0 0.0
    %5501 = vmatprep.subr.mxu0 0.0
    %5502 = vmatpush1.msra.mxu0 0.0
    %5503 = vmatprep.mubr.f32.mxu0 0.0
    %5504 = vmatmul.mubr.f32.gmra.mrb[0].mxu0 %v5434
    %v5505 = vpop.f32.mrb[0].mxu0
    %v5506 = vadd.f32 0.0, %v5505
    %v5507 = vpop.f32.mrb[0].mxu0
    %5508 = vmatprep.mubr.f32.mxu0 0.0
    %5509 = vmatmul.mubr.f32.gmra.mrb[0].mxu0 %v5437
    %v5510 = vpop.f32.mrb[0].mxu0
    %v5511 = vadd.f32 0.0, %v5510
    %v5512 = vpop.f32.mrb[0].mxu0
    %5513 = vdwg.mxu0
    %v5514 = vadd.f32 %v5350, %v5506
    %v5515 = vadd.f32 %v5351, %v5511
    %s5516 = scalar_lea.vmem %s6, 96
    %v5517 = vld [vmem:[%s5516] sm:$0xff]
    %v5518 = vld [vmem:[%s5516 + $0x8] sm:$0xff]
    %5519 = vmatprep.subr.mxu0 0.0
    %5520 = vmatpush1.msra.mxu0 %v5517
    %5521 = vmatprep.subr.mxu0 0.0
    %5522 = vmatpush1.msra.mxu0 %v5518
    %5523 = vmatprep.subr.mxu0 0.0
    %5524 = vmatpush1.msra.mxu0 0.0
    %5525 = vmatprep.subr.mxu0 0.0
    %5526 = vmatpush1.msra.mxu0 0.0
    %5527 = vmatprep.subr.mxu0 0.0
    %5528 = vmatpush1.msra.mxu0 0.0
    %5529 = vmatprep.subr.mxu0 0.0
    %5530 = vmatpush1.msra.mxu0 0.0
    %5531 = vmatprep.subr.mxu0 0.0
    %5532 = vmatpush1.msra.mxu0 0.0
    %5533 = vmatprep.subr.mxu0 0.0
    %5534 = vmatpush1.msra.mxu0 0.0
    %5535 = vmatprep.subr.mxu0 0.0
    %5536 = vmatpush1.msra.mxu0 0.0
    %5537 = vmatprep.subr.mxu0 0.0
    %5538 = vmatpush1.msra.mxu0 0.0
    %5539 = vmatprep.subr.mxu0 0.0
    %5540 = vmatpush1.msra.mxu0 0.0
    %5541 = vmatprep.subr.mxu0 0.0
    %5542 = vmatpush1.msra.mxu0 0.0
    %5543 = vmatprep.subr.mxu0 0.0
    %5544 = vmatpush1.msra.mxu0 0.0
    %5545 = vmatprep.subr.mxu0 0.0
    %5546 = vmatpush1.msra.mxu0 0.0
    %5547 = vmatprep.subr.mxu0 0.0
    %5548 = vmatpush1.msra.mxu0 0.0
    %5549 = vmatprep.subr.mxu0 0.0
    %5550 = vmatpush1.msra.mxu0 0.0
    %5551 = vmatprep.subr.mxu0 0.0
    %5552 = vmatpush1.msra.mxu0 0.0
    %5553 = vmatprep.subr.mxu0 0.0
    %5554 = vmatpush1.msra.mxu0 0.0
    %5555 = vmatprep.subr.mxu0 0.0
    %5556 = vmatpush1.msra.mxu0 0.0
    %5557 = vmatprep.subr.mxu0 0.0
    %5558 = vmatpush1.msra.mxu0 0.0
    %5559 = vmatprep.subr.mxu0 0.0
    %5560 = vmatpush1.msra.mxu0 0.0
    %5561 = vmatprep.subr.mxu0 0.0
    %5562 = vmatpush1.msra.mxu0 0.0
    %5563 = vmatprep.subr.mxu0 0.0
    %5564 = vmatpush1.msra.mxu0 0.0
    %5565 = vmatprep.subr.mxu0 0.0
    %5566 = vmatpush1.msra.mxu0 0.0
    %5567 = vmatprep.subr.mxu0 0.0
    %5568 = vmatpush1.msra.mxu0 0.0
    %5569 = vmatprep.subr.mxu0 0.0
    %5570 = vmatpush1.msra.mxu0 0.0
    %5571 = vmatprep.subr.mxu0 0.0
    %5572 = vmatpush1.msra.mxu0 0.0
    %5573 = vmatprep.subr.mxu0 0.0
    %5574 = vmatpush1.msra.mxu0 0.0
    %5575 = vmatprep.subr.mxu0 0.0
    %5576 = vmatpush1.msra.mxu0 0.0
    %5577 = vmatprep.subr.mxu0 0.0
    %5578 = vmatpush1.msra.mxu0 0.0
    %5579 = vmatprep.subr.mxu0 0.0
    %5580 = vmatpush1.msra.mxu0 0.0
    %5581 = vmatprep.subr.mxu0 0.0
    %5582 = vmatpush1.msra.mxu0 0.0
    %5583 = vmatprep.mubr.f32.mxu0 0.0
    %5584 = vmatmul.mubr.f32.gmra.mrb[0].mxu0 %v4535
    %v5585 = vpop.f32.mrb[0].mxu0
    %v5586 = vadd.f32 0.0, %v5585
    %v5587 = vpop.f32.mrb[0].mxu0
    %5588 = vmatprep.mubr.f32.mxu0 0.0
    %5589 = vmatmul.mubr.f32.gmra.mrb[0].mxu0 %v4538
    %v5590 = vpop.f32.mrb[0].mxu0
    %v5591 = vadd.f32 0.0, %v5590
    %v5592 = vpop.f32.mrb[0].mxu0
    %5593 = vdwg.mxu0
    %s5594 = scalar_lea.vmem %s7, 96
    %v5595 = vld [vmem:[%s5594] sm:$0xff]
    %v5596 = vld [vmem:[%s5594 + $0x8] sm:$0xff]
    %v5598 = vsel %vm4533, %v5595, 0
    %v5601 = vsel %vm4533, %v5596, 0
    %5603 = vmatprep.subr.mxu0 0.0
    %5604 = vmatpush1.msra.mxu0 %v5586
    %5605 = vmatprep.subr.mxu0 0.0
    %5606 = vmatpush1.msra.mxu0 %v5591
    %5607 = vmatprep.subr.mxu0 0.0
    %5608 = vmatpush1.msra.mxu0 0.0
    %5609 = vmatprep.subr.mxu0 0.0
    %5610 = vmatpush1.msra.mxu0 0.0
    %5611 = vmatprep.subr.mxu0 0.0
    %5612 = vmatpush1.msra.mxu0 0.0
    %5613 = vmatprep.subr.mxu0 0.0
    %5614 = vmatpush1.msra.mxu0 0.0
    %5615 = vmatprep.subr.mxu0 0.0
    %5616 = vmatpush1.msra.mxu0 0.0
    %5617 = vmatprep.subr.mxu0 0.0
    %5618 = vmatpush1.msra.mxu0 0.0
    %5619 = vmatprep.subr.mxu0 0.0
    %5620 = vmatpush1.msra.mxu0 0.0
    %5621 = vmatprep.subr.mxu0 0.0
    %5622 = vmatpush1.msra.mxu0 0.0
    %5623 = vmatprep.subr.mxu0 0.0
    %5624 = vmatpush1.msra.mxu0 0.0
    %5625 = vmatprep.subr.mxu0 0.0
    %5626 = vmatpush1.msra.mxu0 0.0
    %5627 = vmatprep.subr.mxu0 0.0
    %5628 = vmatpush1.msra.mxu0 0.0
    %5629 = vmatprep.subr.mxu0 0.0
    %5630 = vmatpush1.msra.mxu0 0.0
    %5631 = vmatprep.subr.mxu0 0.0
    %5632 = vmatpush1.msra.mxu0 0.0
    %5633 = vmatprep.subr.mxu0 0.0
    %5634 = vmatpush1.msra.mxu0 0.0
    %5635 = vmatprep.subr.mxu0 0.0
    %5636 = vmatpush1.msra.mxu0 0.0
    %5637 = vmatprep.subr.mxu0 0.0
    %5638 = vmatpush1.msra.mxu0 0.0
    %5639 = vmatprep.subr.mxu0 0.0
    %5640 = vmatpush1.msra.mxu0 0.0
    %5641 = vmatprep.subr.mxu0 0.0
    %5642 = vmatpush1.msra.mxu0 0.0
    %5643 = vmatprep.subr.mxu0 0.0
    %5644 = vmatpush1.msra.mxu0 0.0
    %5645 = vmatprep.subr.mxu0 0.0
    %5646 = vmatpush1.msra.mxu0 0.0
    %5647 = vmatprep.subr.mxu0 0.0
    %5648 = vmatpush1.msra.mxu0 0.0
    %5649 = vmatprep.subr.mxu0 0.0
    %5650 = vmatpush1.msra.mxu0 0.0
    %5651 = vmatprep.subr.mxu0 0.0
    %5652 = vmatpush1.msra.mxu0 0.0
    %5653 = vmatprep.subr.mxu0 0.0
    %5654 = vmatpush1.msra.mxu0 0.0
    %5655 = vmatprep.subr.mxu0 0.0
    %5656 = vmatpush1.msra.mxu0 0.0
    %5657 = vmatprep.subr.mxu0 0.0
    %5658 = vmatpush1.msra.mxu0 0.0
    %5659 = vmatprep.subr.mxu0 0.0
    %5660 = vmatpush1.msra.mxu0 0.0
    %5661 = vmatprep.subr.mxu0 0.0
    %5662 = vmatpush1.msra.mxu0 0.0
    %5663 = vmatprep.subr.mxu0 0.0
    %5664 = vmatpush1.msra.mxu0 0.0
    %5665 = vmatprep.subr.mxu0 0.0
    %5666 = vmatpush1.msra.mxu0 0.0
    %5667 = vmatprep.mubr.f32.mxu0 0.0
    %5668 = vmatmul.mubr.f32.gmra.mrb[0].mxu0 %v5598
    %v5669 = vpop.f32.mrb[0].mxu0
    %v5670 = vadd.f32 0.0, %v5669
    %v5671 = vpop.f32.mrb[0].mxu0
    %5672 = vmatprep.mubr.f32.mxu0 0.0
    %5673 = vmatmul.mubr.f32.gmra.mrb[0].mxu0 %v5601
    %v5674 = vpop.f32.mrb[0].mxu0
    %v5675 = vadd.f32 0.0, %v5674
    %v5676 = vpop.f32.mrb[0].mxu0
    %5677 = vdwg.mxu0
    %v5678 = vadd.f32 %v5514, %v5670
    %v5679 = vadd.f32 %v5515, %v5675
    %s5680 = scalar_lea.vmem %s6, 112
    %v5681 = vld [vmem:[%s5680] sm:$0xff]
    %v5682 = vld [vmem:[%s5680 + $0x8] sm:$0xff]
    %5683 = vmatprep.subr.mxu0 0.0
    %5684 = vmatpush1.msra.mxu0 %v5681
    %5685 = vmatprep.subr.mxu0 0.0
    %5686 = vmatpush1.msra.mxu0 %v5682
    %5687 = vmatprep.subr.mxu0 0.0
    %5688 = vmatpush1.msra.mxu0 0.0
    %5689 = vmatprep.subr.mxu0 0.0
    %5690 = vmatpush1.msra.mxu0 0.0
    %5691 = vmatprep.subr.mxu0 0.0
    %5692 = vmatpush1.msra.mxu0 0.0
    %5693 = vmatprep.subr.mxu0 0.0
    %5694 = vmatpush1.msra.mxu0 0.0
    %5695 = vmatprep.subr.mxu0 0.0
    %5696 = vmatpush1.msra.mxu0 0.0
    %5697 = vmatprep.subr.mxu0 0.0
    %5698 = vmatpush1.msra.mxu0 0.0
    %5699 = vmatprep.subr.mxu0 0.0
    %5700 = vmatpush1.msra.mxu0 0.0
    %5701 = vmatprep.subr.mxu0 0.0
    %5702 = vmatpush1.msra.mxu0 0.0
    %5703 = vmatprep.subr.mxu0 0.0
    %5704 = vmatpush1.msra.mxu0 0.0
    %5705 = vmatprep.subr.mxu0 0.0
    %5706 = vmatpush1.msra.mxu0 0.0
    %5707 = vmatprep.subr.mxu0 0.0
    %5708 = vmatpush1.msra.mxu0 0.0
    %5709 = vmatprep.subr.mxu0 0.0
    %5710 = vmatpush1.msra.mxu0 0.0
    %5711 = vmatprep.subr.mxu0 0.0
    %5712 = vmatpush1.msra.mxu0 0.0
    %5713 = vmatprep.subr.mxu0 0.0
    %5714 = vmatpush1.msra.mxu0 0.0
    %5715 = vmatprep.subr.mxu0 0.0
    %5716 = vmatpush1.msra.mxu0 0.0
    %5717 = vmatprep.subr.mxu0 0.0
    %5718 = vmatpush1.msra.mxu0 0.0
    %5719 = vmatprep.subr.mxu0 0.0
    %5720 = vmatpush1.msra.mxu0 0.0
    %5721 = vmatprep.subr.mxu0 0.0
    %5722 = vmatpush1.msra.mxu0 0.0
    %5723 = vmatprep.subr.mxu0 0.0
    %5724 = vmatpush1.msra.mxu0 0.0
    %5725 = vmatprep.subr.mxu0 0.0
    %5726 = vmatpush1.msra.mxu0 0.0
    %5727 = vmatprep.subr.mxu0 0.0
    %5728 = vmatpush1.msra.mxu0 0.0
    %5729 = vmatprep.subr.mxu0 0.0
    %5730 = vmatpush1.msra.mxu0 0.0
    %5731 = vmatprep.subr.mxu0 0.0
    %5732 = vmatpush1.msra.mxu0 0.0
    %5733 = vmatprep.subr.mxu0 0.0
    %5734 = vmatpush1.msra.mxu0 0.0
    %5735 = vmatprep.subr.mxu0 0.0
    %5736 = vmatpush1.msra.mxu0 0.0
    %5737 = vmatprep.subr.mxu0 0.0
    %5738 = vmatpush1.msra.mxu0 0.0
    %5739 = vmatprep.subr.mxu0 0.0
    %5740 = vmatpush1.msra.mxu0 0.0
    %5741 = vmatprep.subr.mxu0 0.0
    %5742 = vmatpush1.msra.mxu0 0.0
    %5743 = vmatprep.subr.mxu0 0.0
    %5744 = vmatpush1.msra.mxu0 0.0
    %5745 = vmatprep.subr.mxu0 0.0
    %5746 = vmatpush1.msra.mxu0 0.0
    %5747 = vmatprep.mubr.f32.mxu0 0.0
    %5748 = vmatmul.mubr.f32.gmra.mrb[0].mxu0 %v4535
    %v5749 = vpop.f32.mrb[0].mxu0
    %v5750 = vadd.f32 0.0, %v5749
    %v5751 = vpop.f32.mrb[0].mxu0
    %5752 = vmatprep.mubr.f32.mxu0 0.0
    %5753 = vmatmul.mubr.f32.gmra.mrb[0].mxu0 %v4538
    %v5754 = vpop.f32.mrb[0].mxu0
    %v5755 = vadd.f32 0.0, %v5754
    %v5756 = vpop.f32.mrb[0].mxu0
    %5757 = vdwg.mxu0
    %s5758 = scalar_lea.vmem %s7, 112
    %v5759 = vld [vmem:[%s5758] sm:$0xff]
    %v5760 = vld [vmem:[%s5758 + $0x8] sm:$0xff]
    %v5762 = vsel %vm4533, %v5759, 0
    %v5765 = vsel %vm4533, %v5760, 0
    %5767 = vmatprep.subr.mxu0 0.0
    %5768 = vmatpush1.msra.mxu0 %v5750
    %5769 = vmatprep.subr.mxu0 0.0
    %5770 = vmatpush1.msra.mxu0 %v5755
    %5771 = vmatprep.subr.mxu0 0.0
    %5772 = vmatpush1.msra.mxu0 0.0
    %5773 = vmatprep.subr.mxu0 0.0
    %5774 = vmatpush1.msra.mxu0 0.0
    %5775 = vmatprep.subr.mxu0 0.0
    %5776 = vmatpush1.msra.mxu0 0.0
    %5777 = vmatprep.subr.mxu0 0.0
    %5778 = vmatpush1.msra.mxu0 0.0
    %5779 = vmatprep.subr.mxu0 0.0
    %5780 = vmatpush1.msra.mxu0 0.0
    %5781 = vmatprep.subr.mxu0 0.0
    %5782 = vmatpush1.msra.mxu0 0.0
    %5783 = vmatprep.subr.mxu0 0.0
    %5784 = vmatpush1.msra.mxu0 0.0
    %5785 = vmatprep.subr.mxu0 0.0
    %5786 = vmatpush1.msra.mxu0 0.0
    %5787 = vmatprep.subr.mxu0 0.0
    %5788 = vmatpush1.msra.mxu0 0.0
    %5789 = vmatprep.subr.mxu0 0.0
    %5790 = vmatpush1.msra.mxu0 0.0
    %5791 = vmatprep.subr.mxu0 0.0
    %5792 = vmatpush1.msra.mxu0 0.0
    %5793 = vmatprep.subr.mxu0 0.0
    %5794 = vmatpush1.msra.mxu0 0.0
    %5795 = vmatprep.subr.mxu0 0.0
    %5796 = vmatpush1.msra.mxu0 0.0
    %5797 = vmatprep.subr.mxu0 0.0
    %5798 = vmatpush1.msra.mxu0 0.0
    %5799 = vmatprep.subr.mxu0 0.0
    %5800 = vmatpush1.msra.mxu0 0.0
    %5801 = vmatprep.subr.mxu0 0.0
    %5802 = vmatpush1.msra.mxu0 0.0
    %5803 = vmatprep.subr.mxu0 0.0
    %5804 = vmatpush1.msra.mxu0 0.0
    %5805 = vmatprep.subr.mxu0 0.0
    %5806 = vmatpush1.msra.mxu0 0.0
    %5807 = vmatprep.subr.mxu0 0.0
    %5808 = vmatpush1.msra.mxu0 0.0
    %5809 = vmatprep.subr.mxu0 0.0
    %5810 = vmatpush1.msra.mxu0 0.0
    %5811 = vmatprep.subr.mxu0 0.0
    %5812 = vmatpush1.msra.mxu0 0.0
    %5813 = vmatprep.subr.mxu0 0.0
    %5814 = vmatpush1.msra.mxu0 0.0
    %5815 = vmatprep.subr.mxu0 0.0
    %5816 = vmatpush1.msra.mxu0 0.0
    %5817 = vmatprep.subr.mxu0 0.0
    %5818 = vmatpush1.msra.mxu0 0.0
    %5819 = vmatprep.subr.mxu0 0.0
    %5820 = vmatpush1.msra.mxu0 0.0
    %5821 = vmatprep.subr.mxu0 0.0
    %5822 = vmatpush1.msra.mxu0 0.0
    %5823 = vmatprep.subr.mxu0 0.0
    %5824 = vmatpush1.msra.mxu0 0.0
    %5825 = vmatprep.subr.mxu0 0.0
    %5826 = vmatpush1.msra.mxu0 0.0
    %5827 = vmatprep.subr.mxu0 0.0
    %5828 = vmatpush1.msra.mxu0 0.0
    %5829 = vmatprep.subr.mxu0 0.0
    %5830 = vmatpush1.msra.mxu0 0.0
    %5831 = vmatprep.mubr.f32.mxu0 0.0
    %5832 = vmatmul.mubr.f32.gmra.mrb[0].mxu0 %v5762
    %v5833 = vpop.f32.mrb[0].mxu0
    %v5834 = vadd.f32 0.0, %v5833
    %v5835 = vpop.f32.mrb[0].mxu0
    %5836 = vmatprep.mubr.f32.mxu0 0.0
    %5837 = vmatmul.mubr.f32.gmra.mrb[0].mxu0 %v5765
    %v5838 = vpop.f32.mrb[0].mxu0
    %v5839 = vadd.f32 0.0, %v5838
    %v5840 = vpop.f32.mrb[0].mxu0
    %5841 = vdwg.mxu0
    %v5842 = vadd.f32 %v5678, %v5834
    %v5843 = vadd.f32 %v5679, %v5839
    %s5844 = scalar_lea.vmem %s6, 128
    %v5845 = vld [vmem:[%s5844] sm:$0xff]
    %v5846 = vld [vmem:[%s5844 + $0x8] sm:$0xff]
    %5847 = vmatprep.subr.mxu0 0.0
    %5848 = vmatpush1.msra.mxu0 %v5845
    %5849 = vmatprep.subr.mxu0 0.0
    %5850 = vmatpush1.msra.mxu0 %v5846
    %5851 = vmatprep.subr.mxu0 0.0
    %5852 = vmatpush1.msra.mxu0 0.0
    %5853 = vmatprep.subr.mxu0 0.0
    %5854 = vmatpush1.msra.mxu0 0.0
    %5855 = vmatprep.subr.mxu0 0.0
    %5856 = vmatpush1.msra.mxu0 0.0
    %5857 = vmatprep.subr.mxu0 0.0
    %5858 = vmatpush1.msra.mxu0 0.0
    %5859 = vmatprep.subr.mxu0 0.0
    %5860 = vmatpush1.msra.mxu0 0.0
    %5861 = vmatprep.subr.mxu0 0.0
    %5862 = vmatpush1.msra.mxu0 0.0
    %5863 = vmatprep.subr.mxu0 0.0
    %5864 = vmatpush1.msra.mxu0 0.0
    %5865 = vmatprep.subr.mxu0 0.0
    %5866 = vmatpush1.msra.mxu0 0.0
    %5867 = vmatprep.subr.mxu0 0.0
    %5868 = vmatpush1.msra.mxu0 0.0
    %5869 = vmatprep.subr.mxu0 0.0
    %5870 = vmatpush1.msra.mxu0 0.0
    %5871 = vmatprep.subr.mxu0 0.0
    %5872 = vmatpush1.msra.mxu0 0.0
    %5873 = vmatprep.subr.mxu0 0.0
    %5874 = vmatpush1.msra.mxu0 0.0
    %5875 = vmatprep.subr.mxu0 0.0
    %5876 = vmatpush1.msra.mxu0 0.0
    %5877 = vmatprep.subr.mxu0 0.0
    %5878 = vmatpush1.msra.mxu0 0.0
    %5879 = vmatprep.subr.mxu0 0.0
    %5880 = vmatpush1.msra.mxu0 0.0
    %5881 = vmatprep.subr.mxu0 0.0
    %5882 = vmatpush1.msra.mxu0 0.0
    %5883 = vmatprep.subr.mxu0 0.0
    %5884 = vmatpush1.msra.mxu0 0.0
    %5885 = vmatprep.subr.mxu0 0.0
    %5886 = vmatpush1.msra.mxu0 0.0
    %5887 = vmatprep.subr.mxu0 0.0
    %5888 = vmatpush1.msra.mxu0 0.0
    %5889 = vmatprep.subr.mxu0 0.0
    %5890 = vmatpush1.msra.mxu0 0.0
    %5891 = vmatprep.subr.mxu0 0.0
    %5892 = vmatpush1.msra.mxu0 0.0
    %5893 = vmatprep.subr.mxu0 0.0
    %5894 = vmatpush1.msra.mxu0 0.0
    %5895 = vmatprep.subr.mxu0 0.0
    %5896 = vmatpush1.msra.mxu0 0.0
    %5897 = vmatprep.subr.mxu0 0.0
    %5898 = vmatpush1.msra.mxu0 0.0
    %5899 = vmatprep.subr.mxu0 0.0
    %5900 = vmatpush1.msra.mxu0 0.0
    %5901 = vmatprep.subr.mxu0 0.0
    %5902 = vmatpush1.msra.mxu0 0.0
    %5903 = vmatprep.subr.mxu0 0.0
    %5904 = vmatpush1.msra.mxu0 0.0
    %5905 = vmatprep.subr.mxu0 0.0
    %5906 = vmatpush1.msra.mxu0 0.0
    %5907 = vmatprep.subr.mxu0 0.0
    %5908 = vmatpush1.msra.mxu0 0.0
    %5909 = vmatprep.subr.mxu0 0.0
    %5910 = vmatpush1.msra.mxu0 0.0
    %5911 = vmatprep.mubr.f32.mxu0 0.0
    %5912 = vmatmul.mubr.f32.gmra.mrb[0].mxu0 %v4535
    %v5913 = vpop.f32.mrb[0].mxu0
    %v5914 = vadd.f32 0.0, %v5913
    %v5915 = vpop.f32.mrb[0].mxu0
    %5916 = vmatprep.mubr.f32.mxu0 0.0
    %5917 = vmatmul.mubr.f32.gmra.mrb[0].mxu0 %v4538
    %v5918 = vpop.f32.mrb[0].mxu0
    %v5919 = vadd.f32 0.0, %v5918
    %v5920 = vpop.f32.mrb[0].mxu0
    %5921 = vdwg.mxu0
    %s5922 = scalar_lea.vmem %s7, 128
    %v5923 = vld [vmem:[%s5922] sm:$0xff]
    %v5924 = vld [vmem:[%s5922 + $0x8] sm:$0xff]
    %v5926 = vsel %vm4533, %v5923, 0
    %v5929 = vsel %vm4533, %v5924, 0
    %5931 = vmatprep.subr.mxu0 0.0
    %5932 = vmatpush1.msra.mxu0 %v5914
    %5933 = vmatprep.subr.mxu0 0.0
    %5934 = vmatpush1.msra.mxu0 %v5919
    %5935 = vmatprep.subr.mxu0 0.0
    %5936 = vmatpush1.msra.mxu0 0.0
    %5937 = vmatprep.subr.mxu0 0.0
    %5938 = vmatpush1.msra.mxu0 0.0
    %5939 = vmatprep.subr.mxu0 0.0
    %5940 = vmatpush1.msra.mxu0 0.0
    %5941 = vmatprep.subr.mxu0 0.0
    %5942 = vmatpush1.msra.mxu0 0.0
    %5943 = vmatprep.subr.mxu0 0.0
    %5944 = vmatpush1.msra.mxu0 0.0
    %5945 = vmatprep.subr.mxu0 0.0
    %5946 = vmatpush1.msra.mxu0 0.0
    %5947 = vmatprep.subr.mxu0 0.0
    %5948 = vmatpush1.msra.mxu0 0.0
    %5949 = vmatprep.subr.mxu0 0.0
    %5950 = vmatpush1.msra.mxu0 0.0
    %5951 = vmatprep.subr.mxu0 0.0
    %5952 = vmatpush1.msra.mxu0 0.0
    %5953 = vmatprep.subr.mxu0 0.0
    %5954 = vmatpush1.msra.mxu0 0.0
    %5955 = vmatprep.subr.mxu0 0.0
    %5956 = vmatpush1.msra.mxu0 0.0
    %5957 = vmatprep.subr.mxu0 0.0
    %5958 = vmatpush1.msra.mxu0 0.0
    %5959 = vmatprep.subr.mxu0 0.0
    %5960 = vmatpush1.msra.mxu0 0.0
    %5961 = vmatprep.subr.mxu0 0.0
    %5962 = vmatpush1.msra.mxu0 0.0
    %5963 = vmatprep.subr.mxu0 0.0
    %5964 = vmatpush1.msra.mxu0 0.0
    %5965 = vmatprep.subr.mxu0 0.0
    %5966 = vmatpush1.msra.mxu0 0.0
    %5967 = vmatprep.subr.mxu0 0.0
    %5968 = vmatpush1.msra.mxu0 0.0
    %5969 = vmatprep.subr.mxu0 0.0
    %5970 = vmatpush1.msra.mxu0 0.0
    %5971 = vmatprep.subr.mxu0 0.0
    %5972 = vmatpush1.msra.mxu0 0.0
    %5973 = vmatprep.subr.mxu0 0.0
    %5974 = vmatpush1.msra.mxu0 0.0
    %5975 = vmatprep.subr.mxu0 0.0
    %5976 = vmatpush1.msra.mxu0 0.0
    %5977 = vmatprep.subr.mxu0 0.0
    %5978 = vmatpush1.msra.mxu0 0.0
    %5979 = vmatprep.subr.mxu0 0.0
    %5980 = vmatpush1.msra.mxu0 0.0
    %5981 = vmatprep.subr.mxu0 0.0
    %5982 = vmatpush1.msra.mxu0 0.0
    %5983 = vmatprep.subr.mxu0 0.0
    %5984 = vmatpush1.msra.mxu0 0.0
    %5985 = vmatprep.subr.mxu0 0.0
    %5986 = vmatpush1.msra.mxu0 0.0
    %5987 = vmatprep.subr.mxu0 0.0
    %5988 = vmatpush1.msra.mxu0 0.0
    %5989 = vmatprep.subr.mxu0 0.0
    %5990 = vmatpush1.msra.mxu0 0.0
    %5991 = vmatprep.subr.mxu0 0.0
    %5992 = vmatpush1.msra.mxu0 0.0
    %5993 = vmatprep.subr.mxu0 0.0
    %5994 = vmatpush1.msra.mxu0 0.0
    %5995 = vmatprep.mubr.f32.mxu0 0.0
    %5996 = vmatmul.mubr.f32.gmra.mrb[0].mxu0 %v5926
    %v5997 = vpop.f32.mrb[0].mxu0
    %v5998 = vadd.f32 0.0, %v5997
    %v5999 = vpop.f32.mrb[0].mxu0
    %6000 = vmatprep.mubr.f32.mxu0 0.0
    %6001 = vmatmul.mubr.f32.gmra.mrb[0].mxu0 %v5929
    %v6002 = vpop.f32.mrb[0].mxu0
    %v6003 = vadd.f32 0.0, %v6002
    %v6004 = vpop.f32.mrb[0].mxu0
    %6005 = vdwg.mxu0
    %v6006 = vadd.f32 %v5842, %v5998
    %v6007 = vadd.f32 %v5843, %v6003
    %s6008 = scalar_lea.vmem %s6, 144
    %v6009 = vld [vmem:[%s6008] sm:$0xff]
    %v6010 = vld [vmem:[%s6008 + $0x8] sm:$0xff]
    %6011 = vmatprep.subr.mxu0 0.0
    %6012 = vmatpush1.msra.mxu0 %v6009
    %6013 = vmatprep.subr.mxu0 0.0
    %6014 = vmatpush1.msra.mxu0 %v6010
    %6015 = vmatprep.subr.mxu0 0.0
    %6016 = vmatpush1.msra.mxu0 0.0
    %6017 = vmatprep.subr.mxu0 0.0
    %6018 = vmatpush1.msra.mxu0 0.0
    %6019 = vmatprep.subr.mxu0 0.0
    %6020 = vmatpush1.msra.mxu0 0.0
    %6021 = vmatprep.subr.mxu0 0.0
    %6022 = vmatpush1.msra.mxu0 0.0
    %6023 = vmatprep.subr.mxu0 0.0
    %6024 = vmatpush1.msra.mxu0 0.0
    %6025 = vmatprep.subr.mxu0 0.0
    %6026 = vmatpush1.msra.mxu0 0.0
    %6027 = vmatprep.subr.mxu0 0.0
    %6028 = vmatpush1.msra.mxu0 0.0
    %6029 = vmatprep.subr.mxu0 0.0
    %6030 = vmatpush1.msra.mxu0 0.0
    %6031 = vmatprep.subr.mxu0 0.0
    %6032 = vmatpush1.msra.mxu0 0.0
    %6033 = vmatprep.subr.mxu0 0.0
    %6034 = vmatpush1.msra.mxu0 0.0
    %6035 = vmatprep.subr.mxu0 0.0
    %6036 = vmatpush1.msra.mxu0 0.0
    %6037 = vmatprep.subr.mxu0 0.0
    %6038 = vmatpush1.msra.mxu0 0.0
    %6039 = vmatprep.subr.mxu0 0.0
    %6040 = vmatpush1.msra.mxu0 0.0
    %6041 = vmatprep.subr.mxu0 0.0
    %6042 = vmatpush1.msra.mxu0 0.0
    %6043 = vmatprep.subr.mxu0 0.0
    %6044 = vmatpush1.msra.mxu0 0.0
    %6045 = vmatprep.subr.mxu0 0.0
    %6046 = vmatpush1.msra.mxu0 0.0
    %6047 = vmatprep.subr.mxu0 0.0
    %6048 = vmatpush1.msra.mxu0 0.0
    %6049 = vmatprep.subr.mxu0 0.0
    %6050 = vmatpush1.msra.mxu0 0.0
    %6051 = vmatprep.subr.mxu0 0.0
    %6052 = vmatpush1.msra.mxu0 0.0
    %6053 = vmatprep.subr.mxu0 0.0
    %6054 = vmatpush1.msra.mxu0 0.0
    %6055 = vmatprep.subr.mxu0 0.0
    %6056 = vmatpush1.msra.mxu0 0.0
    %6057 = vmatprep.subr.mxu0 0.0
    %6058 = vmatpush1.msra.mxu0 0.0
    %6059 = vmatprep.subr.mxu0 0.0
    %6060 = vmatpush1.msra.mxu0 0.0
    %6061 = vmatprep.subr.mxu0 0.0
    %6062 = vmatpush1.msra.mxu0 0.0
    %6063 = vmatprep.subr.mxu0 0.0
    %6064 = vmatpush1.msra.mxu0 0.0
    %6065 = vmatprep.subr.mxu0 0.0
    %6066 = vmatpush1.msra.mxu0 0.0
    %6067 = vmatprep.subr.mxu0 0.0
    %6068 = vmatpush1.msra.mxu0 0.0
    %6069 = vmatprep.subr.mxu0 0.0
    %6070 = vmatpush1.msra.mxu0 0.0
    %6071 = vmatprep.subr.mxu0 0.0
    %6072 = vmatpush1.msra.mxu0 0.0
    %6073 = vmatprep.subr.mxu0 0.0
    %6074 = vmatpush1.msra.mxu0 0.0
    %6075 = vmatprep.mubr.f32.mxu0 0.0
    %6076 = vmatmul.mubr.f32.gmra.mrb[0].mxu0 %v4535
    %v6077 = vpop.f32.mrb[0].mxu0
    %v6078 = vadd.f32 0.0, %v6077
    %v6079 = vpop.f32.mrb[0].mxu0
    %6080 = vmatprep.mubr.f32.mxu0 0.0
    %6081 = vmatmul.mubr.f32.gmra.mrb[0].mxu0 %v4538
    %v6082 = vpop.f32.mrb[0].mxu0
    %v6083 = vadd.f32 0.0, %v6082
    %v6084 = vpop.f32.mrb[0].mxu0
    %6085 = vdwg.mxu0
    %s6086 = scalar_lea.vmem %s7, 144
    %v6087 = vld [vmem:[%s6086] sm:$0xff]
    %v6088 = vld [vmem:[%s6086 + $0x8] sm:$0xff]
    %v6090 = vsel %vm4533, %v6087, 0
    %v6093 = vsel %vm4533, %v6088, 0
    %6095 = vmatprep.subr.mxu0 0.0
    %6096 = vmatpush1.msra.mxu0 %v6078
    %6097 = vmatprep.subr.mxu0 0.0
    %6098 = vmatpush1.msra.mxu0 %v6083
    %6099 = vmatprep.subr.mxu0 0.0
    %6100 = vmatpush1.msra.mxu0 0.0
    %6101 = vmatprep.subr.mxu0 0.0
    %6102 = vmatpush1.msra.mxu0 0.0
    %6103 = vmatprep.subr.mxu0 0.0
    %6104 = vmatpush1.msra.mxu0 0.0
    %6105 = vmatprep.subr.mxu0 0.0
    %6106 = vmatpush1.msra.mxu0 0.0
    %6107 = vmatprep.subr.mxu0 0.0
    %6108 = vmatpush1.msra.mxu0 0.0
    %6109 = vmatprep.subr.mxu0 0.0
    %6110 = vmatpush1.msra.mxu0 0.0
    %6111 = vmatprep.subr.mxu0 0.0
    %6112 = vmatpush1.msra.mxu0 0.0
    %6113 = vmatprep.subr.mxu0 0.0
    %6114 = vmatpush1.msra.mxu0 0.0
    %6115 = vmatprep.subr.mxu0 0.0
    %6116 = vmatpush1.msra.mxu0 0.0
    %6117 = vmatprep.subr.mxu0 0.0
    %6118 = vmatpush1.msra.mxu0 0.0
    %6119 = vmatprep.subr.mxu0 0.0
    %6120 = vmatpush1.msra.mxu0 0.0
    %6121 = vmatprep.subr.mxu0 0.0
    %6122 = vmatpush1.msra.mxu0 0.0
    %6123 = vmatprep.subr.mxu0 0.0
    %6124 = vmatpush1.msra.mxu0 0.0
    %6125 = vmatprep.subr.mxu0 0.0
    %6126 = vmatpush1.msra.mxu0 0.0
    %6127 = vmatprep.subr.mxu0 0.0
    %6128 = vmatpush1.msra.mxu0 0.0
    %6129 = vmatprep.subr.mxu0 0.0
    %6130 = vmatpush1.msra.mxu0 0.0
    %6131 = vmatprep.subr.mxu0 0.0
    %6132 = vmatpush1.msra.mxu0 0.0
    %6133 = vmatprep.subr.mxu0 0.0
    %6134 = vmatpush1.msra.mxu0 0.0
    %6135 = vmatprep.subr.mxu0 0.0
    %6136 = vmatpush1.msra.mxu0 0.0
    %6137 = vmatprep.subr.mxu0 0.0
    %6138 = vmatpush1.msra.mxu0 0.0
    %6139 = vmatprep.subr.mxu0 0.0
    %6140 = vmatpush1.msra.mxu0 0.0
    %6141 = vmatprep.subr.mxu0 0.0
    %6142 = vmatpush1.msra.mxu0 0.0
    %6143 = vmatprep.subr.mxu0 0.0
    %6144 = vmatpush1.msra.mxu0 0.0
    %6145 = vmatprep.subr.mxu0 0.0
    %6146 = vmatpush1.msra.mxu0 0.0
    %6147 = vmatprep.subr.mxu0 0.0
    %6148 = vmatpush1.msra.mxu0 0.0
    %6149 = vmatprep.subr.mxu0 0.0
    %6150 = vmatpush1.msra.mxu0 0.0
    %6151 = vmatprep.subr.mxu0 0.0
    %6152 = vmatpush1.msra.mxu0 0.0
    %6153 = vmatprep.subr.mxu0 0.0
    %6154 = vmatpush1.msra.mxu0 0.0
    %6155 = vmatprep.subr.mxu0 0.0
    %6156 = vmatpush1.msra.mxu0 0.0
    %6157 = vmatprep.subr.mxu0 0.0
    %6158 = vmatpush1.msra.mxu0 0.0
    %6159 = vmatprep.mubr.f32.mxu0 0.0
    %6160 = vmatmul.mubr.f32.gmra.mrb[0].mxu0 %v6090
    %v6161 = vpop.f32.mrb[0].mxu0
    %v6162 = vadd.f32 0.0, %v6161
    %v6163 = vpop.f32.mrb[0].mxu0
    %6164 = vmatprep.mubr.f32.mxu0 0.0
    %6165 = vmatmul.mubr.f32.gmra.mrb[0].mxu0 %v6093
    %v6166 = vpop.f32.mrb[0].mxu0
    %v6167 = vadd.f32 0.0, %v6166
    %v6168 = vpop.f32.mrb[0].mxu0
    %6169 = vdwg.mxu0
    %v6170 = vadd.f32 %v6006, %v6162
    %v6171 = vadd.f32 %v6007, %v6167
    %s6172 = scalar_lea.vmem %s6, 160
    %v6173 = vld [vmem:[%s6172] sm:$0xff]
    %v6174 = vld [vmem:[%s6172 + $0x8] sm:$0xff]
    %6175 = vmatprep.subr.mxu0 0.0
    %6176 = vmatpush1.msra.mxu0 %v6173
    %6177 = vmatprep.subr.mxu0 0.0
    %6178 = vmatpush1.msra.mxu0 %v6174
    %6179 = vmatprep.subr.mxu0 0.0
    %6180 = vmatpush1.msra.mxu0 0.0
    %6181 = vmatprep.subr.mxu0 0.0
    %6182 = vmatpush1.msra.mxu0 0.0
    %6183 = vmatprep.subr.mxu0 0.0
    %6184 = vmatpush1.msra.mxu0 0.0
    %6185 = vmatprep.subr.mxu0 0.0
    %6186 = vmatpush1.msra.mxu0 0.0
    %6187 = vmatprep.subr.mxu0 0.0
    %6188 = vmatpush1.msra.mxu0 0.0
    %6189 = vmatprep.subr.mxu0 0.0
    %6190 = vmatpush1.msra.mxu0 0.0
    %6191 = vmatprep.subr.mxu0 0.0
    %6192 = vmatpush1.msra.mxu0 0.0
    %6193 = vmatprep.subr.mxu0 0.0
    %6194 = vmatpush1.msra.mxu0 0.0
    %6195 = vmatprep.subr.mxu0 0.0
    %6196 = vmatpush1.msra.mxu0 0.0
    %6197 = vmatprep.subr.mxu0 0.0
    %6198 = vmatpush1.msra.mxu0 0.0
    %6199 = vmatprep.subr.mxu0 0.0
    %6200 = vmatpush1.msra.mxu0 0.0
    %6201 = vmatprep.subr.mxu0 0.0
    %6202 = vmatpush1.msra.mxu0 0.0
    %6203 = vmatprep.subr.mxu0 0.0
    %6204 = vmatpush1.msra.mxu0 0.0
    %6205 = vmatprep.subr.mxu0 0.0
    %6206 = vmatpush1.msra.mxu0 0.0
    %6207 = vmatprep.subr.mxu0 0.0
    %6208 = vmatpush1.msra.mxu0 0.0
    %6209 = vmatprep.subr.mxu0 0.0
    %6210 = vmatpush1.msra.mxu0 0.0
    %6211 = vmatprep.subr.mxu0 0.0
    %6212 = vmatpush1.msra.mxu0 0.0
    %6213 = vmatprep.subr.mxu0 0.0
    %6214 = vmatpush1.msra.mxu0 0.0
    %6215 = vmatprep.subr.mxu0 0.0
    %6216 = vmatpush1.msra.mxu0 0.0
    %6217 = vmatprep.subr.mxu0 0.0
    %6218 = vmatpush1.msra.mxu0 0.0
    %6219 = vmatprep.subr.mxu0 0.0
    %6220 = vmatpush1.msra.mxu0 0.0
    %6221 = vmatprep.subr.mxu0 0.0
    %6222 = vmatpush1.msra.mxu0 0.0
    %6223 = vmatprep.subr.mxu0 0.0
    %6224 = vmatpush1.msra.mxu0 0.0
    %6225 = vmatprep.subr.mxu0 0.0
    %6226 = vmatpush1.msra.mxu0 0.0
    %6227 = vmatprep.subr.mxu0 0.0
    %6228 = vmatpush1.msra.mxu0 0.0
    %6229 = vmatprep.subr.mxu0 0.0
    %6230 = vmatpush1.msra.mxu0 0.0
    %6231 = vmatprep.subr.mxu0 0.0
    %6232 = vmatpush1.msra.mxu0 0.0
    %6233 = vmatprep.subr.mxu0 0.0
    %6234 = vmatpush1.msra.mxu0 0.0
    %6235 = vmatprep.subr.mxu0 0.0
    %6236 = vmatpush1.msra.mxu0 0.0
    %6237 = vmatprep.subr.mxu0 0.0
    %6238 = vmatpush1.msra.mxu0 0.0
    %6239 = vmatprep.mubr.f32.mxu0 0.0
    %6240 = vmatmul.mubr.f32.gmra.mrb[0].mxu0 %v4535
    %v6241 = vpop.f32.mrb[0].mxu0
    %v6242 = vadd.f32 0.0, %v6241
    %v6243 = vpop.f32.mrb[0].mxu0
    %6244 = vmatprep.mubr.f32.mxu0 0.0
    %6245 = vmatmul.mubr.f32.gmra.mrb[0].mxu0 %v4538
    %v6246 = vpop.f32.mrb[0].mxu0
    %v6247 = vadd.f32 0.0, %v6246
    %v6248 = vpop.f32.mrb[0].mxu0
    %6249 = vdwg.mxu0
    %s6250 = scalar_lea.vmem %s7, 160
    %v6251 = vld [vmem:[%s6250] sm:$0xff]
    %v6252 = vld [vmem:[%s6250 + $0x8] sm:$0xff]
    %v6254 = vsel %vm4533, %v6251, 0
    %v6257 = vsel %vm4533, %v6252, 0
    %6259 = vmatprep.subr.mxu0 0.0
    %6260 = vmatpush1.msra.mxu0 %v6242
    %6261 = vmatprep.subr.mxu0 0.0
    %6262 = vmatpush1.msra.mxu0 %v6247
    %6263 = vmatprep.subr.mxu0 0.0
    %6264 = vmatpush1.msra.mxu0 0.0
    %6265 = vmatprep.subr.mxu0 0.0
    %6266 = vmatpush1.msra.mxu0 0.0
    %6267 = vmatprep.subr.mxu0 0.0
    %6268 = vmatpush1.msra.mxu0 0.0
    %6269 = vmatprep.subr.mxu0 0.0
    %6270 = vmatpush1.msra.mxu0 0.0
    %6271 = vmatprep.subr.mxu0 0.0
    %6272 = vmatpush1.msra.mxu0 0.0
    %6273 = vmatprep.subr.mxu0 0.0
    %6274 = vmatpush1.msra.mxu0 0.0
    %6275 = vmatprep.subr.mxu0 0.0
    %6276 = vmatpush1.msra.mxu0 0.0
    %6277 = vmatprep.subr.mxu0 0.0
    %6278 = vmatpush1.msra.mxu0 0.0
    %6279 = vmatprep.subr.mxu0 0.0
    %6280 = vmatpush1.msra.mxu0 0.0
    %6281 = vmatprep.subr.mxu0 0.0
    %6282 = vmatpush1.msra.mxu0 0.0
    %6283 = vmatprep.subr.mxu0 0.0
    %6284 = vmatpush1.msra.mxu0 0.0
    %6285 = vmatprep.subr.mxu0 0.0
    %6286 = vmatpush1.msra.mxu0 0.0
    %6287 = vmatprep.subr.mxu0 0.0
    %6288 = vmatpush1.msra.mxu0 0.0
    %6289 = vmatprep.subr.mxu0 0.0
    %6290 = vmatpush1.msra.mxu0 0.0
    %6291 = vmatprep.subr.mxu0 0.0
    %6292 = vmatpush1.msra.mxu0 0.0
    %6293 = vmatprep.subr.mxu0 0.0
    %6294 = vmatpush1.msra.mxu0 0.0
    %6295 = vmatprep.subr.mxu0 0.0
    %6296 = vmatpush1.msra.mxu0 0.0
    %6297 = vmatprep.subr.mxu0 0.0
    %6298 = vmatpush1.msra.mxu0 0.0
    %6299 = vmatprep.subr.mxu0 0.0
    %6300 = vmatpush1.msra.mxu0 0.0
    %6301 = vmatprep.subr.mxu0 0.0
    %6302 = vmatpush1.msra.mxu0 0.0
    %6303 = vmatprep.subr.mxu0 0.0
    %6304 = vmatpush1.msra.mxu0 0.0
    %6305 = vmatprep.subr.mxu0 0.0
    %6306 = vmatpush1.msra.mxu0 0.0
    %6307 = vmatprep.subr.mxu0 0.0
    %6308 = vmatpush1.msra.mxu0 0.0
    %6309 = vmatprep.subr.mxu0 0.0
    %6310 = vmatpush1.msra.mxu0 0.0
    %6311 = vmatprep.subr.mxu0 0.0
    %6312 = vmatpush1.msra.mxu0 0.0
    %6313 = vmatprep.subr.mxu0 0.0
    %6314 = vmatpush1.msra.mxu0 0.0
    %6315 = vmatprep.subr.mxu0 0.0
    %6316 = vmatpush1.msra.mxu0 0.0
    %6317 = vmatprep.subr.mxu0 0.0
    %6318 = vmatpush1.msra.mxu0 0.0
    %6319 = vmatprep.subr.mxu0 0.0
    %6320 = vmatpush1.msra.mxu0 0.0
    %6321 = vmatprep.subr.mxu0 0.0
    %6322 = vmatpush1.msra.mxu0 0.0
    %6323 = vmatprep.mubr.f32.mxu0 0.0
    %6324 = vmatmul.mubr.f32.gmra.mrb[0].mxu0 %v6254
    %v6325 = vpop.f32.mrb[0].mxu0
    %v6326 = vadd.f32 0.0, %v6325
    %v6327 = vpop.f32.mrb[0].mxu0
    %6328 = vmatprep.mubr.f32.mxu0 0.0
    %6329 = vmatmul.mubr.f32.gmra.mrb[0].mxu0 %v6257
    %v6330 = vpop.f32.mrb[0].mxu0
    %v6331 = vadd.f32 0.0, %v6330
    %v6332 = vpop.f32.mrb[0].mxu0
    %6333 = vdwg.mxu0
    %v6334 = vadd.f32 %v6170, %v6326
    %v6335 = vadd.f32 %v6171, %v6331
    %s6336 = scalar_lea.vmem %s6, 176
    %v6337 = vld [vmem:[%s6336] sm:$0xff]
    %v6338 = vld [vmem:[%s6336 + $0x8] sm:$0xff]
    %6339 = vmatprep.subr.mxu0 0.0
    %6340 = vmatpush1.msra.mxu0 %v6337
    %6341 = vmatprep.subr.mxu0 0.0
    %6342 = vmatpush1.msra.mxu0 %v6338
    %6343 = vmatprep.subr.mxu0 0.0
    %6344 = vmatpush1.msra.mxu0 0.0
    %6345 = vmatprep.subr.mxu0 0.0
    %6346 = vmatpush1.msra.mxu0 0.0
    %6347 = vmatprep.subr.mxu0 0.0
    %6348 = vmatpush1.msra.mxu0 0.0
    %6349 = vmatprep.subr.mxu0 0.0
    %6350 = vmatpush1.msra.mxu0 0.0
    %6351 = vmatprep.subr.mxu0 0.0
    %6352 = vmatpush1.msra.mxu0 0.0
    %6353 = vmatprep.subr.mxu0 0.0
    %6354 = vmatpush1.msra.mxu0 0.0
    %6355 = vmatprep.subr.mxu0 0.0
    %6356 = vmatpush1.msra.mxu0 0.0
    %6357 = vmatprep.subr.mxu0 0.0
    %6358 = vmatpush1.msra.mxu0 0.0
    %6359 = vmatprep.subr.mxu0 0.0
    %6360 = vmatpush1.msra.mxu0 0.0
    %6361 = vmatprep.subr.mxu0 0.0
    %6362 = vmatpush1.msra.mxu0 0.0
    %6363 = vmatprep.subr.mxu0 0.0
    %6364 = vmatpush1.msra.mxu0 0.0
    %6365 = vmatprep.subr.mxu0 0.0
    %6366 = vmatpush1.msra.mxu0 0.0
    %6367 = vmatprep.subr.mxu0 0.0
    %6368 = vmatpush1.msra.mxu0 0.0
    %6369 = vmatprep.subr.mxu0 0.0
    %6370 = vmatpush1.msra.mxu0 0.0
    %6371 = vmatprep.subr.mxu0 0.0
    %6372 = vmatpush1.msra.mxu0 0.0
    %6373 = vmatprep.subr.mxu0 0.0
    %6374 = vmatpush1.msra.mxu0 0.0
    %6375 = vmatprep.subr.mxu0 0.0
    %6376 = vmatpush1.msra.mxu0 0.0
    %6377 = vmatprep.subr.mxu0 0.0
    %6378 = vmatpush1.msra.mxu0 0.0
    %6379 = vmatprep.subr.mxu0 0.0
    %6380 = vmatpush1.msra.mxu0 0.0
    %6381 = vmatprep.subr.mxu0 0.0
    %6382 = vmatpush1.msra.mxu0 0.0
    %6383 = vmatprep.subr.mxu0 0.0
    %6384 = vmatpush1.msra.mxu0 0.0
    %6385 = vmatprep.subr.mxu0 0.0
    %6386 = vmatpush1.msra.mxu0 0.0
    %6387 = vmatprep.subr.mxu0 0.0
    %6388 = vmatpush1.msra.mxu0 0.0
    %6389 = vmatprep.subr.mxu0 0.0
    %6390 = vmatpush1.msra.mxu0 0.0
    %6391 = vmatprep.subr.mxu0 0.0
    %6392 = vmatpush1.msra.mxu0 0.0
    %6393 = vmatprep.subr.mxu0 0.0
    %6394 = vmatpush1.msra.mxu0 0.0
    %6395 = vmatprep.subr.mxu0 0.0
    %6396 = vmatpush1.msra.mxu0 0.0
    %6397 = vmatprep.subr.mxu0 0.0
    %6398 = vmatpush1.msra.mxu0 0.0
    %6399 = vmatprep.subr.mxu0 0.0
    %6400 = vmatpush1.msra.mxu0 0.0
    %6401 = vmatprep.subr.mxu0 0.0
    %6402 = vmatpush1.msra.mxu0 0.0
    %6403 = vmatprep.mubr.f32.mxu0 0.0
    %6404 = vmatmul.mubr.f32.gmra.mrb[0].mxu0 %v4535
    %v6405 = vpop.f32.mrb[0].mxu0
    %v6406 = vadd.f32 0.0, %v6405
    %v6407 = vpop.f32.mrb[0].mxu0
    %6408 = vmatprep.mubr.f32.mxu0 0.0
    %6409 = vmatmul.mubr.f32.gmra.mrb[0].mxu0 %v4538
    %v6410 = vpop.f32.mrb[0].mxu0
    %v6411 = vadd.f32 0.0, %v6410
    %v6412 = vpop.f32.mrb[0].mxu0
    %6413 = vdwg.mxu0
    %s6414 = scalar_lea.vmem %s7, 176
    %v6415 = vld [vmem:[%s6414] sm:$0xff]
    %v6416 = vld [vmem:[%s6414 + $0x8] sm:$0xff]
    %v6418 = vsel %vm4533, %v6415, 0
    %v6421 = vsel %vm4533, %v6416, 0
    %6423 = vmatprep.subr.mxu0 0.0
    %6424 = vmatpush1.msra.mxu0 %v6406
    %6425 = vmatprep.subr.mxu0 0.0
    %6426 = vmatpush1.msra.mxu0 %v6411
    %6427 = vmatprep.subr.mxu0 0.0
    %6428 = vmatpush1.msra.mxu0 0.0
    %6429 = vmatprep.subr.mxu0 0.0
    %6430 = vmatpush1.msra.mxu0 0.0
    %6431 = vmatprep.subr.mxu0 0.0
    %6432 = vmatpush1.msra.mxu0 0.0
    %6433 = vmatprep.subr.mxu0 0.0
    %6434 = vmatpush1.msra.mxu0 0.0
    %6435 = vmatprep.subr.mxu0 0.0
    %6436 = vmatpush1.msra.mxu0 0.0
    %6437 = vmatprep.subr.mxu0 0.0
    %6438 = vmatpush1.msra.mxu0 0.0
    %6439 = vmatprep.subr.mxu0 0.0
    %6440 = vmatpush1.msra.mxu0 0.0
    %6441 = vmatprep.subr.mxu0 0.0
    %6442 = vmatpush1.msra.mxu0 0.0
    %6443 = vmatprep.subr.mxu0 0.0
    %6444 = vmatpush1.msra.mxu0 0.0
    %6445 = vmatprep.subr.mxu0 0.0
    %6446 = vmatpush1.msra.mxu0 0.0
    %6447 = vmatprep.subr.mxu0 0.0
    %6448 = vmatpush1.msra.mxu0 0.0
    %6449 = vmatprep.subr.mxu0 0.0
    %6450 = vmatpush1.msra.mxu0 0.0
    %6451 = vmatprep.subr.mxu0 0.0
    %6452 = vmatpush1.msra.mxu0 0.0
    %6453 = vmatprep.subr.mxu0 0.0
    %6454 = vmatpush1.msra.mxu0 0.0
    %6455 = vmatprep.subr.mxu0 0.0
    %6456 = vmatpush1.msra.mxu0 0.0
    %6457 = vmatprep.subr.mxu0 0.0
    %6458 = vmatpush1.msra.mxu0 0.0
    %6459 = vmatprep.subr.mxu0 0.0
    %6460 = vmatpush1.msra.mxu0 0.0
    %6461 = vmatprep.subr.mxu0 0.0
    %6462 = vmatpush1.msra.mxu0 0.0
    %6463 = vmatprep.subr.mxu0 0.0
    %6464 = vmatpush1.msra.mxu0 0.0
    %6465 = vmatprep.subr.mxu0 0.0
    %6466 = vmatpush1.msra.mxu0 0.0
    %6467 = vmatprep.subr.mxu0 0.0
    %6468 = vmatpush1.msra.mxu0 0.0
    %6469 = vmatprep.subr.mxu0 0.0
    %6470 = vmatpush1.msra.mxu0 0.0
    %6471 = vmatprep.subr.mxu0 0.0
    %6472 = vmatpush1.msra.mxu0 0.0
    %6473 = vmatprep.subr.mxu0 0.0
    %6474 = vmatpush1.msra.mxu0 0.0
    %6475 = vmatprep.subr.mxu0 0.0
    %6476 = vmatpush1.msra.mxu0 0.0
    %6477 = vmatprep.subr.mxu0 0.0
    %6478 = vmatpush1.msra.mxu0 0.0
    %6479 = vmatprep.subr.mxu0 0.0
    %6480 = vmatpush1.msra.mxu0 0.0
    %6481 = vmatprep.subr.mxu0 0.0
    %6482 = vmatpush1.msra.mxu0 0.0
    %6483 = vmatprep.subr.mxu0 0.0
    %6484 = vmatpush1.msra.mxu0 0.0
    %6485 = vmatprep.subr.mxu0 0.0
    %6486 = vmatpush1.msra.mxu0 0.0
    %6487 = vmatprep.mubr.f32.mxu0 0.0
    %6488 = vmatmul.mubr.f32.gmra.mrb[0].mxu0 %v6418
    %v6489 = vpop.f32.mrb[0].mxu0
    %v6490 = vadd.f32 0.0, %v6489
    %v6491 = vpop.f32.mrb[0].mxu0
    %6492 = vmatprep.mubr.f32.mxu0 0.0
    %6493 = vmatmul.mubr.f32.gmra.mrb[0].mxu0 %v6421
    %v6494 = vpop.f32.mrb[0].mxu0
    %v6495 = vadd.f32 0.0, %v6494
    %v6496 = vpop.f32.mrb[0].mxu0
    %6497 = vdwg.mxu0
    %v6498 = vadd.f32 %v6334, %v6490
    %v6499 = vadd.f32 %v6335, %v6495
    %s6500 = scalar_lea.vmem %s6, 192
    %v6501 = vld [vmem:[%s6500] sm:$0xff]
    %v6502 = vld [vmem:[%s6500 + $0x8] sm:$0xff]
    %6503 = vmatprep.subr.mxu0 0.0
    %6504 = vmatpush1.msra.mxu0 %v6501
    %6505 = vmatprep.subr.mxu0 0.0
    %6506 = vmatpush1.msra.mxu0 %v6502
    %6507 = vmatprep.subr.mxu0 0.0
    %6508 = vmatpush1.msra.mxu0 0.0
    %6509 = vmatprep.subr.mxu0 0.0
    %6510 = vmatpush1.msra.mxu0 0.0
    %6511 = vmatprep.subr.mxu0 0.0
    %6512 = vmatpush1.msra.mxu0 0.0
    %6513 = vmatprep.subr.mxu0 0.0
    %6514 = vmatpush1.msra.mxu0 0.0
    %6515 = vmatprep.subr.mxu0 0.0
    %6516 = vmatpush1.msra.mxu0 0.0
    %6517 = vmatprep.subr.mxu0 0.0
    %6518 = vmatpush1.msra.mxu0 0.0
    %6519 = vmatprep.subr.mxu0 0.0
    %6520 = vmatpush1.msra.mxu0 0.0
    %6521 = vmatprep.subr.mxu0 0.0
    %6522 = vmatpush1.msra.mxu0 0.0
    %6523 = vmatprep.subr.mxu0 0.0
    %6524 = vmatpush1.msra.mxu0 0.0
    %6525 = vmatprep.subr.mxu0 0.0
    %6526 = vmatpush1.msra.mxu0 0.0
    %6527 = vmatprep.subr.mxu0 0.0
    %6528 = vmatpush1.msra.mxu0 0.0
    %6529 = vmatprep.subr.mxu0 0.0
    %6530 = vmatpush1.msra.mxu0 0.0
    %6531 = vmatprep.subr.mxu0 0.0
    %6532 = vmatpush1.msra.mxu0 0.0
    %6533 = vmatprep.subr.mxu0 0.0
    %6534 = vmatpush1.msra.mxu0 0.0
    %6535 = vmatprep.subr.mxu0 0.0
    %6536 = vmatpush1.msra.mxu0 0.0
    %6537 = vmatprep.subr.mxu0 0.0
    %6538 = vmatpush1.msra.mxu0 0.0
    %6539 = vmatprep.subr.mxu0 0.0
    %6540 = vmatpush1.msra.mxu0 0.0
    %6541 = vmatprep.subr.mxu0 0.0
    %6542 = vmatpush1.msra.mxu0 0.0
    %6543 = vmatprep.subr.mxu0 0.0
    %6544 = vmatpush1.msra.mxu0 0.0
    %6545 = vmatprep.subr.mxu0 0.0
    %6546 = vmatpush1.msra.mxu0 0.0
    %6547 = vmatprep.subr.mxu0 0.0
    %6548 = vmatpush1.msra.mxu0 0.0
    %6549 = vmatprep.subr.mxu0 0.0
    %6550 = vmatpush1.msra.mxu0 0.0
    %6551 = vmatprep.subr.mxu0 0.0
    %6552 = vmatpush1.msra.mxu0 0.0
    %6553 = vmatprep.subr.mxu0 0.0
    %6554 = vmatpush1.msra.mxu0 0.0
    %6555 = vmatprep.subr.mxu0 0.0
    %6556 = vmatpush1.msra.mxu0 0.0
    %6557 = vmatprep.subr.mxu0 0.0
    %6558 = vmatpush1.msra.mxu0 0.0
    %6559 = vmatprep.subr.mxu0 0.0
    %6560 = vmatpush1.msra.mxu0 0.0
    %6561 = vmatprep.subr.mxu0 0.0
    %6562 = vmatpush1.msra.mxu0 0.0
    %6563 = vmatprep.subr.mxu0 0.0
    %6564 = vmatpush1.msra.mxu0 0.0
    %6565 = vmatprep.subr.mxu0 0.0
    %6566 = vmatpush1.msra.mxu0 0.0
    %6567 = vmatprep.mubr.f32.mxu0 0.0
    %6568 = vmatmul.mubr.f32.gmra.mrb[0].mxu0 %v4535
    %v6569 = vpop.f32.mrb[0].mxu0
    %v6570 = vadd.f32 0.0, %v6569
    %v6571 = vpop.f32.mrb[0].mxu0
    %6572 = vmatprep.mubr.f32.mxu0 0.0
    %6573 = vmatmul.mubr.f32.gmra.mrb[0].mxu0 %v4538
    %v6574 = vpop.f32.mrb[0].mxu0
    %v6575 = vadd.f32 0.0, %v6574
    %v6576 = vpop.f32.mrb[0].mxu0
    %6577 = vdwg.mxu0
    %s6578 = scalar_lea.vmem %s7, 192
    %v6579 = vld [vmem:[%s6578] sm:$0xff]
    %v6580 = vld [vmem:[%s6578 + $0x8] sm:$0xff]
    %v6582 = vsel %vm4533, %v6579, 0
    %v6585 = vsel %vm4533, %v6580, 0
    %6587 = vmatprep.subr.mxu0 0.0
    %6588 = vmatpush1.msra.mxu0 %v6570
    %6589 = vmatprep.subr.mxu0 0.0
    %6590 = vmatpush1.msra.mxu0 %v6575
    %6591 = vmatprep.subr.mxu0 0.0
    %6592 = vmatpush1.msra.mxu0 0.0
    %6593 = vmatprep.subr.mxu0 0.0
    %6594 = vmatpush1.msra.mxu0 0.0
    %6595 = vmatprep.subr.mxu0 0.0
    %6596 = vmatpush1.msra.mxu0 0.0
    %6597 = vmatprep.subr.mxu0 0.0
    %6598 = vmatpush1.msra.mxu0 0.0
    %6599 = vmatprep.subr.mxu0 0.0
    %6600 = vmatpush1.msra.mxu0 0.0
    %6601 = vmatprep.subr.mxu0 0.0
    %6602 = vmatpush1.msra.mxu0 0.0
    %6603 = vmatprep.subr.mxu0 0.0
    %6604 = vmatpush1.msra.mxu0 0.0
    %6605 = vmatprep.subr.mxu0 0.0
    %6606 = vmatpush1.msra.mxu0 0.0
    %6607 = vmatprep.subr.mxu0 0.0
    %6608 = vmatpush1.msra.mxu0 0.0
    %6609 = vmatprep.subr.mxu0 0.0
    %6610 = vmatpush1.msra.mxu0 0.0
    %6611 = vmatprep.subr.mxu0 0.0
    %6612 = vmatpush1.msra.mxu0 0.0
    %6613 = vmatprep.subr.mxu0 0.0
    %6614 = vmatpush1.msra.mxu0 0.0
    %6615 = vmatprep.subr.mxu0 0.0
    %6616 = vmatpush1.msra.mxu0 0.0
    %6617 = vmatprep.subr.mxu0 0.0
    %6618 = vmatpush1.msra.mxu0 0.0
    %6619 = vmatprep.subr.mxu0 0.0
    %6620 = vmatpush1.msra.mxu0 0.0
    %6621 = vmatprep.subr.mxu0 0.0
    %6622 = vmatpush1.msra.mxu0 0.0
    %6623 = vmatprep.subr.mxu0 0.0
    %6624 = vmatpush1.msra.mxu0 0.0
    %6625 = vmatprep.subr.mxu0 0.0
    %6626 = vmatpush1.msra.mxu0 0.0
    %6627 = vmatprep.subr.mxu0 0.0
    %6628 = vmatpush1.msra.mxu0 0.0
    %6629 = vmatprep.subr.mxu0 0.0
    %6630 = vmatpush1.msra.mxu0 0.0
    %6631 = vmatprep.subr.mxu0 0.0
    %6632 = vmatpush1.msra.mxu0 0.0
    %6633 = vmatprep.subr.mxu0 0.0
    %6634 = vmatpush1.msra.mxu0 0.0
    %6635 = vmatprep.subr.mxu0 0.0
    %6636 = vmatpush1.msra.mxu0 0.0
    %6637 = vmatprep.subr.mxu0 0.0
    %6638 = vmatpush1.msra.mxu0 0.0
    %6639 = vmatprep.subr.mxu0 0.0
    %6640 = vmatpush1.msra.mxu0 0.0
    %6641 = vmatprep.subr.mxu0 0.0
    %6642 = vmatpush1.msra.mxu0 0.0
    %6643 = vmatprep.subr.mxu0 0.0
    %6644 = vmatpush1.msra.mxu0 0.0
    %6645 = vmatprep.subr.mxu0 0.0
    %6646 = vmatpush1.msra.mxu0 0.0
    %6647 = vmatprep.subr.mxu0 0.0
    %6648 = vmatpush1.msra.mxu0 0.0
    %6649 = vmatprep.subr.mxu0 0.0
    %6650 = vmatpush1.msra.mxu0 0.0
    %6651 = vmatprep.mubr.f32.mxu0 0.0
    %6652 = vmatmul.mubr.f32.gmra.mrb[0].mxu0 %v6582
    %v6653 = vpop.f32.mrb[0].mxu0
    %v6654 = vadd.f32 0.0, %v6653
    %v6655 = vpop.f32.mrb[0].mxu0
    %6656 = vmatprep.mubr.f32.mxu0 0.0
    %6657 = vmatmul.mubr.f32.gmra.mrb[0].mxu0 %v6585
    %v6658 = vpop.f32.mrb[0].mxu0
    %v6659 = vadd.f32 0.0, %v6658
    %v6660 = vpop.f32.mrb[0].mxu0
    %6661 = vdwg.mxu0
    %v6662 = vadd.f32 %v6498, %v6654
    %v6663 = vadd.f32 %v6499, %v6659
    %s6664 = scalar_lea.vmem %s6, 208
    %v6665 = vld [vmem:[%s6664] sm:$0xff]
    %v6666 = vld [vmem:[%s6664 + $0x8] sm:$0xff]
    %6667 = vmatprep.subr.mxu0 0.0
    %6668 = vmatpush1.msra.mxu0 %v6665
    %6669 = vmatprep.subr.mxu0 0.0
    %6670 = vmatpush1.msra.mxu0 %v6666
    %6671 = vmatprep.subr.mxu0 0.0
    %6672 = vmatpush1.msra.mxu0 0.0
    %6673 = vmatprep.subr.mxu0 0.0
    %6674 = vmatpush1.msra.mxu0 0.0
    %6675 = vmatprep.subr.mxu0 0.0
    %6676 = vmatpush1.msra.mxu0 0.0
    %6677 = vmatprep.subr.mxu0 0.0
    %6678 = vmatpush1.msra.mxu0 0.0
    %6679 = vmatprep.subr.mxu0 0.0
    %6680 = vmatpush1.msra.mxu0 0.0
    %6681 = vmatprep.subr.mxu0 0.0
    %6682 = vmatpush1.msra.mxu0 0.0
    %6683 = vmatprep.subr.mxu0 0.0
    %6684 = vmatpush1.msra.mxu0 0.0
    %6685 = vmatprep.subr.mxu0 0.0
    %6686 = vmatpush1.msra.mxu0 0.0
    %6687 = vmatprep.subr.mxu0 0.0
    %6688 = vmatpush1.msra.mxu0 0.0
    %6689 = vmatprep.subr.mxu0 0.0
    %6690 = vmatpush1.msra.mxu0 0.0
    %6691 = vmatprep.subr.mxu0 0.0
    %6692 = vmatpush1.msra.mxu0 0.0
    %6693 = vmatprep.subr.mxu0 0.0
    %6694 = vmatpush1.msra.mxu0 0.0
    %6695 = vmatprep.subr.mxu0 0.0
    %6696 = vmatpush1.msra.mxu0 0.0
    %6697 = vmatprep.subr.mxu0 0.0
    %6698 = vmatpush1.msra.mxu0 0.0
    %6699 = vmatprep.subr.mxu0 0.0
    %6700 = vmatpush1.msra.mxu0 0.0
    %6701 = vmatprep.subr.mxu0 0.0
    %6702 = vmatpush1.msra.mxu0 0.0
    %6703 = vmatprep.subr.mxu0 0.0
    %6704 = vmatpush1.msra.mxu0 0.0
    %6705 = vmatprep.subr.mxu0 0.0
    %6706 = vmatpush1.msra.mxu0 0.0
    %6707 = vmatprep.subr.mxu0 0.0
    %6708 = vmatpush1.msra.mxu0 0.0
    %6709 = vmatprep.subr.mxu0 0.0
    %6710 = vmatpush1.msra.mxu0 0.0
    %6711 = vmatprep.subr.mxu0 0.0
    %6712 = vmatpush1.msra.mxu0 0.0
    %6713 = vmatprep.subr.mxu0 0.0
    %6714 = vmatpush1.msra.mxu0 0.0
    %6715 = vmatprep.subr.mxu0 0.0
    %6716 = vmatpush1.msra.mxu0 0.0
    %6717 = vmatprep.subr.mxu0 0.0
    %6718 = vmatpush1.msra.mxu0 0.0
    %6719 = vmatprep.subr.mxu0 0.0
    %6720 = vmatpush1.msra.mxu0 0.0
    %6721 = vmatprep.subr.mxu0 0.0
    %6722 = vmatpush1.msra.mxu0 0.0
    %6723 = vmatprep.subr.mxu0 0.0
    %6724 = vmatpush1.msra.mxu0 0.0
    %6725 = vmatprep.subr.mxu0 0.0
    %6726 = vmatpush1.msra.mxu0 0.0
    %6727 = vmatprep.subr.mxu0 0.0
    %6728 = vmatpush1.msra.mxu0 0.0
    %6729 = vmatprep.subr.mxu0 0.0
    %6730 = vmatpush1.msra.mxu0 0.0
    %6731 = vmatprep.mubr.f32.mxu0 0.0
    %6732 = vmatmul.mubr.f32.gmra.mrb[0].mxu0 %v4535
    %v6733 = vpop.f32.mrb[0].mxu0
    %v6734 = vadd.f32 0.0, %v6733
    %v6735 = vpop.f32.mrb[0].mxu0
    %6736 = vmatprep.mubr.f32.mxu0 0.0
    %6737 = vmatmul.mubr.f32.gmra.mrb[0].mxu0 %v4538
    %v6738 = vpop.f32.mrb[0].mxu0
    %v6739 = vadd.f32 0.0, %v6738
    %v6740 = vpop.f32.mrb[0].mxu0
    %6741 = vdwg.mxu0
    %s6742 = scalar_lea.vmem %s7, 208
    %v6743 = vld [vmem:[%s6742] sm:$0xff]
    %v6744 = vld [vmem:[%s6742 + $0x8] sm:$0xff]
    %v6746 = vsel %vm4533, %v6743, 0
    %v6749 = vsel %vm4533, %v6744, 0
    %6751 = vmatprep.subr.mxu0 0.0
    %6752 = vmatpush1.msra.mxu0 %v6734
    %6753 = vmatprep.subr.mxu0 0.0
    %6754 = vmatpush1.msra.mxu0 %v6739
    %6755 = vmatprep.subr.mxu0 0.0
    %6756 = vmatpush1.msra.mxu0 0.0
    %6757 = vmatprep.subr.mxu0 0.0
    %6758 = vmatpush1.msra.mxu0 0.0
    %6759 = vmatprep.subr.mxu0 0.0
    %6760 = vmatpush1.msra.mxu0 0.0
    %6761 = vmatprep.subr.mxu0 0.0
    %6762 = vmatpush1.msra.mxu0 0.0
    %6763 = vmatprep.subr.mxu0 0.0
    %6764 = vmatpush1.msra.mxu0 0.0
    %6765 = vmatprep.subr.mxu0 0.0
    %6766 = vmatpush1.msra.mxu0 0.0
    %6767 = vmatprep.subr.mxu0 0.0
    %6768 = vmatpush1.msra.mxu0 0.0
    %6769 = vmatprep.subr.mxu0 0.0
    %6770 = vmatpush1.msra.mxu0 0.0
    %6771 = vmatprep.subr.mxu0 0.0
    %6772 = vmatpush1.msra.mxu0 0.0
    %6773 = vmatprep.subr.mxu0 0.0
    %6774 = vmatpush1.msra.mxu0 0.0
    %6775 = vmatprep.subr.mxu0 0.0
    %6776 = vmatpush1.msra.mxu0 0.0
    %6777 = vmatprep.subr.mxu0 0.0
    %6778 = vmatpush1.msra.mxu0 0.0
    %6779 = vmatprep.subr.mxu0 0.0
    %6780 = vmatpush1.msra.mxu0 0.0
    %6781 = vmatprep.subr.mxu0 0.0
    %6782 = vmatpush1.msra.mxu0 0.0
    %6783 = vmatprep.subr.mxu0 0.0
    %6784 = vmatpush1.msra.mxu0 0.0
    %6785 = vmatprep.subr.mxu0 0.0
    %6786 = vmatpush1.msra.mxu0 0.0
    %6787 = vmatprep.subr.mxu0 0.0
    %6788 = vmatpush1.msra.mxu0 0.0
    %6789 = vmatprep.subr.mxu0 0.0
    %6790 = vmatpush1.msra.mxu0 0.0
    %6791 = vmatprep.subr.mxu0 0.0
    %6792 = vmatpush1.msra.mxu0 0.0
    %6793 = vmatprep.subr.mxu0 0.0
    %6794 = vmatpush1.msra.mxu0 0.0
    %6795 = vmatprep.subr.mxu0 0.0
    %6796 = vmatpush1.msra.mxu0 0.0
    %6797 = vmatprep.subr.mxu0 0.0
    %6798 = vmatpush1.msra.mxu0 0.0
    %6799 = vmatprep.subr.mxu0 0.0
    %6800 = vmatpush1.msra.mxu0 0.0
    %6801 = vmatprep.subr.mxu0 0.0
    %6802 = vmatpush1.msra.mxu0 0.0
    %6803 = vmatprep.subr.mxu0 0.0
    %6804 = vmatpush1.msra.mxu0 0.0
    %6805 = vmatprep.subr.mxu0 0.0
    %6806 = vmatpush1.msra.mxu0 0.0
    %6807 = vmatprep.subr.mxu0 0.0
    %6808 = vmatpush1.msra.mxu0 0.0
    %6809 = vmatprep.subr.mxu0 0.0
    %6810 = vmatpush1.msra.mxu0 0.0
    %6811 = vmatprep.subr.mxu0 0.0
    %6812 = vmatpush1.msra.mxu0 0.0
    %6813 = vmatprep.subr.mxu0 0.0
    %6814 = vmatpush1.msra.mxu0 0.0
    %6815 = vmatprep.mubr.f32.mxu0 0.0
    %6816 = vmatmul.mubr.f32.gmra.mrb[0].mxu0 %v6746
    %v6817 = vpop.f32.mrb[0].mxu0
    %v6818 = vadd.f32 0.0, %v6817
    %v6819 = vpop.f32.mrb[0].mxu0
    %6820 = vmatprep.mubr.f32.mxu0 0.0
    %6821 = vmatmul.mubr.f32.gmra.mrb[0].mxu0 %v6749
    %v6822 = vpop.f32.mrb[0].mxu0
    %v6823 = vadd.f32 0.0, %v6822
    %v6824 = vpop.f32.mrb[0].mxu0
    %6825 = vdwg.mxu0
    %v6826 = vadd.f32 %v6662, %v6818
    %v6827 = vadd.f32 %v6663, %v6823
    %s6828 = scalar_lea.vmem %s6, 224
    %v6829 = vld [vmem:[%s6828] sm:$0xff]
    %v6830 = vld [vmem:[%s6828 + $0x8] sm:$0xff]
    %6831 = vmatprep.subr.mxu0 0.0
    %6832 = vmatpush1.msra.mxu0 %v6829
    %6833 = vmatprep.subr.mxu0 0.0
    %6834 = vmatpush1.msra.mxu0 %v6830
    %6835 = vmatprep.subr.mxu0 0.0
    %6836 = vmatpush1.msra.mxu0 0.0
    %6837 = vmatprep.subr.mxu0 0.0
    %6838 = vmatpush1.msra.mxu0 0.0
    %6839 = vmatprep.subr.mxu0 0.0
    %6840 = vmatpush1.msra.mxu0 0.0
    %6841 = vmatprep.subr.mxu0 0.0
    %6842 = vmatpush1.msra.mxu0 0.0
    %6843 = vmatprep.subr.mxu0 0.0
    %6844 = vmatpush1.msra.mxu0 0.0
    %6845 = vmatprep.subr.mxu0 0.0
    %6846 = vmatpush1.msra.mxu0 0.0
    %6847 = vmatprep.subr.mxu0 0.0
    %6848 = vmatpush1.msra.mxu0 0.0
    %6849 = vmatprep.subr.mxu0 0.0
    %6850 = vmatpush1.msra.mxu0 0.0
    %6851 = vmatprep.subr.mxu0 0.0
    %6852 = vmatpush1.msra.mxu0 0.0
    %6853 = vmatprep.subr.mxu0 0.0
    %6854 = vmatpush1.msra.mxu0 0.0
    %6855 = vmatprep.subr.mxu0 0.0
    %6856 = vmatpush1.msra.mxu0 0.0
    %6857 = vmatprep.subr.mxu0 0.0
    %6858 = vmatpush1.msra.mxu0 0.0
    %6859 = vmatprep.subr.mxu0 0.0
    %6860 = vmatpush1.msra.mxu0 0.0
    %6861 = vmatprep.subr.mxu0 0.0
    %6862 = vmatpush1.msra.mxu0 0.0
    %6863 = vmatprep.subr.mxu0 0.0
    %6864 = vmatpush1.msra.mxu0 0.0
    %6865 = vmatprep.subr.mxu0 0.0
    %6866 = vmatpush1.msra.mxu0 0.0
    %6867 = vmatprep.subr.mxu0 0.0
    %6868 = vmatpush1.msra.mxu0 0.0
    %6869 = vmatprep.subr.mxu0 0.0
    %6870 = vmatpush1.msra.mxu0 0.0
    %6871 = vmatprep.subr.mxu0 0.0
    %6872 = vmatpush1.msra.mxu0 0.0
    %6873 = vmatprep.subr.mxu0 0.0
    %6874 = vmatpush1.msra.mxu0 0.0
    %6875 = vmatprep.subr.mxu0 0.0
    %6876 = vmatpush1.msra.mxu0 0.0
    %6877 = vmatprep.subr.mxu0 0.0
    %6878 = vmatpush1.msra.mxu0 0.0
    %6879 = vmatprep.subr.mxu0 0.0
    %6880 = vmatpush1.msra.mxu0 0.0
    %6881 = vmatprep.subr.mxu0 0.0
    %6882 = vmatpush1.msra.mxu0 0.0
    %6883 = vmatprep.subr.mxu0 0.0
    %6884 = vmatpush1.msra.mxu0 0.0
    %6885 = vmatprep.subr.mxu0 0.0
    %6886 = vmatpush1.msra.mxu0 0.0
    %6887 = vmatprep.subr.mxu0 0.0
    %6888 = vmatpush1.msra.mxu0 0.0
    %6889 = vmatprep.subr.mxu0 0.0
    %6890 = vmatpush1.msra.mxu0 0.0
    %6891 = vmatprep.subr.mxu0 0.0
    %6892 = vmatpush1.msra.mxu0 0.0
    %6893 = vmatprep.subr.mxu0 0.0
    %6894 = vmatpush1.msra.mxu0 0.0
    %6895 = vmatprep.mubr.f32.mxu0 0.0
    %6896 = vmatmul.mubr.f32.gmra.mrb[0].mxu0 %v4535
    %v6897 = vpop.f32.mrb[0].mxu0
    %v6898 = vadd.f32 0.0, %v6897
    %v6899 = vpop.f32.mrb[0].mxu0
    %6900 = vmatprep.mubr.f32.mxu0 0.0
    %6901 = vmatmul.mubr.f32.gmra.mrb[0].mxu0 %v4538
    %v6902 = vpop.f32.mrb[0].mxu0
    %v6903 = vadd.f32 0.0, %v6902
    %v6904 = vpop.f32.mrb[0].mxu0
    %6905 = vdwg.mxu0
    %s6906 = scalar_lea.vmem %s7, 224
    %v6907 = vld [vmem:[%s6906] sm:$0xff]
    %v6908 = vld [vmem:[%s6906 + $0x8] sm:$0xff]
    %v6910 = vsel %vm4533, %v6907, 0
    %v6913 = vsel %vm4533, %v6908, 0
    %6915 = vmatprep.subr.mxu0 0.0
    %6916 = vmatpush1.msra.mxu0 %v6898
    %6917 = vmatprep.subr.mxu0 0.0
    %6918 = vmatpush1.msra.mxu0 %v6903
    %6919 = vmatprep.subr.mxu0 0.0
    %6920 = vmatpush1.msra.mxu0 0.0
    %6921 = vmatprep.subr.mxu0 0.0
    %6922 = vmatpush1.msra.mxu0 0.0
    %6923 = vmatprep.subr.mxu0 0.0
    %6924 = vmatpush1.msra.mxu0 0.0
    %6925 = vmatprep.subr.mxu0 0.0
    %6926 = vmatpush1.msra.mxu0 0.0
    %6927 = vmatprep.subr.mxu0 0.0
    %6928 = vmatpush1.msra.mxu0 0.0
    %6929 = vmatprep.subr.mxu0 0.0
    %6930 = vmatpush1.msra.mxu0 0.0
    %6931 = vmatprep.subr.mxu0 0.0
    %6932 = vmatpush1.msra.mxu0 0.0
    %6933 = vmatprep.subr.mxu0 0.0
    %6934 = vmatpush1.msra.mxu0 0.0
    %6935 = vmatprep.subr.mxu0 0.0
    %6936 = vmatpush1.msra.mxu0 0.0
    %6937 = vmatprep.subr.mxu0 0.0
    %6938 = vmatpush1.msra.mxu0 0.0
    %6939 = vmatprep.subr.mxu0 0.0
    %6940 = vmatpush1.msra.mxu0 0.0
    %6941 = vmatprep.subr.mxu0 0.0
    %6942 = vmatpush1.msra.mxu0 0.0
    %6943 = vmatprep.subr.mxu0 0.0
    %6944 = vmatpush1.msra.mxu0 0.0
    %6945 = vmatprep.subr.mxu0 0.0
    %6946 = vmatpush1.msra.mxu0 0.0
    %6947 = vmatprep.subr.mxu0 0.0
    %6948 = vmatpush1.msra.mxu0 0.0
    %6949 = vmatprep.subr.mxu0 0.0
    %6950 = vmatpush1.msra.mxu0 0.0
    %6951 = vmatprep.subr.mxu0 0.0
    %6952 = vmatpush1.msra.mxu0 0.0
    %6953 = vmatprep.subr.mxu0 0.0
    %6954 = vmatpush1.msra.mxu0 0.0
    %6955 = vmatprep.subr.mxu0 0.0
    %6956 = vmatpush1.msra.mxu0 0.0
    %6957 = vmatprep.subr.mxu0 0.0
    %6958 = vmatpush1.msra.mxu0 0.0
    %6959 = vmatprep.subr.mxu0 0.0
    %6960 = vmatpush1.msra.mxu0 0.0
    %6961 = vmatprep.subr.mxu0 0.0
    %6962 = vmatpush1.msra.mxu0 0.0
    %6963 = vmatprep.subr.mxu0 0.0
    %6964 = vmatpush1.msra.mxu0 0.0
    %6965 = vmatprep.subr.mxu0 0.0
    %6966 = vmatpush1.msra.mxu0 0.0
    %6967 = vmatprep.subr.mxu0 0.0
    %6968 = vmatpush1.msra.mxu0 0.0
    %6969 = vmatprep.subr.mxu0 0.0
    %6970 = vmatpush1.msra.mxu0 0.0
    %6971 = vmatprep.subr.mxu0 0.0
    %6972 = vmatpush1.msra.mxu0 0.0
    %6973 = vmatprep.subr.mxu0 0.0
    %6974 = vmatpush1.msra.mxu0 0.0
    %6975 = vmatprep.subr.mxu0 0.0
    %6976 = vmatpush1.msra.mxu0 0.0
    %6977 = vmatprep.subr.mxu0 0.0
    %6978 = vmatpush1.msra.mxu0 0.0
    %6979 = vmatprep.mubr.f32.mxu0 0.0
    %6980 = vmatmul.mubr.f32.gmra.mrb[0].mxu0 %v6910
    %v6981 = vpop.f32.mrb[0].mxu0
    %v6982 = vadd.f32 0.0, %v6981
    %v6983 = vpop.f32.mrb[0].mxu0
    %6984 = vmatprep.mubr.f32.mxu0 0.0
    %6985 = vmatmul.mubr.f32.gmra.mrb[0].mxu0 %v6913
    %v6986 = vpop.f32.mrb[0].mxu0
    %v6987 = vadd.f32 0.0, %v6986
    %v6988 = vpop.f32.mrb[0].mxu0
    %6989 = vdwg.mxu0
    %v6990 = vadd.f32 %v6826, %v6982
    %v6991 = vadd.f32 %v6827, %v6987
    %s6992 = scalar_lea.vmem %s6, 240
    %v6993 = vld [vmem:[%s6992] sm:$0xff]
    %v6994 = vld [vmem:[%s6992 + $0x8] sm:$0xff]
    %6995 = vmatprep.subr.mxu0 0.0
    %6996 = vmatpush1.msra.mxu0 %v6993
    %6997 = vmatprep.subr.mxu0 0.0
    %6998 = vmatpush1.msra.mxu0 %v6994
    %6999 = vmatprep.subr.mxu0 0.0
    %7000 = vmatpush1.msra.mxu0 0.0
    %7001 = vmatprep.subr.mxu0 0.0
    %7002 = vmatpush1.msra.mxu0 0.0
    %7003 = vmatprep.subr.mxu0 0.0
    %7004 = vmatpush1.msra.mxu0 0.0
    %7005 = vmatprep.subr.mxu0 0.0
    %7006 = vmatpush1.msra.mxu0 0.0
    %7007 = vmatprep.subr.mxu0 0.0
    %7008 = vmatpush1.msra.mxu0 0.0
    %7009 = vmatprep.subr.mxu0 0.0
    %7010 = vmatpush1.msra.mxu0 0.0
    %7011 = vmatprep.subr.mxu0 0.0
    %7012 = vmatpush1.msra.mxu0 0.0
    %7013 = vmatprep.subr.mxu0 0.0
    %7014 = vmatpush1.msra.mxu0 0.0
    %7015 = vmatprep.subr.mxu0 0.0
    %7016 = vmatpush1.msra.mxu0 0.0
    %7017 = vmatprep.subr.mxu0 0.0
    %7018 = vmatpush1.msra.mxu0 0.0
    %7019 = vmatprep.subr.mxu0 0.0
    %7020 = vmatpush1.msra.mxu0 0.0
    %7021 = vmatprep.subr.mxu0 0.0
    %7022 = vmatpush1.msra.mxu0 0.0
    %7023 = vmatprep.subr.mxu0 0.0
    %7024 = vmatpush1.msra.mxu0 0.0
    %7025 = vmatprep.subr.mxu0 0.0
    %7026 = vmatpush1.msra.mxu0 0.0
    %7027 = vmatprep.subr.mxu0 0.0
    %7028 = vmatpush1.msra.mxu0 0.0
    %7029 = vmatprep.subr.mxu0 0.0
    %7030 = vmatpush1.msra.mxu0 0.0
    %7031 = vmatprep.subr.mxu0 0.0
    %7032 = vmatpush1.msra.mxu0 0.0
    %7033 = vmatprep.subr.mxu0 0.0
    %7034 = vmatpush1.msra.mxu0 0.0
    %7035 = vmatprep.subr.mxu0 0.0
    %7036 = vmatpush1.msra.mxu0 0.0
    %7037 = vmatprep.subr.mxu0 0.0
    %7038 = vmatpush1.msra.mxu0 0.0
    %7039 = vmatprep.subr.mxu0 0.0
    %7040 = vmatpush1.msra.mxu0 0.0
    %7041 = vmatprep.subr.mxu0 0.0
    %7042 = vmatpush1.msra.mxu0 0.0
    %7043 = vmatprep.subr.mxu0 0.0
    %7044 = vmatpush1.msra.mxu0 0.0
    %7045 = vmatprep.subr.mxu0 0.0
    %7046 = vmatpush1.msra.mxu0 0.0
    %7047 = vmatprep.subr.mxu0 0.0
    %7048 = vmatpush1.msra.mxu0 0.0
    %7049 = vmatprep.subr.mxu0 0.0
    %7050 = vmatpush1.msra.mxu0 0.0
    %7051 = vmatprep.subr.mxu0 0.0
    %7052 = vmatpush1.msra.mxu0 0.0
    %7053 = vmatprep.subr.mxu0 0.0
    %7054 = vmatpush1.msra.mxu0 0.0
    %7055 = vmatprep.subr.mxu0 0.0
    %7056 = vmatpush1.msra.mxu0 0.0
    %7057 = vmatprep.subr.mxu0 0.0
    %7058 = vmatpush1.msra.mxu0 0.0
    %7059 = vmatprep.mubr.f32.mxu0 0.0
    %7060 = vmatmul.mubr.f32.gmra.mrb[0].mxu0 %v4535
    %v7061 = vpop.f32.mrb[0].mxu0
    %v7062 = vadd.f32 0.0, %v7061
    %v7063 = vpop.f32.mrb[0].mxu0
    %7064 = vmatprep.mubr.f32.mxu0 0.0
    %7065 = vmatmul.mubr.f32.gmra.mrb[0].mxu0 %v4538
    %v7066 = vpop.f32.mrb[0].mxu0
    %v7067 = vadd.f32 0.0, %v7066
    %v7068 = vpop.f32.mrb[0].mxu0
    %7069 = vdwg.mxu0
    %s7070 = scalar_lea.vmem %s7, 240
    %v7071 = vld [vmem:[%s7070] sm:$0xff]
    %v7072 = vld [vmem:[%s7070 + $0x8] sm:$0xff]
    %v7074 = vsel %vm4533, %v7071, 0
    %v7077 = vsel %vm4533, %v7072, 0
    %7079 = vmatprep.subr.mxu0 0.0
    %7080 = vmatpush1.msra.mxu0 %v7062
    %7081 = vmatprep.subr.mxu0 0.0
    %7082 = vmatpush1.msra.mxu0 %v7067
    %7083 = vmatprep.subr.mxu0 0.0
    %7084 = vmatpush1.msra.mxu0 0.0
    %7085 = vmatprep.subr.mxu0 0.0
    %7086 = vmatpush1.msra.mxu0 0.0
    %7087 = vmatprep.subr.mxu0 0.0
    %7088 = vmatpush1.msra.mxu0 0.0
    %7089 = vmatprep.subr.mxu0 0.0
    %7090 = vmatpush1.msra.mxu0 0.0
    %7091 = vmatprep.subr.mxu0 0.0
    %7092 = vmatpush1.msra.mxu0 0.0
    %7093 = vmatprep.subr.mxu0 0.0
    %7094 = vmatpush1.msra.mxu0 0.0
    %7095 = vmatprep.subr.mxu0 0.0
    %7096 = vmatpush1.msra.mxu0 0.0
    %7097 = vmatprep.subr.mxu0 0.0
    %7098 = vmatpush1.msra.mxu0 0.0
    %7099 = vmatprep.subr.mxu0 0.0
    %7100 = vmatpush1.msra.mxu0 0.0
    %7101 = vmatprep.subr.mxu0 0.0
    %7102 = vmatpush1.msra.mxu0 0.0
    %7103 = vmatprep.subr.mxu0 0.0
    %7104 = vmatpush1.msra.mxu0 0.0
    %7105 = vmatprep.subr.mxu0 0.0
    %7106 = vmatpush1.msra.mxu0 0.0
    %7107 = vmatprep.subr.mxu0 0.0
    %7108 = vmatpush1.msra.mxu0 0.0
    %7109 = vmatprep.subr.mxu0 0.0
    %7110 = vmatpush1.msra.mxu0 0.0
    %7111 = vmatprep.subr.mxu0 0.0
    %7112 = vmatpush1.msra.mxu0 0.0
    %7113 = vmatprep.subr.mxu0 0.0
    %7114 = vmatpush1.msra.mxu0 0.0
    %7115 = vmatprep.subr.mxu0 0.0
    %7116 = vmatpush1.msra.mxu0 0.0
    %7117 = vmatprep.subr.mxu0 0.0
    %7118 = vmatpush1.msra.mxu0 0.0
    %7119 = vmatprep.subr.mxu0 0.0
    %7120 = vmatpush1.msra.mxu0 0.0
    %7121 = vmatprep.subr.mxu0 0.0
    %7122 = vmatpush1.msra.mxu0 0.0
    %7123 = vmatprep.subr.mxu0 0.0
    %7124 = vmatpush1.msra.mxu0 0.0
    %7125 = vmatprep.subr.mxu0 0.0
    %7126 = vmatpush1.msra.mxu0 0.0
    %7127 = vmatprep.subr.mxu0 0.0
    %7128 = vmatpush1.msra.mxu0 0.0
    %7129 = vmatprep.subr.mxu0 0.0
    %7130 = vmatpush1.msra.mxu0 0.0
    %7131 = vmatprep.subr.mxu0 0.0
    %7132 = vmatpush1.msra.mxu0 0.0
    %7133 = vmatprep.subr.mxu0 0.0
    %7134 = vmatpush1.msra.mxu0 0.0
    %7135 = vmatprep.subr.mxu0 0.0
    %7136 = vmatpush1.msra.mxu0 0.0
    %7137 = vmatprep.subr.mxu0 0.0
    %7138 = vmatpush1.msra.mxu0 0.0
    %7139 = vmatprep.subr.mxu0 0.0
    %7140 = vmatpush1.msra.mxu0 0.0
    %7141 = vmatprep.subr.mxu0 0.0
    %7142 = vmatpush1.msra.mxu0 0.0
    %7143 = vmatprep.mubr.f32.mxu0 0.0
    %7144 = vmatmul.mubr.f32.gmra.mrb[0].mxu0 %v7074
    %v7145 = vpop.f32.mrb[0].mxu0
    %v7146 = vadd.f32 0.0, %v7145
    %v7147 = vpop.f32.mrb[0].mxu0
    %7148 = vmatprep.mubr.f32.mxu0 0.0
    %7149 = vmatmul.mubr.f32.gmra.mrb[0].mxu0 %v7077
    %v7150 = vpop.f32.mrb[0].mxu0
    %v7151 = vadd.f32 0.0, %v7150
    %v7152 = vpop.f32.mrb[0].mxu0
    %7153 = vdwg.mxu0
    %v7154 = vadd.f32 %v6990, %v7146
    %v7155 = vadd.f32 %v6991, %v7151
    %s7156 = scalar_lea.vmem %s6, 256
    %v7157 = vld [vmem:[%s7156] sm:$0xff]
    %v7158 = vld [vmem:[%s7156 + $0x8] sm:$0xff]
    %7159 = vmatprep.subr.mxu0 0.0
    %7160 = vmatpush1.msra.mxu0 %v7157
    %7161 = vmatprep.subr.mxu0 0.0
    %7162 = vmatpush1.msra.mxu0 %v7158
    %7163 = vmatprep.subr.mxu0 0.0
    %7164 = vmatpush1.msra.mxu0 0.0
    %7165 = vmatprep.subr.mxu0 0.0
    %7166 = vmatpush1.msra.mxu0 0.0
    %7167 = vmatprep.subr.mxu0 0.0
    %7168 = vmatpush1.msra.mxu0 0.0
    %7169 = vmatprep.subr.mxu0 0.0
    %7170 = vmatpush1.msra.mxu0 0.0
    %7171 = vmatprep.subr.mxu0 0.0
    %7172 = vmatpush1.msra.mxu0 0.0
    %7173 = vmatprep.subr.mxu0 0.0
    %7174 = vmatpush1.msra.mxu0 0.0
    %7175 = vmatprep.subr.mxu0 0.0
    %7176 = vmatpush1.msra.mxu0 0.0
    %7177 = vmatprep.subr.mxu0 0.0
    %7178 = vmatpush1.msra.mxu0 0.0
    %7179 = vmatprep.subr.mxu0 0.0
    %7180 = vmatpush1.msra.mxu0 0.0
    %7181 = vmatprep.subr.mxu0 0.0
    %7182 = vmatpush1.msra.mxu0 0.0
    %7183 = vmatprep.subr.mxu0 0.0
    %7184 = vmatpush1.msra.mxu0 0.0
    %7185 = vmatprep.subr.mxu0 0.0
    %7186 = vmatpush1.msra.mxu0 0.0
    %7187 = vmatprep.subr.mxu0 0.0
    %7188 = vmatpush1.msra.mxu0 0.0
    %7189 = vmatprep.subr.mxu0 0.0
    %7190 = vmatpush1.msra.mxu0 0.0
    %7191 = vmatprep.subr.mxu0 0.0
    %7192 = vmatpush1.msra.mxu0 0.0
    %7193 = vmatprep.subr.mxu0 0.0
    %7194 = vmatpush1.msra.mxu0 0.0
    %7195 = vmatprep.subr.mxu0 0.0
    %7196 = vmatpush1.msra.mxu0 0.0
    %7197 = vmatprep.subr.mxu0 0.0
    %7198 = vmatpush1.msra.mxu0 0.0
    %7199 = vmatprep.subr.mxu0 0.0
    %7200 = vmatpush1.msra.mxu0 0.0
    %7201 = vmatprep.subr.mxu0 0.0
    %7202 = vmatpush1.msra.mxu0 0.0
    %7203 = vmatprep.subr.mxu0 0.0
    %7204 = vmatpush1.msra.mxu0 0.0
    %7205 = vmatprep.subr.mxu0 0.0
    %7206 = vmatpush1.msra.mxu0 0.0
    %7207 = vmatprep.subr.mxu0 0.0
    %7208 = vmatpush1.msra.mxu0 0.0
    %7209 = vmatprep.subr.mxu0 0.0
    %7210 = vmatpush1.msra.mxu0 0.0
    %7211 = vmatprep.subr.mxu0 0.0
    %7212 = vmatpush1.msra.mxu0 0.0
    %7213 = vmatprep.subr.mxu0 0.0
    %7214 = vmatpush1.msra.mxu0 0.0
    %7215 = vmatprep.subr.mxu0 0.0
    %7216 = vmatpush1.msra.mxu0 0.0
    %7217 = vmatprep.subr.mxu0 0.0
    %7218 = vmatpush1.msra.mxu0 0.0
    %7219 = vmatprep.subr.mxu0 0.0
    %7220 = vmatpush1.msra.mxu0 0.0
    %7221 = vmatprep.subr.mxu0 0.0
    %7222 = vmatpush1.msra.mxu0 0.0
    %7223 = vmatprep.mubr.f32.mxu0 0.0
    %7224 = vmatmul.mubr.f32.gmra.mrb[0].mxu0 %v4535
    %v7225 = vpop.f32.mrb[0].mxu0
    %v7226 = vadd.f32 0.0, %v7225
    %v7227 = vpop.f32.mrb[0].mxu0
    %7228 = vmatprep.mubr.f32.mxu0 0.0
    %7229 = vmatmul.mubr.f32.gmra.mrb[0].mxu0 %v4538
    %v7230 = vpop.f32.mrb[0].mxu0
    %v7231 = vadd.f32 0.0, %v7230
    %v7232 = vpop.f32.mrb[0].mxu0
    %7233 = vdwg.mxu0
    %s7234 = scalar_lea.vmem %s7, 256
    %v7235 = vld [vmem:[%s7234] sm:$0xff]
    %v7236 = vld [vmem:[%s7234 + $0x8] sm:$0xff]
    %v7238 = vsel %vm4533, %v7235, 0
    %v7241 = vsel %vm4533, %v7236, 0
    %7243 = vmatprep.subr.mxu0 0.0
    %7244 = vmatpush1.msra.mxu0 %v7226
    %7245 = vmatprep.subr.mxu0 0.0
    %7246 = vmatpush1.msra.mxu0 %v7231
    %7247 = vmatprep.subr.mxu0 0.0
    %7248 = vmatpush1.msra.mxu0 0.0
    %7249 = vmatprep.subr.mxu0 0.0
    %7250 = vmatpush1.msra.mxu0 0.0
    %7251 = vmatprep.subr.mxu0 0.0
    %7252 = vmatpush1.msra.mxu0 0.0
    %7253 = vmatprep.subr.mxu0 0.0
    %7254 = vmatpush1.msra.mxu0 0.0
    %7255 = vmatprep.subr.mxu0 0.0
    %7256 = vmatpush1.msra.mxu0 0.0
    %7257 = vmatprep.subr.mxu0 0.0
    %7258 = vmatpush1.msra.mxu0 0.0
    %7259 = vmatprep.subr.mxu0 0.0
    %7260 = vmatpush1.msra.mxu0 0.0
    %7261 = vmatprep.subr.mxu0 0.0
    %7262 = vmatpush1.msra.mxu0 0.0
    %7263 = vmatprep.subr.mxu0 0.0
    %7264 = vmatpush1.msra.mxu0 0.0
    %7265 = vmatprep.subr.mxu0 0.0
    %7266 = vmatpush1.msra.mxu0 0.0
    %7267 = vmatprep.subr.mxu0 0.0
    %7268 = vmatpush1.msra.mxu0 0.0
    %7269 = vmatprep.subr.mxu0 0.0
    %7270 = vmatpush1.msra.mxu0 0.0
    %7271 = vmatprep.subr.mxu0 0.0
    %7272 = vmatpush1.msra.mxu0 0.0
    %7273 = vmatprep.subr.mxu0 0.0
    %7274 = vmatpush1.msra.mxu0 0.0
    %7275 = vmatprep.subr.mxu0 0.0
    %7276 = vmatpush1.msra.mxu0 0.0
    %7277 = vmatprep.subr.mxu0 0.0
    %7278 = vmatpush1.msra.mxu0 0.0
    %7279 = vmatprep.subr.mxu0 0.0
    %7280 = vmatpush1.msra.mxu0 0.0
    %7281 = vmatprep.subr.mxu0 0.0
    %7282 = vmatpush1.msra.mxu0 0.0
    %7283 = vmatprep.subr.mxu0 0.0
    %7284 = vmatpush1.msra.mxu0 0.0
    %7285 = vmatprep.subr.mxu0 0.0
    %7286 = vmatpush1.msra.mxu0 0.0
    %7287 = vmatprep.subr.mxu0 0.0
    %7288 = vmatpush1.msra.mxu0 0.0
    %7289 = vmatprep.subr.mxu0 0.0
    %7290 = vmatpush1.msra.mxu0 0.0
    %7291 = vmatprep.subr.mxu0 0.0
    %7292 = vmatpush1.msra.mxu0 0.0
    %7293 = vmatprep.subr.mxu0 0.0
    %7294 = vmatpush1.msra.mxu0 0.0
    %7295 = vmatprep.subr.mxu0 0.0
    %7296 = vmatpush1.msra.mxu0 0.0
    %7297 = vmatprep.subr.mxu0 0.0
    %7298 = vmatpush1.msra.mxu0 0.0
    %7299 = vmatprep.subr.mxu0 0.0
    %7300 = vmatpush1.msra.mxu0 0.0
    %7301 = vmatprep.subr.mxu0 0.0
    %7302 = vmatpush1.msra.mxu0 0.0
    %7303 = vmatprep.subr.mxu0 0.0
    %7304 = vmatpush1.msra.mxu0 0.0
    %7305 = vmatprep.subr.mxu0 0.0
    %7306 = vmatpush1.msra.mxu0 0.0
    %7307 = vmatprep.mubr.f32.mxu0 0.0
    %7308 = vmatmul.mubr.f32.gmra.mrb[0].mxu0 %v7238
    %v7309 = vpop.f32.mrb[0].mxu0
    %v7310 = vadd.f32 0.0, %v7309
    %v7311 = vpop.f32.mrb[0].mxu0
    %7312 = vmatprep.mubr.f32.mxu0 0.0
    %7313 = vmatmul.mubr.f32.gmra.mrb[0].mxu0 %v7241
    %v7314 = vpop.f32.mrb[0].mxu0
    %v7315 = vadd.f32 0.0, %v7314
    %v7316 = vpop.f32.mrb[0].mxu0
    %7317 = vdwg.mxu0
    %v7318 = vadd.f32 %v7154, %v7310
    %v7319 = vadd.f32 %v7155, %v7315
    %s7320 = scalar_lea.vmem %s6, 272
    %v7321 = vld [vmem:[%s7320] sm:$0xff]
    %v7322 = vld [vmem:[%s7320 + $0x8] sm:$0xff]
    %7323 = vmatprep.subr.mxu0 0.0
    %7324 = vmatpush1.msra.mxu0 %v7321
    %7325 = vmatprep.subr.mxu0 0.0
    %7326 = vmatpush1.msra.mxu0 %v7322
    %7327 = vmatprep.subr.mxu0 0.0
    %7328 = vmatpush1.msra.mxu0 0.0
    %7329 = vmatprep.subr.mxu0 0.0
    %7330 = vmatpush1.msra.mxu0 0.0
    %7331 = vmatprep.subr.mxu0 0.0
    %7332 = vmatpush1.msra.mxu0 0.0
    %7333 = vmatprep.subr.mxu0 0.0
    %7334 = vmatpush1.msra.mxu0 0.0
    %7335 = vmatprep.subr.mxu0 0.0
    %7336 = vmatpush1.msra.mxu0 0.0
    %7337 = vmatprep.subr.mxu0 0.0
    %7338 = vmatpush1.msra.mxu0 0.0
    %7339 = vmatprep.subr.mxu0 0.0
    %7340 = vmatpush1.msra.mxu0 0.0
    %7341 = vmatprep.subr.mxu0 0.0
    %7342 = vmatpush1.msra.mxu0 0.0
    %7343 = vmatprep.subr.mxu0 0.0
    %7344 = vmatpush1.msra.mxu0 0.0
    %7345 = vmatprep.subr.mxu0 0.0
    %7346 = vmatpush1.msra.mxu0 0.0
    %7347 = vmatprep.subr.mxu0 0.0
    %7348 = vmatpush1.msra.mxu0 0.0
    %7349 = vmatprep.subr.mxu0 0.0
    %7350 = vmatpush1.msra.mxu0 0.0
    %7351 = vmatprep.subr.mxu0 0.0
    %7352 = vmatpush1.msra.mxu0 0.0
    %7353 = vmatprep.subr.mxu0 0.0
    %7354 = vmatpush1.msra.mxu0 0.0
    %7355 = vmatprep.subr.mxu0 0.0
    %7356 = vmatpush1.msra.mxu0 0.0
    %7357 = vmatprep.subr.mxu0 0.0
    %7358 = vmatpush1.msra.mxu0 0.0
    %7359 = vmatprep.subr.mxu0 0.0
    %7360 = vmatpush1.msra.mxu0 0.0
    %7361 = vmatprep.subr.mxu0 0.0
    %7362 = vmatpush1.msra.mxu0 0.0
    %7363 = vmatprep.subr.mxu0 0.0
    %7364 = vmatpush1.msra.mxu0 0.0
    %7365 = vmatprep.subr.mxu0 0.0
    %7366 = vmatpush1.msra.mxu0 0.0
    %7367 = vmatprep.subr.mxu0 0.0
    %7368 = vmatpush1.msra.mxu0 0.0
    %7369 = vmatprep.subr.mxu0 0.0
    %7370 = vmatpush1.msra.mxu0 0.0
    %7371 = vmatprep.subr.mxu0 0.0
    %7372 = vmatpush1.msra.mxu0 0.0
    %7373 = vmatprep.subr.mxu0 0.0
    %7374 = vmatpush1.msra.mxu0 0.0
    %7375 = vmatprep.subr.mxu0 0.0
    %7376 = vmatpush1.msra.mxu0 0.0
    %7377 = vmatprep.subr.mxu0 0.0
    %7378 = vmatpush1.msra.mxu0 0.0
    %7379 = vmatprep.subr.mxu0 0.0
    %7380 = vmatpush1.msra.mxu0 0.0
    %7381 = vmatprep.subr.mxu0 0.0
    %7382 = vmatpush1.msra.mxu0 0.0
    %7383 = vmatprep.subr.mxu0 0.0
    %7384 = vmatpush1.msra.mxu0 0.0
    %7385 = vmatprep.subr.mxu0 0.0
    %7386 = vmatpush1.msra.mxu0 0.0
    %7387 = vmatprep.mubr.f32.mxu0 0.0
    %7388 = vmatmul.mubr.f32.gmra.mrb[0].mxu0 %v4535
    %v7389 = vpop.f32.mrb[0].mxu0
    %v7390 = vadd.f32 0.0, %v7389
    %v7391 = vpop.f32.mrb[0].mxu0
    %7392 = vmatprep.mubr.f32.mxu0 0.0
    %7393 = vmatmul.mubr.f32.gmra.mrb[0].mxu0 %v4538
    %v7394 = vpop.f32.mrb[0].mxu0
    %v7395 = vadd.f32 0.0, %v7394
    %v7396 = vpop.f32.mrb[0].mxu0
    %7397 = vdwg.mxu0
    %s7398 = scalar_lea.vmem %s7, 272
    %v7399 = vld [vmem:[%s7398] sm:$0xff]
    %v7400 = vld [vmem:[%s7398 + $0x8] sm:$0xff]
    %v7402 = vsel %vm4533, %v7399, 0
    %v7405 = vsel %vm4533, %v7400, 0
    %7407 = vmatprep.subr.mxu0 0.0
    %7408 = vmatpush1.msra.mxu0 %v7390
    %7409 = vmatprep.subr.mxu0 0.0
    %7410 = vmatpush1.msra.mxu0 %v7395
    %7411 = vmatprep.subr.mxu0 0.0
    %7412 = vmatpush1.msra.mxu0 0.0
    %7413 = vmatprep.subr.mxu0 0.0
    %7414 = vmatpush1.msra.mxu0 0.0
    %7415 = vmatprep.subr.mxu0 0.0
    %7416 = vmatpush1.msra.mxu0 0.0
    %7417 = vmatprep.subr.mxu0 0.0
    %7418 = vmatpush1.msra.mxu0 0.0
    %7419 = vmatprep.subr.mxu0 0.0
    %7420 = vmatpush1.msra.mxu0 0.0
    %7421 = vmatprep.subr.mxu0 0.0
    %7422 = vmatpush1.msra.mxu0 0.0
    %7423 = vmatprep.subr.mxu0 0.0
    %7424 = vmatpush1.msra.mxu0 0.0
    %7425 = vmatprep.subr.mxu0 0.0
    %7426 = vmatpush1.msra.mxu0 0.0
    %7427 = vmatprep.subr.mxu0 0.0
    %7428 = vmatpush1.msra.mxu0 0.0
    %7429 = vmatprep.subr.mxu0 0.0
    %7430 = vmatpush1.msra.mxu0 0.0
    %7431 = vmatprep.subr.mxu0 0.0
    %7432 = vmatpush1.msra.mxu0 0.0
    %7433 = vmatprep.subr.mxu0 0.0
    %7434 = vmatpush1.msra.mxu0 0.0
    %7435 = vmatprep.subr.mxu0 0.0
    %7436 = vmatpush1.msra.mxu0 0.0
    %7437 = vmatprep.subr.mxu0 0.0
    %7438 = vmatpush1.msra.mxu0 0.0
    %7439 = vmatprep.subr.mxu0 0.0
    %7440 = vmatpush1.msra.mxu0 0.0
    %7441 = vmatprep.subr.mxu0 0.0
    %7442 = vmatpush1.msra.mxu0 0.0
    %7443 = vmatprep.subr.mxu0 0.0
    %7444 = vmatpush1.msra.mxu0 0.0
    %7445 = vmatprep.subr.mxu0 0.0
    %7446 = vmatpush1.msra.mxu0 0.0
    %7447 = vmatprep.subr.mxu0 0.0
    %7448 = vmatpush1.msra.mxu0 0.0
    %7449 = vmatprep.subr.mxu0 0.0
    %7450 = vmatpush1.msra.mxu0 0.0
    %7451 = vmatprep.subr.mxu0 0.0
    %7452 = vmatpush1.msra.mxu0 0.0
    %7453 = vmatprep.subr.mxu0 0.0
    %7454 = vmatpush1.msra.mxu0 0.0
    %7455 = vmatprep.subr.mxu0 0.0
    %7456 = vmatpush1.msra.mxu0 0.0
    %7457 = vmatprep.subr.mxu0 0.0
    %7458 = vmatpush1.msra.mxu0 0.0
    %7459 = vmatprep.subr.mxu0 0.0
    %7460 = vmatpush1.msra.mxu0 0.0
    %7461 = vmatprep.subr.mxu0 0.0
    %7462 = vmatpush1.msra.mxu0 0.0
    %7463 = vmatprep.subr.mxu0 0.0
    %7464 = vmatpush1.msra.mxu0 0.0
    %7465 = vmatprep.subr.mxu0 0.0
    %7466 = vmatpush1.msra.mxu0 0.0
    %7467 = vmatprep.subr.mxu0 0.0
    %7468 = vmatpush1.msra.mxu0 0.0
    %7469 = vmatprep.subr.mxu0 0.0
    %7470 = vmatpush1.msra.mxu0 0.0
    %7471 = vmatprep.mubr.f32.mxu0 0.0
    %7472 = vmatmul.mubr.f32.gmra.mrb[0].mxu0 %v7402
    %v7473 = vpop.f32.mrb[0].mxu0
    %v7474 = vadd.f32 0.0, %v7473
    %v7475 = vpop.f32.mrb[0].mxu0
    %7476 = vmatprep.mubr.f32.mxu0 0.0
    %7477 = vmatmul.mubr.f32.gmra.mrb[0].mxu0 %v7405
    %v7478 = vpop.f32.mrb[0].mxu0
    %v7479 = vadd.f32 0.0, %v7478
    %v7480 = vpop.f32.mrb[0].mxu0
    %7481 = vdwg.mxu0
    %v7482 = vadd.f32 %v7318, %v7474
    %v7483 = vadd.f32 %v7319, %v7479
    %s7484 = scalar_lea.vmem %s6, 288
    %v7485 = vld [vmem:[%s7484] sm:$0xff]
    %v7486 = vld [vmem:[%s7484 + $0x8] sm:$0xff]
    %7487 = vmatprep.subr.mxu0 0.0
    %7488 = vmatpush1.msra.mxu0 %v7485
    %7489 = vmatprep.subr.mxu0 0.0
    %7490 = vmatpush1.msra.mxu0 %v7486
    %7491 = vmatprep.subr.mxu0 0.0
    %7492 = vmatpush1.msra.mxu0 0.0
    %7493 = vmatprep.subr.mxu0 0.0
    %7494 = vmatpush1.msra.mxu0 0.0
    %7495 = vmatprep.subr.mxu0 0.0
    %7496 = vmatpush1.msra.mxu0 0.0
    %7497 = vmatprep.subr.mxu0 0.0
    %7498 = vmatpush1.msra.mxu0 0.0
    %7499 = vmatprep.subr.mxu0 0.0
    %7500 = vmatpush1.msra.mxu0 0.0
    %7501 = vmatprep.subr.mxu0 0.0
    %7502 = vmatpush1.msra.mxu0 0.0
    %7503 = vmatprep.subr.mxu0 0.0
    %7504 = vmatpush1.msra.mxu0 0.0
    %7505 = vmatprep.subr.mxu0 0.0
    %7506 = vmatpush1.msra.mxu0 0.0
    %7507 = vmatprep.subr.mxu0 0.0
    %7508 = vmatpush1.msra.mxu0 0.0
    %7509 = vmatprep.subr.mxu0 0.0
    %7510 = vmatpush1.msra.mxu0 0.0
    %7511 = vmatprep.subr.mxu0 0.0
    %7512 = vmatpush1.msra.mxu0 0.0
    %7513 = vmatprep.subr.mxu0 0.0
    %7514 = vmatpush1.msra.mxu0 0.0
    %7515 = vmatprep.subr.mxu0 0.0
    %7516 = vmatpush1.msra.mxu0 0.0
    %7517 = vmatprep.subr.mxu0 0.0
    %7518 = vmatpush1.msra.mxu0 0.0
    %7519 = vmatprep.subr.mxu0 0.0
    %7520 = vmatpush1.msra.mxu0 0.0
    %7521 = vmatprep.subr.mxu0 0.0
    %7522 = vmatpush1.msra.mxu0 0.0
    %7523 = vmatprep.subr.mxu0 0.0
    %7524 = vmatpush1.msra.mxu0 0.0
    %7525 = vmatprep.subr.mxu0 0.0
    %7526 = vmatpush1.msra.mxu0 0.0
    %7527 = vmatprep.subr.mxu0 0.0
    %7528 = vmatpush1.msra.mxu0 0.0
    %7529 = vmatprep.subr.mxu0 0.0
    %7530 = vmatpush1.msra.mxu0 0.0
    %7531 = vmatprep.subr.mxu0 0.0
    %7532 = vmatpush1.msra.mxu0 0.0
    %7533 = vmatprep.subr.mxu0 0.0
    %7534 = vmatpush1.msra.mxu0 0.0
    %7535 = vmatprep.subr.mxu0 0.0
    %7536 = vmatpush1.msra.mxu0 0.0
    %7537 = vmatprep.subr.mxu0 0.0
    %7538 = vmatpush1.msra.mxu0 0.0
    %7539 = vmatprep.subr.mxu0 0.0
    %7540 = vmatpush1.msra.mxu0 0.0
    %7541 = vmatprep.subr.mxu0 0.0
    %7542 = vmatpush1.msra.mxu0 0.0
    %7543 = vmatprep.subr.mxu0 0.0
    %7544 = vmatpush1.msra.mxu0 0.0
    %7545 = vmatprep.subr.mxu0 0.0
    %7546 = vmatpush1.msra.mxu0 0.0
    %7547 = vmatprep.subr.mxu0 0.0
    %7548 = vmatpush1.msra.mxu0 0.0
    %7549 = vmatprep.subr.mxu0 0.0
    %7550 = vmatpush1.msra.mxu0 0.0
    %7551 = vmatprep.mubr.f32.mxu0 0.0
    %7552 = vmatmul.mubr.f32.gmra.mrb[0].mxu0 %v4535
    %v7553 = vpop.f32.mrb[0].mxu0
    %v7554 = vadd.f32 0.0, %v7553
    %v7555 = vpop.f32.mrb[0].mxu0
    %7556 = vmatprep.mubr.f32.mxu0 0.0
    %7557 = vmatmul.mubr.f32.gmra.mrb[0].mxu0 %v4538
    %v7558 = vpop.f32.mrb[0].mxu0
    %v7559 = vadd.f32 0.0, %v7558
    %v7560 = vpop.f32.mrb[0].mxu0
    %7561 = vdwg.mxu0
    %s7562 = scalar_lea.vmem %s7, 288
    %v7563 = vld [vmem:[%s7562] sm:$0xff]
    %v7564 = vld [vmem:[%s7562 + $0x8] sm:$0xff]
    %v7566 = vsel %vm4533, %v7563, 0
    %v7569 = vsel %vm4533, %v7564, 0
    %7571 = vmatprep.subr.mxu0 0.0
    %7572 = vmatpush1.msra.mxu0 %v7554
    %7573 = vmatprep.subr.mxu0 0.0
    %7574 = vmatpush1.msra.mxu0 %v7559
    %7575 = vmatprep.subr.mxu0 0.0
    %7576 = vmatpush1.msra.mxu0 0.0
    %7577 = vmatprep.subr.mxu0 0.0
    %7578 = vmatpush1.msra.mxu0 0.0
    %7579 = vmatprep.subr.mxu0 0.0
    %7580 = vmatpush1.msra.mxu0 0.0
    %7581 = vmatprep.subr.mxu0 0.0
    %7582 = vmatpush1.msra.mxu0 0.0
    %7583 = vmatprep.subr.mxu0 0.0
    %7584 = vmatpush1.msra.mxu0 0.0
    %7585 = vmatprep.subr.mxu0 0.0
    %7586 = vmatpush1.msra.mxu0 0.0
    %7587 = vmatprep.subr.mxu0 0.0
    %7588 = vmatpush1.msra.mxu0 0.0
    %7589 = vmatprep.subr.mxu0 0.0
    %7590 = vmatpush1.msra.mxu0 0.0
    %7591 = vmatprep.subr.mxu0 0.0
    %7592 = vmatpush1.msra.mxu0 0.0
    %7593 = vmatprep.subr.mxu0 0.0
    %7594 = vmatpush1.msra.mxu0 0.0
    %7595 = vmatprep.subr.mxu0 0.0
    %7596 = vmatpush1.msra.mxu0 0.0
    %7597 = vmatprep.subr.mxu0 0.0
    %7598 = vmatpush1.msra.mxu0 0.0
    %7599 = vmatprep.subr.mxu0 0.0
    %7600 = vmatpush1.msra.mxu0 0.0
    %7601 = vmatprep.subr.mxu0 0.0
    %7602 = vmatpush1.msra.mxu0 0.0
    %7603 = vmatprep.subr.mxu0 0.0
    %7604 = vmatpush1.msra.mxu0 0.0
    %7605 = vmatprep.subr.mxu0 0.0
    %7606 = vmatpush1.msra.mxu0 0.0
    %7607 = vmatprep.subr.mxu0 0.0
    %7608 = vmatpush1.msra.mxu0 0.0
    %7609 = vmatprep.subr.mxu0 0.0
    %7610 = vmatpush1.msra.mxu0 0.0
    %7611 = vmatprep.subr.mxu0 0.0
    %7612 = vmatpush1.msra.mxu0 0.0
    %7613 = vmatprep.subr.mxu0 0.0
    %7614 = vmatpush1.msra.mxu0 0.0
    %7615 = vmatprep.subr.mxu0 0.0
    %7616 = vmatpush1.msra.mxu0 0.0
    %7617 = vmatprep.subr.mxu0 0.0
    %7618 = vmatpush1.msra.mxu0 0.0
    %7619 = vmatprep.subr.mxu0 0.0
    %7620 = vmatpush1.msra.mxu0 0.0
    %7621 = vmatprep.subr.mxu0 0.0
    %7622 = vmatpush1.msra.mxu0 0.0
    %7623 = vmatprep.subr.mxu0 0.0
    %7624 = vmatpush1.msra.mxu0 0.0
    %7625 = vmatprep.subr.mxu0 0.0
    %7626 = vmatpush1.msra.mxu0 0.0
    %7627 = vmatprep.subr.mxu0 0.0
    %7628 = vmatpush1.msra.mxu0 0.0
    %7629 = vmatprep.subr.mxu0 0.0
    %7630 = vmatpush1.msra.mxu0 0.0
    %7631 = vmatprep.subr.mxu0 0.0
    %7632 = vmatpush1.msra.mxu0 0.0
    %7633 = vmatprep.subr.mxu0 0.0
    %7634 = vmatpush1.msra.mxu0 0.0
    %7635 = vmatprep.mubr.f32.mxu0 0.0
    %7636 = vmatmul.mubr.f32.gmra.mrb[0].mxu0 %v7566
    %v7637 = vpop.f32.mrb[0].mxu0
    %v7638 = vadd.f32 0.0, %v7637
    %v7639 = vpop.f32.mrb[0].mxu0
    %7640 = vmatprep.mubr.f32.mxu0 0.0
    %7641 = vmatmul.mubr.f32.gmra.mrb[0].mxu0 %v7569
    %v7642 = vpop.f32.mrb[0].mxu0
    %v7643 = vadd.f32 0.0, %v7642
    %v7644 = vpop.f32.mrb[0].mxu0
    %7645 = vdwg.mxu0
    %v7646 = vadd.f32 %v7482, %v7638
    %v7647 = vadd.f32 %v7483, %v7643
    %s7648 = scalar_lea.vmem %s6, 304
    %v7649 = vld [vmem:[%s7648] sm:$0xff]
    %v7650 = vld [vmem:[%s7648 + $0x8] sm:$0xff]
    %7651 = vmatprep.subr.mxu0 0.0
    %7652 = vmatpush1.msra.mxu0 %v7649
    %7653 = vmatprep.subr.mxu0 0.0
    %7654 = vmatpush1.msra.mxu0 %v7650
    %7655 = vmatprep.subr.mxu0 0.0
    %7656 = vmatpush1.msra.mxu0 0.0
    %7657 = vmatprep.subr.mxu0 0.0
    %7658 = vmatpush1.msra.mxu0 0.0
    %7659 = vmatprep.subr.mxu0 0.0
    %7660 = vmatpush1.msra.mxu0 0.0
    %7661 = vmatprep.subr.mxu0 0.0
    %7662 = vmatpush1.msra.mxu0 0.0
    %7663 = vmatprep.subr.mxu0 0.0
    %7664 = vmatpush1.msra.mxu0 0.0
    %7665 = vmatprep.subr.mxu0 0.0
    %7666 = vmatpush1.msra.mxu0 0.0
    %7667 = vmatprep.subr.mxu0 0.0
    %7668 = vmatpush1.msra.mxu0 0.0
    %7669 = vmatprep.subr.mxu0 0.0
    %7670 = vmatpush1.msra.mxu0 0.0
    %7671 = vmatprep.subr.mxu0 0.0
    %7672 = vmatpush1.msra.mxu0 0.0
    %7673 = vmatprep.subr.mxu0 0.0
    %7674 = vmatpush1.msra.mxu0 0.0
    %7675 = vmatprep.subr.mxu0 0.0
    %7676 = vmatpush1.msra.mxu0 0.0
    %7677 = vmatprep.subr.mxu0 0.0
    %7678 = vmatpush1.msra.mxu0 0.0
    %7679 = vmatprep.subr.mxu0 0.0
    %7680 = vmatpush1.msra.mxu0 0.0
    %7681 = vmatprep.subr.mxu0 0.0
    %7682 = vmatpush1.msra.mxu0 0.0
    %7683 = vmatprep.subr.mxu0 0.0
    %7684 = vmatpush1.msra.mxu0 0.0
    %7685 = vmatprep.subr.mxu0 0.0
    %7686 = vmatpush1.msra.mxu0 0.0
    %7687 = vmatprep.subr.mxu0 0.0
    %7688 = vmatpush1.msra.mxu0 0.0
    %7689 = vmatprep.subr.mxu0 0.0
    %7690 = vmatpush1.msra.mxu0 0.0
    %7691 = vmatprep.subr.mxu0 0.0
    %7692 = vmatpush1.msra.mxu0 0.0
    %7693 = vmatprep.subr.mxu0 0.0
    %7694 = vmatpush1.msra.mxu0 0.0
    %7695 = vmatprep.subr.mxu0 0.0
    %7696 = vmatpush1.msra.mxu0 0.0
    %7697 = vmatprep.subr.mxu0 0.0
    %7698 = vmatpush1.msra.mxu0 0.0
    %7699 = vmatprep.subr.mxu0 0.0
    %7700 = vmatpush1.msra.mxu0 0.0
    %7701 = vmatprep.subr.mxu0 0.0
    %7702 = vmatpush1.msra.mxu0 0.0
    %7703 = vmatprep.subr.mxu0 0.0
    %7704 = vmatpush1.msra.mxu0 0.0
    %7705 = vmatprep.subr.mxu0 0.0
    %7706 = vmatpush1.msra.mxu0 0.0
    %7707 = vmatprep.subr.mxu0 0.0
    %7708 = vmatpush1.msra.mxu0 0.0
    %7709 = vmatprep.subr.mxu0 0.0
    %7710 = vmatpush1.msra.mxu0 0.0
    %7711 = vmatprep.subr.mxu0 0.0
    %7712 = vmatpush1.msra.mxu0 0.0
    %7713 = vmatprep.subr.mxu0 0.0
    %7714 = vmatpush1.msra.mxu0 0.0
    %7715 = vmatprep.mubr.f32.mxu0 0.0
    %7716 = vmatmul.mubr.f32.gmra.mrb[0].mxu0 %v4535
    %v7717 = vpop.f32.mrb[0].mxu0
    %v7718 = vadd.f32 0.0, %v7717
    %v7719 = vpop.f32.mrb[0].mxu0
    %7720 = vmatprep.mubr.f32.mxu0 0.0
    %7721 = vmatmul.mubr.f32.gmra.mrb[0].mxu0 %v4538
    %v7722 = vpop.f32.mrb[0].mxu0
    %v7723 = vadd.f32 0.0, %v7722
    %v7724 = vpop.f32.mrb[0].mxu0
    %7725 = vdwg.mxu0
    %s7726 = scalar_lea.vmem %s7, 304
    %v7727 = vld [vmem:[%s7726] sm:$0xff]
    %v7728 = vld [vmem:[%s7726 + $0x8] sm:$0xff]
    %v7730 = vsel %vm4533, %v7727, 0
    %v7733 = vsel %vm4533, %v7728, 0
    %7735 = vmatprep.subr.mxu0 0.0
    %7736 = vmatpush1.msra.mxu0 %v7718
    %7737 = vmatprep.subr.mxu0 0.0
    %7738 = vmatpush1.msra.mxu0 %v7723
    %7739 = vmatprep.subr.mxu0 0.0
    %7740 = vmatpush1.msra.mxu0 0.0
    %7741 = vmatprep.subr.mxu0 0.0
    %7742 = vmatpush1.msra.mxu0 0.0
    %7743 = vmatprep.subr.mxu0 0.0
    %7744 = vmatpush1.msra.mxu0 0.0
    %7745 = vmatprep.subr.mxu0 0.0
    %7746 = vmatpush1.msra.mxu0 0.0
    %7747 = vmatprep.subr.mxu0 0.0
    %7748 = vmatpush1.msra.mxu0 0.0
    %7749 = vmatprep.subr.mxu0 0.0
    %7750 = vmatpush1.msra.mxu0 0.0
    %7751 = vmatprep.subr.mxu0 0.0
    %7752 = vmatpush1.msra.mxu0 0.0
    %7753 = vmatprep.subr.mxu0 0.0
    %7754 = vmatpush1.msra.mxu0 0.0
    %7755 = vmatprep.subr.mxu0 0.0
    %7756 = vmatpush1.msra.mxu0 0.0
    %7757 = vmatprep.subr.mxu0 0.0
    %7758 = vmatpush1.msra.mxu0 0.0
    %7759 = vmatprep.subr.mxu0 0.0
    %7760 = vmatpush1.msra.mxu0 0.0
    %7761 = vmatprep.subr.mxu0 0.0
    %7762 = vmatpush1.msra.mxu0 0.0
    %7763 = vmatprep.subr.mxu0 0.0
    %7764 = vmatpush1.msra.mxu0 0.0
    %7765 = vmatprep.subr.mxu0 0.0
    %7766 = vmatpush1.msra.mxu0 0.0
    %7767 = vmatprep.subr.mxu0 0.0
    %7768 = vmatpush1.msra.mxu0 0.0
    %7769 = vmatprep.subr.mxu0 0.0
    %7770 = vmatpush1.msra.mxu0 0.0
    %7771 = vmatprep.subr.mxu0 0.0
    %7772 = vmatpush1.msra.mxu0 0.0
    %7773 = vmatprep.subr.mxu0 0.0
    %7774 = vmatpush1.msra.mxu0 0.0
    %7775 = vmatprep.subr.mxu0 0.0
    %7776 = vmatpush1.msra.mxu0 0.0
    %7777 = vmatprep.subr.mxu0 0.0
    %7778 = vmatpush1.msra.mxu0 0.0
    %7779 = vmatprep.subr.mxu0 0.0
    %7780 = vmatpush1.msra.mxu0 0.0
    %7781 = vmatprep.subr.mxu0 0.0
    %7782 = vmatpush1.msra.mxu0 0.0
    %7783 = vmatprep.subr.mxu0 0.0
    %7784 = vmatpush1.msra.mxu0 0.0
    %7785 = vmatprep.subr.mxu0 0.0
    %7786 = vmatpush1.msra.mxu0 0.0
    %7787 = vmatprep.subr.mxu0 0.0
    %7788 = vmatpush1.msra.mxu0 0.0
    %7789 = vmatprep.subr.mxu0 0.0
    %7790 = vmatpush1.msra.mxu0 0.0
    %7791 = vmatprep.subr.mxu0 0.0
    %7792 = vmatpush1.msra.mxu0 0.0
    %7793 = vmatprep.subr.mxu0 0.0
    %7794 = vmatpush1.msra.mxu0 0.0
    %7795 = vmatprep.subr.mxu0 0.0
    %7796 = vmatpush1.msra.mxu0 0.0
    %7797 = vmatprep.subr.mxu0 0.0
    %7798 = vmatpush1.msra.mxu0 0.0
    %7799 = vmatprep.mubr.f32.mxu0 0.0
    %7800 = vmatmul.mubr.f32.gmra.mrb[0].mxu0 %v7730
    %v7801 = vpop.f32.mrb[0].mxu0
    %v7802 = vadd.f32 0.0, %v7801
    %v7803 = vpop.f32.mrb[0].mxu0
    %7804 = vmatprep.mubr.f32.mxu0 0.0
    %7805 = vmatmul.mubr.f32.gmra.mrb[0].mxu0 %v7733
    %v7806 = vpop.f32.mrb[0].mxu0
    %v7807 = vadd.f32 0.0, %v7806
    %v7808 = vpop.f32.mrb[0].mxu0
    %7809 = vdwg.mxu0
    %v7810 = vadd.f32 %v7646, %v7802
    %v7811 = vadd.f32 %v7647, %v7807
    %s7812 = scalar_lea.vmem %s6, 320
    %v7813 = vld [vmem:[%s7812] sm:$0xff]
    %v7814 = vld [vmem:[%s7812 + $0x8] sm:$0xff]
    %7815 = vmatprep.subr.mxu0 0.0
    %7816 = vmatpush1.msra.mxu0 %v7813
    %7817 = vmatprep.subr.mxu0 0.0
    %7818 = vmatpush1.msra.mxu0 %v7814
    %7819 = vmatprep.subr.mxu0 0.0
    %7820 = vmatpush1.msra.mxu0 0.0
    %7821 = vmatprep.subr.mxu0 0.0
    %7822 = vmatpush1.msra.mxu0 0.0
    %7823 = vmatprep.subr.mxu0 0.0
    %7824 = vmatpush1.msra.mxu0 0.0
    %7825 = vmatprep.subr.mxu0 0.0
    %7826 = vmatpush1.msra.mxu0 0.0
    %7827 = vmatprep.subr.mxu0 0.0
    %7828 = vmatpush1.msra.mxu0 0.0
    %7829 = vmatprep.subr.mxu0 0.0
    %7830 = vmatpush1.msra.mxu0 0.0
    %7831 = vmatprep.subr.mxu0 0.0
    %7832 = vmatpush1.msra.mxu0 0.0
    %7833 = vmatprep.subr.mxu0 0.0
    %7834 = vmatpush1.msra.mxu0 0.0
    %7835 = vmatprep.subr.mxu0 0.0
    %7836 = vmatpush1.msra.mxu0 0.0
    %7837 = vmatprep.subr.mxu0 0.0
    %7838 = vmatpush1.msra.mxu0 0.0
    %7839 = vmatprep.subr.mxu0 0.0
    %7840 = vmatpush1.msra.mxu0 0.0
    %7841 = vmatprep.subr.mxu0 0.0
    %7842 = vmatpush1.msra.mxu0 0.0
    %7843 = vmatprep.subr.mxu0 0.0
    %7844 = vmatpush1.msra.mxu0 0.0
    %7845 = vmatprep.subr.mxu0 0.0
    %7846 = vmatpush1.msra.mxu0 0.0
    %7847 = vmatprep.subr.mxu0 0.0
    %7848 = vmatpush1.msra.mxu0 0.0
    %7849 = vmatprep.subr.mxu0 0.0
    %7850 = vmatpush1.msra.mxu0 0.0
    %7851 = vmatprep.subr.mxu0 0.0
    %7852 = vmatpush1.msra.mxu0 0.0
    %7853 = vmatprep.subr.mxu0 0.0
    %7854 = vmatpush1.msra.mxu0 0.0
    %7855 = vmatprep.subr.mxu0 0.0
    %7856 = vmatpush1.msra.mxu0 0.0
    %7857 = vmatprep.subr.mxu0 0.0
    %7858 = vmatpush1.msra.mxu0 0.0
    %7859 = vmatprep.subr.mxu0 0.0
    %7860 = vmatpush1.msra.mxu0 0.0
    %7861 = vmatprep.subr.mxu0 0.0
    %7862 = vmatpush1.msra.mxu0 0.0
    %7863 = vmatprep.subr.mxu0 0.0
    %7864 = vmatpush1.msra.mxu0 0.0
    %7865 = vmatprep.subr.mxu0 0.0
    %7866 = vmatpush1.msra.mxu0 0.0
    %7867 = vmatprep.subr.mxu0 0.0
    %7868 = vmatpush1.msra.mxu0 0.0
    %7869 = vmatprep.subr.mxu0 0.0
    %7870 = vmatpush1.msra.mxu0 0.0
    %7871 = vmatprep.subr.mxu0 0.0
    %7872 = vmatpush1.msra.mxu0 0.0
    %7873 = vmatprep.subr.mxu0 0.0
    %7874 = vmatpush1.msra.mxu0 0.0
    %7875 = vmatprep.subr.mxu0 0.0
    %7876 = vmatpush1.msra.mxu0 0.0
    %7877 = vmatprep.subr.mxu0 0.0
    %7878 = vmatpush1.msra.mxu0 0.0
    %7879 = vmatprep.mubr.f32.mxu0 0.0
    %7880 = vmatmul.mubr.f32.gmra.mrb[0].mxu0 %v4535
    %v7881 = vpop.f32.mrb[0].mxu0
    %v7882 = vadd.f32 0.0, %v7881
    %v7883 = vpop.f32.mrb[0].mxu0
    %7884 = vmatprep.mubr.f32.mxu0 0.0
    %7885 = vmatmul.mubr.f32.gmra.mrb[0].mxu0 %v4538
    %v7886 = vpop.f32.mrb[0].mxu0
    %v7887 = vadd.f32 0.0, %v7886
    %v7888 = vpop.f32.mrb[0].mxu0
    %7889 = vdwg.mxu0
    %s7890 = scalar_lea.vmem %s7, 320
    %v7891 = vld [vmem:[%s7890] sm:$0xff]
    %v7892 = vld [vmem:[%s7890 + $0x8] sm:$0xff]
    %v7894 = vsel %vm4533, %v7891, 0
    %v7897 = vsel %vm4533, %v7892, 0
    %7899 = vmatprep.subr.mxu0 0.0
    %7900 = vmatpush1.msra.mxu0 %v7882
    %7901 = vmatprep.subr.mxu0 0.0
    %7902 = vmatpush1.msra.mxu0 %v7887
    %7903 = vmatprep.subr.mxu0 0.0
    %7904 = vmatpush1.msra.mxu0 0.0
    %7905 = vmatprep.subr.mxu0 0.0
    %7906 = vmatpush1.msra.mxu0 0.0
    %7907 = vmatprep.subr.mxu0 0.0
    %7908 = vmatpush1.msra.mxu0 0.0
    %7909 = vmatprep.subr.mxu0 0.0
    %7910 = vmatpush1.msra.mxu0 0.0
    %7911 = vmatprep.subr.mxu0 0.0
    %7912 = vmatpush1.msra.mxu0 0.0
    %7913 = vmatprep.subr.mxu0 0.0
    %7914 = vmatpush1.msra.mxu0 0.0
    %7915 = vmatprep.subr.mxu0 0.0
    %7916 = vmatpush1.msra.mxu0 0.0
    %7917 = vmatprep.subr.mxu0 0.0
    %7918 = vmatpush1.msra.mxu0 0.0
    %7919 = vmatprep.subr.mxu0 0.0
    %7920 = vmatpush1.msra.mxu0 0.0
    %7921 = vmatprep.subr.mxu0 0.0
    %7922 = vmatpush1.msra.mxu0 0.0
    %7923 = vmatprep.subr.mxu0 0.0
    %7924 = vmatpush1.msra.mxu0 0.0
    %7925 = vmatprep.subr.mxu0 0.0
    %7926 = vmatpush1.msra.mxu0 0.0
    %7927 = vmatprep.subr.mxu0 0.0
    %7928 = vmatpush1.msra.mxu0 0.0
    %7929 = vmatprep.subr.mxu0 0.0
    %7930 = vmatpush1.msra.mxu0 0.0
    %7931 = vmatprep.subr.mxu0 0.0
    %7932 = vmatpush1.msra.mxu0 0.0
    %7933 = vmatprep.subr.mxu0 0.0
    %7934 = vmatpush1.msra.mxu0 0.0
    %7935 = vmatprep.subr.mxu0 0.0
    %7936 = vmatpush1.msra.mxu0 0.0
    %7937 = vmatprep.subr.mxu0 0.0
    %7938 = vmatpush1.msra.mxu0 0.0
    %7939 = vmatprep.subr.mxu0 0.0
    %7940 = vmatpush1.msra.mxu0 0.0
    %7941 = vmatprep.subr.mxu0 0.0
    %7942 = vmatpush1.msra.mxu0 0.0
    %7943 = vmatprep.subr.mxu0 0.0
    %7944 = vmatpush1.msra.mxu0 0.0
    %7945 = vmatprep.subr.mxu0 0.0
    %7946 = vmatpush1.msra.mxu0 0.0
    %7947 = vmatprep.subr.mxu0 0.0
    %7948 = vmatpush1.msra.mxu0 0.0
    %7949 = vmatprep.subr.mxu0 0.0
    %7950 = vmatpush1.msra.mxu0 0.0
    %7951 = vmatprep.subr.mxu0 0.0
    %7952 = vmatpush1.msra.mxu0 0.0
    %7953 = vmatprep.subr.mxu0 0.0
    %7954 = vmatpush1.msra.mxu0 0.0
    %7955 = vmatprep.subr.mxu0 0.0
    %7956 = vmatpush1.msra.mxu0 0.0
    %7957 = vmatprep.subr.mxu0 0.0
    %7958 = vmatpush1.msra.mxu0 0.0
    %7959 = vmatprep.subr.mxu0 0.0
    %7960 = vmatpush1.msra.mxu0 0.0
    %7961 = vmatprep.subr.mxu0 0.0
    %7962 = vmatpush1.msra.mxu0 0.0
    %7963 = vmatprep.mubr.f32.mxu0 0.0
    %7964 = vmatmul.mubr.f32.gmra.mrb[0].mxu0 %v7894
    %v7965 = vpop.f32.mrb[0].mxu0
    %v7966 = vadd.f32 0.0, %v7965
    %v7967 = vpop.f32.mrb[0].mxu0
    %7968 = vmatprep.mubr.f32.mxu0 0.0
    %7969 = vmatmul.mubr.f32.gmra.mrb[0].mxu0 %v7897
    %v7970 = vpop.f32.mrb[0].mxu0
    %v7971 = vadd.f32 0.0, %v7970
    %v7972 = vpop.f32.mrb[0].mxu0
    %7973 = vdwg.mxu0
    %v7974 = vadd.f32 %v7810, %v7966
    %v7975 = vadd.f32 %v7811, %v7971
    %s7976 = scalar_lea.vmem %s6, 336
    %v7977 = vld [vmem:[%s7976] sm:$0xff]
    %v7978 = vld [vmem:[%s7976 + $0x8] sm:$0xff]
    %7979 = vmatprep.subr.mxu0 0.0
    %7980 = vmatpush1.msra.mxu0 %v7977
    %7981 = vmatprep.subr.mxu0 0.0
    %7982 = vmatpush1.msra.mxu0 %v7978
    %7983 = vmatprep.subr.mxu0 0.0
    %7984 = vmatpush1.msra.mxu0 0.0
    %7985 = vmatprep.subr.mxu0 0.0
    %7986 = vmatpush1.msra.mxu0 0.0
    %7987 = vmatprep.subr.mxu0 0.0
    %7988 = vmatpush1.msra.mxu0 0.0
    %7989 = vmatprep.subr.mxu0 0.0
    %7990 = vmatpush1.msra.mxu0 0.0
    %7991 = vmatprep.subr.mxu0 0.0
    %7992 = vmatpush1.msra.mxu0 0.0
    %7993 = vmatprep.subr.mxu0 0.0
    %7994 = vmatpush1.msra.mxu0 0.0
    %7995 = vmatprep.subr.mxu0 0.0
    %7996 = vmatpush1.msra.mxu0 0.0
    %7997 = vmatprep.subr.mxu0 0.0
    %7998 = vmatpush1.msra.mxu0 0.0
    %7999 = vmatprep.subr.mxu0 0.0
    %8000 = vmatpush1.msra.mxu0 0.0
    %8001 = vmatprep.subr.mxu0 0.0
    %8002 = vmatpush1.msra.mxu0 0.0
    %8003 = vmatprep.subr.mxu0 0.0
    %8004 = vmatpush1.msra.mxu0 0.0
    %8005 = vmatprep.subr.mxu0 0.0
    %8006 = vmatpush1.msra.mxu0 0.0
    %8007 = vmatprep.subr.mxu0 0.0
    %8008 = vmatpush1.msra.mxu0 0.0
    %8009 = vmatprep.subr.mxu0 0.0
    %8010 = vmatpush1.msra.mxu0 0.0
    %8011 = vmatprep.subr.mxu0 0.0
    %8012 = vmatpush1.msra.mxu0 0.0
    %8013 = vmatprep.subr.mxu0 0.0
    %8014 = vmatpush1.msra.mxu0 0.0
    %8015 = vmatprep.subr.mxu0 0.0
    %8016 = vmatpush1.msra.mxu0 0.0
    %8017 = vmatprep.subr.mxu0 0.0
    %8018 = vmatpush1.msra.mxu0 0.0
    %8019 = vmatprep.subr.mxu0 0.0
    %8020 = vmatpush1.msra.mxu0 0.0
    %8021 = vmatprep.subr.mxu0 0.0
    %8022 = vmatpush1.msra.mxu0 0.0
    %8023 = vmatprep.subr.mxu0 0.0
    %8024 = vmatpush1.msra.mxu0 0.0
    %8025 = vmatprep.subr.mxu0 0.0
    %8026 = vmatpush1.msra.mxu0 0.0
    %8027 = vmatprep.subr.mxu0 0.0
    %8028 = vmatpush1.msra.mxu0 0.0
    %8029 = vmatprep.subr.mxu0 0.0
    %8030 = vmatpush1.msra.mxu0 0.0
    %8031 = vmatprep.subr.mxu0 0.0
    %8032 = vmatpush1.msra.mxu0 0.0
    %8033 = vmatprep.subr.mxu0 0.0
    %8034 = vmatpush1.msra.mxu0 0.0
    %8035 = vmatprep.subr.mxu0 0.0
    %8036 = vmatpush1.msra.mxu0 0.0
    %8037 = vmatprep.subr.mxu0 0.0
    %8038 = vmatpush1.msra.mxu0 0.0
    %8039 = vmatprep.subr.mxu0 0.0
    %8040 = vmatpush1.msra.mxu0 0.0
    %8041 = vmatprep.subr.mxu0 0.0
    %8042 = vmatpush1.msra.mxu0 0.0
    %8043 = vmatprep.mubr.f32.mxu0 0.0
    %8044 = vmatmul.mubr.f32.gmra.mrb[0].mxu0 %v4535
    %v8045 = vpop.f32.mrb[0].mxu0
    %v8046 = vadd.f32 0.0, %v8045
    %v8047 = vpop.f32.mrb[0].mxu0
    %8048 = vmatprep.mubr.f32.mxu0 0.0
    %8049 = vmatmul.mubr.f32.gmra.mrb[0].mxu0 %v4538
    %v8050 = vpop.f32.mrb[0].mxu0
    %v8051 = vadd.f32 0.0, %v8050
    %v8052 = vpop.f32.mrb[0].mxu0
    %8053 = vdwg.mxu0
    %s8054 = scalar_lea.vmem %s7, 336
    %v8055 = vld [vmem:[%s8054] sm:$0xff]
    %v8056 = vld [vmem:[%s8054 + $0x8] sm:$0xff]
    %v8058 = vsel %vm4533, %v8055, 0
    %v8061 = vsel %vm4533, %v8056, 0
    %8063 = vmatprep.subr.mxu0 0.0
    %8064 = vmatpush1.msra.mxu0 %v8046
    %8065 = vmatprep.subr.mxu0 0.0
    %8066 = vmatpush1.msra.mxu0 %v8051
    %8067 = vmatprep.subr.mxu0 0.0
    %8068 = vmatpush1.msra.mxu0 0.0
    %8069 = vmatprep.subr.mxu0 0.0
    %8070 = vmatpush1.msra.mxu0 0.0
    %8071 = vmatprep.subr.mxu0 0.0
    %8072 = vmatpush1.msra.mxu0 0.0
    %8073 = vmatprep.subr.mxu0 0.0
    %8074 = vmatpush1.msra.mxu0 0.0
    %8075 = vmatprep.subr.mxu0 0.0
    %8076 = vmatpush1.msra.mxu0 0.0
    %8077 = vmatprep.subr.mxu0 0.0
    %8078 = vmatpush1.msra.mxu0 0.0
    %8079 = vmatprep.subr.mxu0 0.0
    %8080 = vmatpush1.msra.mxu0 0.0
    %8081 = vmatprep.subr.mxu0 0.0
    %8082 = vmatpush1.msra.mxu0 0.0
    %8083 = vmatprep.subr.mxu0 0.0
    %8084 = vmatpush1.msra.mxu0 0.0
    %8085 = vmatprep.subr.mxu0 0.0
    %8086 = vmatpush1.msra.mxu0 0.0
    %8087 = vmatprep.subr.mxu0 0.0
    %8088 = vmatpush1.msra.mxu0 0.0
    %8089 = vmatprep.subr.mxu0 0.0
    %8090 = vmatpush1.msra.mxu0 0.0
    %8091 = vmatprep.subr.mxu0 0.0
    %8092 = vmatpush1.msra.mxu0 0.0
    %8093 = vmatprep.subr.mxu0 0.0
    %8094 = vmatpush1.msra.mxu0 0.0
    %8095 = vmatprep.subr.mxu0 0.0
    %8096 = vmatpush1.msra.mxu0 0.0
    %8097 = vmatprep.subr.mxu0 0.0
    %8098 = vmatpush1.msra.mxu0 0.0
    %8099 = vmatprep.subr.mxu0 0.0
    %8100 = vmatpush1.msra.mxu0 0.0
    %8101 = vmatprep.subr.mxu0 0.0
    %8102 = vmatpush1.msra.mxu0 0.0
    %8103 = vmatprep.subr.mxu0 0.0
    %8104 = vmatpush1.msra.mxu0 0.0
    %8105 = vmatprep.subr.mxu0 0.0
    %8106 = vmatpush1.msra.mxu0 0.0
    %8107 = vmatprep.subr.mxu0 0.0
    %8108 = vmatpush1.msra.mxu0 0.0
    %8109 = vmatprep.subr.mxu0 0.0
    %8110 = vmatpush1.msra.mxu0 0.0
    %8111 = vmatprep.subr.mxu0 0.0
    %8112 = vmatpush1.msra.mxu0 0.0
    %8113 = vmatprep.subr.mxu0 0.0
    %8114 = vmatpush1.msra.mxu0 0.0
    %8115 = vmatprep.subr.mxu0 0.0
    %8116 = vmatpush1.msra.mxu0 0.0
    %8117 = vmatprep.subr.mxu0 0.0
    %8118 = vmatpush1.msra.mxu0 0.0
    %8119 = vmatprep.subr.mxu0 0.0
    %8120 = vmatpush1.msra.mxu0 0.0
    %8121 = vmatprep.subr.mxu0 0.0
    %8122 = vmatpush1.msra.mxu0 0.0
    %8123 = vmatprep.subr.mxu0 0.0
    %8124 = vmatpush1.msra.mxu0 0.0
    %8125 = vmatprep.subr.mxu0 0.0
    %8126 = vmatpush1.msra.mxu0 0.0
    %8127 = vmatprep.mubr.f32.mxu0 0.0
    %8128 = vmatmul.mubr.f32.gmra.mrb[0].mxu0 %v8058
    %v8129 = vpop.f32.mrb[0].mxu0
    %v8130 = vadd.f32 0.0, %v8129
    %v8131 = vpop.f32.mrb[0].mxu0
    %8132 = vmatprep.mubr.f32.mxu0 0.0
    %8133 = vmatmul.mubr.f32.gmra.mrb[0].mxu0 %v8061
    %v8134 = vpop.f32.mrb[0].mxu0
    %v8135 = vadd.f32 0.0, %v8134
    %v8136 = vpop.f32.mrb[0].mxu0
    %8137 = vdwg.mxu0
    %v8138 = vadd.f32 %v7974, %v8130
    %v8139 = vadd.f32 %v7975, %v8135
    %s8140 = scalar_lea.vmem %s6, 352
    %v8141 = vld [vmem:[%s8140] sm:$0xff]
    %v8142 = vld [vmem:[%s8140 + $0x8] sm:$0xff]
    %8143 = vmatprep.subr.mxu0 0.0
    %8144 = vmatpush1.msra.mxu0 %v8141
    %8145 = vmatprep.subr.mxu0 0.0
    %8146 = vmatpush1.msra.mxu0 %v8142
    %8147 = vmatprep.subr.mxu0 0.0
    %8148 = vmatpush1.msra.mxu0 0.0
    %8149 = vmatprep.subr.mxu0 0.0
    %8150 = vmatpush1.msra.mxu0 0.0
    %8151 = vmatprep.subr.mxu0 0.0
    %8152 = vmatpush1.msra.mxu0 0.0
    %8153 = vmatprep.subr.mxu0 0.0
    %8154 = vmatpush1.msra.mxu0 0.0
    %8155 = vmatprep.subr.mxu0 0.0
    %8156 = vmatpush1.msra.mxu0 0.0
    %8157 = vmatprep.subr.mxu0 0.0
    %8158 = vmatpush1.msra.mxu0 0.0
    %8159 = vmatprep.subr.mxu0 0.0
    %8160 = vmatpush1.msra.mxu0 0.0
    %8161 = vmatprep.subr.mxu0 0.0
    %8162 = vmatpush1.msra.mxu0 0.0
    %8163 = vmatprep.subr.mxu0 0.0
    %8164 = vmatpush1.msra.mxu0 0.0
    %8165 = vmatprep.subr.mxu0 0.0
    %8166 = vmatpush1.msra.mxu0 0.0
    %8167 = vmatprep.subr.mxu0 0.0
    %8168 = vmatpush1.msra.mxu0 0.0
    %8169 = vmatprep.subr.mxu0 0.0
    %8170 = vmatpush1.msra.mxu0 0.0
    %8171 = vmatprep.subr.mxu0 0.0
    %8172 = vmatpush1.msra.mxu0 0.0
    %8173 = vmatprep.subr.mxu0 0.0
    %8174 = vmatpush1.msra.mxu0 0.0
    %8175 = vmatprep.subr.mxu0 0.0
    %8176 = vmatpush1.msra.mxu0 0.0
    %8177 = vmatprep.subr.mxu0 0.0
    %8178 = vmatpush1.msra.mxu0 0.0
    %8179 = vmatprep.subr.mxu0 0.0
    %8180 = vmatpush1.msra.mxu0 0.0
    %8181 = vmatprep.subr.mxu0 0.0
    %8182 = vmatpush1.msra.mxu0 0.0
    %8183 = vmatprep.subr.mxu0 0.0
    %8184 = vmatpush1.msra.mxu0 0.0
    %8185 = vmatprep.subr.mxu0 0.0
    %8186 = vmatpush1.msra.mxu0 0.0
    %8187 = vmatprep.subr.mxu0 0.0
    %8188 = vmatpush1.msra.mxu0 0.0
    %8189 = vmatprep.subr.mxu0 0.0
    %8190 = vmatpush1.msra.mxu0 0.0
    %8191 = vmatprep.subr.mxu0 0.0
    %8192 = vmatpush1.msra.mxu0 0.0
    %8193 = vmatprep.subr.mxu0 0.0
    %8194 = vmatpush1.msra.mxu0 0.0
    %8195 = vmatprep.subr.mxu0 0.0
    %8196 = vmatpush1.msra.mxu0 0.0
    %8197 = vmatprep.subr.mxu0 0.0
    %8198 = vmatpush1.msra.mxu0 0.0
    %8199 = vmatprep.subr.mxu0 0.0
    %8200 = vmatpush1.msra.mxu0 0.0
    %8201 = vmatprep.subr.mxu0 0.0
    %8202 = vmatpush1.msra.mxu0 0.0
    %8203 = vmatprep.subr.mxu0 0.0
    %8204 = vmatpush1.msra.mxu0 0.0
    %8205 = vmatprep.subr.mxu0 0.0
    %8206 = vmatpush1.msra.mxu0 0.0
    %8207 = vmatprep.mubr.f32.mxu0 0.0
    %8208 = vmatmul.mubr.f32.gmra.mrb[0].mxu0 %v4535
    %v8209 = vpop.f32.mrb[0].mxu0
    %v8210 = vadd.f32 0.0, %v8209
    %v8211 = vpop.f32.mrb[0].mxu0
    %8212 = vmatprep.mubr.f32.mxu0 0.0
    %8213 = vmatmul.mubr.f32.gmra.mrb[0].mxu0 %v4538
    %v8214 = vpop.f32.mrb[0].mxu0
    %v8215 = vadd.f32 0.0, %v8214
    %v8216 = vpop.f32.mrb[0].mxu0
    %8217 = vdwg.mxu0
    %s8218 = scalar_lea.vmem %s7, 352
    %v8219 = vld [vmem:[%s8218] sm:$0xff]
    %v8220 = vld [vmem:[%s8218 + $0x8] sm:$0xff]
    %v8222 = vsel %vm4533, %v8219, 0
    %v8225 = vsel %vm4533, %v8220, 0
    %8227 = vmatprep.subr.mxu0 0.0
    %8228 = vmatpush1.msra.mxu0 %v8210
    %8229 = vmatprep.subr.mxu0 0.0
    %8230 = vmatpush1.msra.mxu0 %v8215
    %8231 = vmatprep.subr.mxu0 0.0
    %8232 = vmatpush1.msra.mxu0 0.0
    %8233 = vmatprep.subr.mxu0 0.0
    %8234 = vmatpush1.msra.mxu0 0.0
    %8235 = vmatprep.subr.mxu0 0.0
    %8236 = vmatpush1.msra.mxu0 0.0
    %8237 = vmatprep.subr.mxu0 0.0
    %8238 = vmatpush1.msra.mxu0 0.0
    %8239 = vmatprep.subr.mxu0 0.0
    %8240 = vmatpush1.msra.mxu0 0.0
    %8241 = vmatprep.subr.mxu0 0.0
    %8242 = vmatpush1.msra.mxu0 0.0
    %8243 = vmatprep.subr.mxu0 0.0
    %8244 = vmatpush1.msra.mxu0 0.0
    %8245 = vmatprep.subr.mxu0 0.0
    %8246 = vmatpush1.msra.mxu0 0.0
    %8247 = vmatprep.subr.mxu0 0.0
    %8248 = vmatpush1.msra.mxu0 0.0
    %8249 = vmatprep.subr.mxu0 0.0
    %8250 = vmatpush1.msra.mxu0 0.0
    %8251 = vmatprep.subr.mxu0 0.0
    %8252 = vmatpush1.msra.mxu0 0.0
    %8253 = vmatprep.subr.mxu0 0.0
    %8254 = vmatpush1.msra.mxu0 0.0
    %8255 = vmatprep.subr.mxu0 0.0
    %8256 = vmatpush1.msra.mxu0 0.0
    %8257 = vmatprep.subr.mxu0 0.0
    %8258 = vmatpush1.msra.mxu0 0.0
    %8259 = vmatprep.subr.mxu0 0.0
    %8260 = vmatpush1.msra.mxu0 0.0
    %8261 = vmatprep.subr.mxu0 0.0
    %8262 = vmatpush1.msra.mxu0 0.0
    %8263 = vmatprep.subr.mxu0 0.0
    %8264 = vmatpush1.msra.mxu0 0.0
    %8265 = vmatprep.subr.mxu0 0.0
    %8266 = vmatpush1.msra.mxu0 0.0
    %8267 = vmatprep.subr.mxu0 0.0
    %8268 = vmatpush1.msra.mxu0 0.0
    %8269 = vmatprep.subr.mxu0 0.0
    %8270 = vmatpush1.msra.mxu0 0.0
    %8271 = vmatprep.subr.mxu0 0.0
    %8272 = vmatpush1.msra.mxu0 0.0
    %8273 = vmatprep.subr.mxu0 0.0
    %8274 = vmatpush1.msra.mxu0 0.0
    %8275 = vmatprep.subr.mxu0 0.0
    %8276 = vmatpush1.msra.mxu0 0.0
    %8277 = vmatprep.subr.mxu0 0.0
    %8278 = vmatpush1.msra.mxu0 0.0
    %8279 = vmatprep.subr.mxu0 0.0
    %8280 = vmatpush1.msra.mxu0 0.0
    %8281 = vmatprep.subr.mxu0 0.0
    %8282 = vmatpush1.msra.mxu0 0.0
    %8283 = vmatprep.subr.mxu0 0.0
    %8284 = vmatpush1.msra.mxu0 0.0
    %8285 = vmatprep.subr.mxu0 0.0
    %8286 = vmatpush1.msra.mxu0 0.0
    %8287 = vmatprep.subr.mxu0 0.0
    %8288 = vmatpush1.msra.mxu0 0.0
    %8289 = vmatprep.subr.mxu0 0.0
    %8290 = vmatpush1.msra.mxu0 0.0
    %8291 = vmatprep.mubr.f32.mxu0 0.0
    %8292 = vmatmul.mubr.f32.gmra.mrb[0].mxu0 %v8222
    %v8293 = vpop.f32.mrb[0].mxu0
    %v8294 = vadd.f32 0.0, %v8293
    %v8295 = vpop.f32.mrb[0].mxu0
    %8296 = vmatprep.mubr.f32.mxu0 0.0
    %8297 = vmatmul.mubr.f32.gmra.mrb[0].mxu0 %v8225
    %v8298 = vpop.f32.mrb[0].mxu0
    %v8299 = vadd.f32 0.0, %v8298
    %v8300 = vpop.f32.mrb[0].mxu0
    %8301 = vdwg.mxu0
    %v8302 = vadd.f32 %v8138, %v8294
    %v8303 = vadd.f32 %v8139, %v8299
    %s8304 = scalar_lea.vmem %s6, 368
    %v8305 = vld [vmem:[%s8304] sm:$0xff]
    %v8306 = vld [vmem:[%s8304 + $0x8] sm:$0xff]
    %8307 = vmatprep.subr.mxu0 0.0
    %8308 = vmatpush1.msra.mxu0 %v8305
    %8309 = vmatprep.subr.mxu0 0.0
    %8310 = vmatpush1.msra.mxu0 %v8306
    %8311 = vmatprep.subr.mxu0 0.0
    %8312 = vmatpush1.msra.mxu0 0.0
    %8313 = vmatprep.subr.mxu0 0.0
    %8314 = vmatpush1.msra.mxu0 0.0
    %8315 = vmatprep.subr.mxu0 0.0
    %8316 = vmatpush1.msra.mxu0 0.0
    %8317 = vmatprep.subr.mxu0 0.0
    %8318 = vmatpush1.msra.mxu0 0.0
    %8319 = vmatprep.subr.mxu0 0.0
    %8320 = vmatpush1.msra.mxu0 0.0
    %8321 = vmatprep.subr.mxu0 0.0
    %8322 = vmatpush1.msra.mxu0 0.0
    %8323 = vmatprep.subr.mxu0 0.0
    %8324 = vmatpush1.msra.mxu0 0.0
    %8325 = vmatprep.subr.mxu0 0.0
    %8326 = vmatpush1.msra.mxu0 0.0
    %8327 = vmatprep.subr.mxu0 0.0
    %8328 = vmatpush1.msra.mxu0 0.0
    %8329 = vmatprep.subr.mxu0 0.0
    %8330 = vmatpush1.msra.mxu0 0.0
    %8331 = vmatprep.subr.mxu0 0.0
    %8332 = vmatpush1.msra.mxu0 0.0
    %8333 = vmatprep.subr.mxu0 0.0
    %8334 = vmatpush1.msra.mxu0 0.0
    %8335 = vmatprep.subr.mxu0 0.0
    %8336 = vmatpush1.msra.mxu0 0.0
    %8337 = vmatprep.subr.mxu0 0.0
    %8338 = vmatpush1.msra.mxu0 0.0
    %8339 = vmatprep.subr.mxu0 0.0
    %8340 = vmatpush1.msra.mxu0 0.0
    %8341 = vmatprep.subr.mxu0 0.0
    %8342 = vmatpush1.msra.mxu0 0.0
    %8343 = vmatprep.subr.mxu0 0.0
    %8344 = vmatpush1.msra.mxu0 0.0
    %8345 = vmatprep.subr.mxu0 0.0
    %8346 = vmatpush1.msra.mxu0 0.0
    %8347 = vmatprep.subr.mxu0 0.0
    %8348 = vmatpush1.msra.mxu0 0.0
    %8349 = vmatprep.subr.mxu0 0.0
    %8350 = vmatpush1.msra.mxu0 0.0
    %8351 = vmatprep.subr.mxu0 0.0
    %8352 = vmatpush1.msra.mxu0 0.0
    %8353 = vmatprep.subr.mxu0 0.0
    %8354 = vmatpush1.msra.mxu0 0.0
    %8355 = vmatprep.subr.mxu0 0.0
    %8356 = vmatpush1.msra.mxu0 0.0
    %8357 = vmatprep.subr.mxu0 0.0
    %8358 = vmatpush1.msra.mxu0 0.0
    %8359 = vmatprep.subr.mxu0 0.0
    %8360 = vmatpush1.msra.mxu0 0.0
    %8361 = vmatprep.subr.mxu0 0.0
    %8362 = vmatpush1.msra.mxu0 0.0
    %8363 = vmatprep.subr.mxu0 0.0
    %8364 = vmatpush1.msra.mxu0 0.0
    %8365 = vmatprep.subr.mxu0 0.0
    %8366 = vmatpush1.msra.mxu0 0.0
    %8367 = vmatprep.subr.mxu0 0.0
    %8368 = vmatpush1.msra.mxu0 0.0
    %8369 = vmatprep.subr.mxu0 0.0
    %8370 = vmatpush1.msra.mxu0 0.0
    %8371 = vmatprep.mubr.f32.mxu0 0.0
    %8372 = vmatmul.mubr.f32.gmra.mrb[0].mxu0 %v4535
    %v8373 = vpop.f32.mrb[0].mxu0
    %v8374 = vadd.f32 0.0, %v8373
    %v8375 = vpop.f32.mrb[0].mxu0
    %8376 = vmatprep.mubr.f32.mxu0 0.0
    %8377 = vmatmul.mubr.f32.gmra.mrb[0].mxu0 %v4538
    %v8378 = vpop.f32.mrb[0].mxu0
    %v8379 = vadd.f32 0.0, %v8378
    %v8380 = vpop.f32.mrb[0].mxu0
    %8381 = vdwg.mxu0
    %s8382 = scalar_lea.vmem %s7, 368
    %v8383 = vld [vmem:[%s8382] sm:$0xff]
    %v8384 = vld [vmem:[%s8382 + $0x8] sm:$0xff]
    %v8386 = vsel %vm4533, %v8383, 0
    %v8389 = vsel %vm4533, %v8384, 0
    %8391 = vmatprep.subr.mxu0 0.0
    %8392 = vmatpush1.msra.mxu0 %v8374
    %8393 = vmatprep.subr.mxu0 0.0
    %8394 = vmatpush1.msra.mxu0 %v8379
    %8395 = vmatprep.subr.mxu0 0.0
    %8396 = vmatpush1.msra.mxu0 0.0
    %8397 = vmatprep.subr.mxu0 0.0
    %8398 = vmatpush1.msra.mxu0 0.0
    %8399 = vmatprep.subr.mxu0 0.0
    %8400 = vmatpush1.msra.mxu0 0.0
    %8401 = vmatprep.subr.mxu0 0.0
    %8402 = vmatpush1.msra.mxu0 0.0
    %8403 = vmatprep.subr.mxu0 0.0
    %8404 = vmatpush1.msra.mxu0 0.0
    %8405 = vmatprep.subr.mxu0 0.0
    %8406 = vmatpush1.msra.mxu0 0.0
    %8407 = vmatprep.subr.mxu0 0.0
    %8408 = vmatpush1.msra.mxu0 0.0
    %8409 = vmatprep.subr.mxu0 0.0
    %8410 = vmatpush1.msra.mxu0 0.0
    %8411 = vmatprep.subr.mxu0 0.0
    %8412 = vmatpush1.msra.mxu0 0.0
    %8413 = vmatprep.subr.mxu0 0.0
    %8414 = vmatpush1.msra.mxu0 0.0
    %8415 = vmatprep.subr.mxu0 0.0
    %8416 = vmatpush1.msra.mxu0 0.0
    %8417 = vmatprep.subr.mxu0 0.0
    %8418 = vmatpush1.msra.mxu0 0.0
    %8419 = vmatprep.subr.mxu0 0.0
    %8420 = vmatpush1.msra.mxu0 0.0
    %8421 = vmatprep.subr.mxu0 0.0
    %8422 = vmatpush1.msra.mxu0 0.0
    %8423 = vmatprep.subr.mxu0 0.0
    %8424 = vmatpush1.msra.mxu0 0.0
    %8425 = vmatprep.subr.mxu0 0.0
    %8426 = vmatpush1.msra.mxu0 0.0
    %8427 = vmatprep.subr.mxu0 0.0
    %8428 = vmatpush1.msra.mxu0 0.0
    %8429 = vmatprep.subr.mxu0 0.0
    %8430 = vmatpush1.msra.mxu0 0.0
    %8431 = vmatprep.subr.mxu0 0.0
    %8432 = vmatpush1.msra.mxu0 0.0
    %8433 = vmatprep.subr.mxu0 0.0
    %8434 = vmatpush1.msra.mxu0 0.0
    %8435 = vmatprep.subr.mxu0 0.0
    %8436 = vmatpush1.msra.mxu0 0.0
    %8437 = vmatprep.subr.mxu0 0.0
    %8438 = vmatpush1.msra.mxu0 0.0
    %8439 = vmatprep.subr.mxu0 0.0
    %8440 = vmatpush1.msra.mxu0 0.0
    %8441 = vmatprep.subr.mxu0 0.0
    %8442 = vmatpush1.msra.mxu0 0.0
    %8443 = vmatprep.subr.mxu0 0.0
    %8444 = vmatpush1.msra.mxu0 0.0
    %8445 = vmatprep.subr.mxu0 0.0
    %8446 = vmatpush1.msra.mxu0 0.0
    %8447 = vmatprep.subr.mxu0 0.0
    %8448 = vmatpush1.msra.mxu0 0.0
    %8449 = vmatprep.subr.mxu0 0.0
    %8450 = vmatpush1.msra.mxu0 0.0
    %8451 = vmatprep.subr.mxu0 0.0
    %8452 = vmatpush1.msra.mxu0 0.0
    %8453 = vmatprep.subr.mxu0 0.0
    %8454 = vmatpush1.msra.mxu0 0.0
    %8455 = vmatprep.mubr.f32.mxu0 0.0
    %8456 = vmatmul.mubr.f32.gmra.mrb[0].mxu0 %v8386
    %v8457 = vpop.f32.mrb[0].mxu0
    %v8458 = vadd.f32 0.0, %v8457
    %v8459 = vpop.f32.mrb[0].mxu0
    %8460 = vmatprep.mubr.f32.mxu0 0.0
    %8461 = vmatmul.mubr.f32.gmra.mrb[0].mxu0 %v8389
    %v8462 = vpop.f32.mrb[0].mxu0
    %v8463 = vadd.f32 0.0, %v8462
    %v8464 = vpop.f32.mrb[0].mxu0
    %8465 = vdwg.mxu0
    %v8466 = vadd.f32 %v8302, %v8458
    %v8467 = vadd.f32 %v8303, %v8463
    %s8468 = scalar_lea.vmem %s6, 384
    %v8469 = vld [vmem:[%s8468] sm:$0xff]
    %v8470 = vld [vmem:[%s8468 + $0x8] sm:$0xff]
    %8471 = vmatprep.subr.mxu0 0.0
    %8472 = vmatpush1.msra.mxu0 %v8469
    %8473 = vmatprep.subr.mxu0 0.0
    %8474 = vmatpush1.msra.mxu0 %v8470
    %8475 = vmatprep.subr.mxu0 0.0
    %8476 = vmatpush1.msra.mxu0 0.0
    %8477 = vmatprep.subr.mxu0 0.0
    %8478 = vmatpush1.msra.mxu0 0.0
    %8479 = vmatprep.subr.mxu0 0.0
    %8480 = vmatpush1.msra.mxu0 0.0
    %8481 = vmatprep.subr.mxu0 0.0
    %8482 = vmatpush1.msra.mxu0 0.0
    %8483 = vmatprep.subr.mxu0 0.0
    %8484 = vmatpush1.msra.mxu0 0.0
    %8485 = vmatprep.subr.mxu0 0.0
    %8486 = vmatpush1.msra.mxu0 0.0
    %8487 = vmatprep.subr.mxu0 0.0
    %8488 = vmatpush1.msra.mxu0 0.0
    %8489 = vmatprep.subr.mxu0 0.0
    %8490 = vmatpush1.msra.mxu0 0.0
    %8491 = vmatprep.subr.mxu0 0.0
    %8492 = vmatpush1.msra.mxu0 0.0
    %8493 = vmatprep.subr.mxu0 0.0
    %8494 = vmatpush1.msra.mxu0 0.0
    %8495 = vmatprep.subr.mxu0 0.0
    %8496 = vmatpush1.msra.mxu0 0.0
    %8497 = vmatprep.subr.mxu0 0.0
    %8498 = vmatpush1.msra.mxu0 0.0
    %8499 = vmatprep.subr.mxu0 0.0
    %8500 = vmatpush1.msra.mxu0 0.0
    %8501 = vmatprep.subr.mxu0 0.0
    %8502 = vmatpush1.msra.mxu0 0.0
    %8503 = vmatprep.subr.mxu0 0.0
    %8504 = vmatpush1.msra.mxu0 0.0
    %8505 = vmatprep.subr.mxu0 0.0
    %8506 = vmatpush1.msra.mxu0 0.0
    %8507 = vmatprep.subr.mxu0 0.0
    %8508 = vmatpush1.msra.mxu0 0.0
    %8509 = vmatprep.subr.mxu0 0.0
    %8510 = vmatpush1.msra.mxu0 0.0
    %8511 = vmatprep.subr.mxu0 0.0
    %8512 = vmatpush1.msra.mxu0 0.0
    %8513 = vmatprep.subr.mxu0 0.0
    %8514 = vmatpush1.msra.mxu0 0.0
    %8515 = vmatprep.subr.mxu0 0.0
    %8516 = vmatpush1.msra.mxu0 0.0
    %8517 = vmatprep.subr.mxu0 0.0
    %8518 = vmatpush1.msra.mxu0 0.0
    %8519 = vmatprep.subr.mxu0 0.0
    %8520 = vmatpush1.msra.mxu0 0.0
    %8521 = vmatprep.subr.mxu0 0.0
    %8522 = vmatpush1.msra.mxu0 0.0
    %8523 = vmatprep.subr.mxu0 0.0
    %8524 = vmatpush1.msra.mxu0 0.0
    %8525 = vmatprep.subr.mxu0 0.0
    %8526 = vmatpush1.msra.mxu0 0.0
    %8527 = vmatprep.subr.mxu0 0.0
    %8528 = vmatpush1.msra.mxu0 0.0
    %8529 = vmatprep.subr.mxu0 0.0
    %8530 = vmatpush1.msra.mxu0 0.0
    %8531 = vmatprep.subr.mxu0 0.0
    %8532 = vmatpush1.msra.mxu0 0.0
    %8533 = vmatprep.subr.mxu0 0.0
    %8534 = vmatpush1.msra.mxu0 0.0
    %8535 = vmatprep.mubr.f32.mxu0 0.0
    %8536 = vmatmul.mubr.f32.gmra.mrb[0].mxu0 %v4535
    %v8537 = vpop.f32.mrb[0].mxu0
    %v8538 = vadd.f32 0.0, %v8537
    %v8539 = vpop.f32.mrb[0].mxu0
    %8540 = vmatprep.mubr.f32.mxu0 0.0
    %8541 = vmatmul.mubr.f32.gmra.mrb[0].mxu0 %v4538
    %v8542 = vpop.f32.mrb[0].mxu0
    %v8543 = vadd.f32 0.0, %v8542
    %v8544 = vpop.f32.mrb[0].mxu0
    %8545 = vdwg.mxu0
    %s8546 = scalar_lea.vmem %s7, 384
    %v8547 = vld [vmem:[%s8546] sm:$0xff]
    %v8548 = vld [vmem:[%s8546 + $0x8] sm:$0xff]
    %v8550 = vsel %vm4533, %v8547, 0
    %v8553 = vsel %vm4533, %v8548, 0
    %8555 = vmatprep.subr.mxu0 0.0
    %8556 = vmatpush1.msra.mxu0 %v8538
    %8557 = vmatprep.subr.mxu0 0.0
    %8558 = vmatpush1.msra.mxu0 %v8543
    %8559 = vmatprep.subr.mxu0 0.0
    %8560 = vmatpush1.msra.mxu0 0.0
    %8561 = vmatprep.subr.mxu0 0.0
    %8562 = vmatpush1.msra.mxu0 0.0
    %8563 = vmatprep.subr.mxu0 0.0
    %8564 = vmatpush1.msra.mxu0 0.0
    %8565 = vmatprep.subr.mxu0 0.0
    %8566 = vmatpush1.msra.mxu0 0.0
    %8567 = vmatprep.subr.mxu0 0.0
    %8568 = vmatpush1.msra.mxu0 0.0
    %8569 = vmatprep.subr.mxu0 0.0
    %8570 = vmatpush1.msra.mxu0 0.0
    %8571 = vmatprep.subr.mxu0 0.0
    %8572 = vmatpush1.msra.mxu0 0.0
    %8573 = vmatprep.subr.mxu0 0.0
    %8574 = vmatpush1.msra.mxu0 0.0
    %8575 = vmatprep.subr.mxu0 0.0
    %8576 = vmatpush1.msra.mxu0 0.0
    %8577 = vmatprep.subr.mxu0 0.0
    %8578 = vmatpush1.msra.mxu0 0.0
    %8579 = vmatprep.subr.mxu0 0.0
    %8580 = vmatpush1.msra.mxu0 0.0
    %8581 = vmatprep.subr.mxu0 0.0
    %8582 = vmatpush1.msra.mxu0 0.0
    %8583 = vmatprep.subr.mxu0 0.0
    %8584 = vmatpush1.msra.mxu0 0.0
    %8585 = vmatprep.subr.mxu0 0.0
    %8586 = vmatpush1.msra.mxu0 0.0
    %8587 = vmatprep.subr.mxu0 0.0
    %8588 = vmatpush1.msra.mxu0 0.0
    %8589 = vmatprep.subr.mxu0 0.0
    %8590 = vmatpush1.msra.mxu0 0.0
    %8591 = vmatprep.subr.mxu0 0.0
    %8592 = vmatpush1.msra.mxu0 0.0
    %8593 = vmatprep.subr.mxu0 0.0
    %8594 = vmatpush1.msra.mxu0 0.0
    %8595 = vmatprep.subr.mxu0 0.0
    %8596 = vmatpush1.msra.mxu0 0.0
    %8597 = vmatprep.subr.mxu0 0.0
    %8598 = vmatpush1.msra.mxu0 0.0
    %8599 = vmatprep.subr.mxu0 0.0
    %8600 = vmatpush1.msra.mxu0 0.0
    %8601 = vmatprep.subr.mxu0 0.0
    %8602 = vmatpush1.msra.mxu0 0.0
    %8603 = vmatprep.subr.mxu0 0.0
    %8604 = vmatpush1.msra.mxu0 0.0
    %8605 = vmatprep.subr.mxu0 0.0
    %8606 = vmatpush1.msra.mxu0 0.0
    %8607 = vmatprep.subr.mxu0 0.0
    %8608 = vmatpush1.msra.mxu0 0.0
    %8609 = vmatprep.subr.mxu0 0.0
    %8610 = vmatpush1.msra.mxu0 0.0
    %8611 = vmatprep.subr.mxu0 0.0
    %8612 = vmatpush1.msra.mxu0 0.0
    %8613 = vmatprep.subr.mxu0 0.0
    %8614 = vmatpush1.msra.mxu0 0.0
    %8615 = vmatprep.subr.mxu0 0.0
    %8616 = vmatpush1.msra.mxu0 0.0
    %8617 = vmatprep.subr.mxu0 0.0
    %8618 = vmatpush1.msra.mxu0 0.0
    %8619 = vmatprep.mubr.f32.mxu0 0.0
    %8620 = vmatmul.mubr.f32.gmra.mrb[0].mxu0 %v8550
    %v8621 = vpop.f32.mrb[0].mxu0
    %v8622 = vadd.f32 0.0, %v8621
    %v8623 = vpop.f32.mrb[0].mxu0
    %8624 = vmatprep.mubr.f32.mxu0 0.0
    %8625 = vmatmul.mubr.f32.gmra.mrb[0].mxu0 %v8553
    %v8626 = vpop.f32.mrb[0].mxu0
    %v8627 = vadd.f32 0.0, %v8626
    %v8628 = vpop.f32.mrb[0].mxu0
    %8629 = vdwg.mxu0
    %v8630 = vadd.f32 %v8466, %v8622
    %v8631 = vadd.f32 %v8467, %v8627
    %v8632 = vld [vmem:[%s8] sm:$0xff]
    %v8633 = vld [vmem:[%s8 + $0x8] sm:$0xff]
    %8635 = vset.pattern.permute.xlu0 0
    %8636 = vperm.xlu0 %8635, %v8632
    %v8637 = vpop.permute.xlu0 %8636
    %8640 = vset.pattern.permute.xlu0 0
    %8641 = vperm.xlu0 %8640, %v8633
    %v8642 = vpop.permute.xlu0 %8641
    %v8644 = vadd.f32 %v8630, %v8637
    %v8645 = vadd.f32 %v8631, %v8642
    %v8646 = vmax.f32 %v8644, 0.0
    %v8647 = vmax.f32 %v8645, 0.0
    %v8648 = vld [vmem:[#allocation8] sm:$0xff]
    %v8649 = vld [vmem:[#allocation8 + $0x8] sm:$0xff]
    %v8651 = vsel %vm4533, %v8646, 0
    %v8654 = vsel %vm4533, %v8647, 0
    %8656 = vmatprep.subr.mxu0 0.0
    %8657 = vmatpush1.msra.mxu0 %v8648
    %8658 = vmatprep.subr.mxu0 0.0
    %8659 = vmatpush1.msra.mxu0 %v8649
    %8660 = vmatprep.subr.mxu0 0.0
    %8661 = vmatpush1.msra.mxu0 0.0
    %8662 = vmatprep.subr.mxu0 0.0
    %8663 = vmatpush1.msra.mxu0 0.0
    %8664 = vmatprep.subr.mxu0 0.0
    %8665 = vmatpush1.msra.mxu0 0.0
    %8666 = vmatprep.subr.mxu0 0.0
    %8667 = vmatpush1.msra.mxu0 0.0
    %8668 = vmatprep.subr.mxu0 0.0
    %8669 = vmatpush1.msra.mxu0 0.0
    %8670 = vmatprep.subr.mxu0 0.0
    %8671 = vmatpush1.msra.mxu0 0.0
    %8672 = vmatprep.subr.mxu0 0.0
    %8673 = vmatpush1.msra.mxu0 0.0
    %8674 = vmatprep.subr.mxu0 0.0
    %8675 = vmatpush1.msra.mxu0 0.0
    %8676 = vmatprep.subr.mxu0 0.0
    %8677 = vmatpush1.msra.mxu0 0.0
    %8678 = vmatprep.subr.mxu0 0.0
    %8679 = vmatpush1.msra.mxu0 0.0
    %8680 = vmatprep.subr.mxu0 0.0
    %8681 = vmatpush1.msra.mxu0 0.0
    %8682 = vmatprep.subr.mxu0 0.0
    %8683 = vmatpush1.msra.mxu0 0.0
    %8684 = vmatprep.subr.mxu0 0.0
    %8685 = vmatpush1.msra.mxu0 0.0
    %8686 = vmatprep.subr.mxu0 0.0
    %8687 = vmatpush1.msra.mxu0 0.0
    %8688 = vmatprep.subr.mxu0 0.0
    %8689 = vmatpush1.msra.mxu0 0.0
    %8690 = vmatprep.subr.mxu0 0.0
    %8691 = vmatpush1.msra.mxu0 0.0
    %8692 = vmatprep.subr.mxu0 0.0
    %8693 = vmatpush1.msra.mxu0 0.0
    %8694 = vmatprep.subr.mxu0 0.0
    %8695 = vmatpush1.msra.mxu0 0.0
    %8696 = vmatprep.subr.mxu0 0.0
    %8697 = vmatpush1.msra.mxu0 0.0
    %8698 = vmatprep.subr.mxu0 0.0
    %8699 = vmatpush1.msra.mxu0 0.0
    %8700 = vmatprep.subr.mxu0 0.0
    %8701 = vmatpush1.msra.mxu0 0.0
    %8702 = vmatprep.subr.mxu0 0.0
    %8703 = vmatpush1.msra.mxu0 0.0
    %8704 = vmatprep.subr.mxu0 0.0
    %8705 = vmatpush1.msra.mxu0 0.0
    %8706 = vmatprep.subr.mxu0 0.0
    %8707 = vmatpush1.msra.mxu0 0.0
    %8708 = vmatprep.subr.mxu0 0.0
    %8709 = vmatpush1.msra.mxu0 0.0
    %8710 = vmatprep.subr.mxu0 0.0
    %8711 = vmatpush1.msra.mxu0 0.0
    %8712 = vmatprep.subr.mxu0 0.0
    %8713 = vmatpush1.msra.mxu0 0.0
    %8714 = vmatprep.subr.mxu0 0.0
    %8715 = vmatpush1.msra.mxu0 0.0
    %8716 = vmatprep.subr.mxu0 0.0
    %8717 = vmatpush1.msra.mxu0 0.0
    %8718 = vmatprep.subr.mxu0 0.0
    %8719 = vmatpush1.msra.mxu0 0.0
    %8720 = vmatprep.mubr.f32.mxu0 0.0
    %8721 = vmatmul.mubr.f32.gmra.mrb[0].mxu0 %v8651
    %v8722 = vpop.f32.mrb[0].mxu0
    %v8723 = vadd.f32 0.0, %v8722
    %v8724 = vpop.f32.mrb[0].mxu0
    %8725 = vmatprep.mubr.f32.mxu0 0.0
    %8726 = vmatmul.mubr.f32.gmra.mrb[0].mxu0 %v8654
    %v8727 = vpop.f32.mrb[0].mxu0
    %v8728 = vadd.f32 0.0, %v8727
    %v8729 = vpop.f32.mrb[0].mxu0
    %8730 = vdwg.mxu0
    %8733 = vrot.lane.b32.xlu0 %v8723, 96
    %v8734 = vpop.permute.xlu0 %8733
    %8735 = vrot.lane.b32.xlu0 %v8728, 96
    %v8736 = vpop.permute.xlu0 %8735
    %v8739 = vmax.f32 %v8723, %v8734
    %v8740 = vmax.f32 %v8728, %v8736
    %8743 = vrot.lane.b32.xlu0 %v8739, 64
    %v8744 = vpop.permute.xlu0 %8743
    %8745 = vrot.lane.b32.xlu0 %v8740, 64
    %v8746 = vpop.permute.xlu0 %8745
    %v8749 = vmax.f32 %v8739, %v8744
    %v8750 = vmax.f32 %v8740, %v8746
    %v8751 = vld [vmem:[%s11] sm:$0x3]
    %v8752 = vld [vmem:[#allocation10] sm:$0xff]
    %v8753 = vld [vmem:[#allocation10 + $0x8] sm:$0xff]
    %v8754 = vmul.f32 %v8752, %v8749
    %v8755 = vmul.f32 %v8753, %v8750
    %v8757 = vsel %vm4533, %v8751, 0
    %8759 = vmatprep.subr.mxu0 0.0
    %8760 = vmatpush1.msra.mxu0 %v8754
    %8761 = vmatprep.subr.mxu0 0.0
    %8762 = vmatpush1.msra.mxu0 %v8755
    %8763 = vmatprep.subr.mxu0 0.0
    %8764 = vmatpush1.msra.mxu0 0.0
    %8765 = vmatprep.subr.mxu0 0.0
    %8766 = vmatpush1.msra.mxu0 0.0
    %8767 = vmatprep.subr.mxu0 0.0
    %8768 = vmatpush1.msra.mxu0 0.0
    %8769 = vmatprep.subr.mxu0 0.0
    %8770 = vmatpush1.msra.mxu0 0.0
    %8771 = vmatprep.subr.mxu0 0.0
    %8772 = vmatpush1.msra.mxu0 0.0
    %8773 = vmatprep.subr.mxu0 0.0
    %8774 = vmatpush1.msra.mxu0 0.0
    %8775 = vmatprep.subr.mxu0 0.0
    %8776 = vmatpush1.msra.mxu0 0.0
    %8777 = vmatprep.subr.mxu0 0.0
    %8778 = vmatpush1.msra.mxu0 0.0
    %8779 = vmatprep.subr.mxu0 0.0
    %8780 = vmatpush1.msra.mxu0 0.0
    %8781 = vmatprep.subr.mxu0 0.0
    %8782 = vmatpush1.msra.mxu0 0.0
    %8783 = vmatprep.subr.mxu0 0.0
    %8784 = vmatpush1.msra.mxu0 0.0
    %8785 = vmatprep.subr.mxu0 0.0
    %8786 = vmatpush1.msra.mxu0 0.0
    %8787 = vmatprep.subr.mxu0 0.0
    %8788 = vmatpush1.msra.mxu0 0.0
    %8789 = vmatprep.subr.mxu0 0.0
    %8790 = vmatpush1.msra.mxu0 0.0
    %8791 = vmatprep.subr.mxu0 0.0
    %8792 = vmatpush1.msra.mxu0 0.0
    %8793 = vmatprep.subr.mxu0 0.0
    %8794 = vmatpush1.msra.mxu0 0.0
    %8795 = vmatprep.subr.mxu0 0.0
    %8796 = vmatpush1.msra.mxu0 0.0
    %8797 = vmatprep.subr.mxu0 0.0
    %8798 = vmatpush1.msra.mxu0 0.0
    %8799 = vmatprep.subr.mxu0 0.0
    %8800 = vmatpush1.msra.mxu0 0.0
    %8801 = vmatprep.subr.mxu0 0.0
    %8802 = vmatpush1.msra.mxu0 0.0
    %8803 = vmatprep.subr.mxu0 0.0
    %8804 = vmatpush1.msra.mxu0 0.0
    %8805 = vmatprep.subr.mxu0 0.0
    %8806 = vmatpush1.msra.mxu0 0.0
    %8807 = vmatprep.subr.mxu0 0.0
    %8808 = vmatpush1.msra.mxu0 0.0
    %8809 = vmatprep.subr.mxu0 0.0
    %8810 = vmatpush1.msra.mxu0 0.0
    %8811 = vmatprep.subr.mxu0 0.0
    %8812 = vmatpush1.msra.mxu0 0.0
    %8813 = vmatprep.subr.mxu0 0.0
    %8814 = vmatpush1.msra.mxu0 0.0
    %8815 = vmatprep.subr.mxu0 0.0
    %8816 = vmatpush1.msra.mxu0 0.0
    %8817 = vmatprep.subr.mxu0 0.0
    %8818 = vmatpush1.msra.mxu0 0.0
    %8819 = vmatprep.subr.mxu0 0.0
    %8820 = vmatpush1.msra.mxu0 0.0
    %8821 = vmatprep.subr.mxu0 0.0
    %8822 = vmatpush1.msra.mxu0 0.0
    %8823 = vmatprep.mubr.f32.mxu0 0.0
    %8824 = vmatmul.mubr.f32.gmra.mrb[0].mxu0 %v8757
    %v8825 = vpop.f32.mrb[0].mxu0
    %v8826 = vadd.f32 0.0, %v8825
    %v8827 = vpop.f32.mrb[0].mxu0
    %8828 = vdwg.mxu0
    %v8829 = vld [vmem:[%s12] sm:$0xff]
    %v8830 = vld [vmem:[%s12 + $0x8] sm:$0xff]
    %v8831 = vld [vmem:[%s12 + $0x10] sm:$0xff]
    %v8832 = vld [vmem:[%s12 + $0x18] sm:$0xff]
    %v8833 = vld [vmem:[%s13] sm:$0x1]
    %v8835 = vlaneseq
    %v8836 = vshrl.u32 %v8835, 7
    %v8837 = vsub.s32 0, %v8836
    %v8838 = vrot.slane %v8833, %v8837
    %vm8840 = vcmask 261120
    %v8842 = vsel %vm8840, %v8826, 0
    %8844 = vmatprep.subr.mxu0 0.0
    %8845 = vmatpush1.msra.mxu0 %v8829
    %8846 = vmatprep.subr.mxu0 0.0
    %8847 = vmatpush1.msra.mxu0 %v8830
    %8848 = vmatprep.subr.mxu0 0.0
    %8849 = vmatpush1.msra.mxu0 %v8831
    %8850 = vmatprep.subr.mxu0 0.0
    %8851 = vmatpush1.msra.mxu0 %v8832
    %8852 = vmatprep.subr.mxu0 0.0
    %8853 = vmatpush1.msra.mxu0 0.0
    %8854 = vmatprep.subr.mxu0 0.0
    %8855 = vmatpush1.msra.mxu0 0.0
    %8856 = vmatprep.subr.mxu0 0.0
    %8857 = vmatpush1.msra.mxu0 0.0
    %8858 = vmatprep.subr.mxu0 0.0
    %8859 = vmatpush1.msra.mxu0 0.0
    %8860 = vmatprep.subr.mxu0 0.0
    %8861 = vmatpush1.msra.mxu0 0.0
    %8862 = vmatprep.subr.mxu0 0.0
    %8863 = vmatpush1.msra.mxu0 0.0
    %8864 = vmatprep.subr.mxu0 0.0
    %8865 = vmatpush1.msra.mxu0 0.0
    %8866 = vmatprep.subr.mxu0 0.0
    %8867 = vmatpush1.msra.mxu0 0.0
    %8868 = vmatprep.subr.mxu0 0.0
    %8869 = vmatpush1.msra.mxu0 0.0
    %8870 = vmatprep.subr.mxu0 0.0
    %8871 = vmatpush1.msra.mxu0 0.0
    %8872 = vmatprep.subr.mxu0 0.0
    %8873 = vmatpush1.msra.mxu0 0.0
    %8874 = vmatprep.subr.mxu0 0.0
    %8875 = vmatpush1.msra.mxu0 0.0
    %8876 = vmatprep.subr.mxu0 0.0
    %8877 = vmatpush1.msra.mxu0 0.0
    %8878 = vmatprep.subr.mxu0 0.0
    %8879 = vmatpush1.msra.mxu0 0.0
    %8880 = vmatprep.subr.mxu0 0.0
    %8881 = vmatpush1.msra.mxu0 0.0
    %8882 = vmatprep.subr.mxu0 0.0
    %8883 = vmatpush1.msra.mxu0 0.0
    %8884 = vmatprep.subr.mxu0 0.0
    %8885 = vmatpush1.msra.mxu0 0.0
    %8886 = vmatprep.subr.mxu0 0.0
    %8887 = vmatpush1.msra.mxu0 0.0
    %8888 = vmatprep.subr.mxu0 0.0
    %8889 = vmatpush1.msra.mxu0 0.0
    %8890 = vmatprep.subr.mxu0 0.0
    %8891 = vmatpush1.msra.mxu0 0.0
    %8892 = vmatprep.subr.mxu0 0.0
    %8893 = vmatpush1.msra.mxu0 0.0
    %8894 = vmatprep.subr.mxu0 0.0
    %8895 = vmatpush1.msra.mxu0 0.0
    %8896 = vmatprep.subr.mxu0 0.0
    %8897 = vmatpush1.msra.mxu0 0.0
    %8898 = vmatprep.subr.mxu0 0.0
    %8899 = vmatpush1.msra.mxu0 0.0
    %8900 = vmatprep.subr.mxu0 0.0
    %8901 = vmatpush1.msra.mxu0 0.0
    %8902 = vmatprep.subr.mxu0 0.0
    %8903 = vmatpush1.msra.mxu0 0.0
    %8904 = vmatprep.subr.mxu0 0.0
    %8905 = vmatpush1.msra.mxu0 0.0
    %8906 = vmatprep.subr.mxu0 0.0
    %8907 = vmatpush1.msra.mxu0 0.0
    %8908 = vmatprep.mubr.f32.mxu0 0.0
    %8909 = vmatmul.mubr.f32.gmra.mrb[0].mxu0 %v8842
    %v8910 = vpop.f32.mrb[0].mxu0
    %v8911 = vadd.f32 %v8838, %v8910
    %v8912 = vpop.f32.mrb[0].mxu0
    %8913 = vdwg.mxu0
    %v8914 = vmax.f32 %v8911, 0.0
    %v8915 = vld [vmem:[#allocation11] sm:$0xff]
    %v8916 = vld [vmem:[#allocation11 + $0x8] sm:$0xff]
    %v8917 = vld [vmem:[#allocation11 + $0x10] sm:$0xff]
    %v8918 = vld [vmem:[#allocation11 + $0x18] sm:$0xff]
    %v8919 = vld [vmem:[%s15] sm:$0x1]
    %v8921 = vlaneseq
    %v8922 = vshrl.u32 %v8921, 7
    %v8923 = vsub.s32 0, %v8922
    %v8924 = vrot.slane %v8919, %v8923
    %v8927 = vsel %vm8840, %v8914, 0
    %8929 = vmatprep.subr.mxu0 0.0
    %8930 = vmatpush1.msra.mxu0 %v8915
    %8931 = vmatprep.subr.mxu0 0.0
    %8932 = vmatpush1.msra.mxu0 %v8916
    %8933 = vmatprep.subr.mxu0 0.0
    %8934 = vmatpush1.msra.mxu0 %v8917
    %8935 = vmatprep.subr.mxu0 0.0
    %8936 = vmatpush1.msra.mxu0 %v8918
    %8937 = vmatprep.subr.mxu0 0.0
    %8938 = vmatpush1.msra.mxu0 0.0
    %8939 = vmatprep.subr.mxu0 0.0
    %8940 = vmatpush1.msra.mxu0 0.0
    %8941 = vmatprep.subr.mxu0 0.0
    %8942 = vmatpush1.msra.mxu0 0.0
    %8943 = vmatprep.subr.mxu0 0.0
    %8944 = vmatpush1.msra.mxu0 0.0
    %8945 = vmatprep.subr.mxu0 0.0
    %8946 = vmatpush1.msra.mxu0 0.0
    %8947 = vmatprep.subr.mxu0 0.0
    %8948 = vmatpush1.msra.mxu0 0.0
    %8949 = vmatprep.subr.mxu0 0.0
    %8950 = vmatpush1.msra.mxu0 0.0
    %8951 = vmatprep.subr.mxu0 0.0
    %8952 = vmatpush1.msra.mxu0 0.0
    %8953 = vmatprep.subr.mxu0 0.0
    %8954 = vmatpush1.msra.mxu0 0.0
    %8955 = vmatprep.subr.mxu0 0.0
    %8956 = vmatpush1.msra.mxu0 0.0
    %8957 = vmatprep.subr.mxu0 0.0
    %8958 = vmatpush1.msra.mxu0 0.0
    %8959 = vmatprep.subr.mxu0 0.0
    %8960 = vmatpush1.msra.mxu0 0.0
    %8961 = vmatprep.subr.mxu0 0.0
    %8962 = vmatpush1.msra.mxu0 0.0
    %8963 = vmatprep.subr.mxu0 0.0
    %8964 = vmatpush1.msra.mxu0 0.0
    %8965 = vmatprep.subr.mxu0 0.0
    %8966 = vmatpush1.msra.mxu0 0.0
    %8967 = vmatprep.subr.mxu0 0.0
    %8968 = vmatpush1.msra.mxu0 0.0
    %8969 = vmatprep.subr.mxu0 0.0
    %8970 = vmatpush1.msra.mxu0 0.0
    %8971 = vmatprep.subr.mxu0 0.0
    %8972 = vmatpush1.msra.mxu0 0.0
    %8973 = vmatprep.subr.mxu0 0.0
    %8974 = vmatpush1.msra.mxu0 0.0
    %8975 = vmatprep.subr.mxu0 0.0
    %8976 = vmatpush1.msra.mxu0 0.0
    %8977 = vmatprep.subr.mxu0 0.0
    %8978 = vmatpush1.msra.mxu0 0.0
    %8979 = vmatprep.subr.mxu0 0.0
    %8980 = vmatpush1.msra.mxu0 0.0
    %8981 = vmatprep.subr.mxu0 0.0
    %8982 = vmatpush1.msra.mxu0 0.0
    %8983 = vmatprep.subr.mxu0 0.0
    %8984 = vmatpush1.msra.mxu0 0.0
    %8985 = vmatprep.subr.mxu0 0.0
    %8986 = vmatpush1.msra.mxu0 0.0
    %8987 = vmatprep.subr.mxu0 0.0
    %8988 = vmatpush1.msra.mxu0 0.0
    %8989 = vmatprep.subr.mxu0 0.0
    %8990 = vmatpush1.msra.mxu0 0.0
    %8991 = vmatprep.subr.mxu0 0.0
    %8992 = vmatpush1.msra.mxu0 0.0
    %8993 = vmatprep.mubr.f32.mxu0 0.0
    %8994 = vmatmul.mubr.f32.gmra.mrb[0].mxu0 %v8927
    %v8995 = vpop.f32.mrb[0].mxu0
    %v8996 = vadd.f32 %v8924, %v8995
    %v8997 = vpop.f32.mrb[0].mxu0
    %8998 = vdwg.mxu0
    %8999 = vst [vmem:[#allocation13] sm:$0x3] %v8996
    // Predicated region
    $region90: #{tpu_custom_call.1} parent=1 // pred_check
      _
    $region91: #{tpu_custom_call.1} parent=1 // pred_check_branch
      %9001 = sbr.rel (0) target = $region93
    $region92: #{tpu_custom_call.1} parent=1 // pred_region
      %s9003 = ssub.s32 32, 32
      %9004 = vsyncadd [#allocation4], %s9003
      %s9006 = sshll.u32 [#allocation13], 4
      %s9007 = int_to_ptr.vmem [resolvable:$true] %s9006
      %9009 = dma.vmem_to_hbm [thread:$0]  %s9007, 32, %s16, [#allocation4]
    $region93: #{tpu_custom_call.1} parent=1 // pred_fallthru
      _
    // Predicated region
    $region94: #{tpu_custom_call.1} parent=1 // pred_check
      _
    $region95: #{tpu_custom_call.1} parent=1 // pred_check_branch
      %9011 = sbr.rel (0) target = $region97
    $region96: #{tpu_custom_call.1} parent=1 // pred_region
      %9012 = dma.done [#allocation4], 32
    $region97: #{tpu_custom_call.1} parent=1 // pred_fallthru
      _
    %9013 = vsyncpa [#allocation3], 1
    %9014 = vsyncpa [#allocation6], 1
    %9015 = vsyncpa [#allocation9], 1
    %9016 = vsyncpa [#allocation12], 1
    %9017 = vsyncpa [#allocation4], 1

</llo_original>
